<compile_context>
chip_gen: v6e
topology: v6e:2x2x1
jax: 0.10.0
libtpu: 0.0.40
codegen_flags: <defaults>
</compile_context>

<pallas_src>
import jax
import jax.numpy as jnp
import numpy as np
from jax.experimental import pallas as pl
from jax.experimental.pallas import tpu as pltpu


def _silu(x):
    return x * jax.nn.sigmoid(x)


def _pick_tm(M, cap=1024):
    """Largest power-of-two row tile (<= cap) that divides M; per-step overhead amortization."""
    for tm in (1024, 512, 256, 128, 64, 32, 16, 8):
        if tm <= cap and M % tm == 0:
            return tm
    return M


# ------------------------------------------------------------------
# cv1: 1x1 conv (c1 -> 2c) + BN + SiLU, directly emitting the two chunks (a, b).
# ------------------------------------------------------------------
def _cv1_split_kernel(x_ref, wa_ref, wb_ref, sa_ref, ba_ref, sb_ref, bb_ref,
                      a_ref, b_ref):
    x = x_ref[...]
    ya = jnp.dot(x, wa_ref[...], preferred_element_type=jnp.float32)
    a_ref[...] = _silu(ya * sa_ref[...] + ba_ref[...]).astype(a_ref.dtype)
    yb = jnp.dot(x, wb_ref[...], preferred_element_type=jnp.float32)
    b_ref[...] = _silu(yb * sb_ref[...] + bb_ref[...]).astype(b_ref.dtype)


def cv1_split(x_nhwc, w, scale, bias):
    N, H, W, Cin = x_nhwc.shape
    c = w.shape[1] // 2                      # static (from weight shape)
    M = N * H * W
    tm = _pick_tm(M)
    x2 = x_nhwc.reshape(M, Cin)
    wa, wb = w[:, :c], w[:, c:]
    sa, sb = scale[:c].reshape(1, c), scale[c:].reshape(1, c)
    ba, bb = bias[:c].reshape(1, c), bias[c:].reshape(1, c)
    a2, b2 = pl.pallas_call(
        _cv1_split_kernel,
        out_shape=(jax.ShapeDtypeStruct((M, c), x_nhwc.dtype),
                   jax.ShapeDtypeStruct((M, c), x_nhwc.dtype)),
        grid=(M // tm,),
        in_specs=[
            pl.BlockSpec((tm, Cin), lambda i: (i, 0)),
            pl.BlockSpec((Cin, c), lambda i: (0, 0)),
            pl.BlockSpec((Cin, c), lambda i: (0, 0)),
            pl.BlockSpec((1, c), lambda i: (0, 0)),
            pl.BlockSpec((1, c), lambda i: (0, 0)),
            pl.BlockSpec((1, c), lambda i: (0, 0)),
            pl.BlockSpec((1, c), lambda i: (0, 0)),
        ],
        out_specs=(pl.BlockSpec((tm, c), lambda i: (i, 0)),
                   pl.BlockSpec((tm, c), lambda i: (i, 0))),
        compiler_params=pltpu.CompilerParams(dimension_semantics=("parallel",)),
    )(x2, wa, wb, sa, ba, sb, bb)
    return a2.reshape(N, H, W, c), b2.reshape(N, H, W, c)


# ------------------------------------------------------------------
# cv2: concat-free 1x1 conv: cat([a, b], ch) @ W  ==  a @ W_top + b @ W_bottom.
# ------------------------------------------------------------------
def _cv2_merge_kernel(a_ref, b_ref, wa_ref, wb_ref, s_ref, bias_ref, o_ref):
    y = jnp.dot(a_ref[...], wa_ref[...], preferred_element_type=jnp.float32)
    y = y + jnp.dot(b_ref[...], wb_ref[...], preferred_element_type=jnp.float32)
    o_ref[...] = _silu(y * s_ref[...] + bias_ref[...]).astype(o_ref.dtype)


def cv2_merge(a_nhwc, b_nhwc, w, scale, bias):
    N, H, W, c = a_nhwc.shape
    Cout = w.shape[1]
    M = N * H * W
    tm = _pick_tm(M)
    a2 = a_nhwc.reshape(M, c)
    b2 = b_nhwc.reshape(M, c)
    wa, wb = w[:c], w[c:]
    out = pl.pallas_call(
        _cv2_merge_kernel,
        out_shape=jax.ShapeDtypeStruct((M, Cout), a_nhwc.dtype),
        grid=(M // tm,),
        in_specs=[
            pl.BlockSpec((tm, c), lambda i: (i, 0)),
            pl.BlockSpec((tm, c), lambda i: (i, 0)),
            pl.BlockSpec((c, Cout), lambda i: (0, 0)),
            pl.BlockSpec((c, Cout), lambda i: (0, 0)),
            pl.BlockSpec((1, Cout), lambda i: (0, 0)),
            pl.BlockSpec((1, Cout), lambda i: (0, 0)),
        ],
        out_specs=pl.BlockSpec((tm, Cout), lambda i: (i, 0)),
        compiler_params=pltpu.CompilerParams(dimension_semantics=("parallel",)),
    )(a2, b2, wa, wb, scale.reshape(1, Cout), bias.reshape(1, Cout))
    return out.reshape(N, H, W, Cout)


# ------------------------------------------------------------------
# Fused Bottleneck: out = a + SiLU(BN(conv3x3_2(SiLU(BN(conv3x3_1(a))))))
# Both 3x3 convs done inside ONE kernel via im2col single matmuls (K = 9*C);
# the intermediate activation and the zero halo never touch HBM.
# ------------------------------------------------------------------
def _pad1_hw(x):
    """(H, W, C) -> (H+2, W+2, C) with a zero 1-pixel halo, built in-register."""
    H, W, C = x.shape
    zc = jnp.zeros((H, 1, C), x.dtype)
    xw = jnp.concatenate([zc, x, zc], axis=1)
    zr = jnp.zeros((1, W + 2, C), x.dtype)
    return jnp.concatenate([zr, xw, zr], axis=0)


def _conv3_silu(x, w_r, s, b):
    """3x3 'same' conv as a single im2col matmul, then folded-BN affine + SiLU."""
    H, W, C = x.shape
    Cout = w_r.shape[1]
    xp = _pad1_hw(x)
    cols = jnp.concatenate(
        [xp[dy:dy + H, dx:dx + W, :] for dy in range(3) for dx in range(3)],
        axis=-1)                               # (H, W, 9*C) — matches w.reshape(9*C, Cout)
    patches = cols.reshape(H * W, 9 * C)
    y = jnp.dot(patches, w_r, preferred_element_type=jnp.float32)
    y = y * s + b
    return _silu(y).reshape(H, W, Cout)


def _bottleneck_kernel(a_ref, w1_ref, s1_ref, b1_ref, w2_ref, s2_ref, b2_ref, o_ref):
    a = a_ref[0].astype(jnp.float32)
    t = _conv3_silu(a, w1_ref[...], s1_ref[...], b1_ref[...])
    y = _conv3_silu(t, w2_ref[...], s2_ref[...], b2_ref[...])
    o_ref[0] = (a + y).astype(o_ref.dtype)


def bottleneck_fused(a_nhwc, w1, s1, b1, w2, s2, b2):
    N, H, W, C = a_nhwc.shape
    w1r = w1.reshape(9 * C, C)     # HWIO (3,3,C,C) -> (9*C, C), row = dy*3*C + dx*C + cin
    w2r = w2.reshape(9 * C, C)
    full = lambda n: (0, 0)
    return pl.pallas_call(
        _bottleneck_kernel,
        out_shape=jax.ShapeDtypeStruct((N, H, W, C), a_nhwc.dtype),
        grid=(N,),
        in_specs=[
            pl.BlockSpec((1, H, W, C), lambda n: (n, 0, 0, 0)),
            pl.BlockSpec((9 * C, C), full),
            pl.BlockSpec((1, C), full),
            pl.BlockSpec((1, C), full),
            pl.BlockSpec((9 * C, C), full),
            pl.BlockSpec((1, C), full),
            pl.BlockSpec((1, C), full),
        ],
        out_specs=pl.BlockSpec((1, H, W, C), lambda n: (n, 0, 0, 0)),
        compiler_params=pltpu.CompilerParams(dimension_semantics=("parallel",)),
    )(a_nhwc, w1r, s1.reshape(1, C), b1.reshape(1, C),
      w2r, s2.reshape(1, C), b2.reshape(1, C))


# ------------------------------------------------------------------
# C2 module: parameters + forward
# ------------------------------------------------------------------
def init_c2_params(key, c1, c2, n=1, e=0.5):
    c = int(c2 * e)

    def conv_params(key, cin, cout, k):
        k1, k2, k3 = jax.random.split(key, 3)
        if k == 1:
            w = 0.1 * jax.random.normal(k1, (cin, cout), jnp.float32)
        else:
            w = 0.1 * jax.random.normal(k1, (k, k, cin, cout), jnp.float32)
        # folded BatchNorm: per-output-channel scale & bias
        s = jax.random.uniform(k2, (cout,), jnp.float32, 0.5, 1.5)
        b = 0.1 * jax.random.normal(k3, (cout,), jnp.float32)
        return w, s, b

    keys = jax.random.split(key, 2 + 2 * n)
    cv1_w, cv1_s, cv1_b = conv_params(keys[0], c1, 2 * c, 1)
    cv2_w, cv2_s, cv2_b = conv_params(keys[1], 2 * c, c2, 1)
    m = []
    for i in range(n):
        w1, s1, b1 = conv_params(keys[2 + 2 * i], c, c, 3)
        w2, s2, b2 = conv_params(keys[3 + 2 * i], c, c, 3)
        m.append(dict(w1=w1, s1=s1, b1=b1, w2=w2, s2=s2, b2=b2))
    # NOTE: `c` is intentionally NOT stored in params (it would become a traced int under jit);
    # it is derived statically from weight shapes everywhere it is needed.
    return dict(cv1_w=cv1_w, cv1_s=cv1_s, cv1_b=cv1_b,
                cv2_w=cv2_w, cv2_s=cv2_s, cv2_b=cv2_b, m=m)


def c2_forward(x_nchw, params):
    """Pallas implementation of C2.forward. Input/output are NCHW (PyTorch convention)."""
    x = jnp.transpose(x_nchw, (0, 2, 3, 1))   # NCHW -> NHWC
    # cv1 + chunk(2, channel) fused into one pallas_call (two outputs).
    a, b = cv1_split(x, params["cv1_w"], params["cv1_s"], params["cv1_b"])
    # n Bottlenecks(c, c, shortcut=True, e=1.0); each is one fused pallas_call.
    for bw in params["m"]:
        a = bottleneck_fused(a, bw["w1"], bw["s1"], bw["b1"],
                             bw["w2"], bw["s2"], bw["b2"])
    # cat((m(a), b), channel) + cv2 fused into one pallas_call (two inputs, split weight).
    out = cv2_merge(a, b, params["cv2_w"], params["cv2_s"], params["cv2_b"])
    return jnp.transpose(out, (0, 3, 1, 2))   # NHWC -> NCHW


# ------------------------------------------------------------------
# Pure-JAX reference (lax.conv) for correctness checking.
# ------------------------------------------------------------------
def _ref_conv(x, w_oihw, s, b, pad):
    y = jax.lax.conv_general_dilated(
        x, w_oihw, (1, 1), pad, dimension_numbers=("NCHW", "OIHW", "NCHW"))
    y = y * s[None, :, None, None] + b[None, :, None, None]
    return _silu(y)


def c2_reference(x_nchw, params):
    c = params["cv1_s"].shape[0] // 2
    w1 = params["cv1_w"].T[:, :, None, None]           # (Cin,Cout) -> OIHW
    y1 = _ref_conv(x_nchw, w1, params["cv1_s"], params["cv1_b"], "VALID")
    a, b = y1[:, :c], y1[:, c:]
    for bw in params["m"]:
        wb1 = jnp.transpose(bw["w1"], (3, 2, 0, 1))     # HWIO -> OIHW
        wb2 = jnp.transpose(bw["w2"], (3, 2, 0, 1))
        t = _ref_conv(a, wb1, bw["s1"], bw["b1"], ((1, 1), (1, 1)))
        a = a + _ref_conv(t, wb2, bw["s2"], bw["b2"], ((1, 1), (1, 1)))
    z = jnp.concatenate([a, b], axis=1)
    w2 = params["cv2_w"].T[:, :, None, None]
    return _ref_conv(z, w2, params["cv2_s"], params["cv2_b"], "VALID")


if __name__ == "__main__":
    key = jax.random.PRNGKey(0)
    k_x, k_p = jax.random.split(key)

    N, C1, C2_out, H, W = 2, 8, 8, 16, 16
    x = jax.random.normal(k_x, (N, C1, H, W), jnp.float32)
    params = init_c2_params(k_p, C1, C2_out, n=1, e=0.5)

    out = jax.jit(c2_forward)(x, params)
    out = jax.block_until_ready(out)

    ref = c2_reference(x, params)
    np.testing.assert_allclose(np.asarray(out), np.asarray(ref), rtol=1e-4, atol=1e-4)

    print("KERNEL_OK")
</pallas_src>

<mosaic_0001>
module attributes {stable_mosaic.version = 11 : i64} {
  func.func @_cv1_split_kernel(%arg0: i32, %arg1: memref<512x8xf32, #tpu.memory_space<vmem>>, %arg2: memref<8x4xf32, #tpu.memory_space<vmem>>, %arg3: memref<8x4xf32, #tpu.memory_space<vmem>>, %arg4: memref<1x4xf32, #tpu.memory_space<vmem>>, %arg5: memref<1x4xf32, #tpu.memory_space<vmem>>, %arg6: memref<1x4xf32, #tpu.memory_space<vmem>>, %arg7: memref<1x4xf32, #tpu.memory_space<vmem>>, %arg8: memref<512x4xf32, #tpu.memory_space<vmem>>, %arg9: memref<512x4xf32, #tpu.memory_space<vmem>>) attributes {dimension_semantics = [#tpu.dimension_semantics<parallel>], iteration_bounds = array<i64: 1>, scalar_prefetch = 0 : i64, scratch_operands = 0 : i64, tpu.core_type = #tpu.core_type<tc>, window_params = [{transform_indices = @transform_0, window_bounds = array<i64: 512, 8>}, {pipeline_mode = #tpu.pipeline_mode<synchronous>, transform_indices = @transform_1, window_bounds = array<i64: 8, 4>}, {pipeline_mode = #tpu.pipeline_mode<synchronous>, transform_indices = @transform_2, window_bounds = array<i64: 8, 4>}, {pipeline_mode = #tpu.pipeline_mode<synchronous>, transform_indices = @transform_3, window_bounds = array<i64: 1, 4>}, {pipeline_mode = #tpu.pipeline_mode<synchronous>, transform_indices = @transform_4, window_bounds = array<i64: 1, 4>}, {pipeline_mode = #tpu.pipeline_mode<synchronous>, transform_indices = @transform_5, window_bounds = array<i64: 1, 4>}, {pipeline_mode = #tpu.pipeline_mode<synchronous>, transform_indices = @transform_6, window_bounds = array<i64: 1, 4>}, {transform_indices = @transform_7, window_bounds = array<i64: 512, 4>}, {transform_indices = @transform_8, window_bounds = array<i64: 512, 4>}]} {
    %c0 = arith.constant 0 : index
    %c0_0 = arith.constant 0 : index
    %0 = vector.load %arg1[%c0, %c0_0] : memref<512x8xf32, #tpu.memory_space<vmem>>, vector<512x8xf32>
    %c0_1 = arith.constant 0 : index
    %c0_2 = arith.constant 0 : index
    %1 = vector.load %arg2[%c0_1, %c0_2] : memref<8x4xf32, #tpu.memory_space<vmem>>, vector<8x4xf32>
    %cst = arith.constant dense<0.000000e+00> : vector<512x4xf32>
    %2 = tpu.matmul %0, %1, %cst {dimension_numbers = #tpu.dot_dimension_numbers<[1], [0], [0], [1], [0, 0, 1, 1], [], []>} : vector<512x8xf32>, vector<8x4xf32>, vector<512x4xf32> -> vector<512x4xf32>
    %c0_3 = arith.constant 0 : index
    %c0_4 = arith.constant 0 : index
    %3 = vector.load %arg4[%c0_3, %c0_4] : memref<1x4xf32, #tpu.memory_space<vmem>>, vector<1x4xf32>
    %4 = vector.broadcast %3 : vector<1x4xf32> to vector<512x4xf32>
    %5 = arith.mulf %2, %4 : vector<512x4xf32>
    %c0_5 = arith.constant 0 : index
    %c0_6 = arith.constant 0 : index
    %6 = vector.load %arg5[%c0_5, %c0_6] : memref<1x4xf32, #tpu.memory_space<vmem>>, vector<1x4xf32>
    %7 = vector.broadcast %6 : vector<1x4xf32> to vector<512x4xf32>
    %8 = arith.addf %5, %7 : vector<512x4xf32>
    %9 = arith.negf %8 : vector<512x4xf32>
    %10 = math.exp %9 : vector<512x4xf32>
    %cst_7 = arith.constant 1.000000e+00 : f32
    %11 = vector.broadcast %cst_7 : f32 to vector<512x4xf32>
    %12 = arith.addf %11, %10 : vector<512x4xf32>
    %13 = arith.divf %11, %12 : vector<512x4xf32>
    %14 = arith.mulf %8, %13 : vector<512x4xf32>
    %c0_8 = arith.constant 0 : index
    %c0_9 = arith.constant 0 : index
    %15 = vector.load %arg8[%c0_8, %c0_9] : memref<512x4xf32, #tpu.memory_space<vmem>>, vector<512x4xf32>
    tpu.vector_store %arg8[%c0_8, %c0_9], %14 {strides = array<i32>} : memref<512x4xf32, #tpu.memory_space<vmem>>, vector<512x4xf32>,
    %c0_10 = arith.constant 0 : index
    %c0_11 = arith.constant 0 : index
    %16 = vector.load %arg3[%c0_10, %c0_11] : memref<8x4xf32, #tpu.memory_space<vmem>>, vector<8x4xf32>
    %cst_12 = arith.constant dense<0.000000e+00> : vector<512x4xf32>
    %17 = tpu.matmul %0, %16, %cst_12 {dimension_numbers = #tpu.dot_dimension_numbers<[1], [0], [0], [1], [0, 0, 1, 1], [], []>} : vector<512x8xf32>, vector<8x4xf32>, vector<512x4xf32> -> vector<512x4xf32>
    %c0_13 = arith.constant 0 : index
    %c0_14 = arith.constant 0 : index
    %18 = vector.load %arg6[%c0_13, %c0_14] : memref<1x4xf32, #tpu.memory_space<vmem>>, vector<1x4xf32>
    %19 = vector.broadcast %18 : vector<1x4xf32> to vector<512x4xf32>
    %20 = arith.mulf %17, %19 : vector<512x4xf32>
    %c0_15 = arith.constant 0 : index
    %c0_16 = arith.constant 0 : index
    %21 = vector.load %arg7[%c0_15, %c0_16] : memref<1x4xf32, #tpu.memory_space<vmem>>, vector<1x4xf32>
    %22 = vector.broadcast %21 : vector<1x4xf32> to vector<512x4xf32>
    %23 = arith.addf %20, %22 : vector<512x4xf32>
    %24 = arith.negf %23 : vector<512x4xf32>
    %25 = math.exp %24 : vector<512x4xf32>
    %cst_17 = arith.constant 1.000000e+00 : f32
    %26 = vector.broadcast %cst_17 : f32 to vector<512x4xf32>
    %27 = arith.addf %26, %25 : vector<512x4xf32>
    %28 = arith.divf %26, %27 : vector<512x4xf32>
    %29 = arith.mulf %23, %28 : vector<512x4xf32>
    %c0_18 = arith.constant 0 : index
    %c0_19 = arith.constant 0 : index
    %30 = vector.load %arg9[%c0_18, %c0_19] : memref<512x4xf32, #tpu.memory_space<vmem>>, vector<512x4xf32>
    tpu.vector_store %arg9[%c0_18, %c0_19], %29 {strides = array<i32>} : memref<512x4xf32, #tpu.memory_space<vmem>>, vector<512x4xf32>,
    return
  }
  func.func @transform_0(%arg0: i32) -> (i32, i32) {
    %c0_i32 = arith.constant 0 : i32
    %c0_i32_0 = arith.constant 0 : i32
    return %arg0, %c0_i32 : i32, i32
  }
  func.func @transform_1(%arg0: i32) -> (i32, i32) {
    %c0_i32 = arith.constant 0 : i32
    %c0_i32_0 = arith.constant 0 : i32
    %c0_i32_1 = arith.constant 0 : i32
    return %c0_i32, %c0_i32_0 : i32, i32
  }
  func.func @transform_2(%arg0: i32) -> (i32, i32) {
    %c0_i32 = arith.constant 0 : i32
    %c0_i32_0 = arith.constant 0 : i32
    %c0_i32_1 = arith.constant 0 : i32
    return %c0_i32, %c0_i32_0 : i32, i32
  }
  func.func @transform_3(%arg0: i32) -> (i32, i32) {
    %c0_i32 = arith.constant 0 : i32
    %c0_i32_0 = arith.constant 0 : i32
    %c0_i32_1 = arith.constant 0 : i32
    return %c0_i32, %c0_i32_0 : i32, i32
  }
  func.func @transform_4(%arg0: i32) -> (i32, i32) {
    %c0_i32 = arith.constant 0 : i32
    %c0_i32_0 = arith.constant 0 : i32
    %c0_i32_1 = arith.constant 0 : i32
    return %c0_i32, %c0_i32_0 : i32, i32
  }
  func.func @transform_5(%arg0: i32) -> (i32, i32) {
    %c0_i32 = arith.constant 0 : i32
    %c0_i32_0 = arith.constant 0 : i32
    %c0_i32_1 = arith.constant 0 : i32
    return %c0_i32, %c0_i32_0 : i32, i32
  }
  func.func @transform_6(%arg0: i32) -> (i32, i32) {
    %c0_i32 = arith.constant 0 : i32
    %c0_i32_0 = arith.constant 0 : i32
    %c0_i32_1 = arith.constant 0 : i32
    return %c0_i32, %c0_i32_0 : i32, i32
  }
  func.func @transform_7(%arg0: i32) -> (i32, i32) {
    %c0_i32 = arith.constant 0 : i32
    %c0_i32_0 = arith.constant 0 : i32
    return %arg0, %c0_i32 : i32, i32
  }
  func.func @transform_8(%arg0: i32) -> (i32, i32) {
    %c0_i32 = arith.constant 0 : i32
    %c0_i32_0 = arith.constant 0 : i32
    return %arg0, %c0_i32 : i32, i32
  }
}

module attributes {stable_mosaic.version = 11 : i64} {
  func.func @_cv2_merge_kernel(%arg0: i32, %arg1: memref<512x4xf32, #tpu.memory_space<vmem>>, %arg2: memref<512x4xf32, #tpu.memory_space<vmem>>, %arg3: memref<4x8xf32, #tpu.memory_space<vmem>>, %arg4: memref<4x8xf32, #tpu.memory_space<vmem>>, %arg5: memref<1x8xf32, #tpu.memory_space<vmem>>, %arg6: memref<1x8xf32, #tpu.memory_space<vmem>>, %arg7: memref<512x8xf32, #tpu.memory_space<vmem>>) attributes {dimension_semantics = [#tpu.dimension_semantics<parallel>], iteration_bounds = array<i64: 1>, scalar_prefetch = 0 : i64, scratch_operands = 0 : i64, tpu.core_type = #tpu.core_type<tc>, window_params = [{transform_indices = @transform_0, window_bounds = array<i64: 512, 4>}, {transform_indices = @transform_1, window_bounds = array<i64: 512, 4>}, {pipeline_mode = #tpu.pipeline_mode<synchronous>, transform_indices = @transform_2, window_bounds = array<i64: 4, 8>}, {pipeline_mode = #tpu.pipeline_mode<synchronous>, transform_indices = @transform_3, window_bounds = array<i64: 4, 8>}, {pipeline_mode = #tpu.pipeline_mode<synchronous>, transform_indices = @transform_4, window_bounds = array<i64: 1, 8>}, {pipeline_mode = #tpu.pipeline_mode<synchronous>, transform_indices = @transform_5, window_bounds = array<i64: 1, 8>}, {transform_indices = @transform_6, window_bounds = array<i64: 512, 8>}]} {
    %c0 = arith.constant 0 : index
    %c0_0 = arith.constant 0 : index
    %0 = vector.load %arg1[%c0, %c0_0] : memref<512x4xf32, #tpu.memory_space<vmem>>, vector<512x4xf32>
    %c0_1 = arith.constant 0 : index
    %c0_2 = arith.constant 0 : index
    %1 = vector.load %arg3[%c0_1, %c0_2] : memref<4x8xf32, #tpu.memory_space<vmem>>, vector<4x8xf32>
    %cst = arith.constant dense<0.000000e+00> : vector<512x8xf32>
    %2 = tpu.matmul %0, %1, %cst {dimension_numbers = #tpu.dot_dimension_numbers<[1], [0], [0], [1], [0, 0, 1, 1], [], []>} : vector<512x4xf32>, vector<4x8xf32>, vector<512x8xf32> -> vector<512x8xf32>
    %c0_3 = arith.constant 0 : index
    %c0_4 = arith.constant 0 : index
    %3 = vector.load %arg2[%c0_3, %c0_4] : memref<512x4xf32, #tpu.memory_space<vmem>>, vector<512x4xf32>
    %c0_5 = arith.constant 0 : index
    %c0_6 = arith.constant 0 : index
    %4 = vector.load %arg4[%c0_5, %c0_6] : memref<4x8xf32, #tpu.memory_space<vmem>>, vector<4x8xf32>
    %cst_7 = arith.constant dense<0.000000e+00> : vector<512x8xf32>
    %5 = tpu.matmul %3, %4, %cst_7 {dimension_numbers = #tpu.dot_dimension_numbers<[1], [0], [0], [1], [0, 0, 1, 1], [], []>} : vector<512x4xf32>, vector<4x8xf32>, vector<512x8xf32> -> vector<512x8xf32>
    %6 = arith.addf %2, %5 : vector<512x8xf32>
    %c0_8 = arith.constant 0 : index
    %c0_9 = arith.constant 0 : index
    %7 = vector.load %arg5[%c0_8, %c0_9] : memref<1x8xf32, #tpu.memory_space<vmem>>, vector<1x8xf32>
    %8 = vector.broadcast %7 : vector<1x8xf32> to vector<512x8xf32>
    %9 = arith.mulf %6, %8 : vector<512x8xf32>
    %c0_10 = arith.constant 0 : index
    %c0_11 = arith.constant 0 : index
    %10 = vector.load %arg6[%c0_10, %c0_11] : memref<1x8xf32, #tpu.memory_space<vmem>>, vector<1x8xf32>
    %11 = vector.broadcast %10 : vector<1x8xf32> to vector<512x8xf32>
    %12 = arith.addf %9, %11 : vector<512x8xf32>
    %13 = arith.negf %12 : vector<512x8xf32>
    %14 = math.exp %13 : vector<512x8xf32>
    %cst_12 = arith.constant 1.000000e+00 : f32
    %15 = vector.broadcast %cst_12 : f32 to vector<512x8xf32>
    %16 = arith.addf %15, %14 : vector<512x8xf32>
    %17 = arith.divf %15, %16 : vector<512x8xf32>
    %18 = arith.mulf %12, %17 : vector<512x8xf32>
    %c0_13 = arith.constant 0 : index
    %c0_14 = arith.constant 0 : index
    %19 = vector.load %arg7[%c0_13, %c0_14] : memref<512x8xf32, #tpu.memory_space<vmem>>, vector<512x8xf32>
    tpu.vector_store %arg7[%c0_13, %c0_14], %18 {strides = array<i32>} : memref<512x8xf32, #tpu.memory_space<vmem>>, vector<512x8xf32>,
    return
  }
  func.func @transform_0(%arg0: i32) -> (i32, i32) {
    %c0_i32 = arith.constant 0 : i32
    %c0_i32_0 = arith.constant 0 : i32
    return %arg0, %c0_i32 : i32, i32
  }
  func.func @transform_1(%arg0: i32) -> (i32, i32) {
    %c0_i32 = arith.constant 0 : i32
    %c0_i32_0 = arith.constant 0 : i32
    return %arg0, %c0_i32 : i32, i32
  }
  func.func @transform_2(%arg0: i32) -> (i32, i32) {
    %c0_i32 = arith.constant 0 : i32
    %c0_i32_0 = arith.constant 0 : i32
    %c0_i32_1 = arith.constant 0 : i32
    return %c0_i32, %c0_i32_0 : i32, i32
  }
  func.func @transform_3(%arg0: i32) -> (i32, i32) {
    %c0_i32 = arith.constant 0 : i32
    %c0_i32_0 = arith.constant 0 : i32
    %c0_i32_1 = arith.constant 0 : i32
    return %c0_i32, %c0_i32_0 : i32, i32
  }
  func.func @transform_4(%arg0: i32) -> (i32, i32) {
    %c0_i32 = arith.constant 0 : i32
    %c0_i32_0 = arith.constant 0 : i32
    %c0_i32_1 = arith.constant 0 : i32
    return %c0_i32, %c0_i32_0 : i32, i32
  }
  func.func @transform_5(%arg0: i32) -> (i32, i32) {
    %c0_i32 = arith.constant 0 : i32
    %c0_i32_0 = arith.constant 0 : i32
    %c0_i32_1 = arith.constant 0 : i32
    return %c0_i32, %c0_i32_0 : i32, i32
  }
  func.func @transform_6(%arg0: i32) -> (i32, i32) {
    %c0_i32 = arith.constant 0 : i32
    %c0_i32_0 = arith.constant 0 : i32
    return %arg0, %c0_i32 : i32, i32
  }
}

module attributes {stable_mosaic.version = 11 : i64} {
  func.func @_bottleneck_kernel(%arg0: i32, %arg1: memref<1x16x16x4xf32, #tpu.memory_space<vmem>>, %arg2: memref<36x4xf32, #tpu.memory_space<vmem>>, %arg3: memref<1x4xf32, #tpu.memory_space<vmem>>, %arg4: memref<1x4xf32, #tpu.memory_space<vmem>>, %arg5: memref<36x4xf32, #tpu.memory_space<vmem>>, %arg6: memref<1x4xf32, #tpu.memory_space<vmem>>, %arg7: memref<1x4xf32, #tpu.memory_space<vmem>>, %arg8: memref<1x16x16x4xf32, #tpu.memory_space<vmem>>) attributes {dimension_semantics = [#tpu.dimension_semantics<parallel>], iteration_bounds = array<i64: 2>, scalar_prefetch = 0 : i64, scratch_operands = 0 : i64, tpu.core_type = #tpu.core_type<tc>, window_params = [{transform_indices = @transform_0, window_bounds = array<i64: 1, 16, 16, 4>}, {pipeline_mode = #tpu.pipeline_mode<synchronous>, transform_indices = @transform_1, window_bounds = array<i64: 36, 4>}, {pipeline_mode = #tpu.pipeline_mode<synchronous>, transform_indices = @transform_2, window_bounds = array<i64: 1, 4>}, {pipeline_mode = #tpu.pipeline_mode<synchronous>, transform_indices = @transform_3, window_bounds = array<i64: 1, 4>}, {pipeline_mode = #tpu.pipeline_mode<synchronous>, transform_indices = @transform_4, window_bounds = array<i64: 36, 4>}, {pipeline_mode = #tpu.pipeline_mode<synchronous>, transform_indices = @transform_5, window_bounds = array<i64: 1, 4>}, {pipeline_mode = #tpu.pipeline_mode<synchronous>, transform_indices = @transform_6, window_bounds = array<i64: 1, 4>}, {transform_indices = @transform_7, window_bounds = array<i64: 1, 16, 16, 4>}]} {
    %c0 = arith.constant 0 : index
    %c0_0 = arith.constant 0 : index
    %c0_1 = arith.constant 0 : index
    %c0_2 = arith.constant 0 : index
    %0 = vector.load %arg1[%c0, %c0_0, %c0_1, %c0_2] : memref<1x16x16x4xf32, #tpu.memory_space<vmem>>, vector<1x16x16x4xf32>
    %1 = vector.shape_cast %0 : vector<1x16x16x4xf32> to vector<16x16x4xf32>
    %c0_3 = arith.constant 0 : index
    %c0_4 = arith.constant 0 : index
    %2 = vector.load %arg2[%c0_3, %c0_4] : memref<36x4xf32, #tpu.memory_space<vmem>>, vector<36x4xf32>
    %c0_5 = arith.constant 0 : index
    %c0_6 = arith.constant 0 : index
    %3 = vector.load %arg3[%c0_5, %c0_6] : memref<1x4xf32, #tpu.memory_space<vmem>>, vector<1x4xf32>
    %c0_7 = arith.constant 0 : index
    %c0_8 = arith.constant 0 : index
    %4 = vector.load %arg4[%c0_7, %c0_8] : memref<1x4xf32, #tpu.memory_space<vmem>>, vector<1x4xf32>
    %cst = arith.constant 0.000000e+00 : f32
    %5 = vector.broadcast %cst : f32 to vector<16x1x4xf32>
    %6 = tpu.concatenate %5, %1, %5 in 1 : vector<16x1x4xf32>, vector<16x16x4xf32>, vector<16x1x4xf32> -> vector<16x18x4xf32>
    %cst_9 = arith.constant 0.000000e+00 : f32
    %7 = vector.broadcast %cst_9 : f32 to vector<1x18x4xf32>
    %8 = tpu.concatenate %7, %6, %7 in 0 : vector<1x18x4xf32>, vector<16x18x4xf32>, vector<1x18x4xf32> -> vector<18x18x4xf32>
    %9 = vector.extract_strided_slice %8 {offsets = [0, 0, 0], sizes = [16, 16, 4], strides = [1, 1, 1]} : vector<18x18x4xf32> to vector<16x16x4xf32>
    %10 = vector.extract_strided_slice %8 {offsets = [0, 1, 0], sizes = [16, 16, 4], strides = [1, 1, 1]} : vector<18x18x4xf32> to vector<16x16x4xf32>
    %11 = vector.extract_strided_slice %8 {offsets = [0, 2, 0], sizes = [16, 16, 4], strides = [1, 1, 1]} : vector<18x18x4xf32> to vector<16x16x4xf32>
    %12 = vector.extract_strided_slice %8 {offsets = [1, 0, 0], sizes = [16, 16, 4], strides = [1, 1, 1]} : vector<18x18x4xf32> to vector<16x16x4xf32>
    %13 = vector.extract_strided_slice %8 {offsets = [1, 1, 0], sizes = [16, 16, 4], strides = [1, 1, 1]} : vector<18x18x4xf32> to vector<16x16x4xf32>
    %14 = vector.extract_strided_slice %8 {offsets = [1, 2, 0], sizes = [16, 16, 4], strides = [1, 1, 1]} : vector<18x18x4xf32> to vector<16x16x4xf32>
    %15 = vector.extract_strided_slice %8 {offsets = [2, 0, 0], sizes = [16, 16, 4], strides = [1, 1, 1]} : vector<18x18x4xf32> to vector<16x16x4xf32>
    %16 = vector.extract_strided_slice %8 {offsets = [2, 1, 0], sizes = [16, 16, 4], strides = [1, 1, 1]} : vector<18x18x4xf32> to vector<16x16x4xf32>
    %17 = vector.extract_strided_slice %8 {offsets = [2, 2, 0], sizes = [16, 16, 4], strides = [1, 1, 1]} : vector<18x18x4xf32> to vector<16x16x4xf32>
    %18 = tpu.concatenate %9, %10, %11, %12, %13, %14, %15, %16, %17 in 2 : vector<16x16x4xf32>, vector<16x16x4xf32>, vector<16x16x4xf32>, vector<16x16x4xf32>, vector<16x16x4xf32>, vector<16x16x4xf32>, vector<16x16x4xf32>, vector<16x16x4xf32>, vector<16x16x4xf32> -> vector<16x16x36xf32>
    %19 = vector.shape_cast %18 : vector<16x16x36xf32> to vector<256x36xf32>
    %cst_10 = arith.constant dense<0.000000e+00> : vector<256x4xf32>
    %20 = tpu.matmul %19, %2, %cst_10 {dimension_numbers = #tpu.dot_dimension_numbers<[1], [0], [0], [1], [0, 0, 1, 1], [], []>} : vector<256x36xf32>, vector<36x4xf32>, vector<256x4xf32> -> vector<256x4xf32>
    %21 = vector.broadcast %3 : vector<1x4xf32> to vector<256x4xf32>
    %22 = arith.mulf %20, %21 : vector<256x4xf32>
    %23 = vector.broadcast %4 : vector<1x4xf32> to vector<256x4xf32>
    %24 = arith.addf %22, %23 : vector<256x4xf32>
    %25 = arith.negf %24 : vector<256x4xf32>
    %26 = math.exp %25 : vector<256x4xf32>
    %cst_11 = arith.constant 1.000000e+00 : f32
    %27 = vector.broadcast %cst_11 : f32 to vector<256x4xf32>
    %28 = arith.addf %27, %26 : vector<256x4xf32>
    %29 = arith.divf %27, %28 : vector<256x4xf32>
    %30 = arith.mulf %24, %29 : vector<256x4xf32>
    %31 = vector.shape_cast %30 : vector<256x4xf32> to vector<16x16x4xf32>
    %c0_12 = arith.constant 0 : index
    %c0_13 = arith.constant 0 : index
    %32 = vector.load %arg5[%c0_12, %c0_13] : memref<36x4xf32, #tpu.memory_space<vmem>>, vector<36x4xf32>
    %c0_14 = arith.constant 0 : index
    %c0_15 = arith.constant 0 : index
    %33 = vector.load %arg6[%c0_14, %c0_15] : memref<1x4xf32, #tpu.memory_space<vmem>>, vector<1x4xf32>
    %c0_16 = arith.constant 0 : index
    %c0_17 = arith.constant 0 : index
    %34 = vector.load %arg7[%c0_16, %c0_17] : memref<1x4xf32, #tpu.memory_space<vmem>>, vector<1x4xf32>
    %cst_18 = arith.constant 0.000000e+00 : f32
    %35 = vector.broadcast %cst_18 : f32 to vector<16x1x4xf32>
    %36 = tpu.concatenate %35, %31, %35 in 1 : vector<16x1x4xf32>, vector<16x16x4xf32>, vector<16x1x4xf32> -> vector<16x18x4xf32>
    %cst_19 = arith.constant 0.000000e+00 : f32
    %37 = vector.broadcast %cst_19 : f32 to vector<1x18x4xf32>
    %38 = tpu.concatenate %37, %36, %37 in 0 : vector<1x18x4xf32>, vector<16x18x4xf32>, vector<1x18x4xf32> -> vector<18x18x4xf32>
    %39 = vector.extract_strided_slice %38 {offsets = [0, 0, 0], sizes = [16, 16, 4], strides = [1, 1, 1]} : vector<18x18x4xf32> to vector<16x16x4xf32>
    %40 = vector.extract_strided_slice %38 {offsets = [0, 1, 0], sizes = [16, 16, 4], strides = [1, 1, 1]} : vector<18x18x4xf32> to vector<16x16x4xf32>
    %41 = vector.extract_strided_slice %38 {offsets = [0, 2, 0], sizes = [16, 16, 4], strides = [1, 1, 1]} : vector<18x18x4xf32> to vector<16x16x4xf32>
    %42 = vector.extract_strided_slice %38 {offsets = [1, 0, 0], sizes = [16, 16, 4], strides = [1, 1, 1]} : vector<18x18x4xf32> to vector<16x16x4xf32>
    %43 = vector.extract_strided_slice %38 {offsets = [1, 1, 0], sizes = [16, 16, 4], strides = [1, 1, 1]} : vector<18x18x4xf32> to vector<16x16x4xf32>
    %44 = vector.extract_strided_slice %38 {offsets = [1, 2, 0], sizes = [16, 16, 4], strides = [1, 1, 1]} : vector<18x18x4xf32> to vector<16x16x4xf32>
    %45 = vector.extract_strided_slice %38 {offsets = [2, 0, 0], sizes = [16, 16, 4], strides = [1, 1, 1]} : vector<18x18x4xf32> to vector<16x16x4xf32>
    %46 = vector.extract_strided_slice %38 {offsets = [2, 1, 0], sizes = [16, 16, 4], strides = [1, 1, 1]} : vector<18x18x4xf32> to vector<16x16x4xf32>
    %47 = vector.extract_strided_slice %38 {offsets = [2, 2, 0], sizes = [16, 16, 4], strides = [1, 1, 1]} : vector<18x18x4xf32> to vector<16x16x4xf32>
    %48 = tpu.concatenate %39, %40, %41, %42, %43, %44, %45, %46, %47 in 2 : vector<16x16x4xf32>, vector<16x16x4xf32>, vector<16x16x4xf32>, vector<16x16x4xf32>, vector<16x16x4xf32>, vector<16x16x4xf32>, vector<16x16x4xf32>, vector<16x16x4xf32>, vector<16x16x4xf32> -> vector<16x16x36xf32>
    %49 = vector.shape_cast %48 : vector<16x16x36xf32> to vector<256x36xf32>
    %cst_20 = arith.constant dense<0.000000e+00> : vector<256x4xf32>
    %50 = tpu.matmul %49, %32, %cst_20 {dimension_numbers = #tpu.dot_dimension_numbers<[1], [0], [0], [1], [0, 0, 1, 1], [], []>} : vector<256x36xf32>, vector<36x4xf32>, vector<256x4xf32> -> vector<256x4xf32>
    %51 = vector.broadcast %33 : vector<1x4xf32> to vector<256x4xf32>
    %52 = arith.mulf %50, %51 : vector<256x4xf32>
    %53 = vector.broadcast %34 : vector<1x4xf32> to vector<256x4xf32>
    %54 = arith.addf %52, %53 : vector<256x4xf32>
    %55 = arith.negf %54 : vector<256x4xf32>
    %56 = math.exp %55 : vector<256x4xf32>
    %cst_21 = arith.constant 1.000000e+00 : f32
    %57 = vector.broadcast %cst_21 : f32 to vector<256x4xf32>
    %58 = arith.addf %57, %56 : vector<256x4xf32>
    %59 = arith.divf %57, %58 : vector<256x4xf32>
    %60 = arith.mulf %54, %59 : vector<256x4xf32>
    %61 = vector.shape_cast %60 : vector<256x4xf32> to vector<16x16x4xf32>
    %62 = arith.addf %1, %61 : vector<16x16x4xf32>
    %c0_22 = arith.constant 0 : index
    %c0_23 = arith.constant 0 : index
    %c0_24 = arith.constant 0 : index
    %c0_25 = arith.constant 0 : index
    %63 = vector.load %arg8[%c0_22, %c0_23, %c0_24, %c0_25] : memref<1x16x16x4xf32, #tpu.memory_space<vmem>>, vector<1x16x16x4xf32>
    %64 = vector.shape_cast %63 : vector<1x16x16x4xf32> to vector<16x16x4xf32>
    %65 = vector.shape_cast %62 : vector<16x16x4xf32> to vector<1x16x16x4xf32>
    tpu.vector_store %arg8[%c0_22, %c0_23, %c0_24, %c0_25], %65 {strides = array<i32>} : memref<1x16x16x4xf32, #tpu.memory_space<vmem>>, vector<1x16x16x4xf32>,
    return
  }
  func.func @transform_0(%arg0: i32) -> (i32, i32, i32, i32) {
    %c0_i32 = arith.constant 0 : i32
    %c0_i32_0 = arith.constant 0 : i32
    %c0_i32_1 = arith.constant 0 : i32
    %c0_i32_2 = arith.constant 0 : i32
    return %arg0, %c0_i32, %c0_i32_0, %c0_i32_1 : i32, i32, i32, i32
  }
  func.func @transform_1(%arg0: i32) -> (i32, i32) {
    %c0_i32 = arith.constant 0 : i32
    %c0_i32_0 = arith.constant 0 : i32
    %c0_i32_1 = arith.constant 0 : i32
    return %c0_i32, %c0_i32_0 : i32, i32
  }
  func.func @transform_2(%arg0: i32) -> (i32, i32) {
    %c0_i32 = arith.constant 0 : i32
    %c0_i32_0 = arith.constant 0 : i32
    %c0_i32_1 = arith.constant 0 : i32
    return %c0_i32, %c0_i32_0 : i32, i32
  }
  func.func @transform_3(%arg0: i32) -> (i32, i32) {
    %c0_i32 = arith.constant 0 : i32
    %c0_i32_0 = arith.constant 0 : i32
    %c0_i32_1 = arith.constant 0 : i32
    return %c0_i32, %c0_i32_0 : i32, i32
  }
  func.func @transform_4(%arg0: i32) -> (i32, i32) {
    %c0_i32 = arith.constant 0 : i32
    %c0_i32_0 = arith.constant 0 : i32
    %c0_i32_1 = arith.constant 0 : i32
    return %c0_i32, %c0_i32_0 : i32, i32
  }
  func.func @transform_5(%arg0: i32) -> (i32, i32) {
    %c0_i32 = arith.constant 0 : i32
    %c0_i32_0 = arith.constant 0 : i32
    %c0_i32_1 = arith.constant 0 : i32
    return %c0_i32, %c0_i32_0 : i32, i32
  }
  func.func @transform_6(%arg0: i32) -> (i32, i32) {
    %c0_i32 = arith.constant 0 : i32
    %c0_i32_0 = arith.constant 0 : i32
    %c0_i32_1 = arith.constant 0 : i32
    return %c0_i32, %c0_i32_0 : i32, i32
  }
  func.func @transform_7(%arg0: i32) -> (i32, i32, i32, i32) {
    %c0_i32 = arith.constant 0 : i32
    %c0_i32_0 = arith.constant 0 : i32
    %c0_i32_1 = arith.constant 0 : i32
    %c0_i32_2 = arith.constant 0 : i32
    return %arg0, %c0_i32, %c0_i32_0, %c0_i32_1 : i32, i32, i32, i32
  }
}

</mosaic_0001>

<llo_original>
// kernel: c2_forward.3
$region0: #{c2_forward.3}
  #allocation0 [shape = 'u32[]', space=smem, size = 0x4, offset = 0x4, fixed_abs, tag = 'smem constant byte address 0x4 - core index']
  #allocation1 [shape = 'u32[144,128]{1,0:T(1,128)}', space=vmem, size = 0x12000, scoped, tag = 'internal scratch']
  %s0 = inlined_call_operand.vmem [shape: f32[512,8], index: 0, kind: input, shape index: {}]
  %s1 = inlined_call_operand.vmem [shape: f32[8,4], index: 1, kind: input, shape index: {}]
  %s2 = inlined_call_operand.vmem [shape: f32[8,4], index: 2, kind: input, shape index: {}]
  %s3 = inlined_call_operand.vmem [shape: f32[1,4], index: 3, kind: input, shape index: {}]
  %s4 = inlined_call_operand.vmem [shape: f32[1,4], index: 4, kind: input, shape index: {}]
  %s5 = inlined_call_operand.vmem [shape: f32[1,4], index: 5, kind: input, shape index: {}]
  %s6 = inlined_call_operand.vmem [shape: f32[1,4], index: 6, kind: input, shape index: {}]
  %s7 = inlined_call_operand.vmem [shape: f32[512,4], index: 7, kind: output, shape index: {0}]
  %s8 = inlined_call_operand.vmem [shape: f32[512,4], index: 8, kind: output, shape index: {1}]
  %9 = xla_tuple %s7, %s8
  %s10 = sld [smem:[#allocation0]]
  $region46: #{c2_forward.3} parent=0
    _
  %s12 = ssub.s32 1, %s10
  %s13 = scalar_select 0, %s12, %s10
  // Predicated region
  $region2: #{c2_forward.3} parent=0 // pred_check
    _
  $region3: #{c2_forward.3} parent=0 // pred_check_branch
    %15 = sbr.rel (0) target = $region5
  $region4: #{c2_forward.3} parent=0 // pred_region
    _
  $region5: #{c2_forward.3} parent=0 // pred_fallthru
    _
  // Predicated region
  $region6: #{c2_forward.3} parent=0 // pred_check
    _
  $region7: #{c2_forward.3} parent=0 // pred_check_branch
    %17 = sbr.rel (0) target = $region9
  $region8: #{c2_forward.3} parent=0 // pred_region
    _
  $region9: #{c2_forward.3} parent=0 // pred_fallthru
    _
  // Predicated region
  $region10: #{c2_forward.3} parent=0 // pred_check
    _
  $region11: #{c2_forward.3} parent=0 // pred_check_branch
    %19 = sbr.rel (0) target = $region13
  $region12: #{c2_forward.3} parent=0 // pred_region
    _
  $region13: #{c2_forward.3} parent=0 // pred_fallthru
    _
  // Predicated region
  $region14: #{c2_forward.3} parent=0 // pred_check
    _
  $region15: #{c2_forward.3} parent=0 // pred_check_branch
    %21 = sbr.rel (0) target = $region17
  $region16: #{c2_forward.3} parent=0 // pred_region
    _
  $region17: #{c2_forward.3} parent=0 // pred_fallthru
    _
  // Predicated region
  $region18: #{c2_forward.3} parent=0 // pred_check
    _
  $region19: #{c2_forward.3} parent=0 // pred_check_branch
    %23 = sbr.rel (0) target = $region21
  $region20: #{c2_forward.3} parent=0 // pred_region
    _
  $region21: #{c2_forward.3} parent=0 // pred_fallthru
    _
  // Predicated region
  $region22: #{c2_forward.3} parent=0 // pred_check
    _
  $region23: #{c2_forward.3} parent=0 // pred_check_branch
    %25 = sbr.rel (0) target = $region25
  $region24: #{c2_forward.3} parent=0 // pred_region
    _
  $region25: #{c2_forward.3} parent=0 // pred_fallthru
    _
  // Predicated region
  $region26: #{c2_forward.3} parent=0 // pred_check
    _
  $region27: #{c2_forward.3} parent=0 // pred_check_branch
    %27 = sbr.rel (0) target = $region29
  $region28: #{c2_forward.3} parent=0 // pred_region
    _
  $region29: #{c2_forward.3} parent=0 // pred_fallthru
    _
  %v28 = vld [vmem:[%s0] sm:$0xff]
  %v29 = vld [vmem:[%s0 + $0x8] sm:$0xff]
  %v30 = vld [vmem:[%s0 + $0x10] sm:$0xff]
  %v31 = vld [vmem:[%s0 + $0x18] sm:$0xff]
  %v32 = vld [vmem:[%s0 + $0x20] sm:$0xff]
  %v33 = vld [vmem:[%s0 + $0x28] sm:$0xff]
  %v34 = vld [vmem:[%s0 + $0x30] sm:$0xff]
  %v35 = vld [vmem:[%s0 + $0x38] sm:$0xff]
  %v36 = vld [vmem:[%s0 + $0x40] sm:$0xff]
  %v37 = vld [vmem:[%s0 + $0x48] sm:$0xff]
  %v38 = vld [vmem:[%s0 + $0x50] sm:$0xff]
  %v39 = vld [vmem:[%s0 + $0x58] sm:$0xff]
  %v40 = vld [vmem:[%s0 + $0x60] sm:$0xff]
  %v41 = vld [vmem:[%s0 + $0x68] sm:$0xff]
  %v42 = vld [vmem:[%s0 + $0x70] sm:$0xff]
  %v43 = vld [vmem:[%s0 + $0x78] sm:$0xff]
  %v44 = vld [vmem:[%s0 + $0x80] sm:$0xff]
  %v45 = vld [vmem:[%s0 + $0x88] sm:$0xff]
  %v46 = vld [vmem:[%s0 + $0x90] sm:$0xff]
  %v47 = vld [vmem:[%s0 + $0x98] sm:$0xff]
  %v48 = vld [vmem:[%s0 + $0xa0] sm:$0xff]
  %v49 = vld [vmem:[%s0 + $0xa8] sm:$0xff]
  %v50 = vld [vmem:[%s0 + $0xb0] sm:$0xff]
  %v51 = vld [vmem:[%s0 + $0xb8] sm:$0xff]
  %v52 = vld [vmem:[%s0 + $0xc0] sm:$0xff]
  %v53 = vld [vmem:[%s0 + $0xc8] sm:$0xff]
  %v54 = vld [vmem:[%s0 + $0xd0] sm:$0xff]
  %v55 = vld [vmem:[%s0 + $0xd8] sm:$0xff]
  %v56 = vld [vmem:[%s0 + $0xe0] sm:$0xff]
  %v57 = vld [vmem:[%s0 + $0xe8] sm:$0xff]
  %v58 = vld [vmem:[%s0 + $0xf0] sm:$0xff]
  %v59 = vld [vmem:[%s0 + $0xf8] sm:$0xff]
  %v60 = vld [vmem:[%s0 + $0x100] sm:$0xff]
  %v61 = vld [vmem:[%s0 + $0x108] sm:$0xff]
  %v62 = vld [vmem:[%s0 + $0x110] sm:$0xff]
  %v63 = vld [vmem:[%s0 + $0x118] sm:$0xff]
  %v64 = vld [vmem:[%s0 + $0x120] sm:$0xff]
  %v65 = vld [vmem:[%s0 + $0x128] sm:$0xff]
  %v66 = vld [vmem:[%s0 + $0x130] sm:$0xff]
  %v67 = vld [vmem:[%s0 + $0x138] sm:$0xff]
  %v68 = vld [vmem:[%s0 + $0x140] sm:$0xff]
  %v69 = vld [vmem:[%s0 + $0x148] sm:$0xff]
  %v70 = vld [vmem:[%s0 + $0x150] sm:$0xff]
  %v71 = vld [vmem:[%s0 + $0x158] sm:$0xff]
  %v72 = vld [vmem:[%s0 + $0x160] sm:$0xff]
  %v73 = vld [vmem:[%s0 + $0x168] sm:$0xff]
  %v74 = vld [vmem:[%s0 + $0x170] sm:$0xff]
  %v75 = vld [vmem:[%s0 + $0x178] sm:$0xff]
  %v76 = vld [vmem:[%s0 + $0x180] sm:$0xff]
  %v77 = vld [vmem:[%s0 + $0x188] sm:$0xff]
  %v78 = vld [vmem:[%s0 + $0x190] sm:$0xff]
  %v79 = vld [vmem:[%s0 + $0x198] sm:$0xff]
  %v80 = vld [vmem:[%s0 + $0x1a0] sm:$0xff]
  %v81 = vld [vmem:[%s0 + $0x1a8] sm:$0xff]
  %v82 = vld [vmem:[%s0 + $0x1b0] sm:$0xff]
  %v83 = vld [vmem:[%s0 + $0x1b8] sm:$0xff]
  %v84 = vld [vmem:[%s0 + $0x1c0] sm:$0xff]
  %v85 = vld [vmem:[%s0 + $0x1c8] sm:$0xff]
  %v86 = vld [vmem:[%s0 + $0x1d0] sm:$0xff]
  %v87 = vld [vmem:[%s0 + $0x1d8] sm:$0xff]
  %v88 = vld [vmem:[%s0 + $0x1e0] sm:$0xff]
  %v89 = vld [vmem:[%s0 + $0x1e8] sm:$0xff]
  %v90 = vld [vmem:[%s0 + $0x1f0] sm:$0xff]
  %v91 = vld [vmem:[%s0 + $0x1f8] sm:$0xff]
  %v92 = vld [vmem:[%s1] sm:$0xff]
  %vm93 = vcmask 64512
  %v95 = vsel %vm93, %v28, 0
  %v98 = vsel %vm93, %v29, 0
  %v101 = vsel %vm93, %v30, 0
  %v104 = vsel %vm93, %v31, 0
  %v107 = vsel %vm93, %v32, 0
  %v110 = vsel %vm93, %v33, 0
  %v113 = vsel %vm93, %v34, 0
  %v116 = vsel %vm93, %v35, 0
  %v119 = vsel %vm93, %v36, 0
  %v122 = vsel %vm93, %v37, 0
  %v125 = vsel %vm93, %v38, 0
  %v128 = vsel %vm93, %v39, 0
  %v131 = vsel %vm93, %v40, 0
  %v134 = vsel %vm93, %v41, 0
  %v137 = vsel %vm93, %v42, 0
  %v140 = vsel %vm93, %v43, 0
  %v143 = vsel %vm93, %v44, 0
  %v146 = vsel %vm93, %v45, 0
  %v149 = vsel %vm93, %v46, 0
  %v152 = vsel %vm93, %v47, 0
  %v155 = vsel %vm93, %v48, 0
  %v158 = vsel %vm93, %v49, 0
  %v161 = vsel %vm93, %v50, 0
  %v164 = vsel %vm93, %v51, 0
  %v167 = vsel %vm93, %v52, 0
  %v170 = vsel %vm93, %v53, 0
  %v173 = vsel %vm93, %v54, 0
  %v176 = vsel %vm93, %v55, 0
  %v179 = vsel %vm93, %v56, 0
  %v182 = vsel %vm93, %v57, 0
  %v185 = vsel %vm93, %v58, 0
  %v188 = vsel %vm93, %v59, 0
  %v191 = vsel %vm93, %v60, 0
  %v194 = vsel %vm93, %v61, 0
  %v197 = vsel %vm93, %v62, 0
  %v200 = vsel %vm93, %v63, 0
  %v203 = vsel %vm93, %v64, 0
  %v206 = vsel %vm93, %v65, 0
  %v209 = vsel %vm93, %v66, 0
  %v212 = vsel %vm93, %v67, 0
  %v215 = vsel %vm93, %v68, 0
  %v218 = vsel %vm93, %v69, 0
  %v221 = vsel %vm93, %v70, 0
  %v224 = vsel %vm93, %v71, 0
  %v227 = vsel %vm93, %v72, 0
  %v230 = vsel %vm93, %v73, 0
  %v233 = vsel %vm93, %v74, 0
  %v236 = vsel %vm93, %v75, 0
  %v239 = vsel %vm93, %v76, 0
  %v242 = vsel %vm93, %v77, 0
  %v245 = vsel %vm93, %v78, 0
  %v248 = vsel %vm93, %v79, 0
  %v251 = vsel %vm93, %v80, 0
  %v254 = vsel %vm93, %v81, 0
  %v257 = vsel %vm93, %v82, 0
  %v260 = vsel %vm93, %v83, 0
  %v263 = vsel %vm93, %v84, 0
  %v266 = vsel %vm93, %v85, 0
  %v269 = vsel %vm93, %v86, 0
  %v272 = vsel %vm93, %v87, 0
  %v275 = vsel %vm93, %v88, 0
  %v278 = vsel %vm93, %v89, 0
  %v281 = vsel %vm93, %v90, 0
  %v284 = vsel %vm93, %v91, 0
  %286 = vmatprep.subr.mxu0 0.0
  %287 = vmatpush1.msra.mxu0 0.0
  %288 = vmatprep.subr.mxu0 0.0
  %289 = vmatpush1.msra.mxu0 0.0
  %290 = vmatprep.subr.mxu0 0.0
  %291 = vmatpush1.msra.mxu0 0.0
  %292 = vmatprep.subr.mxu0 0.0
  %293 = vmatpush1.msra.mxu0 0.0
  %294 = vmatprep.subr.mxu0 0.0
  %295 = vmatpush1.msra.mxu0 0.0
  %296 = vmatprep.subr.mxu0 0.0
  %297 = vmatpush1.msra.mxu0 0.0
  %298 = vmatprep.subr.mxu0 0.0
  %299 = vmatpush1.msra.mxu0 0.0
  %300 = vmatprep.subr.mxu0 0.0
  %301 = vmatpush1.msra.mxu0 0.0
  %302 = vmatprep.subr.mxu0 0.0
  %303 = vmatpush1.msra.mxu0 0.0
  %304 = vmatprep.subr.mxu0 0.0
  %305 = vmatpush1.msra.mxu0 0.0
  %306 = vmatprep.subr.mxu0 0.0
  %307 = vmatpush1.msra.mxu0 0.0
  %308 = vmatprep.subr.mxu0 0.0
  %309 = vmatpush1.msra.mxu0 0.0
  %310 = vmatprep.subr.mxu0 0.0
  %311 = vmatpush1.msra.mxu0 0.0
  %312 = vmatprep.subr.mxu0 0.0
  %313 = vmatpush1.msra.mxu0 0.0
  %314 = vmatprep.subr.mxu0 0.0
  %315 = vmatpush1.msra.mxu0 0.0
  %316 = vmatprep.subr.mxu0 0.0
  %317 = vmatpush1.msra.mxu0 %v92
  %318 = vmatprep.subr.mxu0 0.0
  %319 = vmatpush2.msra.mxu0 0.0
  %320 = vmatprep.subr.mxu0 0.0
  %321 = vmatpush2.msra.mxu0 0.0
  %322 = vmatprep.subr.mxu0 0.0
  %323 = vmatpush2.msra.mxu0 0.0
  %324 = vmatprep.subr.mxu0 0.0
  %325 = vmatpush2.msra.mxu0 0.0
  %326 = vmatprep.subr.mxu0 0.0
  %327 = vmatpush2.msra.mxu0 0.0
  %328 = vmatprep.subr.mxu0 0.0
  %329 = vmatpush2.msra.mxu0 0.0
  %330 = vmatprep.subr.mxu0 0.0
  %331 = vmatpush2.msra.mxu0 0.0
  %332 = vmatprep.subr.mxu0 0.0
  %333 = vmatpush2.msra.mxu0 0.0
  %334 = vmatprep.subr.mxu0 0.0
  %335 = vmatpush2.msra.mxu0 0.0
  %336 = vmatprep.subr.mxu0 0.0
  %337 = vmatpush2.msra.mxu0 0.0
  %338 = vmatprep.subr.mxu0 0.0
  %339 = vmatpush2.msra.mxu0 0.0
  %340 = vmatprep.subr.mxu0 0.0
  %341 = vmatpush2.msra.mxu0 0.0
  %342 = vmatprep.subr.mxu0 0.0
  %343 = vmatpush2.msra.mxu0 0.0
  %344 = vmatprep.subr.mxu0 0.0
  %345 = vmatpush2.msra.mxu0 0.0
  %346 = vmatprep.subr.mxu0 0.0
  %347 = vmatpush2.msra.mxu0 0.0
  %348 = vmatprep.subr.mxu0 0.0
  %349 = vmatpush2.msra.mxu0 0.0
  %350 = vmatprep.mubr.f32.mxu0 0.0
  %351 = vmatmul.mubr.f32.gmra.mxu0 %v95
  %v352 = vpop.f32.mrf.mxu0
  %v353 = vadd.f32 0.0, %v352
  %v354 = vpop.f32.mrf.mxu0
  %355 = vmatprep.mubr.f32.mxu0 0.0
  %356 = vmatmul.mubr.f32.gmra.mxu0 %v98
  %v357 = vpop.f32.mrf.mxu0
  %v358 = vadd.f32 0.0, %v357
  %v359 = vpop.f32.mrf.mxu0
  %360 = vmatprep.mubr.f32.mxu0 0.0
  %361 = vmatmul.mubr.f32.gmra.mxu0 %v101
  %v362 = vpop.f32.mrf.mxu0
  %v363 = vadd.f32 0.0, %v362
  %v364 = vpop.f32.mrf.mxu0
  %365 = vmatprep.mubr.f32.mxu0 0.0
  %366 = vmatmul.mubr.f32.gmra.mxu0 %v104
  %v367 = vpop.f32.mrf.mxu0
  %v368 = vadd.f32 0.0, %v367
  %v369 = vpop.f32.mrf.mxu0
  %370 = vmatprep.mubr.f32.mxu0 0.0
  %371 = vmatmul.mubr.f32.gmra.mxu0 %v107
  %v372 = vpop.f32.mrf.mxu0
  %v373 = vadd.f32 0.0, %v372
  %v374 = vpop.f32.mrf.mxu0
  %375 = vmatprep.mubr.f32.mxu0 0.0
  %376 = vmatmul.mubr.f32.gmra.mxu0 %v110
  %v377 = vpop.f32.mrf.mxu0
  %v378 = vadd.f32 0.0, %v377
  %v379 = vpop.f32.mrf.mxu0
  %380 = vmatprep.mubr.f32.mxu0 0.0
  %381 = vmatmul.mubr.f32.gmra.mxu0 %v113
  %v382 = vpop.f32.mrf.mxu0
  %v383 = vadd.f32 0.0, %v382
  %v384 = vpop.f32.mrf.mxu0
  %385 = vmatprep.mubr.f32.mxu0 0.0
  %386 = vmatmul.mubr.f32.gmra.mxu0 %v116
  %v387 = vpop.f32.mrf.mxu0
  %v388 = vadd.f32 0.0, %v387
  %v389 = vpop.f32.mrf.mxu0
  %390 = vmatprep.mubr.f32.mxu0 0.0
  %391 = vmatmul.mubr.f32.gmra.mxu0 %v119
  %v392 = vpop.f32.mrf.mxu0
  %v393 = vadd.f32 0.0, %v392
  %v394 = vpop.f32.mrf.mxu0
  %395 = vmatprep.mubr.f32.mxu0 0.0
  %396 = vmatmul.mubr.f32.gmra.mxu0 %v122
  %v397 = vpop.f32.mrf.mxu0
  %v398 = vadd.f32 0.0, %v397
  %v399 = vpop.f32.mrf.mxu0
  %400 = vmatprep.mubr.f32.mxu0 0.0
  %401 = vmatmul.mubr.f32.gmra.mxu0 %v125
  %v402 = vpop.f32.mrf.mxu0
  %v403 = vadd.f32 0.0, %v402
  %v404 = vpop.f32.mrf.mxu0
  %405 = vmatprep.mubr.f32.mxu0 0.0
  %406 = vmatmul.mubr.f32.gmra.mxu0 %v128
  %v407 = vpop.f32.mrf.mxu0
  %v408 = vadd.f32 0.0, %v407
  %v409 = vpop.f32.mrf.mxu0
  %410 = vmatprep.mubr.f32.mxu0 0.0
  %411 = vmatmul.mubr.f32.gmra.mxu0 %v131
  %v412 = vpop.f32.mrf.mxu0
  %v413 = vadd.f32 0.0, %v412
  %v414 = vpop.f32.mrf.mxu0
  %415 = vmatprep.mubr.f32.mxu0 0.0
  %416 = vmatmul.mubr.f32.gmra.mxu0 %v134
  %v417 = vpop.f32.mrf.mxu0
  %v418 = vadd.f32 0.0, %v417
  %v419 = vpop.f32.mrf.mxu0
  %420 = vmatprep.mubr.f32.mxu0 0.0
  %421 = vmatmul.mubr.f32.gmra.mxu0 %v137
  %v422 = vpop.f32.mrf.mxu0
  %v423 = vadd.f32 0.0, %v422
  %v424 = vpop.f32.mrf.mxu0
  %425 = vmatprep.mubr.f32.mxu0 0.0
  %426 = vmatmul.mubr.f32.gmra.mxu0 %v140
  %v427 = vpop.f32.mrf.mxu0
  %v428 = vadd.f32 0.0, %v427
  %v429 = vpop.f32.mrf.mxu0
  %430 = vmatprep.mubr.f32.mxu0 0.0
  %431 = vmatmul.mubr.f32.gmra.mxu0 %v143
  %v432 = vpop.f32.mrf.mxu0
  %v433 = vadd.f32 0.0, %v432
  %v434 = vpop.f32.mrf.mxu0
  %435 = vmatprep.mubr.f32.mxu0 0.0
  %436 = vmatmul.mubr.f32.gmra.mxu0 %v146
  %v437 = vpop.f32.mrf.mxu0
  %v438 = vadd.f32 0.0, %v437
  %v439 = vpop.f32.mrf.mxu0
  %440 = vmatprep.mubr.f32.mxu0 0.0
  %441 = vmatmul.mubr.f32.gmra.mxu0 %v149
  %v442 = vpop.f32.mrf.mxu0
  %v443 = vadd.f32 0.0, %v442
  %v444 = vpop.f32.mrf.mxu0
  %445 = vmatprep.mubr.f32.mxu0 0.0
  %446 = vmatmul.mubr.f32.gmra.mxu0 %v152
  %v447 = vpop.f32.mrf.mxu0
  %v448 = vadd.f32 0.0, %v447
  %v449 = vpop.f32.mrf.mxu0
  %450 = vmatprep.mubr.f32.mxu0 0.0
  %451 = vmatmul.mubr.f32.gmra.mxu0 %v155
  %v452 = vpop.f32.mrf.mxu0
  %v453 = vadd.f32 0.0, %v452
  %v454 = vpop.f32.mrf.mxu0
  %455 = vmatprep.mubr.f32.mxu0 0.0
  %456 = vmatmul.mubr.f32.gmra.mxu0 %v158
  %v457 = vpop.f32.mrf.mxu0
  %v458 = vadd.f32 0.0, %v457
  %v459 = vpop.f32.mrf.mxu0
  %460 = vmatprep.mubr.f32.mxu0 0.0
  %461 = vmatmul.mubr.f32.gmra.mxu0 %v161
  %v462 = vpop.f32.mrf.mxu0
  %v463 = vadd.f32 0.0, %v462
  %v464 = vpop.f32.mrf.mxu0
  %465 = vmatprep.mubr.f32.mxu0 0.0
  %466 = vmatmul.mubr.f32.gmra.mxu0 %v164
  %v467 = vpop.f32.mrf.mxu0
  %v468 = vadd.f32 0.0, %v467
  %v469 = vpop.f32.mrf.mxu0
  %470 = vmatprep.mubr.f32.mxu0 0.0
  %471 = vmatmul.mubr.f32.gmra.mxu0 %v167
  %v472 = vpop.f32.mrf.mxu0
  %v473 = vadd.f32 0.0, %v472
  %v474 = vpop.f32.mrf.mxu0
  %475 = vmatprep.mubr.f32.mxu0 0.0
  %476 = vmatmul.mubr.f32.gmra.mxu0 %v170
  %v477 = vpop.f32.mrf.mxu0
  %v478 = vadd.f32 0.0, %v477
  %v479 = vpop.f32.mrf.mxu0
  %480 = vmatprep.mubr.f32.mxu0 0.0
  %481 = vmatmul.mubr.f32.gmra.mxu0 %v173
  %v482 = vpop.f32.mrf.mxu0
  %v483 = vadd.f32 0.0, %v482
  %v484 = vpop.f32.mrf.mxu0
  %485 = vmatprep.mubr.f32.mxu0 0.0
  %486 = vmatmul.mubr.f32.gmra.mxu0 %v176
  %v487 = vpop.f32.mrf.mxu0
  %v488 = vadd.f32 0.0, %v487
  %v489 = vpop.f32.mrf.mxu0
  %490 = vmatprep.mubr.f32.mxu0 0.0
  %491 = vmatmul.mubr.f32.gmra.mxu0 %v179
  %v492 = vpop.f32.mrf.mxu0
  %v493 = vadd.f32 0.0, %v492
  %v494 = vpop.f32.mrf.mxu0
  %495 = vmatprep.mubr.f32.mxu0 0.0
  %496 = vmatmul.mubr.f32.gmra.mxu0 %v182
  %v497 = vpop.f32.mrf.mxu0
  %v498 = vadd.f32 0.0, %v497
  %v499 = vpop.f32.mrf.mxu0
  %500 = vmatprep.mubr.f32.mxu0 0.0
  %501 = vmatmul.mubr.f32.gmra.mxu0 %v185
  %v502 = vpop.f32.mrf.mxu0
  %v503 = vadd.f32 0.0, %v502
  %v504 = vpop.f32.mrf.mxu0
  %505 = vmatprep.mubr.f32.mxu0 0.0
  %506 = vmatmul.mubr.f32.gmra.mxu0 %v188
  %v507 = vpop.f32.mrf.mxu0
  %v508 = vadd.f32 0.0, %v507
  %v509 = vpop.f32.mrf.mxu0
  %510 = vmatprep.mubr.f32.mxu0 0.0
  %511 = vmatmul.mubr.f32.gmra.mxu0 %v191
  %v512 = vpop.f32.mrf.mxu0
  %v513 = vadd.f32 0.0, %v512
  %v514 = vpop.f32.mrf.mxu0
  %515 = vmatprep.mubr.f32.mxu0 0.0
  %516 = vmatmul.mubr.f32.gmra.mxu0 %v194
  %v517 = vpop.f32.mrf.mxu0
  %v518 = vadd.f32 0.0, %v517
  %v519 = vpop.f32.mrf.mxu0
  %520 = vmatprep.mubr.f32.mxu0 0.0
  %521 = vmatmul.mubr.f32.gmra.mxu0 %v197
  %v522 = vpop.f32.mrf.mxu0
  %v523 = vadd.f32 0.0, %v522
  %v524 = vpop.f32.mrf.mxu0
  %525 = vmatprep.mubr.f32.mxu0 0.0
  %526 = vmatmul.mubr.f32.gmra.mxu0 %v200
  %v527 = vpop.f32.mrf.mxu0
  %v528 = vadd.f32 0.0, %v527
  %v529 = vpop.f32.mrf.mxu0
  %530 = vmatprep.mubr.f32.mxu0 0.0
  %531 = vmatmul.mubr.f32.gmra.mxu0 %v203
  %v532 = vpop.f32.mrf.mxu0
  %v533 = vadd.f32 0.0, %v532
  %v534 = vpop.f32.mrf.mxu0
  %535 = vmatprep.mubr.f32.mxu0 0.0
  %536 = vmatmul.mubr.f32.gmra.mxu0 %v206
  %v537 = vpop.f32.mrf.mxu0
  %v538 = vadd.f32 0.0, %v537
  %v539 = vpop.f32.mrf.mxu0
  %540 = vmatprep.mubr.f32.mxu0 0.0
  %541 = vmatmul.mubr.f32.gmra.mxu0 %v209
  %v542 = vpop.f32.mrf.mxu0
  %v543 = vadd.f32 0.0, %v542
  %v544 = vpop.f32.mrf.mxu0
  %545 = vmatprep.mubr.f32.mxu0 0.0
  %546 = vmatmul.mubr.f32.gmra.mxu0 %v212
  %v547 = vpop.f32.mrf.mxu0
  %v548 = vadd.f32 0.0, %v547
  %v549 = vpop.f32.mrf.mxu0
  %550 = vmatprep.mubr.f32.mxu0 0.0
  %551 = vmatmul.mubr.f32.gmra.mxu0 %v215
  %v552 = vpop.f32.mrf.mxu0
  %v553 = vadd.f32 0.0, %v552
  %v554 = vpop.f32.mrf.mxu0
  %555 = vmatprep.mubr.f32.mxu0 0.0
  %556 = vmatmul.mubr.f32.gmra.mxu0 %v218
  %v557 = vpop.f32.mrf.mxu0
  %v558 = vadd.f32 0.0, %v557
  %v559 = vpop.f32.mrf.mxu0
  %560 = vmatprep.mubr.f32.mxu0 0.0
  %561 = vmatmul.mubr.f32.gmra.mxu0 %v221
  %v562 = vpop.f32.mrf.mxu0
  %v563 = vadd.f32 0.0, %v562
  %v564 = vpop.f32.mrf.mxu0
  %565 = vmatprep.mubr.f32.mxu0 0.0
  %566 = vmatmul.mubr.f32.gmra.mxu0 %v224
  %v567 = vpop.f32.mrf.mxu0
  %v568 = vadd.f32 0.0, %v567
  %v569 = vpop.f32.mrf.mxu0
  %570 = vmatprep.mubr.f32.mxu0 0.0
  %571 = vmatmul.mubr.f32.gmra.mxu0 %v227
  %v572 = vpop.f32.mrf.mxu0
  %v573 = vadd.f32 0.0, %v572
  %v574 = vpop.f32.mrf.mxu0
  %575 = vmatprep.mubr.f32.mxu0 0.0
  %576 = vmatmul.mubr.f32.gmra.mxu0 %v230
  %v577 = vpop.f32.mrf.mxu0
  %v578 = vadd.f32 0.0, %v577
  %v579 = vpop.f32.mrf.mxu0
  %580 = vmatprep.mubr.f32.mxu0 0.0
  %581 = vmatmul.mubr.f32.gmra.mxu0 %v233
  %v582 = vpop.f32.mrf.mxu0
  %v583 = vadd.f32 0.0, %v582
  %v584 = vpop.f32.mrf.mxu0
  %585 = vmatprep.mubr.f32.mxu0 0.0
  %586 = vmatmul.mubr.f32.gmra.mxu0 %v236
  %v587 = vpop.f32.mrf.mxu0
  %v588 = vadd.f32 0.0, %v587
  %v589 = vpop.f32.mrf.mxu0
  %590 = vmatprep.mubr.f32.mxu0 0.0
  %591 = vmatmul.mubr.f32.gmra.mxu0 %v239
  %v592 = vpop.f32.mrf.mxu0
  %v593 = vadd.f32 0.0, %v592
  %v594 = vpop.f32.mrf.mxu0
  %595 = vmatprep.mubr.f32.mxu0 0.0
  %596 = vmatmul.mubr.f32.gmra.mxu0 %v242
  %v597 = vpop.f32.mrf.mxu0
  %v598 = vadd.f32 0.0, %v597
  %v599 = vpop.f32.mrf.mxu0
  %600 = vmatprep.mubr.f32.mxu0 0.0
  %601 = vmatmul.mubr.f32.gmra.mxu0 %v245
  %v602 = vpop.f32.mrf.mxu0
  %v603 = vadd.f32 0.0, %v602
  %v604 = vpop.f32.mrf.mxu0
  %605 = vmatprep.mubr.f32.mxu0 0.0
  %606 = vmatmul.mubr.f32.gmra.mxu0 %v248
  %v607 = vpop.f32.mrf.mxu0
  %v608 = vadd.f32 0.0, %v607
  %v609 = vpop.f32.mrf.mxu0
  %610 = vmatprep.mubr.f32.mxu0 0.0
  %611 = vmatmul.mubr.f32.gmra.mxu0 %v251
  %v612 = vpop.f32.mrf.mxu0
  %v613 = vadd.f32 0.0, %v612
  %v614 = vpop.f32.mrf.mxu0
  %615 = vmatprep.mubr.f32.mxu0 0.0
  %616 = vmatmul.mubr.f32.gmra.mxu0 %v254
  %v617 = vpop.f32.mrf.mxu0
  %v618 = vadd.f32 0.0, %v617
  %v619 = vpop.f32.mrf.mxu0
  %620 = vmatprep.mubr.f32.mxu0 0.0
  %621 = vmatmul.mubr.f32.gmra.mxu0 %v257
  %v622 = vpop.f32.mrf.mxu0
  %v623 = vadd.f32 0.0, %v622
  %v624 = vpop.f32.mrf.mxu0
  %625 = vmatprep.mubr.f32.mxu0 0.0
  %626 = vmatmul.mubr.f32.gmra.mxu0 %v260
  %v627 = vpop.f32.mrf.mxu0
  %v628 = vadd.f32 0.0, %v627
  %v629 = vpop.f32.mrf.mxu0
  %630 = vmatprep.mubr.f32.mxu0 0.0
  %631 = vmatmul.mubr.f32.gmra.mxu0 %v263
  %v632 = vpop.f32.mrf.mxu0
  %v633 = vadd.f32 0.0, %v632
  %v634 = vpop.f32.mrf.mxu0
  %635 = vmatprep.mubr.f32.mxu0 0.0
  %636 = vmatmul.mubr.f32.gmra.mxu0 %v266
  %v637 = vpop.f32.mrf.mxu0
  %v638 = vadd.f32 0.0, %v637
  %v639 = vpop.f32.mrf.mxu0
  %640 = vmatprep.mubr.f32.mxu0 0.0
  %641 = vmatmul.mubr.f32.gmra.mxu0 %v269
  %v642 = vpop.f32.mrf.mxu0
  %v643 = vadd.f32 0.0, %v642
  %v644 = vpop.f32.mrf.mxu0
  %645 = vmatprep.mubr.f32.mxu0 0.0
  %646 = vmatmul.mubr.f32.gmra.mxu0 %v272
  %v647 = vpop.f32.mrf.mxu0
  %v648 = vadd.f32 0.0, %v647
  %v649 = vpop.f32.mrf.mxu0
  %650 = vmatprep.mubr.f32.mxu0 0.0
  %651 = vmatmul.mubr.f32.gmra.mxu0 %v275
  %v652 = vpop.f32.mrf.mxu0
  %v653 = vadd.f32 0.0, %v652
  %v654 = vpop.f32.mrf.mxu0
  %655 = vmatprep.mubr.f32.mxu0 0.0
  %656 = vmatmul.mubr.f32.gmra.mxu0 %v278
  %v657 = vpop.f32.mrf.mxu0
  %v658 = vadd.f32 0.0, %v657
  %v659 = vpop.f32.mrf.mxu0
  %660 = vmatprep.mubr.f32.mxu0 0.0
  %661 = vmatmul.mubr.f32.gmra.mxu0 %v281
  %v662 = vpop.f32.mrf.mxu0
  %v663 = vadd.f32 0.0, %v662
  %v664 = vpop.f32.mrf.mxu0
  %665 = vmatprep.mubr.f32.mxu0 0.0
  %666 = vmatmul.mubr.f32.gmra.mxu0 %v284
  %v667 = vpop.f32.mrf.mxu0
  %v668 = vadd.f32 0.0, %v667
  %v669 = vpop.f32.mrf.mxu0
  %670 = vdwg.mxu0
  %v671 = vld [vmem:[%s3] sm:$0x1]
  %v673 = vlaneseq
  %v674 = vshrl.u32 %v673, 7
  %v675 = vsub.s32 0, %v674
  %v676 = vrot.slane %v671, %v675
  %v678 = vmul.f32 %v353, %v676
  %v679 = vmul.f32 %v358, %v676
  %v680 = vmul.f32 %v363, %v676
  %v681 = vmul.f32 %v368, %v676
  %v682 = vmul.f32 %v373, %v676
  %v683 = vmul.f32 %v378, %v676
  %v684 = vmul.f32 %v383, %v676
  %v685 = vmul.f32 %v388, %v676
  %v686 = vmul.f32 %v393, %v676
  %v687 = vmul.f32 %v398, %v676
  %v688 = vmul.f32 %v403, %v676
  %v689 = vmul.f32 %v408, %v676
  %v690 = vmul.f32 %v413, %v676
  %v691 = vmul.f32 %v418, %v676
  %v692 = vmul.f32 %v423, %v676
  %v693 = vmul.f32 %v428, %v676
  %v694 = vmul.f32 %v433, %v676
  %v695 = vmul.f32 %v438, %v676
  %v696 = vmul.f32 %v443, %v676
  %v697 = vmul.f32 %v448, %v676
  %v698 = vmul.f32 %v453, %v676
  %v699 = vmul.f32 %v458, %v676
  %v700 = vmul.f32 %v463, %v676
  %v701 = vmul.f32 %v468, %v676
  %v702 = vmul.f32 %v473, %v676
  %v703 = vmul.f32 %v478, %v676
  %v704 = vmul.f32 %v483, %v676
  %v705 = vmul.f32 %v488, %v676
  %v706 = vmul.f32 %v493, %v676
  %v707 = vmul.f32 %v498, %v676
  %v708 = vmul.f32 %v503, %v676
  %v709 = vmul.f32 %v508, %v676
  %v710 = vmul.f32 %v513, %v676
  %v711 = vmul.f32 %v518, %v676
  %v712 = vmul.f32 %v523, %v676
  %v713 = vmul.f32 %v528, %v676
  %v714 = vmul.f32 %v533, %v676
  %v715 = vmul.f32 %v538, %v676
  %v716 = vmul.f32 %v543, %v676
  %v717 = vmul.f32 %v548, %v676
  %v718 = vmul.f32 %v553, %v676
  %v719 = vmul.f32 %v558, %v676
  %v720 = vmul.f32 %v563, %v676
  %v721 = vmul.f32 %v568, %v676
  %v722 = vmul.f32 %v573, %v676
  %v723 = vmul.f32 %v578, %v676
  %v724 = vmul.f32 %v583, %v676
  %v725 = vmul.f32 %v588, %v676
  %v726 = vmul.f32 %v593, %v676
  %v727 = vmul.f32 %v598, %v676
  %v728 = vmul.f32 %v603, %v676
  %v729 = vmul.f32 %v608, %v676
  %v730 = vmul.f32 %v613, %v676
  %v731 = vmul.f32 %v618, %v676
  %v732 = vmul.f32 %v623, %v676
  %v733 = vmul.f32 %v628, %v676
  %v734 = vmul.f32 %v633, %v676
  %v735 = vmul.f32 %v638, %v676
  %v736 = vmul.f32 %v643, %v676
  %v737 = vmul.f32 %v648, %v676
  %v738 = vmul.f32 %v653, %v676
  %v739 = vmul.f32 %v658, %v676
  %v740 = vmul.f32 %v663, %v676
  %v741 = vmul.f32 %v668, %v676
  %v742 = vld [vmem:[%s4] sm:$0x1]
  %v744 = vlaneseq
  %v745 = vshrl.u32 %v744, 7
  %v746 = vsub.s32 0, %v745
  %v747 = vrot.slane %v742, %v746
  %v749 = vadd.f32 %v678, %v747
  %v750 = vadd.f32 %v679, %v747
  %v751 = vadd.f32 %v680, %v747
  %v752 = vadd.f32 %v681, %v747
  %v753 = vadd.f32 %v682, %v747
  %v754 = vadd.f32 %v683, %v747
  %v755 = vadd.f32 %v684, %v747
  %v756 = vadd.f32 %v685, %v747
  %v757 = vadd.f32 %v686, %v747
  %v758 = vadd.f32 %v687, %v747
  %v759 = vadd.f32 %v688, %v747
  %v760 = vadd.f32 %v689, %v747
  %v761 = vadd.f32 %v690, %v747
  %v762 = vadd.f32 %v691, %v747
  %v763 = vadd.f32 %v692, %v747
  %v764 = vadd.f32 %v693, %v747
  %v765 = vadd.f32 %v694, %v747
  %v766 = vadd.f32 %v695, %v747
  %v767 = vadd.f32 %v696, %v747
  %v768 = vadd.f32 %v697, %v747
  %v769 = vadd.f32 %v698, %v747
  %v770 = vadd.f32 %v699, %v747
  %v771 = vadd.f32 %v700, %v747
  %v772 = vadd.f32 %v701, %v747
  %v773 = vadd.f32 %v702, %v747
  %v774 = vadd.f32 %v703, %v747
  %v775 = vadd.f32 %v704, %v747
  %v776 = vadd.f32 %v705, %v747
  %v777 = vadd.f32 %v706, %v747
  %v778 = vadd.f32 %v707, %v747
  %v779 = vadd.f32 %v708, %v747
  %v780 = vadd.f32 %v709, %v747
  %v781 = vadd.f32 %v710, %v747
  %v782 = vadd.f32 %v711, %v747
  %v783 = vadd.f32 %v712, %v747
  %v784 = vadd.f32 %v713, %v747
  %v785 = vadd.f32 %v714, %v747
  %v786 = vadd.f32 %v715, %v747
  %v787 = vadd.f32 %v716, %v747
  %v788 = vadd.f32 %v717, %v747
  %v789 = vadd.f32 %v718, %v747
  %v790 = vadd.f32 %v719, %v747
  %v791 = vadd.f32 %v720, %v747
  %v792 = vadd.f32 %v721, %v747
  %v793 = vadd.f32 %v722, %v747
  %v794 = vadd.f32 %v723, %v747
  %v795 = vadd.f32 %v724, %v747
  %v796 = vadd.f32 %v725, %v747
  %v797 = vadd.f32 %v726, %v747
  %v798 = vadd.f32 %v727, %v747
  %v799 = vadd.f32 %v728, %v747
  %v800 = vadd.f32 %v729, %v747
  %v801 = vadd.f32 %v730, %v747
  %v802 = vadd.f32 %v731, %v747
  %v803 = vadd.f32 %v732, %v747
  %v804 = vadd.f32 %v733, %v747
  %v805 = vadd.f32 %v734, %v747
  %v806 = vadd.f32 %v735, %v747
  %v807 = vadd.f32 %v736, %v747
  %v808 = vadd.f32 %v737, %v747
  %v809 = vadd.f32 %v738, %v747
  %v810 = vadd.f32 %v739, %v747
  %v811 = vadd.f32 %v740, %v747
  %v812 = vadd.f32 %v741, %v747
  %v813 = vxor.u32 %v749, 2147483648
  %v814 = vxor.u32 %v750, 2147483648
  %v815 = vxor.u32 %v751, 2147483648
  %v816 = vxor.u32 %v752, 2147483648
  %v817 = vxor.u32 %v753, 2147483648
  %v818 = vxor.u32 %v754, 2147483648
  %v819 = vxor.u32 %v755, 2147483648
  %v820 = vxor.u32 %v756, 2147483648
  %v821 = vxor.u32 %v757, 2147483648
  %v822 = vxor.u32 %v758, 2147483648
  %v823 = vxor.u32 %v759, 2147483648
  %v824 = vxor.u32 %v760, 2147483648
  %v825 = vxor.u32 %v761, 2147483648
  %v826 = vxor.u32 %v762, 2147483648
  %v827 = vxor.u32 %v763, 2147483648
  %v828 = vxor.u32 %v764, 2147483648
  %v829 = vxor.u32 %v765, 2147483648
  %v830 = vxor.u32 %v766, 2147483648
  %v831 = vxor.u32 %v767, 2147483648
  %v832 = vxor.u32 %v768, 2147483648
  %v833 = vxor.u32 %v769, 2147483648
  %v834 = vxor.u32 %v770, 2147483648
  %v835 = vxor.u32 %v771, 2147483648
  %v836 = vxor.u32 %v772, 2147483648
  %v837 = vxor.u32 %v773, 2147483648
  %v838 = vxor.u32 %v774, 2147483648
  %v839 = vxor.u32 %v775, 2147483648
  %v840 = vxor.u32 %v776, 2147483648
  %v841 = vxor.u32 %v777, 2147483648
  %v842 = vxor.u32 %v778, 2147483648
  %v843 = vxor.u32 %v779, 2147483648
  %v844 = vxor.u32 %v780, 2147483648
  %v845 = vxor.u32 %v781, 2147483648
  %v846 = vxor.u32 %v782, 2147483648
  %v847 = vxor.u32 %v783, 2147483648
  %v848 = vxor.u32 %v784, 2147483648
  %v849 = vxor.u32 %v785, 2147483648
  %v850 = vxor.u32 %v786, 2147483648
  %v851 = vxor.u32 %v787, 2147483648
  %v852 = vxor.u32 %v788, 2147483648
  %v853 = vxor.u32 %v789, 2147483648
  %v854 = vxor.u32 %v790, 2147483648
  %v855 = vxor.u32 %v791, 2147483648
  %v856 = vxor.u32 %v792, 2147483648
  %v857 = vxor.u32 %v793, 2147483648
  %v858 = vxor.u32 %v794, 2147483648
  %v859 = vxor.u32 %v795, 2147483648
  %v860 = vxor.u32 %v796, 2147483648
  %v861 = vxor.u32 %v797, 2147483648
  %v862 = vxor.u32 %v798, 2147483648
  %v863 = vxor.u32 %v799, 2147483648
  %v864 = vxor.u32 %v800, 2147483648
  %v865 = vxor.u32 %v801, 2147483648
  %v866 = vxor.u32 %v802, 2147483648
  %v867 = vxor.u32 %v803, 2147483648
  %v868 = vxor.u32 %v804, 2147483648
  %v869 = vxor.u32 %v805, 2147483648
  %v870 = vxor.u32 %v806, 2147483648
  %v871 = vxor.u32 %v807, 2147483648
  %v872 = vxor.u32 %v808, 2147483648
  %v873 = vxor.u32 %v809, 2147483648
  %v874 = vxor.u32 %v810, 2147483648
  %v875 = vxor.u32 %v811, 2147483648
  %v876 = vxor.u32 %v812, 2147483648
  %v877 = vmul.f32 %v813, 1.442695
  %v878 = vpow.pop %v877
  %v879 = vmul.f32 %v814, 1.442695
  %v880 = vpow.pop %v879
  %v881 = vmul.f32 %v815, 1.442695
  %v882 = vpow.pop %v881
  %v883 = vmul.f32 %v816, 1.442695
  %v884 = vpow.pop %v883
  %v885 = vmul.f32 %v817, 1.442695
  %v886 = vpow.pop %v885
  %v887 = vmul.f32 %v818, 1.442695
  %v888 = vpow.pop %v887
  %v889 = vmul.f32 %v819, 1.442695
  %v890 = vpow.pop %v889
  %v891 = vmul.f32 %v820, 1.442695
  %v892 = vpow.pop %v891
  %v893 = vmul.f32 %v821, 1.442695
  %v894 = vpow.pop %v893
  %v895 = vmul.f32 %v822, 1.442695
  %v896 = vpow.pop %v895
  %v897 = vmul.f32 %v823, 1.442695
  %v898 = vpow.pop %v897
  %v899 = vmul.f32 %v824, 1.442695
  %v900 = vpow.pop %v899
  %v901 = vmul.f32 %v825, 1.442695
  %v902 = vpow.pop %v901
  %v903 = vmul.f32 %v826, 1.442695
  %v904 = vpow.pop %v903
  %v905 = vmul.f32 %v827, 1.442695
  %v906 = vpow.pop %v905
  %v907 = vmul.f32 %v828, 1.442695
  %v908 = vpow.pop %v907
  %v909 = vmul.f32 %v829, 1.442695
  %v910 = vpow.pop %v909
  %v911 = vmul.f32 %v830, 1.442695
  %v912 = vpow.pop %v911
  %v913 = vmul.f32 %v831, 1.442695
  %v914 = vpow.pop %v913
  %v915 = vmul.f32 %v832, 1.442695
  %v916 = vpow.pop %v915
  %v917 = vmul.f32 %v833, 1.442695
  %v918 = vpow.pop %v917
  %v919 = vmul.f32 %v834, 1.442695
  %v920 = vpow.pop %v919
  %v921 = vmul.f32 %v835, 1.442695
  %v922 = vpow.pop %v921
  %v923 = vmul.f32 %v836, 1.442695
  %v924 = vpow.pop %v923
  %v925 = vmul.f32 %v837, 1.442695
  %v926 = vpow.pop %v925
  %v927 = vmul.f32 %v838, 1.442695
  %v928 = vpow.pop %v927
  %v929 = vmul.f32 %v839, 1.442695
  %v930 = vpow.pop %v929
  %v931 = vmul.f32 %v840, 1.442695
  %v932 = vpow.pop %v931
  %v933 = vmul.f32 %v841, 1.442695
  %v934 = vpow.pop %v933
  %v935 = vmul.f32 %v842, 1.442695
  %v936 = vpow.pop %v935
  %v937 = vmul.f32 %v843, 1.442695
  %v938 = vpow.pop %v937
  %v939 = vmul.f32 %v844, 1.442695
  %v940 = vpow.pop %v939
  %v941 = vmul.f32 %v845, 1.442695
  %v942 = vpow.pop %v941
  %v943 = vmul.f32 %v846, 1.442695
  %v944 = vpow.pop %v943
  %v945 = vmul.f32 %v847, 1.442695
  %v946 = vpow.pop %v945
  %v947 = vmul.f32 %v848, 1.442695
  %v948 = vpow.pop %v947
  %v949 = vmul.f32 %v849, 1.442695
  %v950 = vpow.pop %v949
  %v951 = vmul.f32 %v850, 1.442695
  %v952 = vpow.pop %v951
  %v953 = vmul.f32 %v851, 1.442695
  %v954 = vpow.pop %v953
  %v955 = vmul.f32 %v852, 1.442695
  %v956 = vpow.pop %v955
  %v957 = vmul.f32 %v853, 1.442695
  %v958 = vpow.pop %v957
  %v959 = vmul.f32 %v854, 1.442695
  %v960 = vpow.pop %v959
  %v961 = vmul.f32 %v855, 1.442695
  %v962 = vpow.pop %v961
  %v963 = vmul.f32 %v856, 1.442695
  %v964 = vpow.pop %v963
  %v965 = vmul.f32 %v857, 1.442695
  %v966 = vpow.pop %v965
  %v967 = vmul.f32 %v858, 1.442695
  %v968 = vpow.pop %v967
  %v969 = vmul.f32 %v859, 1.442695
  %v970 = vpow.pop %v969
  %v971 = vmul.f32 %v860, 1.442695
  %v972 = vpow.pop %v971
  %v973 = vmul.f32 %v861, 1.442695
  %v974 = vpow.pop %v973
  %v975 = vmul.f32 %v862, 1.442695
  %v976 = vpow.pop %v975
  %v977 = vmul.f32 %v863, 1.442695
  %v978 = vpow.pop %v977
  %v979 = vmul.f32 %v864, 1.442695
  %v980 = vpow.pop %v979
  %v981 = vmul.f32 %v865, 1.442695
  %v982 = vpow.pop %v981
  %v983 = vmul.f32 %v866, 1.442695
  %v984 = vpow.pop %v983
  %v985 = vmul.f32 %v867, 1.442695
  %v986 = vpow.pop %v985
  %v987 = vmul.f32 %v868, 1.442695
  %v988 = vpow.pop %v987
  %v989 = vmul.f32 %v869, 1.442695
  %v990 = vpow.pop %v989
  %v991 = vmul.f32 %v870, 1.442695
  %v992 = vpow.pop %v991
  %v993 = vmul.f32 %v871, 1.442695
  %v994 = vpow.pop %v993
  %v995 = vmul.f32 %v872, 1.442695
  %v996 = vpow.pop %v995
  %v997 = vmul.f32 %v873, 1.442695
  %v998 = vpow.pop %v997
  %v999 = vmul.f32 %v874, 1.442695
  %v1000 = vpow.pop %v999
  %v1001 = vmul.f32 %v875, 1.442695
  %v1002 = vpow.pop %v1001
  %v1003 = vmul.f32 %v876, 1.442695
  %v1004 = vpow.pop %v1003
  %v1005 = vadd.f32 %v878, 1.0
  %v1006 = vadd.f32 %v880, 1.0
  %v1007 = vadd.f32 %v882, 1.0
  %v1008 = vadd.f32 %v884, 1.0
  %v1009 = vadd.f32 %v886, 1.0
  %v1010 = vadd.f32 %v888, 1.0
  %v1011 = vadd.f32 %v890, 1.0
  %v1012 = vadd.f32 %v892, 1.0
  %v1013 = vadd.f32 %v894, 1.0
  %v1014 = vadd.f32 %v896, 1.0
  %v1015 = vadd.f32 %v898, 1.0
  %v1016 = vadd.f32 %v900, 1.0
  %v1017 = vadd.f32 %v902, 1.0
  %v1018 = vadd.f32 %v904, 1.0
  %v1019 = vadd.f32 %v906, 1.0
  %v1020 = vadd.f32 %v908, 1.0
  %v1021 = vadd.f32 %v910, 1.0
  %v1022 = vadd.f32 %v912, 1.0
  %v1023 = vadd.f32 %v914, 1.0
  %v1024 = vadd.f32 %v916, 1.0
  %v1025 = vadd.f32 %v918, 1.0
  %v1026 = vadd.f32 %v920, 1.0
  %v1027 = vadd.f32 %v922, 1.0
  %v1028 = vadd.f32 %v924, 1.0
  %v1029 = vadd.f32 %v926, 1.0
  %v1030 = vadd.f32 %v928, 1.0
  %v1031 = vadd.f32 %v930, 1.0
  %v1032 = vadd.f32 %v932, 1.0
  %v1033 = vadd.f32 %v934, 1.0
  %v1034 = vadd.f32 %v936, 1.0
  %v1035 = vadd.f32 %v938, 1.0
  %v1036 = vadd.f32 %v940, 1.0
  %v1037 = vadd.f32 %v942, 1.0
  %v1038 = vadd.f32 %v944, 1.0
  %v1039 = vadd.f32 %v946, 1.0
  %v1040 = vadd.f32 %v948, 1.0
  %v1041 = vadd.f32 %v950, 1.0
  %v1042 = vadd.f32 %v952, 1.0
  %v1043 = vadd.f32 %v954, 1.0
  %v1044 = vadd.f32 %v956, 1.0
  %v1045 = vadd.f32 %v958, 1.0
  %v1046 = vadd.f32 %v960, 1.0
  %v1047 = vadd.f32 %v962, 1.0
  %v1048 = vadd.f32 %v964, 1.0
  %v1049 = vadd.f32 %v966, 1.0
  %v1050 = vadd.f32 %v968, 1.0
  %v1051 = vadd.f32 %v970, 1.0
  %v1052 = vadd.f32 %v972, 1.0
  %v1053 = vadd.f32 %v974, 1.0
  %v1054 = vadd.f32 %v976, 1.0
  %v1055 = vadd.f32 %v978, 1.0
  %v1056 = vadd.f32 %v980, 1.0
  %v1057 = vadd.f32 %v982, 1.0
  %v1058 = vadd.f32 %v984, 1.0
  %v1059 = vadd.f32 %v986, 1.0
  %v1060 = vadd.f32 %v988, 1.0
  %v1061 = vadd.f32 %v990, 1.0
  %v1062 = vadd.f32 %v992, 1.0
  %v1063 = vadd.f32 %v994, 1.0
  %v1064 = vadd.f32 %v996, 1.0
  %v1065 = vadd.f32 %v998, 1.0
  %v1066 = vadd.f32 %v1000, 1.0
  %v1067 = vadd.f32 %v1002, 1.0
  %v1068 = vadd.f32 %v1004, 1.0
  %v1069 = vrcp.pop %v1005
  %v1070 = vmul.f32 1.0, %v1069
  %v1071 = vrcp.pop %v1006
  %v1072 = vmul.f32 1.0, %v1071
  %v1073 = vrcp.pop %v1007
  %v1074 = vmul.f32 1.0, %v1073
  %v1075 = vrcp.pop %v1008
  %v1076 = vmul.f32 1.0, %v1075
  %v1077 = vrcp.pop %v1009
  %v1078 = vmul.f32 1.0, %v1077
  %v1079 = vrcp.pop %v1010
  %v1080 = vmul.f32 1.0, %v1079
  %v1081 = vrcp.pop %v1011
  %v1082 = vmul.f32 1.0, %v1081
  %v1083 = vrcp.pop %v1012
  %v1084 = vmul.f32 1.0, %v1083
  %v1085 = vrcp.pop %v1013
  %v1086 = vmul.f32 1.0, %v1085
  %v1087 = vrcp.pop %v1014
  %v1088 = vmul.f32 1.0, %v1087
  %v1089 = vrcp.pop %v1015
  %v1090 = vmul.f32 1.0, %v1089
  %v1091 = vrcp.pop %v1016
  %v1092 = vmul.f32 1.0, %v1091
  %v1093 = vrcp.pop %v1017
  %v1094 = vmul.f32 1.0, %v1093
  %v1095 = vrcp.pop %v1018
  %v1096 = vmul.f32 1.0, %v1095
  %v1097 = vrcp.pop %v1019
  %v1098 = vmul.f32 1.0, %v1097
  %v1099 = vrcp.pop %v1020
  %v1100 = vmul.f32 1.0, %v1099
  %v1101 = vrcp.pop %v1021
  %v1102 = vmul.f32 1.0, %v1101
  %v1103 = vrcp.pop %v1022
  %v1104 = vmul.f32 1.0, %v1103
  %v1105 = vrcp.pop %v1023
  %v1106 = vmul.f32 1.0, %v1105
  %v1107 = vrcp.pop %v1024
  %v1108 = vmul.f32 1.0, %v1107
  %v1109 = vrcp.pop %v1025
  %v1110 = vmul.f32 1.0, %v1109
  %v1111 = vrcp.pop %v1026
  %v1112 = vmul.f32 1.0, %v1111
  %v1113 = vrcp.pop %v1027
  %v1114 = vmul.f32 1.0, %v1113
  %v1115 = vrcp.pop %v1028
  %v1116 = vmul.f32 1.0, %v1115
  %v1117 = vrcp.pop %v1029
  %v1118 = vmul.f32 1.0, %v1117
  %v1119 = vrcp.pop %v1030
  %v1120 = vmul.f32 1.0, %v1119
  %v1121 = vrcp.pop %v1031
  %v1122 = vmul.f32 1.0, %v1121
  %v1123 = vrcp.pop %v1032
  %v1124 = vmul.f32 1.0, %v1123
  %v1125 = vrcp.pop %v1033
  %v1126 = vmul.f32 1.0, %v1125
  %v1127 = vrcp.pop %v1034
  %v1128 = vmul.f32 1.0, %v1127
  %v1129 = vrcp.pop %v1035
  %v1130 = vmul.f32 1.0, %v1129
  %v1131 = vrcp.pop %v1036
  %v1132 = vmul.f32 1.0, %v1131
  %v1133 = vrcp.pop %v1037
  %v1134 = vmul.f32 1.0, %v1133
  %v1135 = vrcp.pop %v1038
  %v1136 = vmul.f32 1.0, %v1135
  %v1137 = vrcp.pop %v1039
  %v1138 = vmul.f32 1.0, %v1137
  %v1139 = vrcp.pop %v1040
  %v1140 = vmul.f32 1.0, %v1139
  %v1141 = vrcp.pop %v1041
  %v1142 = vmul.f32 1.0, %v1141
  %v1143 = vrcp.pop %v1042
  %v1144 = vmul.f32 1.0, %v1143
  %v1145 = vrcp.pop %v1043
  %v1146 = vmul.f32 1.0, %v1145
  %v1147 = vrcp.pop %v1044
  %v1148 = vmul.f32 1.0, %v1147
  %v1149 = vrcp.pop %v1045
  %v1150 = vmul.f32 1.0, %v1149
  %v1151 = vrcp.pop %v1046
  %v1152 = vmul.f32 1.0, %v1151
  %v1153 = vrcp.pop %v1047
  %v1154 = vmul.f32 1.0, %v1153
  %v1155 = vrcp.pop %v1048
  %v1156 = vmul.f32 1.0, %v1155
  %v1157 = vrcp.pop %v1049
  %v1158 = vmul.f32 1.0, %v1157
  %v1159 = vrcp.pop %v1050
  %v1160 = vmul.f32 1.0, %v1159
  %v1161 = vrcp.pop %v1051
  %v1162 = vmul.f32 1.0, %v1161
  %v1163 = vrcp.pop %v1052
  %v1164 = vmul.f32 1.0, %v1163
  %v1165 = vrcp.pop %v1053
  %v1166 = vmul.f32 1.0, %v1165
  %v1167 = vrcp.pop %v1054
  %v1168 = vmul.f32 1.0, %v1167
  %v1169 = vrcp.pop %v1055
  %v1170 = vmul.f32 1.0, %v1169
  %v1171 = vrcp.pop %v1056
  %v1172 = vmul.f32 1.0, %v1171
  %v1173 = vrcp.pop %v1057
  %v1174 = vmul.f32 1.0, %v1173
  %v1175 = vrcp.pop %v1058
  %v1176 = vmul.f32 1.0, %v1175
  %v1177 = vrcp.pop %v1059
  %v1178 = vmul.f32 1.0, %v1177
  %v1179 = vrcp.pop %v1060
  %v1180 = vmul.f32 1.0, %v1179
  %v1181 = vrcp.pop %v1061
  %v1182 = vmul.f32 1.0, %v1181
  %v1183 = vrcp.pop %v1062
  %v1184 = vmul.f32 1.0, %v1183
  %v1185 = vrcp.pop %v1063
  %v1186 = vmul.f32 1.0, %v1185
  %v1187 = vrcp.pop %v1064
  %v1188 = vmul.f32 1.0, %v1187
  %v1189 = vrcp.pop %v1065
  %v1190 = vmul.f32 1.0, %v1189
  %v1191 = vrcp.pop %v1066
  %v1192 = vmul.f32 1.0, %v1191
  %v1193 = vrcp.pop %v1067
  %v1194 = vmul.f32 1.0, %v1193
  %v1195 = vrcp.pop %v1068
  %v1196 = vmul.f32 1.0, %v1195
  %v1197 = vmul.f32 %v749, %v1070
  %v1198 = vmul.f32 %v750, %v1072
  %v1199 = vmul.f32 %v751, %v1074
  %v1200 = vmul.f32 %v752, %v1076
  %v1201 = vmul.f32 %v753, %v1078
  %v1202 = vmul.f32 %v754, %v1080
  %v1203 = vmul.f32 %v755, %v1082
  %v1204 = vmul.f32 %v756, %v1084
  %v1205 = vmul.f32 %v757, %v1086
  %v1206 = vmul.f32 %v758, %v1088
  %v1207 = vmul.f32 %v759, %v1090
  %v1208 = vmul.f32 %v760, %v1092
  %v1209 = vmul.f32 %v761, %v1094
  %v1210 = vmul.f32 %v762, %v1096
  %v1211 = vmul.f32 %v763, %v1098
  %v1212 = vmul.f32 %v764, %v1100
  %v1213 = vmul.f32 %v765, %v1102
  %v1214 = vmul.f32 %v766, %v1104
  %v1215 = vmul.f32 %v767, %v1106
  %v1216 = vmul.f32 %v768, %v1108
  %v1217 = vmul.f32 %v769, %v1110
  %v1218 = vmul.f32 %v770, %v1112
  %v1219 = vmul.f32 %v771, %v1114
  %v1220 = vmul.f32 %v772, %v1116
  %v1221 = vmul.f32 %v773, %v1118
  %v1222 = vmul.f32 %v774, %v1120
  %v1223 = vmul.f32 %v775, %v1122
  %v1224 = vmul.f32 %v776, %v1124
  %v1225 = vmul.f32 %v777, %v1126
  %v1226 = vmul.f32 %v778, %v1128
  %v1227 = vmul.f32 %v779, %v1130
  %v1228 = vmul.f32 %v780, %v1132
  %v1229 = vmul.f32 %v781, %v1134
  %v1230 = vmul.f32 %v782, %v1136
  %v1231 = vmul.f32 %v783, %v1138
  %v1232 = vmul.f32 %v784, %v1140
  %v1233 = vmul.f32 %v785, %v1142
  %v1234 = vmul.f32 %v786, %v1144
  %v1235 = vmul.f32 %v787, %v1146
  %v1236 = vmul.f32 %v788, %v1148
  %v1237 = vmul.f32 %v789, %v1150
  %v1238 = vmul.f32 %v790, %v1152
  %v1239 = vmul.f32 %v791, %v1154
  %v1240 = vmul.f32 %v792, %v1156
  %v1241 = vmul.f32 %v793, %v1158
  %v1242 = vmul.f32 %v794, %v1160
  %v1243 = vmul.f32 %v795, %v1162
  %v1244 = vmul.f32 %v796, %v1164
  %v1245 = vmul.f32 %v797, %v1166
  %v1246 = vmul.f32 %v798, %v1168
  %v1247 = vmul.f32 %v799, %v1170
  %v1248 = vmul.f32 %v800, %v1172
  %v1249 = vmul.f32 %v801, %v1174
  %v1250 = vmul.f32 %v802, %v1176
  %v1251 = vmul.f32 %v803, %v1178
  %v1252 = vmul.f32 %v804, %v1180
  %v1253 = vmul.f32 %v805, %v1182
  %v1254 = vmul.f32 %v806, %v1184
  %v1255 = vmul.f32 %v807, %v1186
  %v1256 = vmul.f32 %v808, %v1188
  %v1257 = vmul.f32 %v809, %v1190
  %v1258 = vmul.f32 %v810, %v1192
  %v1259 = vmul.f32 %v811, %v1194
  %v1260 = vmul.f32 %v812, %v1196
  %vm1261 = vcmask 31744
  %1262 = vst.msk [vmem:[%s7] sm:$0xff] %vm1261, %v1197
  %1263 = vst.msk [vmem:[%s7 + $0x8] sm:$0xff] %vm1261, %v1198
  %1264 = vst.msk [vmem:[%s7 + $0x10] sm:$0xff] %vm1261, %v1199
  %1265 = vst.msk [vmem:[%s7 + $0x18] sm:$0xff] %vm1261, %v1200
  %1266 = vst.msk [vmem:[%s7 + $0x20] sm:$0xff] %vm1261, %v1201
  %1267 = vst.msk [vmem:[%s7 + $0x28] sm:$0xff] %vm1261, %v1202
  %1268 = vst.msk [vmem:[%s7 + $0x30] sm:$0xff] %vm1261, %v1203
  %1269 = vst.msk [vmem:[%s7 + $0x38] sm:$0xff] %vm1261, %v1204
  %1270 = vst.msk [vmem:[%s7 + $0x40] sm:$0xff] %vm1261, %v1205
  %1271 = vst.msk [vmem:[%s7 + $0x48] sm:$0xff] %vm1261, %v1206
  %1272 = vst.msk [vmem:[%s7 + $0x50] sm:$0xff] %vm1261, %v1207
  %1273 = vst.msk [vmem:[%s7 + $0x58] sm:$0xff] %vm1261, %v1208
  %1274 = vst.msk [vmem:[%s7 + $0x60] sm:$0xff] %vm1261, %v1209
  %1275 = vst.msk [vmem:[%s7 + $0x68] sm:$0xff] %vm1261, %v1210
  %1276 = vst.msk [vmem:[%s7 + $0x70] sm:$0xff] %vm1261, %v1211
  %1277 = vst.msk [vmem:[%s7 + $0x78] sm:$0xff] %vm1261, %v1212
  %1278 = vst.msk [vmem:[%s7 + $0x80] sm:$0xff] %vm1261, %v1213
  %1279 = vst.msk [vmem:[%s7 + $0x88] sm:$0xff] %vm1261, %v1214
  %1280 = vst.msk [vmem:[%s7 + $0x90] sm:$0xff] %vm1261, %v1215
  %1281 = vst.msk [vmem:[%s7 + $0x98] sm:$0xff] %vm1261, %v1216
  %1282 = vst.msk [vmem:[%s7 + $0xa0] sm:$0xff] %vm1261, %v1217
  %1283 = vst.msk [vmem:[%s7 + $0xa8] sm:$0xff] %vm1261, %v1218
  %1284 = vst.msk [vmem:[%s7 + $0xb0] sm:$0xff] %vm1261, %v1219
  %1285 = vst.msk [vmem:[%s7 + $0xb8] sm:$0xff] %vm1261, %v1220
  %1286 = vst.msk [vmem:[%s7 + $0xc0] sm:$0xff] %vm1261, %v1221
  %1287 = vst.msk [vmem:[%s7 + $0xc8] sm:$0xff] %vm1261, %v1222
  %1288 = vst.msk [vmem:[%s7 + $0xd0] sm:$0xff] %vm1261, %v1223
  %1289 = vst.msk [vmem:[%s7 + $0xd8] sm:$0xff] %vm1261, %v1224
  %1290 = vst.msk [vmem:[%s7 + $0xe0] sm:$0xff] %vm1261, %v1225
  %1291 = vst.msk [vmem:[%s7 + $0xe8] sm:$0xff] %vm1261, %v1226
  %1292 = vst.msk [vmem:[%s7 + $0xf0] sm:$0xff] %vm1261, %v1227
  %1293 = vst.msk [vmem:[%s7 + $0xf8] sm:$0xff] %vm1261, %v1228
  %1294 = vst.msk [vmem:[%s7 + $0x100] sm:$0xff] %vm1261, %v1229
  %1295 = vst.msk [vmem:[%s7 + $0x108] sm:$0xff] %vm1261, %v1230
  %1296 = vst.msk [vmem:[%s7 + $0x110] sm:$0xff] %vm1261, %v1231
  %1297 = vst.msk [vmem:[%s7 + $0x118] sm:$0xff] %vm1261, %v1232
  %1298 = vst.msk [vmem:[%s7 + $0x120] sm:$0xff] %vm1261, %v1233
  %1299 = vst.msk [vmem:[%s7 + $0x128] sm:$0xff] %vm1261, %v1234
  %1300 = vst.msk [vmem:[%s7 + $0x130] sm:$0xff] %vm1261, %v1235
  %1301 = vst.msk [vmem:[%s7 + $0x138] sm:$0xff] %vm1261, %v1236
  %1302 = vst.msk [vmem:[%s7 + $0x140] sm:$0xff] %vm1261, %v1237
  %1303 = vst.msk [vmem:[%s7 + $0x148] sm:$0xff] %vm1261, %v1238
  %1304 = vst.msk [vmem:[%s7 + $0x150] sm:$0xff] %vm1261, %v1239
  %1305 = vst.msk [vmem:[%s7 + $0x158] sm:$0xff] %vm1261, %v1240
  %1306 = vst.msk [vmem:[%s7 + $0x160] sm:$0xff] %vm1261, %v1241
  %1307 = vst.msk [vmem:[%s7 + $0x168] sm:$0xff] %vm1261, %v1242
  %1308 = vst.msk [vmem:[%s7 + $0x170] sm:$0xff] %vm1261, %v1243
  %1309 = vst.msk [vmem:[%s7 + $0x178] sm:$0xff] %vm1261, %v1244
  %1310 = vst.msk [vmem:[%s7 + $0x180] sm:$0xff] %vm1261, %v1245
  %1311 = vst.msk [vmem:[%s7 + $0x188] sm:$0xff] %vm1261, %v1246
  %1312 = vst.msk [vmem:[%s7 + $0x190] sm:$0xff] %vm1261, %v1247
  %1313 = vst.msk [vmem:[%s7 + $0x198] sm:$0xff] %vm1261, %v1248
  %1314 = vst.msk [vmem:[%s7 + $0x1a0] sm:$0xff] %vm1261, %v1249
  %1315 = vst.msk [vmem:[%s7 + $0x1a8] sm:$0xff] %vm1261, %v1250
  %1316 = vst.msk [vmem:[%s7 + $0x1b0] sm:$0xff] %vm1261, %v1251
  %1317 = vst.msk [vmem:[%s7 + $0x1b8] sm:$0xff] %vm1261, %v1252
  %1318 = vst.msk [vmem:[%s7 + $0x1c0] sm:$0xff] %vm1261, %v1253
  %1319 = vst.msk [vmem:[%s7 + $0x1c8] sm:$0xff] %vm1261, %v1254
  %1320 = vst.msk [vmem:[%s7 + $0x1d0] sm:$0xff] %vm1261, %v1255
  %1321 = vst.msk [vmem:[%s7 + $0x1d8] sm:$0xff] %vm1261, %v1256
  %1322 = vst.msk [vmem:[%s7 + $0x1e0] sm:$0xff] %vm1261, %v1257
  %1323 = vst.msk [vmem:[%s7 + $0x1e8] sm:$0xff] %vm1261, %v1258
  %1324 = vst.msk [vmem:[%s7 + $0x1f0] sm:$0xff] %vm1261, %v1259
  %1325 = vst.msk [vmem:[%s7 + $0x1f8] sm:$0xff] %vm1261, %v1260
  %v1326 = vld [vmem:[%s2] sm:$0xff]
  %1327 = vmatprep.subr.mxu0 0.0
  %1328 = vmatpush1.msra.mxu0 0.0
  %1329 = vmatprep.subr.mxu0 0.0
  %1330 = vmatpush1.msra.mxu0 0.0
  %1331 = vmatprep.subr.mxu0 0.0
  %1332 = vmatpush1.msra.mxu0 0.0
  %1333 = vmatprep.subr.mxu0 0.0
  %1334 = vmatpush1.msra.mxu0 0.0
  %1335 = vmatprep.subr.mxu0 0.0
  %1336 = vmatpush1.msra.mxu0 0.0
  %1337 = vmatprep.subr.mxu0 0.0
  %1338 = vmatpush1.msra.mxu0 0.0
  %1339 = vmatprep.subr.mxu0 0.0
  %1340 = vmatpush1.msra.mxu0 0.0
  %1341 = vmatprep.subr.mxu0 0.0
  %1342 = vmatpush1.msra.mxu0 0.0
  %1343 = vmatprep.subr.mxu0 0.0
  %1344 = vmatpush1.msra.mxu0 0.0
  %1345 = vmatprep.subr.mxu0 0.0
  %1346 = vmatpush1.msra.mxu0 0.0
  %1347 = vmatprep.subr.mxu0 0.0
  %1348 = vmatpush1.msra.mxu0 0.0
  %1349 = vmatprep.subr.mxu0 0.0
  %1350 = vmatpush1.msra.mxu0 0.0
  %1351 = vmatprep.subr.mxu0 0.0
  %1352 = vmatpush1.msra.mxu0 0.0
  %1353 = vmatprep.subr.mxu0 0.0
  %1354 = vmatpush1.msra.mxu0 0.0
  %1355 = vmatprep.subr.mxu0 0.0
  %1356 = vmatpush1.msra.mxu0 0.0
  %1357 = vmatprep.subr.mxu0 0.0
  %1358 = vmatpush1.msra.mxu0 %v1326
  %1359 = vmatprep.subr.mxu0 0.0
  %1360 = vmatpush2.msra.mxu0 0.0
  %1361 = vmatprep.subr.mxu0 0.0
  %1362 = vmatpush2.msra.mxu0 0.0
  %1363 = vmatprep.subr.mxu0 0.0
  %1364 = vmatpush2.msra.mxu0 0.0
  %1365 = vmatprep.subr.mxu0 0.0
  %1366 = vmatpush2.msra.mxu0 0.0
  %1367 = vmatprep.subr.mxu0 0.0
  %1368 = vmatpush2.msra.mxu0 0.0
  %1369 = vmatprep.subr.mxu0 0.0
  %1370 = vmatpush2.msra.mxu0 0.0
  %1371 = vmatprep.subr.mxu0 0.0
  %1372 = vmatpush2.msra.mxu0 0.0
  %1373 = vmatprep.subr.mxu0 0.0
  %1374 = vmatpush2.msra.mxu0 0.0
  %1375 = vmatprep.subr.mxu0 0.0
  %1376 = vmatpush2.msra.mxu0 0.0
  %1377 = vmatprep.subr.mxu0 0.0
  %1378 = vmatpush2.msra.mxu0 0.0
  %1379 = vmatprep.subr.mxu0 0.0
  %1380 = vmatpush2.msra.mxu0 0.0
  %1381 = vmatprep.subr.mxu0 0.0
  %1382 = vmatpush2.msra.mxu0 0.0
  %1383 = vmatprep.subr.mxu0 0.0
  %1384 = vmatpush2.msra.mxu0 0.0
  %1385 = vmatprep.subr.mxu0 0.0
  %1386 = vmatpush2.msra.mxu0 0.0
  %1387 = vmatprep.subr.mxu0 0.0
  %1388 = vmatpush2.msra.mxu0 0.0
  %1389 = vmatprep.subr.mxu0 0.0
  %1390 = vmatpush2.msra.mxu0 0.0
  %1391 = vmatprep.mubr.f32.mxu0 0.0
  %1392 = vmatmul.mubr.f32.gmra.mxu0 %v95
  %v1393 = vpop.f32.mrf.mxu0
  %v1394 = vadd.f32 0.0, %v1393
  %v1395 = vpop.f32.mrf.mxu0
  %1396 = vmatprep.mubr.f32.mxu0 0.0
  %1397 = vmatmul.mubr.f32.gmra.mxu0 %v98
  %v1398 = vpop.f32.mrf.mxu0
  %v1399 = vadd.f32 0.0, %v1398
  %v1400 = vpop.f32.mrf.mxu0
  %1401 = vmatprep.mubr.f32.mxu0 0.0
  %1402 = vmatmul.mubr.f32.gmra.mxu0 %v101
  %v1403 = vpop.f32.mrf.mxu0
  %v1404 = vadd.f32 0.0, %v1403
  %v1405 = vpop.f32.mrf.mxu0
  %1406 = vmatprep.mubr.f32.mxu0 0.0
  %1407 = vmatmul.mubr.f32.gmra.mxu0 %v104
  %v1408 = vpop.f32.mrf.mxu0
  %v1409 = vadd.f32 0.0, %v1408
  %v1410 = vpop.f32.mrf.mxu0
  %1411 = vmatprep.mubr.f32.mxu0 0.0
  %1412 = vmatmul.mubr.f32.gmra.mxu0 %v107
  %v1413 = vpop.f32.mrf.mxu0
  %v1414 = vadd.f32 0.0, %v1413
  %v1415 = vpop.f32.mrf.mxu0
  %1416 = vmatprep.mubr.f32.mxu0 0.0
  %1417 = vmatmul.mubr.f32.gmra.mxu0 %v110
  %v1418 = vpop.f32.mrf.mxu0
  %v1419 = vadd.f32 0.0, %v1418
  %v1420 = vpop.f32.mrf.mxu0
  %1421 = vmatprep.mubr.f32.mxu0 0.0
  %1422 = vmatmul.mubr.f32.gmra.mxu0 %v113
  %v1423 = vpop.f32.mrf.mxu0
  %v1424 = vadd.f32 0.0, %v1423
  %v1425 = vpop.f32.mrf.mxu0
  %1426 = vmatprep.mubr.f32.mxu0 0.0
  %1427 = vmatmul.mubr.f32.gmra.mxu0 %v116
  %v1428 = vpop.f32.mrf.mxu0
  %v1429 = vadd.f32 0.0, %v1428
  %v1430 = vpop.f32.mrf.mxu0
  %1431 = vmatprep.mubr.f32.mxu0 0.0
  %1432 = vmatmul.mubr.f32.gmra.mxu0 %v119
  %v1433 = vpop.f32.mrf.mxu0
  %v1434 = vadd.f32 0.0, %v1433
  %v1435 = vpop.f32.mrf.mxu0
  %1436 = vmatprep.mubr.f32.mxu0 0.0
  %1437 = vmatmul.mubr.f32.gmra.mxu0 %v122
  %v1438 = vpop.f32.mrf.mxu0
  %v1439 = vadd.f32 0.0, %v1438
  %v1440 = vpop.f32.mrf.mxu0
  %1441 = vmatprep.mubr.f32.mxu0 0.0
  %1442 = vmatmul.mubr.f32.gmra.mxu0 %v125
  %v1443 = vpop.f32.mrf.mxu0
  %v1444 = vadd.f32 0.0, %v1443
  %v1445 = vpop.f32.mrf.mxu0
  %1446 = vmatprep.mubr.f32.mxu0 0.0
  %1447 = vmatmul.mubr.f32.gmra.mxu0 %v128
  %v1448 = vpop.f32.mrf.mxu0
  %v1449 = vadd.f32 0.0, %v1448
  %v1450 = vpop.f32.mrf.mxu0
  %1451 = vmatprep.mubr.f32.mxu0 0.0
  %1452 = vmatmul.mubr.f32.gmra.mxu0 %v131
  %v1453 = vpop.f32.mrf.mxu0
  %v1454 = vadd.f32 0.0, %v1453
  %v1455 = vpop.f32.mrf.mxu0
  %1456 = vmatprep.mubr.f32.mxu0 0.0
  %1457 = vmatmul.mubr.f32.gmra.mxu0 %v134
  %v1458 = vpop.f32.mrf.mxu0
  %v1459 = vadd.f32 0.0, %v1458
  %v1460 = vpop.f32.mrf.mxu0
  %1461 = vmatprep.mubr.f32.mxu0 0.0
  %1462 = vmatmul.mubr.f32.gmra.mxu0 %v137
  %v1463 = vpop.f32.mrf.mxu0
  %v1464 = vadd.f32 0.0, %v1463
  %v1465 = vpop.f32.mrf.mxu0
  %1466 = vmatprep.mubr.f32.mxu0 0.0
  %1467 = vmatmul.mubr.f32.gmra.mxu0 %v140
  %v1468 = vpop.f32.mrf.mxu0
  %v1469 = vadd.f32 0.0, %v1468
  %v1470 = vpop.f32.mrf.mxu0
  %1471 = vmatprep.mubr.f32.mxu0 0.0
  %1472 = vmatmul.mubr.f32.gmra.mxu0 %v143
  %v1473 = vpop.f32.mrf.mxu0
  %v1474 = vadd.f32 0.0, %v1473
  %v1475 = vpop.f32.mrf.mxu0
  %1476 = vmatprep.mubr.f32.mxu0 0.0
  %1477 = vmatmul.mubr.f32.gmra.mxu0 %v146
  %v1478 = vpop.f32.mrf.mxu0
  %v1479 = vadd.f32 0.0, %v1478
  %v1480 = vpop.f32.mrf.mxu0
  %1481 = vmatprep.mubr.f32.mxu0 0.0
  %1482 = vmatmul.mubr.f32.gmra.mxu0 %v149
  %v1483 = vpop.f32.mrf.mxu0
  %v1484 = vadd.f32 0.0, %v1483
  %v1485 = vpop.f32.mrf.mxu0
  %1486 = vmatprep.mubr.f32.mxu0 0.0
  %1487 = vmatmul.mubr.f32.gmra.mxu0 %v152
  %v1488 = vpop.f32.mrf.mxu0
  %v1489 = vadd.f32 0.0, %v1488
  %v1490 = vpop.f32.mrf.mxu0
  %1491 = vmatprep.mubr.f32.mxu0 0.0
  %1492 = vmatmul.mubr.f32.gmra.mxu0 %v155
  %v1493 = vpop.f32.mrf.mxu0
  %v1494 = vadd.f32 0.0, %v1493
  %v1495 = vpop.f32.mrf.mxu0
  %1496 = vmatprep.mubr.f32.mxu0 0.0
  %1497 = vmatmul.mubr.f32.gmra.mxu0 %v158
  %v1498 = vpop.f32.mrf.mxu0
  %v1499 = vadd.f32 0.0, %v1498
  %v1500 = vpop.f32.mrf.mxu0
  %1501 = vmatprep.mubr.f32.mxu0 0.0
  %1502 = vmatmul.mubr.f32.gmra.mxu0 %v161
  %v1503 = vpop.f32.mrf.mxu0
  %v1504 = vadd.f32 0.0, %v1503
  %v1505 = vpop.f32.mrf.mxu0
  %1506 = vmatprep.mubr.f32.mxu0 0.0
  %1507 = vmatmul.mubr.f32.gmra.mxu0 %v164
  %v1508 = vpop.f32.mrf.mxu0
  %v1509 = vadd.f32 0.0, %v1508
  %v1510 = vpop.f32.mrf.mxu0
  %1511 = vmatprep.mubr.f32.mxu0 0.0
  %1512 = vmatmul.mubr.f32.gmra.mxu0 %v167
  %v1513 = vpop.f32.mrf.mxu0
  %v1514 = vadd.f32 0.0, %v1513
  %v1515 = vpop.f32.mrf.mxu0
  %1516 = vmatprep.mubr.f32.mxu0 0.0
  %1517 = vmatmul.mubr.f32.gmra.mxu0 %v170
  %v1518 = vpop.f32.mrf.mxu0
  %v1519 = vadd.f32 0.0, %v1518
  %v1520 = vpop.f32.mrf.mxu0
  %1521 = vmatprep.mubr.f32.mxu0 0.0
  %1522 = vmatmul.mubr.f32.gmra.mxu0 %v173
  %v1523 = vpop.f32.mrf.mxu0
  %v1524 = vadd.f32 0.0, %v1523
  %v1525 = vpop.f32.mrf.mxu0
  %1526 = vmatprep.mubr.f32.mxu0 0.0
  %1527 = vmatmul.mubr.f32.gmra.mxu0 %v176
  %v1528 = vpop.f32.mrf.mxu0
  %v1529 = vadd.f32 0.0, %v1528
  %v1530 = vpop.f32.mrf.mxu0
  %1531 = vmatprep.mubr.f32.mxu0 0.0
  %1532 = vmatmul.mubr.f32.gmra.mxu0 %v179
  %v1533 = vpop.f32.mrf.mxu0
  %v1534 = vadd.f32 0.0, %v1533
  %v1535 = vpop.f32.mrf.mxu0
  %1536 = vmatprep.mubr.f32.mxu0 0.0
  %1537 = vmatmul.mubr.f32.gmra.mxu0 %v182
  %v1538 = vpop.f32.mrf.mxu0
  %v1539 = vadd.f32 0.0, %v1538
  %v1540 = vpop.f32.mrf.mxu0
  %1541 = vmatprep.mubr.f32.mxu0 0.0
  %1542 = vmatmul.mubr.f32.gmra.mxu0 %v185
  %v1543 = vpop.f32.mrf.mxu0
  %v1544 = vadd.f32 0.0, %v1543
  %v1545 = vpop.f32.mrf.mxu0
  %1546 = vmatprep.mubr.f32.mxu0 0.0
  %1547 = vmatmul.mubr.f32.gmra.mxu0 %v188
  %v1548 = vpop.f32.mrf.mxu0
  %v1549 = vadd.f32 0.0, %v1548
  %v1550 = vpop.f32.mrf.mxu0
  %1551 = vmatprep.mubr.f32.mxu0 0.0
  %1552 = vmatmul.mubr.f32.gmra.mxu0 %v191
  %v1553 = vpop.f32.mrf.mxu0
  %v1554 = vadd.f32 0.0, %v1553
  %v1555 = vpop.f32.mrf.mxu0
  %1556 = vmatprep.mubr.f32.mxu0 0.0
  %1557 = vmatmul.mubr.f32.gmra.mxu0 %v194
  %v1558 = vpop.f32.mrf.mxu0
  %v1559 = vadd.f32 0.0, %v1558
  %v1560 = vpop.f32.mrf.mxu0
  %1561 = vmatprep.mubr.f32.mxu0 0.0
  %1562 = vmatmul.mubr.f32.gmra.mxu0 %v197
  %v1563 = vpop.f32.mrf.mxu0
  %v1564 = vadd.f32 0.0, %v1563
  %v1565 = vpop.f32.mrf.mxu0
  %1566 = vmatprep.mubr.f32.mxu0 0.0
  %1567 = vmatmul.mubr.f32.gmra.mxu0 %v200
  %v1568 = vpop.f32.mrf.mxu0
  %v1569 = vadd.f32 0.0, %v1568
  %v1570 = vpop.f32.mrf.mxu0
  %1571 = vmatprep.mubr.f32.mxu0 0.0
  %1572 = vmatmul.mubr.f32.gmra.mxu0 %v203
  %v1573 = vpop.f32.mrf.mxu0
  %v1574 = vadd.f32 0.0, %v1573
  %v1575 = vpop.f32.mrf.mxu0
  %1576 = vmatprep.mubr.f32.mxu0 0.0
  %1577 = vmatmul.mubr.f32.gmra.mxu0 %v206
  %v1578 = vpop.f32.mrf.mxu0
  %v1579 = vadd.f32 0.0, %v1578
  %v1580 = vpop.f32.mrf.mxu0
  %1581 = vmatprep.mubr.f32.mxu0 0.0
  %1582 = vmatmul.mubr.f32.gmra.mxu0 %v209
  %v1583 = vpop.f32.mrf.mxu0
  %v1584 = vadd.f32 0.0, %v1583
  %v1585 = vpop.f32.mrf.mxu0
  %1586 = vmatprep.mubr.f32.mxu0 0.0
  %1587 = vmatmul.mubr.f32.gmra.mxu0 %v212
  %v1588 = vpop.f32.mrf.mxu0
  %v1589 = vadd.f32 0.0, %v1588
  %v1590 = vpop.f32.mrf.mxu0
  %1591 = vmatprep.mubr.f32.mxu0 0.0
  %1592 = vmatmul.mubr.f32.gmra.mxu0 %v215
  %v1593 = vpop.f32.mrf.mxu0
  %v1594 = vadd.f32 0.0, %v1593
  %v1595 = vpop.f32.mrf.mxu0
  %1596 = vmatprep.mubr.f32.mxu0 0.0
  %1597 = vmatmul.mubr.f32.gmra.mxu0 %v218
  %v1598 = vpop.f32.mrf.mxu0
  %v1599 = vadd.f32 0.0, %v1598
  %v1600 = vpop.f32.mrf.mxu0
  %1601 = vmatprep.mubr.f32.mxu0 0.0
  %1602 = vmatmul.mubr.f32.gmra.mxu0 %v221
  %v1603 = vpop.f32.mrf.mxu0
  %v1604 = vadd.f32 0.0, %v1603
  %v1605 = vpop.f32.mrf.mxu0
  %1606 = vmatprep.mubr.f32.mxu0 0.0
  %1607 = vmatmul.mubr.f32.gmra.mxu0 %v224
  %v1608 = vpop.f32.mrf.mxu0
  %v1609 = vadd.f32 0.0, %v1608
  %v1610 = vpop.f32.mrf.mxu0
  %1611 = vmatprep.mubr.f32.mxu0 0.0
  %1612 = vmatmul.mubr.f32.gmra.mxu0 %v227
  %v1613 = vpop.f32.mrf.mxu0
  %v1614 = vadd.f32 0.0, %v1613
  %v1615 = vpop.f32.mrf.mxu0
  %1616 = vmatprep.mubr.f32.mxu0 0.0
  %1617 = vmatmul.mubr.f32.gmra.mxu0 %v230
  %v1618 = vpop.f32.mrf.mxu0
  %v1619 = vadd.f32 0.0, %v1618
  %v1620 = vpop.f32.mrf.mxu0
  %1621 = vmatprep.mubr.f32.mxu0 0.0
  %1622 = vmatmul.mubr.f32.gmra.mxu0 %v233
  %v1623 = vpop.f32.mrf.mxu0
  %v1624 = vadd.f32 0.0, %v1623
  %v1625 = vpop.f32.mrf.mxu0
  %1626 = vmatprep.mubr.f32.mxu0 0.0
  %1627 = vmatmul.mubr.f32.gmra.mxu0 %v236
  %v1628 = vpop.f32.mrf.mxu0
  %v1629 = vadd.f32 0.0, %v1628
  %v1630 = vpop.f32.mrf.mxu0
  %1631 = vmatprep.mubr.f32.mxu0 0.0
  %1632 = vmatmul.mubr.f32.gmra.mxu0 %v239
  %v1633 = vpop.f32.mrf.mxu0
  %v1634 = vadd.f32 0.0, %v1633
  %v1635 = vpop.f32.mrf.mxu0
  %1636 = vmatprep.mubr.f32.mxu0 0.0
  %1637 = vmatmul.mubr.f32.gmra.mxu0 %v242
  %v1638 = vpop.f32.mrf.mxu0
  %v1639 = vadd.f32 0.0, %v1638
  %v1640 = vpop.f32.mrf.mxu0
  %1641 = vmatprep.mubr.f32.mxu0 0.0
  %1642 = vmatmul.mubr.f32.gmra.mxu0 %v245
  %v1643 = vpop.f32.mrf.mxu0
  %v1644 = vadd.f32 0.0, %v1643
  %v1645 = vpop.f32.mrf.mxu0
  %1646 = vmatprep.mubr.f32.mxu0 0.0
  %1647 = vmatmul.mubr.f32.gmra.mxu0 %v248
  %v1648 = vpop.f32.mrf.mxu0
  %v1649 = vadd.f32 0.0, %v1648
  %v1650 = vpop.f32.mrf.mxu0
  %1651 = vmatprep.mubr.f32.mxu0 0.0
  %1652 = vmatmul.mubr.f32.gmra.mxu0 %v251
  %v1653 = vpop.f32.mrf.mxu0
  %v1654 = vadd.f32 0.0, %v1653
  %v1655 = vpop.f32.mrf.mxu0
  %1656 = vmatprep.mubr.f32.mxu0 0.0
  %1657 = vmatmul.mubr.f32.gmra.mxu0 %v254
  %v1658 = vpop.f32.mrf.mxu0
  %v1659 = vadd.f32 0.0, %v1658
  %v1660 = vpop.f32.mrf.mxu0
  %1661 = vmatprep.mubr.f32.mxu0 0.0
  %1662 = vmatmul.mubr.f32.gmra.mxu0 %v257
  %v1663 = vpop.f32.mrf.mxu0
  %v1664 = vadd.f32 0.0, %v1663
  %v1665 = vpop.f32.mrf.mxu0
  %1666 = vmatprep.mubr.f32.mxu0 0.0
  %1667 = vmatmul.mubr.f32.gmra.mxu0 %v260
  %v1668 = vpop.f32.mrf.mxu0
  %v1669 = vadd.f32 0.0, %v1668
  %v1670 = vpop.f32.mrf.mxu0
  %1671 = vmatprep.mubr.f32.mxu0 0.0
  %1672 = vmatmul.mubr.f32.gmra.mxu0 %v263
  %v1673 = vpop.f32.mrf.mxu0
  %v1674 = vadd.f32 0.0, %v1673
  %v1675 = vpop.f32.mrf.mxu0
  %1676 = vmatprep.mubr.f32.mxu0 0.0
  %1677 = vmatmul.mubr.f32.gmra.mxu0 %v266
  %v1678 = vpop.f32.mrf.mxu0
  %v1679 = vadd.f32 0.0, %v1678
  %v1680 = vpop.f32.mrf.mxu0
  %1681 = vmatprep.mubr.f32.mxu0 0.0
  %1682 = vmatmul.mubr.f32.gmra.mxu0 %v269
  %v1683 = vpop.f32.mrf.mxu0
  %v1684 = vadd.f32 0.0, %v1683
  %v1685 = vpop.f32.mrf.mxu0
  %1686 = vmatprep.mubr.f32.mxu0 0.0
  %1687 = vmatmul.mubr.f32.gmra.mxu0 %v272
  %v1688 = vpop.f32.mrf.mxu0
  %v1689 = vadd.f32 0.0, %v1688
  %v1690 = vpop.f32.mrf.mxu0
  %1691 = vmatprep.mubr.f32.mxu0 0.0
  %1692 = vmatmul.mubr.f32.gmra.mxu0 %v275
  %v1693 = vpop.f32.mrf.mxu0
  %v1694 = vadd.f32 0.0, %v1693
  %v1695 = vpop.f32.mrf.mxu0
  %1696 = vmatprep.mubr.f32.mxu0 0.0
  %1697 = vmatmul.mubr.f32.gmra.mxu0 %v278
  %v1698 = vpop.f32.mrf.mxu0
  %v1699 = vadd.f32 0.0, %v1698
  %v1700 = vpop.f32.mrf.mxu0
  %1701 = vmatprep.mubr.f32.mxu0 0.0
  %1702 = vmatmul.mubr.f32.gmra.mxu0 %v281
  %v1703 = vpop.f32.mrf.mxu0
  %v1704 = vadd.f32 0.0, %v1703
  %v1705 = vpop.f32.mrf.mxu0
  %1706 = vmatprep.mubr.f32.mxu0 0.0
  %1707 = vmatmul.mubr.f32.gmra.mxu0 %v284
  %v1708 = vpop.f32.mrf.mxu0
  %v1709 = vadd.f32 0.0, %v1708
  %v1710 = vpop.f32.mrf.mxu0
  %1711 = vdwg.mxu0
  %v1712 = vld [vmem:[%s5] sm:$0x1]
  %v1714 = vlaneseq
  %v1715 = vshrl.u32 %v1714, 7
  %v1716 = vsub.s32 0, %v1715
  %v1717 = vrot.slane %v1712, %v1716
  %v1719 = vmul.f32 %v1394, %v1717
  %v1720 = vmul.f32 %v1399, %v1717
  %v1721 = vmul.f32 %v1404, %v1717
  %v1722 = vmul.f32 %v1409, %v1717
  %v1723 = vmul.f32 %v1414, %v1717
  %v1724 = vmul.f32 %v1419, %v1717
  %v1725 = vmul.f32 %v1424, %v1717
  %v1726 = vmul.f32 %v1429, %v1717
  %v1727 = vmul.f32 %v1434, %v1717
  %v1728 = vmul.f32 %v1439, %v1717
  %v1729 = vmul.f32 %v1444, %v1717
  %v1730 = vmul.f32 %v1449, %v1717
  %v1731 = vmul.f32 %v1454, %v1717
  %v1732 = vmul.f32 %v1459, %v1717
  %v1733 = vmul.f32 %v1464, %v1717
  %v1734 = vmul.f32 %v1469, %v1717
  %v1735 = vmul.f32 %v1474, %v1717
  %v1736 = vmul.f32 %v1479, %v1717
  %v1737 = vmul.f32 %v1484, %v1717
  %v1738 = vmul.f32 %v1489, %v1717
  %v1739 = vmul.f32 %v1494, %v1717
  %v1740 = vmul.f32 %v1499, %v1717
  %v1741 = vmul.f32 %v1504, %v1717
  %v1742 = vmul.f32 %v1509, %v1717
  %v1743 = vmul.f32 %v1514, %v1717
  %v1744 = vmul.f32 %v1519, %v1717
  %v1745 = vmul.f32 %v1524, %v1717
  %v1746 = vmul.f32 %v1529, %v1717
  %v1747 = vmul.f32 %v1534, %v1717
  %v1748 = vmul.f32 %v1539, %v1717
  %v1749 = vmul.f32 %v1544, %v1717
  %v1750 = vmul.f32 %v1549, %v1717
  %v1751 = vmul.f32 %v1554, %v1717
  %v1752 = vmul.f32 %v1559, %v1717
  %v1753 = vmul.f32 %v1564, %v1717
  %v1754 = vmul.f32 %v1569, %v1717
  %v1755 = vmul.f32 %v1574, %v1717
  %v1756 = vmul.f32 %v1579, %v1717
  %v1757 = vmul.f32 %v1584, %v1717
  %v1758 = vmul.f32 %v1589, %v1717
  %v1759 = vmul.f32 %v1594, %v1717
  %v1760 = vmul.f32 %v1599, %v1717
  %v1761 = vmul.f32 %v1604, %v1717
  %v1762 = vmul.f32 %v1609, %v1717
  %v1763 = vmul.f32 %v1614, %v1717
  %v1764 = vmul.f32 %v1619, %v1717
  %v1765 = vmul.f32 %v1624, %v1717
  %v1766 = vmul.f32 %v1629, %v1717
  %v1767 = vmul.f32 %v1634, %v1717
  %v1768 = vmul.f32 %v1639, %v1717
  %v1769 = vmul.f32 %v1644, %v1717
  %v1770 = vmul.f32 %v1649, %v1717
  %v1771 = vmul.f32 %v1654, %v1717
  %v1772 = vmul.f32 %v1659, %v1717
  %v1773 = vmul.f32 %v1664, %v1717
  %v1774 = vmul.f32 %v1669, %v1717
  %v1775 = vmul.f32 %v1674, %v1717
  %v1776 = vmul.f32 %v1679, %v1717
  %v1777 = vmul.f32 %v1684, %v1717
  %v1778 = vmul.f32 %v1689, %v1717
  %v1779 = vmul.f32 %v1694, %v1717
  %v1780 = vmul.f32 %v1699, %v1717
  %v1781 = vmul.f32 %v1704, %v1717
  %v1782 = vmul.f32 %v1709, %v1717
  %v1783 = vld [vmem:[%s6] sm:$0x1]
  %v1785 = vlaneseq
  %v1786 = vshrl.u32 %v1785, 7
  %v1787 = vsub.s32 0, %v1786
  %v1788 = vrot.slane %v1783, %v1787
  %v1790 = vadd.f32 %v1719, %v1788
  %v1791 = vadd.f32 %v1720, %v1788
  %v1792 = vadd.f32 %v1721, %v1788
  %v1793 = vadd.f32 %v1722, %v1788
  %v1794 = vadd.f32 %v1723, %v1788
  %v1795 = vadd.f32 %v1724, %v1788
  %v1796 = vadd.f32 %v1725, %v1788
  %v1797 = vadd.f32 %v1726, %v1788
  %v1798 = vadd.f32 %v1727, %v1788
  %v1799 = vadd.f32 %v1728, %v1788
  %v1800 = vadd.f32 %v1729, %v1788
  %v1801 = vadd.f32 %v1730, %v1788
  %v1802 = vadd.f32 %v1731, %v1788
  %v1803 = vadd.f32 %v1732, %v1788
  %v1804 = vadd.f32 %v1733, %v1788
  %v1805 = vadd.f32 %v1734, %v1788
  %v1806 = vadd.f32 %v1735, %v1788
  %v1807 = vadd.f32 %v1736, %v1788
  %v1808 = vadd.f32 %v1737, %v1788
  %v1809 = vadd.f32 %v1738, %v1788
  %v1810 = vadd.f32 %v1739, %v1788
  %v1811 = vadd.f32 %v1740, %v1788
  %v1812 = vadd.f32 %v1741, %v1788
  %v1813 = vadd.f32 %v1742, %v1788
  %v1814 = vadd.f32 %v1743, %v1788
  %v1815 = vadd.f32 %v1744, %v1788
  %v1816 = vadd.f32 %v1745, %v1788
  %v1817 = vadd.f32 %v1746, %v1788
  %v1818 = vadd.f32 %v1747, %v1788
  %v1819 = vadd.f32 %v1748, %v1788
  %v1820 = vadd.f32 %v1749, %v1788
  %v1821 = vadd.f32 %v1750, %v1788
  %v1822 = vadd.f32 %v1751, %v1788
  %v1823 = vadd.f32 %v1752, %v1788
  %v1824 = vadd.f32 %v1753, %v1788
  %v1825 = vadd.f32 %v1754, %v1788
  %v1826 = vadd.f32 %v1755, %v1788
  %v1827 = vadd.f32 %v1756, %v1788
  %v1828 = vadd.f32 %v1757, %v1788
  %v1829 = vadd.f32 %v1758, %v1788
  %v1830 = vadd.f32 %v1759, %v1788
  %v1831 = vadd.f32 %v1760, %v1788
  %v1832 = vadd.f32 %v1761, %v1788
  %v1833 = vadd.f32 %v1762, %v1788
  %v1834 = vadd.f32 %v1763, %v1788
  %v1835 = vadd.f32 %v1764, %v1788
  %v1836 = vadd.f32 %v1765, %v1788
  %v1837 = vadd.f32 %v1766, %v1788
  %v1838 = vadd.f32 %v1767, %v1788
  %v1839 = vadd.f32 %v1768, %v1788
  %v1840 = vadd.f32 %v1769, %v1788
  %v1841 = vadd.f32 %v1770, %v1788
  %v1842 = vadd.f32 %v1771, %v1788
  %v1843 = vadd.f32 %v1772, %v1788
  %v1844 = vadd.f32 %v1773, %v1788
  %v1845 = vadd.f32 %v1774, %v1788
  %v1846 = vadd.f32 %v1775, %v1788
  %v1847 = vadd.f32 %v1776, %v1788
  %v1848 = vadd.f32 %v1777, %v1788
  %v1849 = vadd.f32 %v1778, %v1788
  %v1850 = vadd.f32 %v1779, %v1788
  %v1851 = vadd.f32 %v1780, %v1788
  %v1852 = vadd.f32 %v1781, %v1788
  %v1853 = vadd.f32 %v1782, %v1788
  %v1854 = vxor.u32 %v1790, 2147483648
  %v1855 = vxor.u32 %v1791, 2147483648
  %v1856 = vxor.u32 %v1792, 2147483648
  %v1857 = vxor.u32 %v1793, 2147483648
  %v1858 = vxor.u32 %v1794, 2147483648
  %v1859 = vxor.u32 %v1795, 2147483648
  %v1860 = vxor.u32 %v1796, 2147483648
  %v1861 = vxor.u32 %v1797, 2147483648
  %v1862 = vxor.u32 %v1798, 2147483648
  %v1863 = vxor.u32 %v1799, 2147483648
  %v1864 = vxor.u32 %v1800, 2147483648
  %v1865 = vxor.u32 %v1801, 2147483648
  %v1866 = vxor.u32 %v1802, 2147483648
  %v1867 = vxor.u32 %v1803, 2147483648
  %v1868 = vxor.u32 %v1804, 2147483648
  %v1869 = vxor.u32 %v1805, 2147483648
  %v1870 = vxor.u32 %v1806, 2147483648
  %v1871 = vxor.u32 %v1807, 2147483648
  %v1872 = vxor.u32 %v1808, 2147483648
  %v1873 = vxor.u32 %v1809, 2147483648
  %v1874 = vxor.u32 %v1810, 2147483648
  %v1875 = vxor.u32 %v1811, 2147483648
  %v1876 = vxor.u32 %v1812, 2147483648
  %v1877 = vxor.u32 %v1813, 2147483648
  %v1878 = vxor.u32 %v1814, 2147483648
  %v1879 = vxor.u32 %v1815, 2147483648
  %v1880 = vxor.u32 %v1816, 2147483648
  %v1881 = vxor.u32 %v1817, 2147483648
  %v1882 = vxor.u32 %v1818, 2147483648
  %v1883 = vxor.u32 %v1819, 2147483648
  %v1884 = vxor.u32 %v1820, 2147483648
  %v1885 = vxor.u32 %v1821, 2147483648
  %v1886 = vxor.u32 %v1822, 2147483648
  %v1887 = vxor.u32 %v1823, 2147483648
  %v1888 = vxor.u32 %v1824, 2147483648
  %v1889 = vxor.u32 %v1825, 2147483648
  %v1890 = vxor.u32 %v1826, 2147483648
  %v1891 = vxor.u32 %v1827, 2147483648
  %v1892 = vxor.u32 %v1828, 2147483648
  %v1893 = vxor.u32 %v1829, 2147483648
  %v1894 = vxor.u32 %v1830, 2147483648
  %v1895 = vxor.u32 %v1831, 2147483648
  %v1896 = vxor.u32 %v1832, 2147483648
  %v1897 = vxor.u32 %v1833, 2147483648
  %v1898 = vxor.u32 %v1834, 2147483648
  %v1899 = vxor.u32 %v1835, 2147483648
  %v1900 = vxor.u32 %v1836, 2147483648
  %v1901 = vxor.u32 %v1837, 2147483648
  %v1902 = vxor.u32 %v1838, 2147483648
  %v1903 = vxor.u32 %v1839, 2147483648
  %v1904 = vxor.u32 %v1840, 2147483648
  %v1905 = vxor.u32 %v1841, 2147483648
  %v1906 = vxor.u32 %v1842, 2147483648
  %v1907 = vxor.u32 %v1843, 2147483648
  %v1908 = vxor.u32 %v1844, 2147483648
  %v1909 = vxor.u32 %v1845, 2147483648
  %v1910 = vxor.u32 %v1846, 2147483648
  %v1911 = vxor.u32 %v1847, 2147483648
  %v1912 = vxor.u32 %v1848, 2147483648
  %v1913 = vxor.u32 %v1849, 2147483648
  %v1914 = vxor.u32 %v1850, 2147483648
  %v1915 = vxor.u32 %v1851, 2147483648
  %v1916 = vxor.u32 %v1852, 2147483648
  %v1917 = vxor.u32 %v1853, 2147483648
  %v1918 = vmul.f32 %v1854, 1.442695
  %v1919 = vpow.pop %v1918
  %v1920 = vmul.f32 %v1855, 1.442695
  %v1921 = vpow.pop %v1920
  %v1922 = vmul.f32 %v1856, 1.442695
  %v1923 = vpow.pop %v1922
  %v1924 = vmul.f32 %v1857, 1.442695
  %v1925 = vpow.pop %v1924
  %v1926 = vmul.f32 %v1858, 1.442695
  %v1927 = vpow.pop %v1926
  %v1928 = vmul.f32 %v1859, 1.442695
  %v1929 = vpow.pop %v1928
  %v1930 = vmul.f32 %v1860, 1.442695
  %v1931 = vpow.pop %v1930
  %v1932 = vmul.f32 %v1861, 1.442695
  %v1933 = vpow.pop %v1932
  %v1934 = vmul.f32 %v1862, 1.442695
  %v1935 = vpow.pop %v1934
  %v1936 = vmul.f32 %v1863, 1.442695
  %v1937 = vpow.pop %v1936
  %v1938 = vmul.f32 %v1864, 1.442695
  %v1939 = vpow.pop %v1938
  %v1940 = vmul.f32 %v1865, 1.442695
  %v1941 = vpow.pop %v1940
  %v1942 = vmul.f32 %v1866, 1.442695
  %v1943 = vpow.pop %v1942
  %v1944 = vmul.f32 %v1867, 1.442695
  %v1945 = vpow.pop %v1944
  %v1946 = vmul.f32 %v1868, 1.442695
  %v1947 = vpow.pop %v1946
  %v1948 = vmul.f32 %v1869, 1.442695
  %v1949 = vpow.pop %v1948
  %v1950 = vmul.f32 %v1870, 1.442695
  %v1951 = vpow.pop %v1950
  %v1952 = vmul.f32 %v1871, 1.442695
  %v1953 = vpow.pop %v1952
  %v1954 = vmul.f32 %v1872, 1.442695
  %v1955 = vpow.pop %v1954
  %v1956 = vmul.f32 %v1873, 1.442695
  %v1957 = vpow.pop %v1956
  %v1958 = vmul.f32 %v1874, 1.442695
  %v1959 = vpow.pop %v1958
  %v1960 = vmul.f32 %v1875, 1.442695
  %v1961 = vpow.pop %v1960
  %v1962 = vmul.f32 %v1876, 1.442695
  %v1963 = vpow.pop %v1962
  %v1964 = vmul.f32 %v1877, 1.442695
  %v1965 = vpow.pop %v1964
  %v1966 = vmul.f32 %v1878, 1.442695
  %v1967 = vpow.pop %v1966
  %v1968 = vmul.f32 %v1879, 1.442695
  %v1969 = vpow.pop %v1968
  %v1970 = vmul.f32 %v1880, 1.442695
  %v1971 = vpow.pop %v1970
  %v1972 = vmul.f32 %v1881, 1.442695
  %v1973 = vpow.pop %v1972
  %v1974 = vmul.f32 %v1882, 1.442695
  %v1975 = vpow.pop %v1974
  %v1976 = vmul.f32 %v1883, 1.442695
  %v1977 = vpow.pop %v1976
  %v1978 = vmul.f32 %v1884, 1.442695
  %v1979 = vpow.pop %v1978
  %v1980 = vmul.f32 %v1885, 1.442695
  %v1981 = vpow.pop %v1980
  %v1982 = vmul.f32 %v1886, 1.442695
  %v1983 = vpow.pop %v1982
  %v1984 = vmul.f32 %v1887, 1.442695
  %v1985 = vpow.pop %v1984
  %v1986 = vmul.f32 %v1888, 1.442695
  %v1987 = vpow.pop %v1986
  %v1988 = vmul.f32 %v1889, 1.442695
  %v1989 = vpow.pop %v1988
  %v1990 = vmul.f32 %v1890, 1.442695
  %v1991 = vpow.pop %v1990
  %v1992 = vmul.f32 %v1891, 1.442695
  %v1993 = vpow.pop %v1992
  %v1994 = vmul.f32 %v1892, 1.442695
  %v1995 = vpow.pop %v1994
  %v1996 = vmul.f32 %v1893, 1.442695
  %v1997 = vpow.pop %v1996
  %v1998 = vmul.f32 %v1894, 1.442695
  %v1999 = vpow.pop %v1998
  %v2000 = vmul.f32 %v1895, 1.442695
  %v2001 = vpow.pop %v2000
  %v2002 = vmul.f32 %v1896, 1.442695
  %v2003 = vpow.pop %v2002
  %v2004 = vmul.f32 %v1897, 1.442695
  %v2005 = vpow.pop %v2004
  %v2006 = vmul.f32 %v1898, 1.442695
  %v2007 = vpow.pop %v2006
  %v2008 = vmul.f32 %v1899, 1.442695
  %v2009 = vpow.pop %v2008
  %v2010 = vmul.f32 %v1900, 1.442695
  %v2011 = vpow.pop %v2010
  %v2012 = vmul.f32 %v1901, 1.442695
  %v2013 = vpow.pop %v2012
  %v2014 = vmul.f32 %v1902, 1.442695
  %v2015 = vpow.pop %v2014
  %v2016 = vmul.f32 %v1903, 1.442695
  %v2017 = vpow.pop %v2016
  %v2018 = vmul.f32 %v1904, 1.442695
  %v2019 = vpow.pop %v2018
  %v2020 = vmul.f32 %v1905, 1.442695
  %v2021 = vpow.pop %v2020
  %v2022 = vmul.f32 %v1906, 1.442695
  %v2023 = vpow.pop %v2022
  %v2024 = vmul.f32 %v1907, 1.442695
  %v2025 = vpow.pop %v2024
  %v2026 = vmul.f32 %v1908, 1.442695
  %v2027 = vpow.pop %v2026
  %v2028 = vmul.f32 %v1909, 1.442695
  %v2029 = vpow.pop %v2028
  %v2030 = vmul.f32 %v1910, 1.442695
  %v2031 = vpow.pop %v2030
  %v2032 = vmul.f32 %v1911, 1.442695
  %v2033 = vpow.pop %v2032
  %v2034 = vmul.f32 %v1912, 1.442695
  %v2035 = vpow.pop %v2034
  %v2036 = vmul.f32 %v1913, 1.442695
  %v2037 = vpow.pop %v2036
  %v2038 = vmul.f32 %v1914, 1.442695
  %v2039 = vpow.pop %v2038
  %v2040 = vmul.f32 %v1915, 1.442695
  %v2041 = vpow.pop %v2040
  %v2042 = vmul.f32 %v1916, 1.442695
  %v2043 = vpow.pop %v2042
  %v2044 = vmul.f32 %v1917, 1.442695
  %v2045 = vpow.pop %v2044
  %v2046 = vadd.f32 %v1919, 1.0
  %v2047 = vadd.f32 %v1921, 1.0
  %v2048 = vadd.f32 %v1923, 1.0
  %v2049 = vadd.f32 %v1925, 1.0
  %v2050 = vadd.f32 %v1927, 1.0
  %v2051 = vadd.f32 %v1929, 1.0
  %v2052 = vadd.f32 %v1931, 1.0
  %v2053 = vadd.f32 %v1933, 1.0
  %v2054 = vadd.f32 %v1935, 1.0
  %v2055 = vadd.f32 %v1937, 1.0
  %v2056 = vadd.f32 %v1939, 1.0
  %v2057 = vadd.f32 %v1941, 1.0
  %v2058 = vadd.f32 %v1943, 1.0
  %v2059 = vadd.f32 %v1945, 1.0
  %v2060 = vadd.f32 %v1947, 1.0
  %v2061 = vadd.f32 %v1949, 1.0
  %v2062 = vadd.f32 %v1951, 1.0
  %v2063 = vadd.f32 %v1953, 1.0
  %v2064 = vadd.f32 %v1955, 1.0
  %v2065 = vadd.f32 %v1957, 1.0
  %v2066 = vadd.f32 %v1959, 1.0
  %v2067 = vadd.f32 %v1961, 1.0
  %v2068 = vadd.f32 %v1963, 1.0
  %v2069 = vadd.f32 %v1965, 1.0
  %v2070 = vadd.f32 %v1967, 1.0
  %v2071 = vadd.f32 %v1969, 1.0
  %v2072 = vadd.f32 %v1971, 1.0
  %v2073 = vadd.f32 %v1973, 1.0
  %v2074 = vadd.f32 %v1975, 1.0
  %v2075 = vadd.f32 %v1977, 1.0
  %v2076 = vadd.f32 %v1979, 1.0
  %v2077 = vadd.f32 %v1981, 1.0
  %v2078 = vadd.f32 %v1983, 1.0
  %v2079 = vadd.f32 %v1985, 1.0
  %v2080 = vadd.f32 %v1987, 1.0
  %v2081 = vadd.f32 %v1989, 1.0
  %v2082 = vadd.f32 %v1991, 1.0
  %v2083 = vadd.f32 %v1993, 1.0
  %v2084 = vadd.f32 %v1995, 1.0
  %v2085 = vadd.f32 %v1997, 1.0
  %v2086 = vadd.f32 %v1999, 1.0
  %v2087 = vadd.f32 %v2001, 1.0
  %v2088 = vadd.f32 %v2003, 1.0
  %v2089 = vadd.f32 %v2005, 1.0
  %v2090 = vadd.f32 %v2007, 1.0
  %v2091 = vadd.f32 %v2009, 1.0
  %v2092 = vadd.f32 %v2011, 1.0
  %v2093 = vadd.f32 %v2013, 1.0
  %v2094 = vadd.f32 %v2015, 1.0
  %v2095 = vadd.f32 %v2017, 1.0
  %v2096 = vadd.f32 %v2019, 1.0
  %v2097 = vadd.f32 %v2021, 1.0
  %v2098 = vadd.f32 %v2023, 1.0
  %v2099 = vadd.f32 %v2025, 1.0
  %v2100 = vadd.f32 %v2027, 1.0
  %v2101 = vadd.f32 %v2029, 1.0
  %v2102 = vadd.f32 %v2031, 1.0
  %v2103 = vadd.f32 %v2033, 1.0
  %v2104 = vadd.f32 %v2035, 1.0
  %v2105 = vadd.f32 %v2037, 1.0
  %v2106 = vadd.f32 %v2039, 1.0
  %v2107 = vadd.f32 %v2041, 1.0
  %v2108 = vadd.f32 %v2043, 1.0
  %v2109 = vadd.f32 %v2045, 1.0
  %v2110 = vrcp.pop %v2046
  %v2111 = vmul.f32 1.0, %v2110
  %v2112 = vrcp.pop %v2047
  %v2113 = vmul.f32 1.0, %v2112
  %v2114 = vrcp.pop %v2048
  %v2115 = vmul.f32 1.0, %v2114
  %v2116 = vrcp.pop %v2049
  %v2117 = vmul.f32 1.0, %v2116
  %v2118 = vrcp.pop %v2050
  %v2119 = vmul.f32 1.0, %v2118
  %v2120 = vrcp.pop %v2051
  %v2121 = vmul.f32 1.0, %v2120
  %v2122 = vrcp.pop %v2052
  %v2123 = vmul.f32 1.0, %v2122
  %v2124 = vrcp.pop %v2053
  %v2125 = vmul.f32 1.0, %v2124
  %v2126 = vrcp.pop %v2054
  %v2127 = vmul.f32 1.0, %v2126
  %v2128 = vrcp.pop %v2055
  %v2129 = vmul.f32 1.0, %v2128
  %v2130 = vrcp.pop %v2056
  %v2131 = vmul.f32 1.0, %v2130
  %v2132 = vrcp.pop %v2057
  %v2133 = vmul.f32 1.0, %v2132
  %v2134 = vrcp.pop %v2058
  %v2135 = vmul.f32 1.0, %v2134
  %v2136 = vrcp.pop %v2059
  %v2137 = vmul.f32 1.0, %v2136
  %v2138 = vrcp.pop %v2060
  %v2139 = vmul.f32 1.0, %v2138
  %v2140 = vrcp.pop %v2061
  %v2141 = vmul.f32 1.0, %v2140
  %v2142 = vrcp.pop %v2062
  %v2143 = vmul.f32 1.0, %v2142
  %v2144 = vrcp.pop %v2063
  %v2145 = vmul.f32 1.0, %v2144
  %v2146 = vrcp.pop %v2064
  %v2147 = vmul.f32 1.0, %v2146
  %v2148 = vrcp.pop %v2065
  %v2149 = vmul.f32 1.0, %v2148
  %v2150 = vrcp.pop %v2066
  %v2151 = vmul.f32 1.0, %v2150
  %v2152 = vrcp.pop %v2067
  %v2153 = vmul.f32 1.0, %v2152
  %v2154 = vrcp.pop %v2068
  %v2155 = vmul.f32 1.0, %v2154
  %v2156 = vrcp.pop %v2069
  %v2157 = vmul.f32 1.0, %v2156
  %v2158 = vrcp.pop %v2070
  %v2159 = vmul.f32 1.0, %v2158
  %v2160 = vrcp.pop %v2071
  %v2161 = vmul.f32 1.0, %v2160
  %v2162 = vrcp.pop %v2072
  %v2163 = vmul.f32 1.0, %v2162
  %v2164 = vrcp.pop %v2073
  %v2165 = vmul.f32 1.0, %v2164
  %v2166 = vrcp.pop %v2074
  %v2167 = vmul.f32 1.0, %v2166
  %v2168 = vrcp.pop %v2075
  %v2169 = vmul.f32 1.0, %v2168
  %v2170 = vrcp.pop %v2076
  %v2171 = vmul.f32 1.0, %v2170
  %v2172 = vrcp.pop %v2077
  %v2173 = vmul.f32 1.0, %v2172
  %v2174 = vrcp.pop %v2078
  %v2175 = vmul.f32 1.0, %v2174
  %v2176 = vrcp.pop %v2079
  %v2177 = vmul.f32 1.0, %v2176
  %v2178 = vrcp.pop %v2080
  %v2179 = vmul.f32 1.0, %v2178
  %v2180 = vrcp.pop %v2081
  %v2181 = vmul.f32 1.0, %v2180
  %v2182 = vrcp.pop %v2082
  %v2183 = vmul.f32 1.0, %v2182
  %v2184 = vrcp.pop %v2083
  %v2185 = vmul.f32 1.0, %v2184
  %v2186 = vrcp.pop %v2084
  %v2187 = vmul.f32 1.0, %v2186
  %v2188 = vrcp.pop %v2085
  %v2189 = vmul.f32 1.0, %v2188
  %v2190 = vrcp.pop %v2086
  %v2191 = vmul.f32 1.0, %v2190
  %v2192 = vrcp.pop %v2087
  %v2193 = vmul.f32 1.0, %v2192
  %v2194 = vrcp.pop %v2088
  %v2195 = vmul.f32 1.0, %v2194
  %v2196 = vrcp.pop %v2089
  %v2197 = vmul.f32 1.0, %v2196
  %v2198 = vrcp.pop %v2090
  %v2199 = vmul.f32 1.0, %v2198
  %v2200 = vrcp.pop %v2091
  %v2201 = vmul.f32 1.0, %v2200
  %v2202 = vrcp.pop %v2092
  %v2203 = vmul.f32 1.0, %v2202
  %v2204 = vrcp.pop %v2093
  %v2205 = vmul.f32 1.0, %v2204
  %v2206 = vrcp.pop %v2094
  %v2207 = vmul.f32 1.0, %v2206
  %v2208 = vrcp.pop %v2095
  %v2209 = vmul.f32 1.0, %v2208
  %v2210 = vrcp.pop %v2096
  %v2211 = vmul.f32 1.0, %v2210
  %v2212 = vrcp.pop %v2097
  %v2213 = vmul.f32 1.0, %v2212
  %v2214 = vrcp.pop %v2098
  %v2215 = vmul.f32 1.0, %v2214
  %v2216 = vrcp.pop %v2099
  %v2217 = vmul.f32 1.0, %v2216
  %v2218 = vrcp.pop %v2100
  %v2219 = vmul.f32 1.0, %v2218
  %v2220 = vrcp.pop %v2101
  %v2221 = vmul.f32 1.0, %v2220
  %v2222 = vrcp.pop %v2102
  %v2223 = vmul.f32 1.0, %v2222
  %v2224 = vrcp.pop %v2103
  %v2225 = vmul.f32 1.0, %v2224
  %v2226 = vrcp.pop %v2104
  %v2227 = vmul.f32 1.0, %v2226
  %v2228 = vrcp.pop %v2105
  %v2229 = vmul.f32 1.0, %v2228
  %v2230 = vrcp.pop %v2106
  %v2231 = vmul.f32 1.0, %v2230
  %v2232 = vrcp.pop %v2107
  %v2233 = vmul.f32 1.0, %v2232
  %v2234 = vrcp.pop %v2108
  %v2235 = vmul.f32 1.0, %v2234
  %v2236 = vrcp.pop %v2109
  %v2237 = vmul.f32 1.0, %v2236
  %v2238 = vmul.f32 %v1790, %v2111
  %v2239 = vmul.f32 %v1791, %v2113
  %v2240 = vmul.f32 %v1792, %v2115
  %v2241 = vmul.f32 %v1793, %v2117
  %v2242 = vmul.f32 %v1794, %v2119
  %v2243 = vmul.f32 %v1795, %v2121
  %v2244 = vmul.f32 %v1796, %v2123
  %v2245 = vmul.f32 %v1797, %v2125
  %v2246 = vmul.f32 %v1798, %v2127
  %v2247 = vmul.f32 %v1799, %v2129
  %v2248 = vmul.f32 %v1800, %v2131
  %v2249 = vmul.f32 %v1801, %v2133
  %v2250 = vmul.f32 %v1802, %v2135
  %v2251 = vmul.f32 %v1803, %v2137
  %v2252 = vmul.f32 %v1804, %v2139
  %v2253 = vmul.f32 %v1805, %v2141
  %v2254 = vmul.f32 %v1806, %v2143
  %v2255 = vmul.f32 %v1807, %v2145
  %v2256 = vmul.f32 %v1808, %v2147
  %v2257 = vmul.f32 %v1809, %v2149
  %v2258 = vmul.f32 %v1810, %v2151
  %v2259 = vmul.f32 %v1811, %v2153
  %v2260 = vmul.f32 %v1812, %v2155
  %v2261 = vmul.f32 %v1813, %v2157
  %v2262 = vmul.f32 %v1814, %v2159
  %v2263 = vmul.f32 %v1815, %v2161
  %v2264 = vmul.f32 %v1816, %v2163
  %v2265 = vmul.f32 %v1817, %v2165
  %v2266 = vmul.f32 %v1818, %v2167
  %v2267 = vmul.f32 %v1819, %v2169
  %v2268 = vmul.f32 %v1820, %v2171
  %v2269 = vmul.f32 %v1821, %v2173
  %v2270 = vmul.f32 %v1822, %v2175
  %v2271 = vmul.f32 %v1823, %v2177
  %v2272 = vmul.f32 %v1824, %v2179
  %v2273 = vmul.f32 %v1825, %v2181
  %v2274 = vmul.f32 %v1826, %v2183
  %v2275 = vmul.f32 %v1827, %v2185
  %v2276 = vmul.f32 %v1828, %v2187
  %v2277 = vmul.f32 %v1829, %v2189
  %v2278 = vmul.f32 %v1830, %v2191
  %v2279 = vmul.f32 %v1831, %v2193
  %v2280 = vmul.f32 %v1832, %v2195
  %v2281 = vmul.f32 %v1833, %v2197
  %v2282 = vmul.f32 %v1834, %v2199
  %v2283 = vmul.f32 %v1835, %v2201
  %v2284 = vmul.f32 %v1836, %v2203
  %v2285 = vmul.f32 %v1837, %v2205
  %v2286 = vmul.f32 %v1838, %v2207
  %v2287 = vmul.f32 %v1839, %v2209
  %v2288 = vmul.f32 %v1840, %v2211
  %v2289 = vmul.f32 %v1841, %v2213
  %v2290 = vmul.f32 %v1842, %v2215
  %v2291 = vmul.f32 %v1843, %v2217
  %v2292 = vmul.f32 %v1844, %v2219
  %v2293 = vmul.f32 %v1845, %v2221
  %v2294 = vmul.f32 %v1846, %v2223
  %v2295 = vmul.f32 %v1847, %v2225
  %v2296 = vmul.f32 %v1848, %v2227
  %v2297 = vmul.f32 %v1849, %v2229
  %v2298 = vmul.f32 %v1850, %v2231
  %v2299 = vmul.f32 %v1851, %v2233
  %v2300 = vmul.f32 %v1852, %v2235
  %v2301 = vmul.f32 %v1853, %v2237
  %2302 = vst.msk [vmem:[%s8] sm:$0xff] %vm1261, %v2238
  %2303 = vst.msk [vmem:[%s8 + $0x8] sm:$0xff] %vm1261, %v2239
  %2304 = vst.msk [vmem:[%s8 + $0x10] sm:$0xff] %vm1261, %v2240
  %2305 = vst.msk [vmem:[%s8 + $0x18] sm:$0xff] %vm1261, %v2241
  %2306 = vst.msk [vmem:[%s8 + $0x20] sm:$0xff] %vm1261, %v2242
  %2307 = vst.msk [vmem:[%s8 + $0x28] sm:$0xff] %vm1261, %v2243
  %2308 = vst.msk [vmem:[%s8 + $0x30] sm:$0xff] %vm1261, %v2244
  %2309 = vst.msk [vmem:[%s8 + $0x38] sm:$0xff] %vm1261, %v2245
  %2310 = vst.msk [vmem:[%s8 + $0x40] sm:$0xff] %vm1261, %v2246
  %2311 = vst.msk [vmem:[%s8 + $0x48] sm:$0xff] %vm1261, %v2247
  %2312 = vst.msk [vmem:[%s8 + $0x50] sm:$0xff] %vm1261, %v2248
  %2313 = vst.msk [vmem:[%s8 + $0x58] sm:$0xff] %vm1261, %v2249
  %2314 = vst.msk [vmem:[%s8 + $0x60] sm:$0xff] %vm1261, %v2250
  %2315 = vst.msk [vmem:[%s8 + $0x68] sm:$0xff] %vm1261, %v2251
  %2316 = vst.msk [vmem:[%s8 + $0x70] sm:$0xff] %vm1261, %v2252
  %2317 = vst.msk [vmem:[%s8 + $0x78] sm:$0xff] %vm1261, %v2253
  %2318 = vst.msk [vmem:[%s8 + $0x80] sm:$0xff] %vm1261, %v2254
  %2319 = vst.msk [vmem:[%s8 + $0x88] sm:$0xff] %vm1261, %v2255
  %2320 = vst.msk [vmem:[%s8 + $0x90] sm:$0xff] %vm1261, %v2256
  %2321 = vst.msk [vmem:[%s8 + $0x98] sm:$0xff] %vm1261, %v2257
  %2322 = vst.msk [vmem:[%s8 + $0xa0] sm:$0xff] %vm1261, %v2258
  %2323 = vst.msk [vmem:[%s8 + $0xa8] sm:$0xff] %vm1261, %v2259
  %2324 = vst.msk [vmem:[%s8 + $0xb0] sm:$0xff] %vm1261, %v2260
  %2325 = vst.msk [vmem:[%s8 + $0xb8] sm:$0xff] %vm1261, %v2261
  %2326 = vst.msk [vmem:[%s8 + $0xc0] sm:$0xff] %vm1261, %v2262
  %2327 = vst.msk [vmem:[%s8 + $0xc8] sm:$0xff] %vm1261, %v2263
  %2328 = vst.msk [vmem:[%s8 + $0xd0] sm:$0xff] %vm1261, %v2264
  %2329 = vst.msk [vmem:[%s8 + $0xd8] sm:$0xff] %vm1261, %v2265
  %2330 = vst.msk [vmem:[%s8 + $0xe0] sm:$0xff] %vm1261, %v2266
  %2331 = vst.msk [vmem:[%s8 + $0xe8] sm:$0xff] %vm1261, %v2267
  %2332 = vst.msk [vmem:[%s8 + $0xf0] sm:$0xff] %vm1261, %v2268
  %2333 = vst.msk [vmem:[%s8 + $0xf8] sm:$0xff] %vm1261, %v2269
  %2334 = vst.msk [vmem:[%s8 + $0x100] sm:$0xff] %vm1261, %v2270
  %2335 = vst.msk [vmem:[%s8 + $0x108] sm:$0xff] %vm1261, %v2271
  %2336 = vst.msk [vmem:[%s8 + $0x110] sm:$0xff] %vm1261, %v2272
  %2337 = vst.msk [vmem:[%s8 + $0x118] sm:$0xff] %vm1261, %v2273
  %2338 = vst.msk [vmem:[%s8 + $0x120] sm:$0xff] %vm1261, %v2274
  %2339 = vst.msk [vmem:[%s8 + $0x128] sm:$0xff] %vm1261, %v2275
  %2340 = vst.msk [vmem:[%s8 + $0x130] sm:$0xff] %vm1261, %v2276
  %2341 = vst.msk [vmem:[%s8 + $0x138] sm:$0xff] %vm1261, %v2277
  %2342 = vst.msk [vmem:[%s8 + $0x140] sm:$0xff] %vm1261, %v2278
  %2343 = vst.msk [vmem:[%s8 + $0x148] sm:$0xff] %vm1261, %v2279
  %2344 = vst.msk [vmem:[%s8 + $0x150] sm:$0xff] %vm1261, %v2280
  %2345 = vst.msk [vmem:[%s8 + $0x158] sm:$0xff] %vm1261, %v2281
  %2346 = vst.msk [vmem:[%s8 + $0x160] sm:$0xff] %vm1261, %v2282
  %2347 = vst.msk [vmem:[%s8 + $0x168] sm:$0xff] %vm1261, %v2283
  %2348 = vst.msk [vmem:[%s8 + $0x170] sm:$0xff] %vm1261, %v2284
  %2349 = vst.msk [vmem:[%s8 + $0x178] sm:$0xff] %vm1261, %v2285
  %2350 = vst.msk [vmem:[%s8 + $0x180] sm:$0xff] %vm1261, %v2286
  %2351 = vst.msk [vmem:[%s8 + $0x188] sm:$0xff] %vm1261, %v2287
  %2352 = vst.msk [vmem:[%s8 + $0x190] sm:$0xff] %vm1261, %v2288
  %2353 = vst.msk [vmem:[%s8 + $0x198] sm:$0xff] %vm1261, %v2289
  %2354 = vst.msk [vmem:[%s8 + $0x1a0] sm:$0xff] %vm1261, %v2290
  %2355 = vst.msk [vmem:[%s8 + $0x1a8] sm:$0xff] %vm1261, %v2291
  %2356 = vst.msk [vmem:[%s8 + $0x1b0] sm:$0xff] %vm1261, %v2292
  %2357 = vst.msk [vmem:[%s8 + $0x1b8] sm:$0xff] %vm1261, %v2293
  %2358 = vst.msk [vmem:[%s8 + $0x1c0] sm:$0xff] %vm1261, %v2294
  %2359 = vst.msk [vmem:[%s8 + $0x1c8] sm:$0xff] %vm1261, %v2295
  %2360 = vst.msk [vmem:[%s8 + $0x1d0] sm:$0xff] %vm1261, %v2296
  %2361 = vst.msk [vmem:[%s8 + $0x1d8] sm:$0xff] %vm1261, %v2297
  %2362 = vst.msk [vmem:[%s8 + $0x1e0] sm:$0xff] %vm1261, %v2298
  %2363 = vst.msk [vmem:[%s8 + $0x1e8] sm:$0xff] %vm1261, %v2299
  %2364 = vst.msk [vmem:[%s8 + $0x1f0] sm:$0xff] %vm1261, %v2300
  %2365 = vst.msk [vmem:[%s8 + $0x1f8] sm:$0xff] %vm1261, %v2301
  // Predicated region
  $region30: #{c2_forward.3} parent=0 // pred_check
    _
  $region31: #{c2_forward.3} parent=0 // pred_check_branch
    %2367 = sbr.rel (0) target = $region33
  $region32: #{c2_forward.3} parent=0 // pred_region
    _
  $region33: #{c2_forward.3} parent=0 // pred_fallthru
    _
  // Predicated region
  $region34: #{c2_forward.3} parent=0 // pred_check
    _
  $region35: #{c2_forward.3} parent=0 // pred_check_branch
    %2369 = sbr.rel (0) target = $region37
  $region36: #{c2_forward.3} parent=0 // pred_region
    _
  $region37: #{c2_forward.3} parent=0 // pred_fallthru
    _
  // Predicated region
  $region38: #{c2_forward.3} parent=0 // pred_check
    _
  $region39: #{c2_forward.3} parent=0 // pred_check_branch
    %2371 = sbr.rel (0) target = $region41
  $region40: #{c2_forward.3} parent=0 // pred_region
    _
  $region41: #{c2_forward.3} parent=0 // pred_fallthru
    _
  // Predicated region
  $region42: #{c2_forward.3} parent=0 // pred_check
    _
  $region43: #{c2_forward.3} parent=0 // pred_check_branch
    %2373 = sbr.rel (0) target = $region45
  $region44: #{c2_forward.3} parent=0 // pred_region
    _
  $region45: #{c2_forward.3} parent=0 // pred_fallthru
    _

// kernel: c2_forward.5
$region0: #{c2_forward.5}
  #allocation0 [shape = 'u32[]', space=smem, size = 0x4, offset = 0x4, fixed_abs, tag = 'smem constant byte address 0x4 - core index']
  #allocation1 [shape = 'u32[144,128]{1,0:T(1,128)}', space=vmem, size = 0x12000, scoped, tag = 'internal scratch']
  %s0 = inlined_call_operand.vmem [shape: f32[512,4], index: 0, kind: input, shape index: {}]
  %s1 = inlined_call_operand.vmem [shape: f32[512,4], index: 1, kind: input, shape index: {}]
  %s2 = inlined_call_operand.vmem [shape: f32[4,8], index: 2, kind: input, shape index: {}]
  %s3 = inlined_call_operand.vmem [shape: f32[4,8], index: 3, kind: input, shape index: {}]
  %s4 = inlined_call_operand.vmem [shape: f32[1,8], index: 4, kind: input, shape index: {}]
  %s5 = inlined_call_operand.vmem [shape: f32[1,8], index: 5, kind: input, shape index: {}]
  %s6 = inlined_call_operand.vmem [shape: f32[512,8], index: 6, kind: output, shape index: {}]
  %s7 = sld [smem:[#allocation0]]
  $region34: #{c2_forward.5} parent=0
    _
  %s9 = ssub.s32 1, %s7
  %s10 = scalar_select 0, %s9, %s7
  // Predicated region
  $region2: #{c2_forward.5} parent=0 // pred_check
    _
  $region3: #{c2_forward.5} parent=0 // pred_check_branch
    %12 = sbr.rel (0) target = $region5
  $region4: #{c2_forward.5} parent=0 // pred_region
    _
  $region5: #{c2_forward.5} parent=0 // pred_fallthru
    _
  // Predicated region
  $region6: #{c2_forward.5} parent=0 // pred_check
    _
  $region7: #{c2_forward.5} parent=0 // pred_check_branch
    %14 = sbr.rel (0) target = $region9
  $region8: #{c2_forward.5} parent=0 // pred_region
    _
  $region9: #{c2_forward.5} parent=0 // pred_fallthru
    _
  // Predicated region
  $region10: #{c2_forward.5} parent=0 // pred_check
    _
  $region11: #{c2_forward.5} parent=0 // pred_check_branch
    %16 = sbr.rel (0) target = $region13
  $region12: #{c2_forward.5} parent=0 // pred_region
    _
  $region13: #{c2_forward.5} parent=0 // pred_fallthru
    _
  // Predicated region
  $region14: #{c2_forward.5} parent=0 // pred_check
    _
  $region15: #{c2_forward.5} parent=0 // pred_check_branch
    %18 = sbr.rel (0) target = $region17
  $region16: #{c2_forward.5} parent=0 // pred_region
    _
  $region17: #{c2_forward.5} parent=0 // pred_fallthru
    _
  // Predicated region
  $region18: #{c2_forward.5} parent=0 // pred_check
    _
  $region19: #{c2_forward.5} parent=0 // pred_check_branch
    %20 = sbr.rel (0) target = $region21
  $region20: #{c2_forward.5} parent=0 // pred_region
    _
  $region21: #{c2_forward.5} parent=0 // pred_fallthru
    _
  // Predicated region
  $region22: #{c2_forward.5} parent=0 // pred_check
    _
  $region23: #{c2_forward.5} parent=0 // pred_check_branch
    %22 = sbr.rel (0) target = $region25
  $region24: #{c2_forward.5} parent=0 // pred_region
    _
  $region25: #{c2_forward.5} parent=0 // pred_fallthru
    _
  %v23 = vld [vmem:[%s0] sm:$0xff]
  %v24 = vld [vmem:[%s0 + $0x8] sm:$0xff]
  %v25 = vld [vmem:[%s0 + $0x10] sm:$0xff]
  %v26 = vld [vmem:[%s0 + $0x18] sm:$0xff]
  %v27 = vld [vmem:[%s0 + $0x20] sm:$0xff]
  %v28 = vld [vmem:[%s0 + $0x28] sm:$0xff]
  %v29 = vld [vmem:[%s0 + $0x30] sm:$0xff]
  %v30 = vld [vmem:[%s0 + $0x38] sm:$0xff]
  %v31 = vld [vmem:[%s0 + $0x40] sm:$0xff]
  %v32 = vld [vmem:[%s0 + $0x48] sm:$0xff]
  %v33 = vld [vmem:[%s0 + $0x50] sm:$0xff]
  %v34 = vld [vmem:[%s0 + $0x58] sm:$0xff]
  %v35 = vld [vmem:[%s0 + $0x60] sm:$0xff]
  %v36 = vld [vmem:[%s0 + $0x68] sm:$0xff]
  %v37 = vld [vmem:[%s0 + $0x70] sm:$0xff]
  %v38 = vld [vmem:[%s0 + $0x78] sm:$0xff]
  %v39 = vld [vmem:[%s0 + $0x80] sm:$0xff]
  %v40 = vld [vmem:[%s0 + $0x88] sm:$0xff]
  %v41 = vld [vmem:[%s0 + $0x90] sm:$0xff]
  %v42 = vld [vmem:[%s0 + $0x98] sm:$0xff]
  %v43 = vld [vmem:[%s0 + $0xa0] sm:$0xff]
  %v44 = vld [vmem:[%s0 + $0xa8] sm:$0xff]
  %v45 = vld [vmem:[%s0 + $0xb0] sm:$0xff]
  %v46 = vld [vmem:[%s0 + $0xb8] sm:$0xff]
  %v47 = vld [vmem:[%s0 + $0xc0] sm:$0xff]
  %v48 = vld [vmem:[%s0 + $0xc8] sm:$0xff]
  %v49 = vld [vmem:[%s0 + $0xd0] sm:$0xff]
  %v50 = vld [vmem:[%s0 + $0xd8] sm:$0xff]
  %v51 = vld [vmem:[%s0 + $0xe0] sm:$0xff]
  %v52 = vld [vmem:[%s0 + $0xe8] sm:$0xff]
  %v53 = vld [vmem:[%s0 + $0xf0] sm:$0xff]
  %v54 = vld [vmem:[%s0 + $0xf8] sm:$0xff]
  %v55 = vld [vmem:[%s0 + $0x100] sm:$0xff]
  %v56 = vld [vmem:[%s0 + $0x108] sm:$0xff]
  %v57 = vld [vmem:[%s0 + $0x110] sm:$0xff]
  %v58 = vld [vmem:[%s0 + $0x118] sm:$0xff]
  %v59 = vld [vmem:[%s0 + $0x120] sm:$0xff]
  %v60 = vld [vmem:[%s0 + $0x128] sm:$0xff]
  %v61 = vld [vmem:[%s0 + $0x130] sm:$0xff]
  %v62 = vld [vmem:[%s0 + $0x138] sm:$0xff]
  %v63 = vld [vmem:[%s0 + $0x140] sm:$0xff]
  %v64 = vld [vmem:[%s0 + $0x148] sm:$0xff]
  %v65 = vld [vmem:[%s0 + $0x150] sm:$0xff]
  %v66 = vld [vmem:[%s0 + $0x158] sm:$0xff]
  %v67 = vld [vmem:[%s0 + $0x160] sm:$0xff]
  %v68 = vld [vmem:[%s0 + $0x168] sm:$0xff]
  %v69 = vld [vmem:[%s0 + $0x170] sm:$0xff]
  %v70 = vld [vmem:[%s0 + $0x178] sm:$0xff]
  %v71 = vld [vmem:[%s0 + $0x180] sm:$0xff]
  %v72 = vld [vmem:[%s0 + $0x188] sm:$0xff]
  %v73 = vld [vmem:[%s0 + $0x190] sm:$0xff]
  %v74 = vld [vmem:[%s0 + $0x198] sm:$0xff]
  %v75 = vld [vmem:[%s0 + $0x1a0] sm:$0xff]
  %v76 = vld [vmem:[%s0 + $0x1a8] sm:$0xff]
  %v77 = vld [vmem:[%s0 + $0x1b0] sm:$0xff]
  %v78 = vld [vmem:[%s0 + $0x1b8] sm:$0xff]
  %v79 = vld [vmem:[%s0 + $0x1c0] sm:$0xff]
  %v80 = vld [vmem:[%s0 + $0x1c8] sm:$0xff]
  %v81 = vld [vmem:[%s0 + $0x1d0] sm:$0xff]
  %v82 = vld [vmem:[%s0 + $0x1d8] sm:$0xff]
  %v83 = vld [vmem:[%s0 + $0x1e0] sm:$0xff]
  %v84 = vld [vmem:[%s0 + $0x1e8] sm:$0xff]
  %v85 = vld [vmem:[%s0 + $0x1f0] sm:$0xff]
  %v86 = vld [vmem:[%s0 + $0x1f8] sm:$0xff]
  %v87 = vld [vmem:[%s2] sm:$0xf]
  %v88 = vld [vmem:[%s1] sm:$0xff]
  %v89 = vld [vmem:[%s1 + $0x8] sm:$0xff]
  %v90 = vld [vmem:[%s1 + $0x10] sm:$0xff]
  %v91 = vld [vmem:[%s1 + $0x18] sm:$0xff]
  %v92 = vld [vmem:[%s1 + $0x20] sm:$0xff]
  %v93 = vld [vmem:[%s1 + $0x28] sm:$0xff]
  %v94 = vld [vmem:[%s1 + $0x30] sm:$0xff]
  %v95 = vld [vmem:[%s1 + $0x38] sm:$0xff]
  %v96 = vld [vmem:[%s1 + $0x40] sm:$0xff]
  %v97 = vld [vmem:[%s1 + $0x48] sm:$0xff]
  %v98 = vld [vmem:[%s1 + $0x50] sm:$0xff]
  %v99 = vld [vmem:[%s1 + $0x58] sm:$0xff]
  %v100 = vld [vmem:[%s1 + $0x60] sm:$0xff]
  %v101 = vld [vmem:[%s1 + $0x68] sm:$0xff]
  %v102 = vld [vmem:[%s1 + $0x70] sm:$0xff]
  %v103 = vld [vmem:[%s1 + $0x78] sm:$0xff]
  %v104 = vld [vmem:[%s1 + $0x80] sm:$0xff]
  %v105 = vld [vmem:[%s1 + $0x88] sm:$0xff]
  %v106 = vld [vmem:[%s1 + $0x90] sm:$0xff]
  %v107 = vld [vmem:[%s1 + $0x98] sm:$0xff]
  %v108 = vld [vmem:[%s1 + $0xa0] sm:$0xff]
  %v109 = vld [vmem:[%s1 + $0xa8] sm:$0xff]
  %v110 = vld [vmem:[%s1 + $0xb0] sm:$0xff]
  %v111 = vld [vmem:[%s1 + $0xb8] sm:$0xff]
  %v112 = vld [vmem:[%s1 + $0xc0] sm:$0xff]
  %v113 = vld [vmem:[%s1 + $0xc8] sm:$0xff]
  %v114 = vld [vmem:[%s1 + $0xd0] sm:$0xff]
  %v115 = vld [vmem:[%s1 + $0xd8] sm:$0xff]
  %v116 = vld [vmem:[%s1 + $0xe0] sm:$0xff]
  %v117 = vld [vmem:[%s1 + $0xe8] sm:$0xff]
  %v118 = vld [vmem:[%s1 + $0xf0] sm:$0xff]
  %v119 = vld [vmem:[%s1 + $0xf8] sm:$0xff]
  %v120 = vld [vmem:[%s1 + $0x100] sm:$0xff]
  %v121 = vld [vmem:[%s1 + $0x108] sm:$0xff]
  %v122 = vld [vmem:[%s1 + $0x110] sm:$0xff]
  %v123 = vld [vmem:[%s1 + $0x118] sm:$0xff]
  %v124 = vld [vmem:[%s1 + $0x120] sm:$0xff]
  %v125 = vld [vmem:[%s1 + $0x128] sm:$0xff]
  %v126 = vld [vmem:[%s1 + $0x130] sm:$0xff]
  %v127 = vld [vmem:[%s1 + $0x138] sm:$0xff]
  %v128 = vld [vmem:[%s1 + $0x140] sm:$0xff]
  %v129 = vld [vmem:[%s1 + $0x148] sm:$0xff]
  %v130 = vld [vmem:[%s1 + $0x150] sm:$0xff]
  %v131 = vld [vmem:[%s1 + $0x158] sm:$0xff]
  %v132 = vld [vmem:[%s1 + $0x160] sm:$0xff]
  %v133 = vld [vmem:[%s1 + $0x168] sm:$0xff]
  %v134 = vld [vmem:[%s1 + $0x170] sm:$0xff]
  %v135 = vld [vmem:[%s1 + $0x178] sm:$0xff]
  %v136 = vld [vmem:[%s1 + $0x180] sm:$0xff]
  %v137 = vld [vmem:[%s1 + $0x188] sm:$0xff]
  %v138 = vld [vmem:[%s1 + $0x190] sm:$0xff]
  %v139 = vld [vmem:[%s1 + $0x198] sm:$0xff]
  %v140 = vld [vmem:[%s1 + $0x1a0] sm:$0xff]
  %v141 = vld [vmem:[%s1 + $0x1a8] sm:$0xff]
  %v142 = vld [vmem:[%s1 + $0x1b0] sm:$0xff]
  %v143 = vld [vmem:[%s1 + $0x1b8] sm:$0xff]
  %v144 = vld [vmem:[%s1 + $0x1c0] sm:$0xff]
  %v145 = vld [vmem:[%s1 + $0x1c8] sm:$0xff]
  %v146 = vld [vmem:[%s1 + $0x1d0] sm:$0xff]
  %v147 = vld [vmem:[%s1 + $0x1d8] sm:$0xff]
  %v148 = vld [vmem:[%s1 + $0x1e0] sm:$0xff]
  %v149 = vld [vmem:[%s1 + $0x1e8] sm:$0xff]
  %v150 = vld [vmem:[%s1 + $0x1f0] sm:$0xff]
  %v151 = vld [vmem:[%s1 + $0x1f8] sm:$0xff]
  %v152 = vld [vmem:[%s3] sm:$0xf]
  %vm153 = vcmask 31744
  %v155 = vsel %vm153, %v88, 0
  %v158 = vsel %vm153, %v89, 0
  %v161 = vsel %vm153, %v90, 0
  %v164 = vsel %vm153, %v91, 0
  %v167 = vsel %vm153, %v92, 0
  %v170 = vsel %vm153, %v93, 0
  %v173 = vsel %vm153, %v94, 0
  %v176 = vsel %vm153, %v95, 0
  %v179 = vsel %vm153, %v96, 0
  %v182 = vsel %vm153, %v97, 0
  %v185 = vsel %vm153, %v98, 0
  %v188 = vsel %vm153, %v99, 0
  %v191 = vsel %vm153, %v100, 0
  %v194 = vsel %vm153, %v101, 0
  %v197 = vsel %vm153, %v102, 0
  %v200 = vsel %vm153, %v103, 0
  %v203 = vsel %vm153, %v104, 0
  %v206 = vsel %vm153, %v105, 0
  %v209 = vsel %vm153, %v106, 0
  %v212 = vsel %vm153, %v107, 0
  %v215 = vsel %vm153, %v108, 0
  %v218 = vsel %vm153, %v109, 0
  %v221 = vsel %vm153, %v110, 0
  %v224 = vsel %vm153, %v111, 0
  %v227 = vsel %vm153, %v112, 0
  %v230 = vsel %vm153, %v113, 0
  %v233 = vsel %vm153, %v114, 0
  %v236 = vsel %vm153, %v115, 0
  %v239 = vsel %vm153, %v116, 0
  %v242 = vsel %vm153, %v117, 0
  %v245 = vsel %vm153, %v118, 0
  %v248 = vsel %vm153, %v119, 0
  %v251 = vsel %vm153, %v120, 0
  %v254 = vsel %vm153, %v121, 0
  %v257 = vsel %vm153, %v122, 0
  %v260 = vsel %vm153, %v123, 0
  %v263 = vsel %vm153, %v124, 0
  %v266 = vsel %vm153, %v125, 0
  %v269 = vsel %vm153, %v126, 0
  %v272 = vsel %vm153, %v127, 0
  %v275 = vsel %vm153, %v128, 0
  %v278 = vsel %vm153, %v129, 0
  %v281 = vsel %vm153, %v130, 0
  %v284 = vsel %vm153, %v131, 0
  %v287 = vsel %vm153, %v132, 0
  %v290 = vsel %vm153, %v133, 0
  %v293 = vsel %vm153, %v134, 0
  %v296 = vsel %vm153, %v135, 0
  %v299 = vsel %vm153, %v136, 0
  %v302 = vsel %vm153, %v137, 0
  %v305 = vsel %vm153, %v138, 0
  %v308 = vsel %vm153, %v139, 0
  %v311 = vsel %vm153, %v140, 0
  %v314 = vsel %vm153, %v141, 0
  %v317 = vsel %vm153, %v142, 0
  %v320 = vsel %vm153, %v143, 0
  %v323 = vsel %vm153, %v144, 0
  %v326 = vsel %vm153, %v145, 0
  %v329 = vsel %vm153, %v146, 0
  %v332 = vsel %vm153, %v147, 0
  %v335 = vsel %vm153, %v148, 0
  %v338 = vsel %vm153, %v149, 0
  %v341 = vsel %vm153, %v150, 0
  %v344 = vsel %vm153, %v151, 0
  %vm346 = vcmask 1043456
  %v348 = vsel %vm346, %v152, 0
  %350 = vmatprep.subr.mxu0 0.0
  %351 = vmatpush1.msra.mxu0 0.0
  %352 = vmatprep.subr.mxu0 0.0
  %353 = vmatpush1.msra.mxu0 0.0
  %354 = vmatprep.subr.mxu0 0.0
  %355 = vmatpush1.msra.mxu0 0.0
  %356 = vmatprep.subr.mxu0 0.0
  %357 = vmatpush1.msra.mxu0 0.0
  %358 = vmatprep.subr.mxu0 0.0
  %359 = vmatpush1.msra.mxu0 0.0
  %360 = vmatprep.subr.mxu0 0.0
  %361 = vmatpush1.msra.mxu0 0.0
  %362 = vmatprep.subr.mxu0 0.0
  %363 = vmatpush1.msra.mxu0 0.0
  %364 = vmatprep.subr.mxu0 0.0
  %365 = vmatpush1.msra.mxu0 0.0
  %366 = vmatprep.subr.mxu0 0.0
  %367 = vmatpush1.msra.mxu0 0.0
  %368 = vmatprep.subr.mxu0 0.0
  %369 = vmatpush1.msra.mxu0 0.0
  %370 = vmatprep.subr.mxu0 0.0
  %371 = vmatpush1.msra.mxu0 0.0
  %372 = vmatprep.subr.mxu0 0.0
  %373 = vmatpush1.msra.mxu0 0.0
  %374 = vmatprep.subr.mxu0 0.0
  %375 = vmatpush1.msra.mxu0 0.0
  %376 = vmatprep.subr.mxu0 0.0
  %377 = vmatpush1.msra.mxu0 0.0
  %378 = vmatprep.subr.mxu0 0.0
  %379 = vmatpush1.msra.mxu0 0.0
  %380 = vmatprep.subr.mxu0 0.0
  %381 = vmatpush1.msra.mxu0 %v348
  %382 = vmatprep.subr.mxu0 0.0
  %383 = vmatpush2.msra.mxu0 0.0
  %384 = vmatprep.subr.mxu0 0.0
  %385 = vmatpush2.msra.mxu0 0.0
  %386 = vmatprep.subr.mxu0 0.0
  %387 = vmatpush2.msra.mxu0 0.0
  %388 = vmatprep.subr.mxu0 0.0
  %389 = vmatpush2.msra.mxu0 0.0
  %390 = vmatprep.subr.mxu0 0.0
  %391 = vmatpush2.msra.mxu0 0.0
  %392 = vmatprep.subr.mxu0 0.0
  %393 = vmatpush2.msra.mxu0 0.0
  %394 = vmatprep.subr.mxu0 0.0
  %395 = vmatpush2.msra.mxu0 0.0
  %396 = vmatprep.subr.mxu0 0.0
  %397 = vmatpush2.msra.mxu0 0.0
  %398 = vmatprep.subr.mxu0 0.0
  %399 = vmatpush2.msra.mxu0 0.0
  %400 = vmatprep.subr.mxu0 0.0
  %401 = vmatpush2.msra.mxu0 0.0
  %402 = vmatprep.subr.mxu0 0.0
  %403 = vmatpush2.msra.mxu0 0.0
  %404 = vmatprep.subr.mxu0 0.0
  %405 = vmatpush2.msra.mxu0 0.0
  %406 = vmatprep.subr.mxu0 0.0
  %407 = vmatpush2.msra.mxu0 0.0
  %408 = vmatprep.subr.mxu0 0.0
  %409 = vmatpush2.msra.mxu0 0.0
  %410 = vmatprep.subr.mxu0 0.0
  %411 = vmatpush2.msra.mxu0 0.0
  %412 = vmatprep.subr.mxu0 0.0
  %413 = vmatpush2.msra.mxu0 0.0
  %414 = vmatprep.mubr.f32.mxu0 0.0
  %415 = vmatmul.mubr.f32.gmra.mxu0 %v155
  %v416 = vpop.f32.mrf.mxu0
  %v417 = vadd.f32 0.0, %v416
  %v418 = vpop.f32.mrf.mxu0
  %419 = vmatprep.mubr.f32.mxu0 0.0
  %420 = vmatmul.mubr.f32.gmra.mxu0 %v158
  %v421 = vpop.f32.mrf.mxu0
  %v422 = vadd.f32 0.0, %v421
  %v423 = vpop.f32.mrf.mxu0
  %424 = vmatprep.mubr.f32.mxu0 0.0
  %425 = vmatmul.mubr.f32.gmra.mxu0 %v161
  %v426 = vpop.f32.mrf.mxu0
  %v427 = vadd.f32 0.0, %v426
  %v428 = vpop.f32.mrf.mxu0
  %429 = vmatprep.mubr.f32.mxu0 0.0
  %430 = vmatmul.mubr.f32.gmra.mxu0 %v164
  %v431 = vpop.f32.mrf.mxu0
  %v432 = vadd.f32 0.0, %v431
  %v433 = vpop.f32.mrf.mxu0
  %434 = vmatprep.mubr.f32.mxu0 0.0
  %435 = vmatmul.mubr.f32.gmra.mxu0 %v167
  %v436 = vpop.f32.mrf.mxu0
  %v437 = vadd.f32 0.0, %v436
  %v438 = vpop.f32.mrf.mxu0
  %439 = vmatprep.mubr.f32.mxu0 0.0
  %440 = vmatmul.mubr.f32.gmra.mxu0 %v170
  %v441 = vpop.f32.mrf.mxu0
  %v442 = vadd.f32 0.0, %v441
  %v443 = vpop.f32.mrf.mxu0
  %444 = vmatprep.mubr.f32.mxu0 0.0
  %445 = vmatmul.mubr.f32.gmra.mxu0 %v173
  %v446 = vpop.f32.mrf.mxu0
  %v447 = vadd.f32 0.0, %v446
  %v448 = vpop.f32.mrf.mxu0
  %449 = vmatprep.mubr.f32.mxu0 0.0
  %450 = vmatmul.mubr.f32.gmra.mxu0 %v176
  %v451 = vpop.f32.mrf.mxu0
  %v452 = vadd.f32 0.0, %v451
  %v453 = vpop.f32.mrf.mxu0
  %454 = vmatprep.mubr.f32.mxu0 0.0
  %455 = vmatmul.mubr.f32.gmra.mxu0 %v179
  %v456 = vpop.f32.mrf.mxu0
  %v457 = vadd.f32 0.0, %v456
  %v458 = vpop.f32.mrf.mxu0
  %459 = vmatprep.mubr.f32.mxu0 0.0
  %460 = vmatmul.mubr.f32.gmra.mxu0 %v182
  %v461 = vpop.f32.mrf.mxu0
  %v462 = vadd.f32 0.0, %v461
  %v463 = vpop.f32.mrf.mxu0
  %464 = vmatprep.mubr.f32.mxu0 0.0
  %465 = vmatmul.mubr.f32.gmra.mxu0 %v185
  %v466 = vpop.f32.mrf.mxu0
  %v467 = vadd.f32 0.0, %v466
  %v468 = vpop.f32.mrf.mxu0
  %469 = vmatprep.mubr.f32.mxu0 0.0
  %470 = vmatmul.mubr.f32.gmra.mxu0 %v188
  %v471 = vpop.f32.mrf.mxu0
  %v472 = vadd.f32 0.0, %v471
  %v473 = vpop.f32.mrf.mxu0
  %474 = vmatprep.mubr.f32.mxu0 0.0
  %475 = vmatmul.mubr.f32.gmra.mxu0 %v191
  %v476 = vpop.f32.mrf.mxu0
  %v477 = vadd.f32 0.0, %v476
  %v478 = vpop.f32.mrf.mxu0
  %479 = vmatprep.mubr.f32.mxu0 0.0
  %480 = vmatmul.mubr.f32.gmra.mxu0 %v194
  %v481 = vpop.f32.mrf.mxu0
  %v482 = vadd.f32 0.0, %v481
  %v483 = vpop.f32.mrf.mxu0
  %484 = vmatprep.mubr.f32.mxu0 0.0
  %485 = vmatmul.mubr.f32.gmra.mxu0 %v197
  %v486 = vpop.f32.mrf.mxu0
  %v487 = vadd.f32 0.0, %v486
  %v488 = vpop.f32.mrf.mxu0
  %489 = vmatprep.mubr.f32.mxu0 0.0
  %490 = vmatmul.mubr.f32.gmra.mxu0 %v200
  %v491 = vpop.f32.mrf.mxu0
  %v492 = vadd.f32 0.0, %v491
  %v493 = vpop.f32.mrf.mxu0
  %494 = vmatprep.mubr.f32.mxu0 0.0
  %495 = vmatmul.mubr.f32.gmra.mxu0 %v203
  %v496 = vpop.f32.mrf.mxu0
  %v497 = vadd.f32 0.0, %v496
  %v498 = vpop.f32.mrf.mxu0
  %499 = vmatprep.mubr.f32.mxu0 0.0
  %500 = vmatmul.mubr.f32.gmra.mxu0 %v206
  %v501 = vpop.f32.mrf.mxu0
  %v502 = vadd.f32 0.0, %v501
  %v503 = vpop.f32.mrf.mxu0
  %504 = vmatprep.mubr.f32.mxu0 0.0
  %505 = vmatmul.mubr.f32.gmra.mxu0 %v209
  %v506 = vpop.f32.mrf.mxu0
  %v507 = vadd.f32 0.0, %v506
  %v508 = vpop.f32.mrf.mxu0
  %509 = vmatprep.mubr.f32.mxu0 0.0
  %510 = vmatmul.mubr.f32.gmra.mxu0 %v212
  %v511 = vpop.f32.mrf.mxu0
  %v512 = vadd.f32 0.0, %v511
  %v513 = vpop.f32.mrf.mxu0
  %514 = vmatprep.mubr.f32.mxu0 0.0
  %515 = vmatmul.mubr.f32.gmra.mxu0 %v215
  %v516 = vpop.f32.mrf.mxu0
  %v517 = vadd.f32 0.0, %v516
  %v518 = vpop.f32.mrf.mxu0
  %519 = vmatprep.mubr.f32.mxu0 0.0
  %520 = vmatmul.mubr.f32.gmra.mxu0 %v218
  %v521 = vpop.f32.mrf.mxu0
  %v522 = vadd.f32 0.0, %v521
  %v523 = vpop.f32.mrf.mxu0
  %524 = vmatprep.mubr.f32.mxu0 0.0
  %525 = vmatmul.mubr.f32.gmra.mxu0 %v221
  %v526 = vpop.f32.mrf.mxu0
  %v527 = vadd.f32 0.0, %v526
  %v528 = vpop.f32.mrf.mxu0
  %529 = vmatprep.mubr.f32.mxu0 0.0
  %530 = vmatmul.mubr.f32.gmra.mxu0 %v224
  %v531 = vpop.f32.mrf.mxu0
  %v532 = vadd.f32 0.0, %v531
  %v533 = vpop.f32.mrf.mxu0
  %534 = vmatprep.mubr.f32.mxu0 0.0
  %535 = vmatmul.mubr.f32.gmra.mxu0 %v227
  %v536 = vpop.f32.mrf.mxu0
  %v537 = vadd.f32 0.0, %v536
  %v538 = vpop.f32.mrf.mxu0
  %539 = vmatprep.mubr.f32.mxu0 0.0
  %540 = vmatmul.mubr.f32.gmra.mxu0 %v230
  %v541 = vpop.f32.mrf.mxu0
  %v542 = vadd.f32 0.0, %v541
  %v543 = vpop.f32.mrf.mxu0
  %544 = vmatprep.mubr.f32.mxu0 0.0
  %545 = vmatmul.mubr.f32.gmra.mxu0 %v233
  %v546 = vpop.f32.mrf.mxu0
  %v547 = vadd.f32 0.0, %v546
  %v548 = vpop.f32.mrf.mxu0
  %549 = vmatprep.mubr.f32.mxu0 0.0
  %550 = vmatmul.mubr.f32.gmra.mxu0 %v236
  %v551 = vpop.f32.mrf.mxu0
  %v552 = vadd.f32 0.0, %v551
  %v553 = vpop.f32.mrf.mxu0
  %554 = vmatprep.mubr.f32.mxu0 0.0
  %555 = vmatmul.mubr.f32.gmra.mxu0 %v239
  %v556 = vpop.f32.mrf.mxu0
  %v557 = vadd.f32 0.0, %v556
  %v558 = vpop.f32.mrf.mxu0
  %559 = vmatprep.mubr.f32.mxu0 0.0
  %560 = vmatmul.mubr.f32.gmra.mxu0 %v242
  %v561 = vpop.f32.mrf.mxu0
  %v562 = vadd.f32 0.0, %v561
  %v563 = vpop.f32.mrf.mxu0
  %564 = vmatprep.mubr.f32.mxu0 0.0
  %565 = vmatmul.mubr.f32.gmra.mxu0 %v245
  %v566 = vpop.f32.mrf.mxu0
  %v567 = vadd.f32 0.0, %v566
  %v568 = vpop.f32.mrf.mxu0
  %569 = vmatprep.mubr.f32.mxu0 0.0
  %570 = vmatmul.mubr.f32.gmra.mxu0 %v248
  %v571 = vpop.f32.mrf.mxu0
  %v572 = vadd.f32 0.0, %v571
  %v573 = vpop.f32.mrf.mxu0
  %574 = vmatprep.mubr.f32.mxu0 0.0
  %575 = vmatmul.mubr.f32.gmra.mxu0 %v251
  %v576 = vpop.f32.mrf.mxu0
  %v577 = vadd.f32 0.0, %v576
  %v578 = vpop.f32.mrf.mxu0
  %579 = vmatprep.mubr.f32.mxu0 0.0
  %580 = vmatmul.mubr.f32.gmra.mxu0 %v254
  %v581 = vpop.f32.mrf.mxu0
  %v582 = vadd.f32 0.0, %v581
  %v583 = vpop.f32.mrf.mxu0
  %584 = vmatprep.mubr.f32.mxu0 0.0
  %585 = vmatmul.mubr.f32.gmra.mxu0 %v257
  %v586 = vpop.f32.mrf.mxu0
  %v587 = vadd.f32 0.0, %v586
  %v588 = vpop.f32.mrf.mxu0
  %589 = vmatprep.mubr.f32.mxu0 0.0
  %590 = vmatmul.mubr.f32.gmra.mxu0 %v260
  %v591 = vpop.f32.mrf.mxu0
  %v592 = vadd.f32 0.0, %v591
  %v593 = vpop.f32.mrf.mxu0
  %594 = vmatprep.mubr.f32.mxu0 0.0
  %595 = vmatmul.mubr.f32.gmra.mxu0 %v263
  %v596 = vpop.f32.mrf.mxu0
  %v597 = vadd.f32 0.0, %v596
  %v598 = vpop.f32.mrf.mxu0
  %599 = vmatprep.mubr.f32.mxu0 0.0
  %600 = vmatmul.mubr.f32.gmra.mxu0 %v266
  %v601 = vpop.f32.mrf.mxu0
  %v602 = vadd.f32 0.0, %v601
  %v603 = vpop.f32.mrf.mxu0
  %604 = vmatprep.mubr.f32.mxu0 0.0
  %605 = vmatmul.mubr.f32.gmra.mxu0 %v269
  %v606 = vpop.f32.mrf.mxu0
  %v607 = vadd.f32 0.0, %v606
  %v608 = vpop.f32.mrf.mxu0
  %609 = vmatprep.mubr.f32.mxu0 0.0
  %610 = vmatmul.mubr.f32.gmra.mxu0 %v272
  %v611 = vpop.f32.mrf.mxu0
  %v612 = vadd.f32 0.0, %v611
  %v613 = vpop.f32.mrf.mxu0
  %614 = vmatprep.mubr.f32.mxu0 0.0
  %615 = vmatmul.mubr.f32.gmra.mxu0 %v275
  %v616 = vpop.f32.mrf.mxu0
  %v617 = vadd.f32 0.0, %v616
  %v618 = vpop.f32.mrf.mxu0
  %619 = vmatprep.mubr.f32.mxu0 0.0
  %620 = vmatmul.mubr.f32.gmra.mxu0 %v278
  %v621 = vpop.f32.mrf.mxu0
  %v622 = vadd.f32 0.0, %v621
  %v623 = vpop.f32.mrf.mxu0
  %624 = vmatprep.mubr.f32.mxu0 0.0
  %625 = vmatmul.mubr.f32.gmra.mxu0 %v281
  %v626 = vpop.f32.mrf.mxu0
  %v627 = vadd.f32 0.0, %v626
  %v628 = vpop.f32.mrf.mxu0
  %629 = vmatprep.mubr.f32.mxu0 0.0
  %630 = vmatmul.mubr.f32.gmra.mxu0 %v284
  %v631 = vpop.f32.mrf.mxu0
  %v632 = vadd.f32 0.0, %v631
  %v633 = vpop.f32.mrf.mxu0
  %634 = vmatprep.mubr.f32.mxu0 0.0
  %635 = vmatmul.mubr.f32.gmra.mxu0 %v287
  %v636 = vpop.f32.mrf.mxu0
  %v637 = vadd.f32 0.0, %v636
  %v638 = vpop.f32.mrf.mxu0
  %639 = vmatprep.mubr.f32.mxu0 0.0
  %640 = vmatmul.mubr.f32.gmra.mxu0 %v290
  %v641 = vpop.f32.mrf.mxu0
  %v642 = vadd.f32 0.0, %v641
  %v643 = vpop.f32.mrf.mxu0
  %644 = vmatprep.mubr.f32.mxu0 0.0
  %645 = vmatmul.mubr.f32.gmra.mxu0 %v293
  %v646 = vpop.f32.mrf.mxu0
  %v647 = vadd.f32 0.0, %v646
  %v648 = vpop.f32.mrf.mxu0
  %649 = vmatprep.mubr.f32.mxu0 0.0
  %650 = vmatmul.mubr.f32.gmra.mxu0 %v296
  %v651 = vpop.f32.mrf.mxu0
  %v652 = vadd.f32 0.0, %v651
  %v653 = vpop.f32.mrf.mxu0
  %654 = vmatprep.mubr.f32.mxu0 0.0
  %655 = vmatmul.mubr.f32.gmra.mxu0 %v299
  %v656 = vpop.f32.mrf.mxu0
  %v657 = vadd.f32 0.0, %v656
  %v658 = vpop.f32.mrf.mxu0
  %659 = vmatprep.mubr.f32.mxu0 0.0
  %660 = vmatmul.mubr.f32.gmra.mxu0 %v302
  %v661 = vpop.f32.mrf.mxu0
  %v662 = vadd.f32 0.0, %v661
  %v663 = vpop.f32.mrf.mxu0
  %664 = vmatprep.mubr.f32.mxu0 0.0
  %665 = vmatmul.mubr.f32.gmra.mxu0 %v305
  %v666 = vpop.f32.mrf.mxu0
  %v667 = vadd.f32 0.0, %v666
  %v668 = vpop.f32.mrf.mxu0
  %669 = vmatprep.mubr.f32.mxu0 0.0
  %670 = vmatmul.mubr.f32.gmra.mxu0 %v308
  %v671 = vpop.f32.mrf.mxu0
  %v672 = vadd.f32 0.0, %v671
  %v673 = vpop.f32.mrf.mxu0
  %674 = vmatprep.mubr.f32.mxu0 0.0
  %675 = vmatmul.mubr.f32.gmra.mxu0 %v311
  %v676 = vpop.f32.mrf.mxu0
  %v677 = vadd.f32 0.0, %v676
  %v678 = vpop.f32.mrf.mxu0
  %679 = vmatprep.mubr.f32.mxu0 0.0
  %680 = vmatmul.mubr.f32.gmra.mxu0 %v314
  %v681 = vpop.f32.mrf.mxu0
  %v682 = vadd.f32 0.0, %v681
  %v683 = vpop.f32.mrf.mxu0
  %684 = vmatprep.mubr.f32.mxu0 0.0
  %685 = vmatmul.mubr.f32.gmra.mxu0 %v317
  %v686 = vpop.f32.mrf.mxu0
  %v687 = vadd.f32 0.0, %v686
  %v688 = vpop.f32.mrf.mxu0
  %689 = vmatprep.mubr.f32.mxu0 0.0
  %690 = vmatmul.mubr.f32.gmra.mxu0 %v320
  %v691 = vpop.f32.mrf.mxu0
  %v692 = vadd.f32 0.0, %v691
  %v693 = vpop.f32.mrf.mxu0
  %694 = vmatprep.mubr.f32.mxu0 0.0
  %695 = vmatmul.mubr.f32.gmra.mxu0 %v323
  %v696 = vpop.f32.mrf.mxu0
  %v697 = vadd.f32 0.0, %v696
  %v698 = vpop.f32.mrf.mxu0
  %699 = vmatprep.mubr.f32.mxu0 0.0
  %700 = vmatmul.mubr.f32.gmra.mxu0 %v326
  %v701 = vpop.f32.mrf.mxu0
  %v702 = vadd.f32 0.0, %v701
  %v703 = vpop.f32.mrf.mxu0
  %704 = vmatprep.mubr.f32.mxu0 0.0
  %705 = vmatmul.mubr.f32.gmra.mxu0 %v329
  %v706 = vpop.f32.mrf.mxu0
  %v707 = vadd.f32 0.0, %v706
  %v708 = vpop.f32.mrf.mxu0
  %709 = vmatprep.mubr.f32.mxu0 0.0
  %710 = vmatmul.mubr.f32.gmra.mxu0 %v332
  %v711 = vpop.f32.mrf.mxu0
  %v712 = vadd.f32 0.0, %v711
  %v713 = vpop.f32.mrf.mxu0
  %714 = vmatprep.mubr.f32.mxu0 0.0
  %715 = vmatmul.mubr.f32.gmra.mxu0 %v335
  %v716 = vpop.f32.mrf.mxu0
  %v717 = vadd.f32 0.0, %v716
  %v718 = vpop.f32.mrf.mxu0
  %719 = vmatprep.mubr.f32.mxu0 0.0
  %720 = vmatmul.mubr.f32.gmra.mxu0 %v338
  %v721 = vpop.f32.mrf.mxu0
  %v722 = vadd.f32 0.0, %v721
  %v723 = vpop.f32.mrf.mxu0
  %724 = vmatprep.mubr.f32.mxu0 0.0
  %725 = vmatmul.mubr.f32.gmra.mxu0 %v341
  %v726 = vpop.f32.mrf.mxu0
  %v727 = vadd.f32 0.0, %v726
  %v728 = vpop.f32.mrf.mxu0
  %729 = vmatprep.mubr.f32.mxu0 0.0
  %730 = vmatmul.mubr.f32.gmra.mxu0 %v344
  %v731 = vpop.f32.mrf.mxu0
  %v732 = vadd.f32 0.0, %v731
  %v733 = vpop.f32.mrf.mxu0
  %734 = vdwg.mxu0
  %v736 = vsel %vm153, %v23, 0
  %v739 = vsel %vm153, %v24, 0
  %v742 = vsel %vm153, %v25, 0
  %v745 = vsel %vm153, %v26, 0
  %v748 = vsel %vm153, %v27, 0
  %v751 = vsel %vm153, %v28, 0
  %v754 = vsel %vm153, %v29, 0
  %v757 = vsel %vm153, %v30, 0
  %v760 = vsel %vm153, %v31, 0
  %v763 = vsel %vm153, %v32, 0
  %v766 = vsel %vm153, %v33, 0
  %v769 = vsel %vm153, %v34, 0
  %v772 = vsel %vm153, %v35, 0
  %v775 = vsel %vm153, %v36, 0
  %v778 = vsel %vm153, %v37, 0
  %v781 = vsel %vm153, %v38, 0
  %v784 = vsel %vm153, %v39, 0
  %v787 = vsel %vm153, %v40, 0
  %v790 = vsel %vm153, %v41, 0
  %v793 = vsel %vm153, %v42, 0
  %v796 = vsel %vm153, %v43, 0
  %v799 = vsel %vm153, %v44, 0
  %v802 = vsel %vm153, %v45, 0
  %v805 = vsel %vm153, %v46, 0
  %v808 = vsel %vm153, %v47, 0
  %v811 = vsel %vm153, %v48, 0
  %v814 = vsel %vm153, %v49, 0
  %v817 = vsel %vm153, %v50, 0
  %v820 = vsel %vm153, %v51, 0
  %v823 = vsel %vm153, %v52, 0
  %v826 = vsel %vm153, %v53, 0
  %v829 = vsel %vm153, %v54, 0
  %v832 = vsel %vm153, %v55, 0
  %v835 = vsel %vm153, %v56, 0
  %v838 = vsel %vm153, %v57, 0
  %v841 = vsel %vm153, %v58, 0
  %v844 = vsel %vm153, %v59, 0
  %v847 = vsel %vm153, %v60, 0
  %v850 = vsel %vm153, %v61, 0
  %v853 = vsel %vm153, %v62, 0
  %v856 = vsel %vm153, %v63, 0
  %v859 = vsel %vm153, %v64, 0
  %v862 = vsel %vm153, %v65, 0
  %v865 = vsel %vm153, %v66, 0
  %v868 = vsel %vm153, %v67, 0
  %v871 = vsel %vm153, %v68, 0
  %v874 = vsel %vm153, %v69, 0
  %v877 = vsel %vm153, %v70, 0
  %v880 = vsel %vm153, %v71, 0
  %v883 = vsel %vm153, %v72, 0
  %v886 = vsel %vm153, %v73, 0
  %v889 = vsel %vm153, %v74, 0
  %v892 = vsel %vm153, %v75, 0
  %v895 = vsel %vm153, %v76, 0
  %v898 = vsel %vm153, %v77, 0
  %v901 = vsel %vm153, %v78, 0
  %v904 = vsel %vm153, %v79, 0
  %v907 = vsel %vm153, %v80, 0
  %v910 = vsel %vm153, %v81, 0
  %v913 = vsel %vm153, %v82, 0
  %v916 = vsel %vm153, %v83, 0
  %v919 = vsel %vm153, %v84, 0
  %v922 = vsel %vm153, %v85, 0
  %v925 = vsel %vm153, %v86, 0
  %v928 = vsel %vm346, %v87, 0
  %930 = vmatprep.subr.mxu0 0.0
  %931 = vmatpush1.msra.mxu0 0.0
  %932 = vmatprep.subr.mxu0 0.0
  %933 = vmatpush1.msra.mxu0 0.0
  %934 = vmatprep.subr.mxu0 0.0
  %935 = vmatpush1.msra.mxu0 0.0
  %936 = vmatprep.subr.mxu0 0.0
  %937 = vmatpush1.msra.mxu0 0.0
  %938 = vmatprep.subr.mxu0 0.0
  %939 = vmatpush1.msra.mxu0 0.0
  %940 = vmatprep.subr.mxu0 0.0
  %941 = vmatpush1.msra.mxu0 0.0
  %942 = vmatprep.subr.mxu0 0.0
  %943 = vmatpush1.msra.mxu0 0.0
  %944 = vmatprep.subr.mxu0 0.0
  %945 = vmatpush1.msra.mxu0 0.0
  %946 = vmatprep.subr.mxu0 0.0
  %947 = vmatpush1.msra.mxu0 0.0
  %948 = vmatprep.subr.mxu0 0.0
  %949 = vmatpush1.msra.mxu0 0.0
  %950 = vmatprep.subr.mxu0 0.0
  %951 = vmatpush1.msra.mxu0 0.0
  %952 = vmatprep.subr.mxu0 0.0
  %953 = vmatpush1.msra.mxu0 0.0
  %954 = vmatprep.subr.mxu0 0.0
  %955 = vmatpush1.msra.mxu0 0.0
  %956 = vmatprep.subr.mxu0 0.0
  %957 = vmatpush1.msra.mxu0 0.0
  %958 = vmatprep.subr.mxu0 0.0
  %959 = vmatpush1.msra.mxu0 0.0
  %960 = vmatprep.subr.mxu0 0.0
  %961 = vmatpush1.msra.mxu0 %v928
  %962 = vmatprep.subr.mxu0 0.0
  %963 = vmatpush2.msra.mxu0 0.0
  %964 = vmatprep.subr.mxu0 0.0
  %965 = vmatpush2.msra.mxu0 0.0
  %966 = vmatprep.subr.mxu0 0.0
  %967 = vmatpush2.msra.mxu0 0.0
  %968 = vmatprep.subr.mxu0 0.0
  %969 = vmatpush2.msra.mxu0 0.0
  %970 = vmatprep.subr.mxu0 0.0
  %971 = vmatpush2.msra.mxu0 0.0
  %972 = vmatprep.subr.mxu0 0.0
  %973 = vmatpush2.msra.mxu0 0.0
  %974 = vmatprep.subr.mxu0 0.0
  %975 = vmatpush2.msra.mxu0 0.0
  %976 = vmatprep.subr.mxu0 0.0
  %977 = vmatpush2.msra.mxu0 0.0
  %978 = vmatprep.subr.mxu0 0.0
  %979 = vmatpush2.msra.mxu0 0.0
  %980 = vmatprep.subr.mxu0 0.0
  %981 = vmatpush2.msra.mxu0 0.0
  %982 = vmatprep.subr.mxu0 0.0
  %983 = vmatpush2.msra.mxu0 0.0
  %984 = vmatprep.subr.mxu0 0.0
  %985 = vmatpush2.msra.mxu0 0.0
  %986 = vmatprep.subr.mxu0 0.0
  %987 = vmatpush2.msra.mxu0 0.0
  %988 = vmatprep.subr.mxu0 0.0
  %989 = vmatpush2.msra.mxu0 0.0
  %990 = vmatprep.subr.mxu0 0.0
  %991 = vmatpush2.msra.mxu0 0.0
  %992 = vmatprep.subr.mxu0 0.0
  %993 = vmatpush2.msra.mxu0 0.0
  %994 = vmatprep.mubr.f32.mxu0 0.0
  %995 = vmatmul.mubr.f32.gmra.mxu0 %v736
  %v996 = vpop.f32.mrf.mxu0
  %v997 = vadd.f32 %v417, %v996
  %v998 = vpop.f32.mrf.mxu0
  %999 = vmatprep.mubr.f32.mxu0 0.0
  %1000 = vmatmul.mubr.f32.gmra.mxu0 %v739
  %v1001 = vpop.f32.mrf.mxu0
  %v1002 = vadd.f32 %v422, %v1001
  %v1003 = vpop.f32.mrf.mxu0
  %1004 = vmatprep.mubr.f32.mxu0 0.0
  %1005 = vmatmul.mubr.f32.gmra.mxu0 %v742
  %v1006 = vpop.f32.mrf.mxu0
  %v1007 = vadd.f32 %v427, %v1006
  %v1008 = vpop.f32.mrf.mxu0
  %1009 = vmatprep.mubr.f32.mxu0 0.0
  %1010 = vmatmul.mubr.f32.gmra.mxu0 %v745
  %v1011 = vpop.f32.mrf.mxu0
  %v1012 = vadd.f32 %v432, %v1011
  %v1013 = vpop.f32.mrf.mxu0
  %1014 = vmatprep.mubr.f32.mxu0 0.0
  %1015 = vmatmul.mubr.f32.gmra.mxu0 %v748
  %v1016 = vpop.f32.mrf.mxu0
  %v1017 = vadd.f32 %v437, %v1016
  %v1018 = vpop.f32.mrf.mxu0
  %1019 = vmatprep.mubr.f32.mxu0 0.0
  %1020 = vmatmul.mubr.f32.gmra.mxu0 %v751
  %v1021 = vpop.f32.mrf.mxu0
  %v1022 = vadd.f32 %v442, %v1021
  %v1023 = vpop.f32.mrf.mxu0
  %1024 = vmatprep.mubr.f32.mxu0 0.0
  %1025 = vmatmul.mubr.f32.gmra.mxu0 %v754
  %v1026 = vpop.f32.mrf.mxu0
  %v1027 = vadd.f32 %v447, %v1026
  %v1028 = vpop.f32.mrf.mxu0
  %1029 = vmatprep.mubr.f32.mxu0 0.0
  %1030 = vmatmul.mubr.f32.gmra.mxu0 %v757
  %v1031 = vpop.f32.mrf.mxu0
  %v1032 = vadd.f32 %v452, %v1031
  %v1033 = vpop.f32.mrf.mxu0
  %1034 = vmatprep.mubr.f32.mxu0 0.0
  %1035 = vmatmul.mubr.f32.gmra.mxu0 %v760
  %v1036 = vpop.f32.mrf.mxu0
  %v1037 = vadd.f32 %v457, %v1036
  %v1038 = vpop.f32.mrf.mxu0
  %1039 = vmatprep.mubr.f32.mxu0 0.0
  %1040 = vmatmul.mubr.f32.gmra.mxu0 %v763
  %v1041 = vpop.f32.mrf.mxu0
  %v1042 = vadd.f32 %v462, %v1041
  %v1043 = vpop.f32.mrf.mxu0
  %1044 = vmatprep.mubr.f32.mxu0 0.0
  %1045 = vmatmul.mubr.f32.gmra.mxu0 %v766
  %v1046 = vpop.f32.mrf.mxu0
  %v1047 = vadd.f32 %v467, %v1046
  %v1048 = vpop.f32.mrf.mxu0
  %1049 = vmatprep.mubr.f32.mxu0 0.0
  %1050 = vmatmul.mubr.f32.gmra.mxu0 %v769
  %v1051 = vpop.f32.mrf.mxu0
  %v1052 = vadd.f32 %v472, %v1051
  %v1053 = vpop.f32.mrf.mxu0
  %1054 = vmatprep.mubr.f32.mxu0 0.0
  %1055 = vmatmul.mubr.f32.gmra.mxu0 %v772
  %v1056 = vpop.f32.mrf.mxu0
  %v1057 = vadd.f32 %v477, %v1056
  %v1058 = vpop.f32.mrf.mxu0
  %1059 = vmatprep.mubr.f32.mxu0 0.0
  %1060 = vmatmul.mubr.f32.gmra.mxu0 %v775
  %v1061 = vpop.f32.mrf.mxu0
  %v1062 = vadd.f32 %v482, %v1061
  %v1063 = vpop.f32.mrf.mxu0
  %1064 = vmatprep.mubr.f32.mxu0 0.0
  %1065 = vmatmul.mubr.f32.gmra.mxu0 %v778
  %v1066 = vpop.f32.mrf.mxu0
  %v1067 = vadd.f32 %v487, %v1066
  %v1068 = vpop.f32.mrf.mxu0
  %1069 = vmatprep.mubr.f32.mxu0 0.0
  %1070 = vmatmul.mubr.f32.gmra.mxu0 %v781
  %v1071 = vpop.f32.mrf.mxu0
  %v1072 = vadd.f32 %v492, %v1071
  %v1073 = vpop.f32.mrf.mxu0
  %1074 = vmatprep.mubr.f32.mxu0 0.0
  %1075 = vmatmul.mubr.f32.gmra.mxu0 %v784
  %v1076 = vpop.f32.mrf.mxu0
  %v1077 = vadd.f32 %v497, %v1076
  %v1078 = vpop.f32.mrf.mxu0
  %1079 = vmatprep.mubr.f32.mxu0 0.0
  %1080 = vmatmul.mubr.f32.gmra.mxu0 %v787
  %v1081 = vpop.f32.mrf.mxu0
  %v1082 = vadd.f32 %v502, %v1081
  %v1083 = vpop.f32.mrf.mxu0
  %1084 = vmatprep.mubr.f32.mxu0 0.0
  %1085 = vmatmul.mubr.f32.gmra.mxu0 %v790
  %v1086 = vpop.f32.mrf.mxu0
  %v1087 = vadd.f32 %v507, %v1086
  %v1088 = vpop.f32.mrf.mxu0
  %1089 = vmatprep.mubr.f32.mxu0 0.0
  %1090 = vmatmul.mubr.f32.gmra.mxu0 %v793
  %v1091 = vpop.f32.mrf.mxu0
  %v1092 = vadd.f32 %v512, %v1091
  %v1093 = vpop.f32.mrf.mxu0
  %1094 = vmatprep.mubr.f32.mxu0 0.0
  %1095 = vmatmul.mubr.f32.gmra.mxu0 %v796
  %v1096 = vpop.f32.mrf.mxu0
  %v1097 = vadd.f32 %v517, %v1096
  %v1098 = vpop.f32.mrf.mxu0
  %1099 = vmatprep.mubr.f32.mxu0 0.0
  %1100 = vmatmul.mubr.f32.gmra.mxu0 %v799
  %v1101 = vpop.f32.mrf.mxu0
  %v1102 = vadd.f32 %v522, %v1101
  %v1103 = vpop.f32.mrf.mxu0
  %1104 = vmatprep.mubr.f32.mxu0 0.0
  %1105 = vmatmul.mubr.f32.gmra.mxu0 %v802
  %v1106 = vpop.f32.mrf.mxu0
  %v1107 = vadd.f32 %v527, %v1106
  %v1108 = vpop.f32.mrf.mxu0
  %1109 = vmatprep.mubr.f32.mxu0 0.0
  %1110 = vmatmul.mubr.f32.gmra.mxu0 %v805
  %v1111 = vpop.f32.mrf.mxu0
  %v1112 = vadd.f32 %v532, %v1111
  %v1113 = vpop.f32.mrf.mxu0
  %1114 = vmatprep.mubr.f32.mxu0 0.0
  %1115 = vmatmul.mubr.f32.gmra.mxu0 %v808
  %v1116 = vpop.f32.mrf.mxu0
  %v1117 = vadd.f32 %v537, %v1116
  %v1118 = vpop.f32.mrf.mxu0
  %1119 = vmatprep.mubr.f32.mxu0 0.0
  %1120 = vmatmul.mubr.f32.gmra.mxu0 %v811
  %v1121 = vpop.f32.mrf.mxu0
  %v1122 = vadd.f32 %v542, %v1121
  %v1123 = vpop.f32.mrf.mxu0
  %1124 = vmatprep.mubr.f32.mxu0 0.0
  %1125 = vmatmul.mubr.f32.gmra.mxu0 %v814
  %v1126 = vpop.f32.mrf.mxu0
  %v1127 = vadd.f32 %v547, %v1126
  %v1128 = vpop.f32.mrf.mxu0
  %1129 = vmatprep.mubr.f32.mxu0 0.0
  %1130 = vmatmul.mubr.f32.gmra.mxu0 %v817
  %v1131 = vpop.f32.mrf.mxu0
  %v1132 = vadd.f32 %v552, %v1131
  %v1133 = vpop.f32.mrf.mxu0
  %1134 = vmatprep.mubr.f32.mxu0 0.0
  %1135 = vmatmul.mubr.f32.gmra.mxu0 %v820
  %v1136 = vpop.f32.mrf.mxu0
  %v1137 = vadd.f32 %v557, %v1136
  %v1138 = vpop.f32.mrf.mxu0
  %1139 = vmatprep.mubr.f32.mxu0 0.0
  %1140 = vmatmul.mubr.f32.gmra.mxu0 %v823
  %v1141 = vpop.f32.mrf.mxu0
  %v1142 = vadd.f32 %v562, %v1141
  %v1143 = vpop.f32.mrf.mxu0
  %1144 = vmatprep.mubr.f32.mxu0 0.0
  %1145 = vmatmul.mubr.f32.gmra.mxu0 %v826
  %v1146 = vpop.f32.mrf.mxu0
  %v1147 = vadd.f32 %v567, %v1146
  %v1148 = vpop.f32.mrf.mxu0
  %1149 = vmatprep.mubr.f32.mxu0 0.0
  %1150 = vmatmul.mubr.f32.gmra.mxu0 %v829
  %v1151 = vpop.f32.mrf.mxu0
  %v1152 = vadd.f32 %v572, %v1151
  %v1153 = vpop.f32.mrf.mxu0
  %1154 = vmatprep.mubr.f32.mxu0 0.0
  %1155 = vmatmul.mubr.f32.gmra.mxu0 %v832
  %v1156 = vpop.f32.mrf.mxu0
  %v1157 = vadd.f32 %v577, %v1156
  %v1158 = vpop.f32.mrf.mxu0
  %1159 = vmatprep.mubr.f32.mxu0 0.0
  %1160 = vmatmul.mubr.f32.gmra.mxu0 %v835
  %v1161 = vpop.f32.mrf.mxu0
  %v1162 = vadd.f32 %v582, %v1161
  %v1163 = vpop.f32.mrf.mxu0
  %1164 = vmatprep.mubr.f32.mxu0 0.0
  %1165 = vmatmul.mubr.f32.gmra.mxu0 %v838
  %v1166 = vpop.f32.mrf.mxu0
  %v1167 = vadd.f32 %v587, %v1166
  %v1168 = vpop.f32.mrf.mxu0
  %1169 = vmatprep.mubr.f32.mxu0 0.0
  %1170 = vmatmul.mubr.f32.gmra.mxu0 %v841
  %v1171 = vpop.f32.mrf.mxu0
  %v1172 = vadd.f32 %v592, %v1171
  %v1173 = vpop.f32.mrf.mxu0
  %1174 = vmatprep.mubr.f32.mxu0 0.0
  %1175 = vmatmul.mubr.f32.gmra.mxu0 %v844
  %v1176 = vpop.f32.mrf.mxu0
  %v1177 = vadd.f32 %v597, %v1176
  %v1178 = vpop.f32.mrf.mxu0
  %1179 = vmatprep.mubr.f32.mxu0 0.0
  %1180 = vmatmul.mubr.f32.gmra.mxu0 %v847
  %v1181 = vpop.f32.mrf.mxu0
  %v1182 = vadd.f32 %v602, %v1181
  %v1183 = vpop.f32.mrf.mxu0
  %1184 = vmatprep.mubr.f32.mxu0 0.0
  %1185 = vmatmul.mubr.f32.gmra.mxu0 %v850
  %v1186 = vpop.f32.mrf.mxu0
  %v1187 = vadd.f32 %v607, %v1186
  %v1188 = vpop.f32.mrf.mxu0
  %1189 = vmatprep.mubr.f32.mxu0 0.0
  %1190 = vmatmul.mubr.f32.gmra.mxu0 %v853
  %v1191 = vpop.f32.mrf.mxu0
  %v1192 = vadd.f32 %v612, %v1191
  %v1193 = vpop.f32.mrf.mxu0
  %1194 = vmatprep.mubr.f32.mxu0 0.0
  %1195 = vmatmul.mubr.f32.gmra.mxu0 %v856
  %v1196 = vpop.f32.mrf.mxu0
  %v1197 = vadd.f32 %v617, %v1196
  %v1198 = vpop.f32.mrf.mxu0
  %1199 = vmatprep.mubr.f32.mxu0 0.0
  %1200 = vmatmul.mubr.f32.gmra.mxu0 %v859
  %v1201 = vpop.f32.mrf.mxu0
  %v1202 = vadd.f32 %v622, %v1201
  %v1203 = vpop.f32.mrf.mxu0
  %1204 = vmatprep.mubr.f32.mxu0 0.0
  %1205 = vmatmul.mubr.f32.gmra.mxu0 %v862
  %v1206 = vpop.f32.mrf.mxu0
  %v1207 = vadd.f32 %v627, %v1206
  %v1208 = vpop.f32.mrf.mxu0
  %1209 = vmatprep.mubr.f32.mxu0 0.0
  %1210 = vmatmul.mubr.f32.gmra.mxu0 %v865
  %v1211 = vpop.f32.mrf.mxu0
  %v1212 = vadd.f32 %v632, %v1211
  %v1213 = vpop.f32.mrf.mxu0
  %1214 = vmatprep.mubr.f32.mxu0 0.0
  %1215 = vmatmul.mubr.f32.gmra.mxu0 %v868
  %v1216 = vpop.f32.mrf.mxu0
  %v1217 = vadd.f32 %v637, %v1216
  %v1218 = vpop.f32.mrf.mxu0
  %1219 = vmatprep.mubr.f32.mxu0 0.0
  %1220 = vmatmul.mubr.f32.gmra.mxu0 %v871
  %v1221 = vpop.f32.mrf.mxu0
  %v1222 = vadd.f32 %v642, %v1221
  %v1223 = vpop.f32.mrf.mxu0
  %1224 = vmatprep.mubr.f32.mxu0 0.0
  %1225 = vmatmul.mubr.f32.gmra.mxu0 %v874
  %v1226 = vpop.f32.mrf.mxu0
  %v1227 = vadd.f32 %v647, %v1226
  %v1228 = vpop.f32.mrf.mxu0
  %1229 = vmatprep.mubr.f32.mxu0 0.0
  %1230 = vmatmul.mubr.f32.gmra.mxu0 %v877
  %v1231 = vpop.f32.mrf.mxu0
  %v1232 = vadd.f32 %v652, %v1231
  %v1233 = vpop.f32.mrf.mxu0
  %1234 = vmatprep.mubr.f32.mxu0 0.0
  %1235 = vmatmul.mubr.f32.gmra.mxu0 %v880
  %v1236 = vpop.f32.mrf.mxu0
  %v1237 = vadd.f32 %v657, %v1236
  %v1238 = vpop.f32.mrf.mxu0
  %1239 = vmatprep.mubr.f32.mxu0 0.0
  %1240 = vmatmul.mubr.f32.gmra.mxu0 %v883
  %v1241 = vpop.f32.mrf.mxu0
  %v1242 = vadd.f32 %v662, %v1241
  %v1243 = vpop.f32.mrf.mxu0
  %1244 = vmatprep.mubr.f32.mxu0 0.0
  %1245 = vmatmul.mubr.f32.gmra.mxu0 %v886
  %v1246 = vpop.f32.mrf.mxu0
  %v1247 = vadd.f32 %v667, %v1246
  %v1248 = vpop.f32.mrf.mxu0
  %1249 = vmatprep.mubr.f32.mxu0 0.0
  %1250 = vmatmul.mubr.f32.gmra.mxu0 %v889
  %v1251 = vpop.f32.mrf.mxu0
  %v1252 = vadd.f32 %v672, %v1251
  %v1253 = vpop.f32.mrf.mxu0
  %1254 = vmatprep.mubr.f32.mxu0 0.0
  %1255 = vmatmul.mubr.f32.gmra.mxu0 %v892
  %v1256 = vpop.f32.mrf.mxu0
  %v1257 = vadd.f32 %v677, %v1256
  %v1258 = vpop.f32.mrf.mxu0
  %1259 = vmatprep.mubr.f32.mxu0 0.0
  %1260 = vmatmul.mubr.f32.gmra.mxu0 %v895
  %v1261 = vpop.f32.mrf.mxu0
  %v1262 = vadd.f32 %v682, %v1261
  %v1263 = vpop.f32.mrf.mxu0
  %1264 = vmatprep.mubr.f32.mxu0 0.0
  %1265 = vmatmul.mubr.f32.gmra.mxu0 %v898
  %v1266 = vpop.f32.mrf.mxu0
  %v1267 = vadd.f32 %v687, %v1266
  %v1268 = vpop.f32.mrf.mxu0
  %1269 = vmatprep.mubr.f32.mxu0 0.0
  %1270 = vmatmul.mubr.f32.gmra.mxu0 %v901
  %v1271 = vpop.f32.mrf.mxu0
  %v1272 = vadd.f32 %v692, %v1271
  %v1273 = vpop.f32.mrf.mxu0
  %1274 = vmatprep.mubr.f32.mxu0 0.0
  %1275 = vmatmul.mubr.f32.gmra.mxu0 %v904
  %v1276 = vpop.f32.mrf.mxu0
  %v1277 = vadd.f32 %v697, %v1276
  %v1278 = vpop.f32.mrf.mxu0
  %1279 = vmatprep.mubr.f32.mxu0 0.0
  %1280 = vmatmul.mubr.f32.gmra.mxu0 %v907
  %v1281 = vpop.f32.mrf.mxu0
  %v1282 = vadd.f32 %v702, %v1281
  %v1283 = vpop.f32.mrf.mxu0
  %1284 = vmatprep.mubr.f32.mxu0 0.0
  %1285 = vmatmul.mubr.f32.gmra.mxu0 %v910
  %v1286 = vpop.f32.mrf.mxu0
  %v1287 = vadd.f32 %v707, %v1286
  %v1288 = vpop.f32.mrf.mxu0
  %1289 = vmatprep.mubr.f32.mxu0 0.0
  %1290 = vmatmul.mubr.f32.gmra.mxu0 %v913
  %v1291 = vpop.f32.mrf.mxu0
  %v1292 = vadd.f32 %v712, %v1291
  %v1293 = vpop.f32.mrf.mxu0
  %1294 = vmatprep.mubr.f32.mxu0 0.0
  %1295 = vmatmul.mubr.f32.gmra.mxu0 %v916
  %v1296 = vpop.f32.mrf.mxu0
  %v1297 = vadd.f32 %v717, %v1296
  %v1298 = vpop.f32.mrf.mxu0
  %1299 = vmatprep.mubr.f32.mxu0 0.0
  %1300 = vmatmul.mubr.f32.gmra.mxu0 %v919
  %v1301 = vpop.f32.mrf.mxu0
  %v1302 = vadd.f32 %v722, %v1301
  %v1303 = vpop.f32.mrf.mxu0
  %1304 = vmatprep.mubr.f32.mxu0 0.0
  %1305 = vmatmul.mubr.f32.gmra.mxu0 %v922
  %v1306 = vpop.f32.mrf.mxu0
  %v1307 = vadd.f32 %v727, %v1306
  %v1308 = vpop.f32.mrf.mxu0
  %1309 = vmatprep.mubr.f32.mxu0 0.0
  %1310 = vmatmul.mubr.f32.gmra.mxu0 %v925
  %v1311 = vpop.f32.mrf.mxu0
  %v1312 = vadd.f32 %v732, %v1311
  %v1313 = vpop.f32.mrf.mxu0
  %1314 = vdwg.mxu0
  %v1315 = vld [vmem:[%s4] sm:$0x1]
  %v1317 = vlaneseq
  %v1318 = vshrl.u32 %v1317, 7
  %v1319 = vsub.s32 0, %v1318
  %v1320 = vrot.slane %v1315, %v1319
  %v1322 = vmul.f32 %v997, %v1320
  %v1323 = vmul.f32 %v1002, %v1320
  %v1324 = vmul.f32 %v1007, %v1320
  %v1325 = vmul.f32 %v1012, %v1320
  %v1326 = vmul.f32 %v1017, %v1320
  %v1327 = vmul.f32 %v1022, %v1320
  %v1328 = vmul.f32 %v1027, %v1320
  %v1329 = vmul.f32 %v1032, %v1320
  %v1330 = vmul.f32 %v1037, %v1320
  %v1331 = vmul.f32 %v1042, %v1320
  %v1332 = vmul.f32 %v1047, %v1320
  %v1333 = vmul.f32 %v1052, %v1320
  %v1334 = vmul.f32 %v1057, %v1320
  %v1335 = vmul.f32 %v1062, %v1320
  %v1336 = vmul.f32 %v1067, %v1320
  %v1337 = vmul.f32 %v1072, %v1320
  %v1338 = vmul.f32 %v1077, %v1320
  %v1339 = vmul.f32 %v1082, %v1320
  %v1340 = vmul.f32 %v1087, %v1320
  %v1341 = vmul.f32 %v1092, %v1320
  %v1342 = vmul.f32 %v1097, %v1320
  %v1343 = vmul.f32 %v1102, %v1320
  %v1344 = vmul.f32 %v1107, %v1320
  %v1345 = vmul.f32 %v1112, %v1320
  %v1346 = vmul.f32 %v1117, %v1320
  %v1347 = vmul.f32 %v1122, %v1320
  %v1348 = vmul.f32 %v1127, %v1320
  %v1349 = vmul.f32 %v1132, %v1320
  %v1350 = vmul.f32 %v1137, %v1320
  %v1351 = vmul.f32 %v1142, %v1320
  %v1352 = vmul.f32 %v1147, %v1320
  %v1353 = vmul.f32 %v1152, %v1320
  %v1354 = vmul.f32 %v1157, %v1320
  %v1355 = vmul.f32 %v1162, %v1320
  %v1356 = vmul.f32 %v1167, %v1320
  %v1357 = vmul.f32 %v1172, %v1320
  %v1358 = vmul.f32 %v1177, %v1320
  %v1359 = vmul.f32 %v1182, %v1320
  %v1360 = vmul.f32 %v1187, %v1320
  %v1361 = vmul.f32 %v1192, %v1320
  %v1362 = vmul.f32 %v1197, %v1320
  %v1363 = vmul.f32 %v1202, %v1320
  %v1364 = vmul.f32 %v1207, %v1320
  %v1365 = vmul.f32 %v1212, %v1320
  %v1366 = vmul.f32 %v1217, %v1320
  %v1367 = vmul.f32 %v1222, %v1320
  %v1368 = vmul.f32 %v1227, %v1320
  %v1369 = vmul.f32 %v1232, %v1320
  %v1370 = vmul.f32 %v1237, %v1320
  %v1371 = vmul.f32 %v1242, %v1320
  %v1372 = vmul.f32 %v1247, %v1320
  %v1373 = vmul.f32 %v1252, %v1320
  %v1374 = vmul.f32 %v1257, %v1320
  %v1375 = vmul.f32 %v1262, %v1320
  %v1376 = vmul.f32 %v1267, %v1320
  %v1377 = vmul.f32 %v1272, %v1320
  %v1378 = vmul.f32 %v1277, %v1320
  %v1379 = vmul.f32 %v1282, %v1320
  %v1380 = vmul.f32 %v1287, %v1320
  %v1381 = vmul.f32 %v1292, %v1320
  %v1382 = vmul.f32 %v1297, %v1320
  %v1383 = vmul.f32 %v1302, %v1320
  %v1384 = vmul.f32 %v1307, %v1320
  %v1385 = vmul.f32 %v1312, %v1320
  %v1386 = vld [vmem:[%s5] sm:$0x1]
  %v1388 = vlaneseq
  %v1389 = vshrl.u32 %v1388, 7
  %v1390 = vsub.s32 0, %v1389
  %v1391 = vrot.slane %v1386, %v1390
  %v1393 = vadd.f32 %v1322, %v1391
  %v1394 = vadd.f32 %v1323, %v1391
  %v1395 = vadd.f32 %v1324, %v1391
  %v1396 = vadd.f32 %v1325, %v1391
  %v1397 = vadd.f32 %v1326, %v1391
  %v1398 = vadd.f32 %v1327, %v1391
  %v1399 = vadd.f32 %v1328, %v1391
  %v1400 = vadd.f32 %v1329, %v1391
  %v1401 = vadd.f32 %v1330, %v1391
  %v1402 = vadd.f32 %v1331, %v1391
  %v1403 = vadd.f32 %v1332, %v1391
  %v1404 = vadd.f32 %v1333, %v1391
  %v1405 = vadd.f32 %v1334, %v1391
  %v1406 = vadd.f32 %v1335, %v1391
  %v1407 = vadd.f32 %v1336, %v1391
  %v1408 = vadd.f32 %v1337, %v1391
  %v1409 = vadd.f32 %v1338, %v1391
  %v1410 = vadd.f32 %v1339, %v1391
  %v1411 = vadd.f32 %v1340, %v1391
  %v1412 = vadd.f32 %v1341, %v1391
  %v1413 = vadd.f32 %v1342, %v1391
  %v1414 = vadd.f32 %v1343, %v1391
  %v1415 = vadd.f32 %v1344, %v1391
  %v1416 = vadd.f32 %v1345, %v1391
  %v1417 = vadd.f32 %v1346, %v1391
  %v1418 = vadd.f32 %v1347, %v1391
  %v1419 = vadd.f32 %v1348, %v1391
  %v1420 = vadd.f32 %v1349, %v1391
  %v1421 = vadd.f32 %v1350, %v1391
  %v1422 = vadd.f32 %v1351, %v1391
  %v1423 = vadd.f32 %v1352, %v1391
  %v1424 = vadd.f32 %v1353, %v1391
  %v1425 = vadd.f32 %v1354, %v1391
  %v1426 = vadd.f32 %v1355, %v1391
  %v1427 = vadd.f32 %v1356, %v1391
  %v1428 = vadd.f32 %v1357, %v1391
  %v1429 = vadd.f32 %v1358, %v1391
  %v1430 = vadd.f32 %v1359, %v1391
  %v1431 = vadd.f32 %v1360, %v1391
  %v1432 = vadd.f32 %v1361, %v1391
  %v1433 = vadd.f32 %v1362, %v1391
  %v1434 = vadd.f32 %v1363, %v1391
  %v1435 = vadd.f32 %v1364, %v1391
  %v1436 = vadd.f32 %v1365, %v1391
  %v1437 = vadd.f32 %v1366, %v1391
  %v1438 = vadd.f32 %v1367, %v1391
  %v1439 = vadd.f32 %v1368, %v1391
  %v1440 = vadd.f32 %v1369, %v1391
  %v1441 = vadd.f32 %v1370, %v1391
  %v1442 = vadd.f32 %v1371, %v1391
  %v1443 = vadd.f32 %v1372, %v1391
  %v1444 = vadd.f32 %v1373, %v1391
  %v1445 = vadd.f32 %v1374, %v1391
  %v1446 = vadd.f32 %v1375, %v1391
  %v1447 = vadd.f32 %v1376, %v1391
  %v1448 = vadd.f32 %v1377, %v1391
  %v1449 = vadd.f32 %v1378, %v1391
  %v1450 = vadd.f32 %v1379, %v1391
  %v1451 = vadd.f32 %v1380, %v1391
  %v1452 = vadd.f32 %v1381, %v1391
  %v1453 = vadd.f32 %v1382, %v1391
  %v1454 = vadd.f32 %v1383, %v1391
  %v1455 = vadd.f32 %v1384, %v1391
  %v1456 = vadd.f32 %v1385, %v1391
  %v1457 = vxor.u32 %v1393, 2147483648
  %v1458 = vxor.u32 %v1394, 2147483648
  %v1459 = vxor.u32 %v1395, 2147483648
  %v1460 = vxor.u32 %v1396, 2147483648
  %v1461 = vxor.u32 %v1397, 2147483648
  %v1462 = vxor.u32 %v1398, 2147483648
  %v1463 = vxor.u32 %v1399, 2147483648
  %v1464 = vxor.u32 %v1400, 2147483648
  %v1465 = vxor.u32 %v1401, 2147483648
  %v1466 = vxor.u32 %v1402, 2147483648
  %v1467 = vxor.u32 %v1403, 2147483648
  %v1468 = vxor.u32 %v1404, 2147483648
  %v1469 = vxor.u32 %v1405, 2147483648
  %v1470 = vxor.u32 %v1406, 2147483648
  %v1471 = vxor.u32 %v1407, 2147483648
  %v1472 = vxor.u32 %v1408, 2147483648
  %v1473 = vxor.u32 %v1409, 2147483648
  %v1474 = vxor.u32 %v1410, 2147483648
  %v1475 = vxor.u32 %v1411, 2147483648
  %v1476 = vxor.u32 %v1412, 2147483648
  %v1477 = vxor.u32 %v1413, 2147483648
  %v1478 = vxor.u32 %v1414, 2147483648
  %v1479 = vxor.u32 %v1415, 2147483648
  %v1480 = vxor.u32 %v1416, 2147483648
  %v1481 = vxor.u32 %v1417, 2147483648
  %v1482 = vxor.u32 %v1418, 2147483648
  %v1483 = vxor.u32 %v1419, 2147483648
  %v1484 = vxor.u32 %v1420, 2147483648
  %v1485 = vxor.u32 %v1421, 2147483648
  %v1486 = vxor.u32 %v1422, 2147483648
  %v1487 = vxor.u32 %v1423, 2147483648
  %v1488 = vxor.u32 %v1424, 2147483648
  %v1489 = vxor.u32 %v1425, 2147483648
  %v1490 = vxor.u32 %v1426, 2147483648
  %v1491 = vxor.u32 %v1427, 2147483648
  %v1492 = vxor.u32 %v1428, 2147483648
  %v1493 = vxor.u32 %v1429, 2147483648
  %v1494 = vxor.u32 %v1430, 2147483648
  %v1495 = vxor.u32 %v1431, 2147483648
  %v1496 = vxor.u32 %v1432, 2147483648
  %v1497 = vxor.u32 %v1433, 2147483648
  %v1498 = vxor.u32 %v1434, 2147483648
  %v1499 = vxor.u32 %v1435, 2147483648
  %v1500 = vxor.u32 %v1436, 2147483648
  %v1501 = vxor.u32 %v1437, 2147483648
  %v1502 = vxor.u32 %v1438, 2147483648
  %v1503 = vxor.u32 %v1439, 2147483648
  %v1504 = vxor.u32 %v1440, 2147483648
  %v1505 = vxor.u32 %v1441, 2147483648
  %v1506 = vxor.u32 %v1442, 2147483648
  %v1507 = vxor.u32 %v1443, 2147483648
  %v1508 = vxor.u32 %v1444, 2147483648
  %v1509 = vxor.u32 %v1445, 2147483648
  %v1510 = vxor.u32 %v1446, 2147483648
  %v1511 = vxor.u32 %v1447, 2147483648
  %v1512 = vxor.u32 %v1448, 2147483648
  %v1513 = vxor.u32 %v1449, 2147483648
  %v1514 = vxor.u32 %v1450, 2147483648
  %v1515 = vxor.u32 %v1451, 2147483648
  %v1516 = vxor.u32 %v1452, 2147483648
  %v1517 = vxor.u32 %v1453, 2147483648
  %v1518 = vxor.u32 %v1454, 2147483648
  %v1519 = vxor.u32 %v1455, 2147483648
  %v1520 = vxor.u32 %v1456, 2147483648
  %v1521 = vmul.f32 %v1457, 1.442695
  %v1522 = vpow.pop %v1521
  %v1523 = vmul.f32 %v1458, 1.442695
  %v1524 = vpow.pop %v1523
  %v1525 = vmul.f32 %v1459, 1.442695
  %v1526 = vpow.pop %v1525
  %v1527 = vmul.f32 %v1460, 1.442695
  %v1528 = vpow.pop %v1527
  %v1529 = vmul.f32 %v1461, 1.442695
  %v1530 = vpow.pop %v1529
  %v1531 = vmul.f32 %v1462, 1.442695
  %v1532 = vpow.pop %v1531
  %v1533 = vmul.f32 %v1463, 1.442695
  %v1534 = vpow.pop %v1533
  %v1535 = vmul.f32 %v1464, 1.442695
  %v1536 = vpow.pop %v1535
  %v1537 = vmul.f32 %v1465, 1.442695
  %v1538 = vpow.pop %v1537
  %v1539 = vmul.f32 %v1466, 1.442695
  %v1540 = vpow.pop %v1539
  %v1541 = vmul.f32 %v1467, 1.442695
  %v1542 = vpow.pop %v1541
  %v1543 = vmul.f32 %v1468, 1.442695
  %v1544 = vpow.pop %v1543
  %v1545 = vmul.f32 %v1469, 1.442695
  %v1546 = vpow.pop %v1545
  %v1547 = vmul.f32 %v1470, 1.442695
  %v1548 = vpow.pop %v1547
  %v1549 = vmul.f32 %v1471, 1.442695
  %v1550 = vpow.pop %v1549
  %v1551 = vmul.f32 %v1472, 1.442695
  %v1552 = vpow.pop %v1551
  %v1553 = vmul.f32 %v1473, 1.442695
  %v1554 = vpow.pop %v1553
  %v1555 = vmul.f32 %v1474, 1.442695
  %v1556 = vpow.pop %v1555
  %v1557 = vmul.f32 %v1475, 1.442695
  %v1558 = vpow.pop %v1557
  %v1559 = vmul.f32 %v1476, 1.442695
  %v1560 = vpow.pop %v1559
  %v1561 = vmul.f32 %v1477, 1.442695
  %v1562 = vpow.pop %v1561
  %v1563 = vmul.f32 %v1478, 1.442695
  %v1564 = vpow.pop %v1563
  %v1565 = vmul.f32 %v1479, 1.442695
  %v1566 = vpow.pop %v1565
  %v1567 = vmul.f32 %v1480, 1.442695
  %v1568 = vpow.pop %v1567
  %v1569 = vmul.f32 %v1481, 1.442695
  %v1570 = vpow.pop %v1569
  %v1571 = vmul.f32 %v1482, 1.442695
  %v1572 = vpow.pop %v1571
  %v1573 = vmul.f32 %v1483, 1.442695
  %v1574 = vpow.pop %v1573
  %v1575 = vmul.f32 %v1484, 1.442695
  %v1576 = vpow.pop %v1575
  %v1577 = vmul.f32 %v1485, 1.442695
  %v1578 = vpow.pop %v1577
  %v1579 = vmul.f32 %v1486, 1.442695
  %v1580 = vpow.pop %v1579
  %v1581 = vmul.f32 %v1487, 1.442695
  %v1582 = vpow.pop %v1581
  %v1583 = vmul.f32 %v1488, 1.442695
  %v1584 = vpow.pop %v1583
  %v1585 = vmul.f32 %v1489, 1.442695
  %v1586 = vpow.pop %v1585
  %v1587 = vmul.f32 %v1490, 1.442695
  %v1588 = vpow.pop %v1587
  %v1589 = vmul.f32 %v1491, 1.442695
  %v1590 = vpow.pop %v1589
  %v1591 = vmul.f32 %v1492, 1.442695
  %v1592 = vpow.pop %v1591
  %v1593 = vmul.f32 %v1493, 1.442695
  %v1594 = vpow.pop %v1593
  %v1595 = vmul.f32 %v1494, 1.442695
  %v1596 = vpow.pop %v1595
  %v1597 = vmul.f32 %v1495, 1.442695
  %v1598 = vpow.pop %v1597
  %v1599 = vmul.f32 %v1496, 1.442695
  %v1600 = vpow.pop %v1599
  %v1601 = vmul.f32 %v1497, 1.442695
  %v1602 = vpow.pop %v1601
  %v1603 = vmul.f32 %v1498, 1.442695
  %v1604 = vpow.pop %v1603
  %v1605 = vmul.f32 %v1499, 1.442695
  %v1606 = vpow.pop %v1605
  %v1607 = vmul.f32 %v1500, 1.442695
  %v1608 = vpow.pop %v1607
  %v1609 = vmul.f32 %v1501, 1.442695
  %v1610 = vpow.pop %v1609
  %v1611 = vmul.f32 %v1502, 1.442695
  %v1612 = vpow.pop %v1611
  %v1613 = vmul.f32 %v1503, 1.442695
  %v1614 = vpow.pop %v1613
  %v1615 = vmul.f32 %v1504, 1.442695
  %v1616 = vpow.pop %v1615
  %v1617 = vmul.f32 %v1505, 1.442695
  %v1618 = vpow.pop %v1617
  %v1619 = vmul.f32 %v1506, 1.442695
  %v1620 = vpow.pop %v1619
  %v1621 = vmul.f32 %v1507, 1.442695
  %v1622 = vpow.pop %v1621
  %v1623 = vmul.f32 %v1508, 1.442695
  %v1624 = vpow.pop %v1623
  %v1625 = vmul.f32 %v1509, 1.442695
  %v1626 = vpow.pop %v1625
  %v1627 = vmul.f32 %v1510, 1.442695
  %v1628 = vpow.pop %v1627
  %v1629 = vmul.f32 %v1511, 1.442695
  %v1630 = vpow.pop %v1629
  %v1631 = vmul.f32 %v1512, 1.442695
  %v1632 = vpow.pop %v1631
  %v1633 = vmul.f32 %v1513, 1.442695
  %v1634 = vpow.pop %v1633
  %v1635 = vmul.f32 %v1514, 1.442695
  %v1636 = vpow.pop %v1635
  %v1637 = vmul.f32 %v1515, 1.442695
  %v1638 = vpow.pop %v1637
  %v1639 = vmul.f32 %v1516, 1.442695
  %v1640 = vpow.pop %v1639
  %v1641 = vmul.f32 %v1517, 1.442695
  %v1642 = vpow.pop %v1641
  %v1643 = vmul.f32 %v1518, 1.442695
  %v1644 = vpow.pop %v1643
  %v1645 = vmul.f32 %v1519, 1.442695
  %v1646 = vpow.pop %v1645
  %v1647 = vmul.f32 %v1520, 1.442695
  %v1648 = vpow.pop %v1647
  %v1649 = vadd.f32 %v1522, 1.0
  %v1650 = vadd.f32 %v1524, 1.0
  %v1651 = vadd.f32 %v1526, 1.0
  %v1652 = vadd.f32 %v1528, 1.0
  %v1653 = vadd.f32 %v1530, 1.0
  %v1654 = vadd.f32 %v1532, 1.0
  %v1655 = vadd.f32 %v1534, 1.0
  %v1656 = vadd.f32 %v1536, 1.0
  %v1657 = vadd.f32 %v1538, 1.0
  %v1658 = vadd.f32 %v1540, 1.0
  %v1659 = vadd.f32 %v1542, 1.0
  %v1660 = vadd.f32 %v1544, 1.0
  %v1661 = vadd.f32 %v1546, 1.0
  %v1662 = vadd.f32 %v1548, 1.0
  %v1663 = vadd.f32 %v1550, 1.0
  %v1664 = vadd.f32 %v1552, 1.0
  %v1665 = vadd.f32 %v1554, 1.0
  %v1666 = vadd.f32 %v1556, 1.0
  %v1667 = vadd.f32 %v1558, 1.0
  %v1668 = vadd.f32 %v1560, 1.0
  %v1669 = vadd.f32 %v1562, 1.0
  %v1670 = vadd.f32 %v1564, 1.0
  %v1671 = vadd.f32 %v1566, 1.0
  %v1672 = vadd.f32 %v1568, 1.0
  %v1673 = vadd.f32 %v1570, 1.0
  %v1674 = vadd.f32 %v1572, 1.0
  %v1675 = vadd.f32 %v1574, 1.0
  %v1676 = vadd.f32 %v1576, 1.0
  %v1677 = vadd.f32 %v1578, 1.0
  %v1678 = vadd.f32 %v1580, 1.0
  %v1679 = vadd.f32 %v1582, 1.0
  %v1680 = vadd.f32 %v1584, 1.0
  %v1681 = vadd.f32 %v1586, 1.0
  %v1682 = vadd.f32 %v1588, 1.0
  %v1683 = vadd.f32 %v1590, 1.0
  %v1684 = vadd.f32 %v1592, 1.0
  %v1685 = vadd.f32 %v1594, 1.0
  %v1686 = vadd.f32 %v1596, 1.0
  %v1687 = vadd.f32 %v1598, 1.0
  %v1688 = vadd.f32 %v1600, 1.0
  %v1689 = vadd.f32 %v1602, 1.0
  %v1690 = vadd.f32 %v1604, 1.0
  %v1691 = vadd.f32 %v1606, 1.0
  %v1692 = vadd.f32 %v1608, 1.0
  %v1693 = vadd.f32 %v1610, 1.0
  %v1694 = vadd.f32 %v1612, 1.0
  %v1695 = vadd.f32 %v1614, 1.0
  %v1696 = vadd.f32 %v1616, 1.0
  %v1697 = vadd.f32 %v1618, 1.0
  %v1698 = vadd.f32 %v1620, 1.0
  %v1699 = vadd.f32 %v1622, 1.0
  %v1700 = vadd.f32 %v1624, 1.0
  %v1701 = vadd.f32 %v1626, 1.0
  %v1702 = vadd.f32 %v1628, 1.0
  %v1703 = vadd.f32 %v1630, 1.0
  %v1704 = vadd.f32 %v1632, 1.0
  %v1705 = vadd.f32 %v1634, 1.0
  %v1706 = vadd.f32 %v1636, 1.0
  %v1707 = vadd.f32 %v1638, 1.0
  %v1708 = vadd.f32 %v1640, 1.0
  %v1709 = vadd.f32 %v1642, 1.0
  %v1710 = vadd.f32 %v1644, 1.0
  %v1711 = vadd.f32 %v1646, 1.0
  %v1712 = vadd.f32 %v1648, 1.0
  %v1713 = vrcp.pop %v1649
  %v1714 = vmul.f32 1.0, %v1713
  %v1715 = vrcp.pop %v1650
  %v1716 = vmul.f32 1.0, %v1715
  %v1717 = vrcp.pop %v1651
  %v1718 = vmul.f32 1.0, %v1717
  %v1719 = vrcp.pop %v1652
  %v1720 = vmul.f32 1.0, %v1719
  %v1721 = vrcp.pop %v1653
  %v1722 = vmul.f32 1.0, %v1721
  %v1723 = vrcp.pop %v1654
  %v1724 = vmul.f32 1.0, %v1723
  %v1725 = vrcp.pop %v1655
  %v1726 = vmul.f32 1.0, %v1725
  %v1727 = vrcp.pop %v1656
  %v1728 = vmul.f32 1.0, %v1727
  %v1729 = vrcp.pop %v1657
  %v1730 = vmul.f32 1.0, %v1729
  %v1731 = vrcp.pop %v1658
  %v1732 = vmul.f32 1.0, %v1731
  %v1733 = vrcp.pop %v1659
  %v1734 = vmul.f32 1.0, %v1733
  %v1735 = vrcp.pop %v1660
  %v1736 = vmul.f32 1.0, %v1735
  %v1737 = vrcp.pop %v1661
  %v1738 = vmul.f32 1.0, %v1737
  %v1739 = vrcp.pop %v1662
  %v1740 = vmul.f32 1.0, %v1739
  %v1741 = vrcp.pop %v1663
  %v1742 = vmul.f32 1.0, %v1741
  %v1743 = vrcp.pop %v1664
  %v1744 = vmul.f32 1.0, %v1743
  %v1745 = vrcp.pop %v1665
  %v1746 = vmul.f32 1.0, %v1745
  %v1747 = vrcp.pop %v1666
  %v1748 = vmul.f32 1.0, %v1747
  %v1749 = vrcp.pop %v1667
  %v1750 = vmul.f32 1.0, %v1749
  %v1751 = vrcp.pop %v1668
  %v1752 = vmul.f32 1.0, %v1751
  %v1753 = vrcp.pop %v1669
  %v1754 = vmul.f32 1.0, %v1753
  %v1755 = vrcp.pop %v1670
  %v1756 = vmul.f32 1.0, %v1755
  %v1757 = vrcp.pop %v1671
  %v1758 = vmul.f32 1.0, %v1757
  %v1759 = vrcp.pop %v1672
  %v1760 = vmul.f32 1.0, %v1759
  %v1761 = vrcp.pop %v1673
  %v1762 = vmul.f32 1.0, %v1761
  %v1763 = vrcp.pop %v1674
  %v1764 = vmul.f32 1.0, %v1763
  %v1765 = vrcp.pop %v1675
  %v1766 = vmul.f32 1.0, %v1765
  %v1767 = vrcp.pop %v1676
  %v1768 = vmul.f32 1.0, %v1767
  %v1769 = vrcp.pop %v1677
  %v1770 = vmul.f32 1.0, %v1769
  %v1771 = vrcp.pop %v1678
  %v1772 = vmul.f32 1.0, %v1771
  %v1773 = vrcp.pop %v1679
  %v1774 = vmul.f32 1.0, %v1773
  %v1775 = vrcp.pop %v1680
  %v1776 = vmul.f32 1.0, %v1775
  %v1777 = vrcp.pop %v1681
  %v1778 = vmul.f32 1.0, %v1777
  %v1779 = vrcp.pop %v1682
  %v1780 = vmul.f32 1.0, %v1779
  %v1781 = vrcp.pop %v1683
  %v1782 = vmul.f32 1.0, %v1781
  %v1783 = vrcp.pop %v1684
  %v1784 = vmul.f32 1.0, %v1783
  %v1785 = vrcp.pop %v1685
  %v1786 = vmul.f32 1.0, %v1785
  %v1787 = vrcp.pop %v1686
  %v1788 = vmul.f32 1.0, %v1787
  %v1789 = vrcp.pop %v1687
  %v1790 = vmul.f32 1.0, %v1789
  %v1791 = vrcp.pop %v1688
  %v1792 = vmul.f32 1.0, %v1791
  %v1793 = vrcp.pop %v1689
  %v1794 = vmul.f32 1.0, %v1793
  %v1795 = vrcp.pop %v1690
  %v1796 = vmul.f32 1.0, %v1795
  %v1797 = vrcp.pop %v1691
  %v1798 = vmul.f32 1.0, %v1797
  %v1799 = vrcp.pop %v1692
  %v1800 = vmul.f32 1.0, %v1799
  %v1801 = vrcp.pop %v1693
  %v1802 = vmul.f32 1.0, %v1801
  %v1803 = vrcp.pop %v1694
  %v1804 = vmul.f32 1.0, %v1803
  %v1805 = vrcp.pop %v1695
  %v1806 = vmul.f32 1.0, %v1805
  %v1807 = vrcp.pop %v1696
  %v1808 = vmul.f32 1.0, %v1807
  %v1809 = vrcp.pop %v1697
  %v1810 = vmul.f32 1.0, %v1809
  %v1811 = vrcp.pop %v1698
  %v1812 = vmul.f32 1.0, %v1811
  %v1813 = vrcp.pop %v1699
  %v1814 = vmul.f32 1.0, %v1813
  %v1815 = vrcp.pop %v1700
  %v1816 = vmul.f32 1.0, %v1815
  %v1817 = vrcp.pop %v1701
  %v1818 = vmul.f32 1.0, %v1817
  %v1819 = vrcp.pop %v1702
  %v1820 = vmul.f32 1.0, %v1819
  %v1821 = vrcp.pop %v1703
  %v1822 = vmul.f32 1.0, %v1821
  %v1823 = vrcp.pop %v1704
  %v1824 = vmul.f32 1.0, %v1823
  %v1825 = vrcp.pop %v1705
  %v1826 = vmul.f32 1.0, %v1825
  %v1827 = vrcp.pop %v1706
  %v1828 = vmul.f32 1.0, %v1827
  %v1829 = vrcp.pop %v1707
  %v1830 = vmul.f32 1.0, %v1829
  %v1831 = vrcp.pop %v1708
  %v1832 = vmul.f32 1.0, %v1831
  %v1833 = vrcp.pop %v1709
  %v1834 = vmul.f32 1.0, %v1833
  %v1835 = vrcp.pop %v1710
  %v1836 = vmul.f32 1.0, %v1835
  %v1837 = vrcp.pop %v1711
  %v1838 = vmul.f32 1.0, %v1837
  %v1839 = vrcp.pop %v1712
  %v1840 = vmul.f32 1.0, %v1839
  %v1841 = vmul.f32 %v1393, %v1714
  %v1842 = vmul.f32 %v1394, %v1716
  %v1843 = vmul.f32 %v1395, %v1718
  %v1844 = vmul.f32 %v1396, %v1720
  %v1845 = vmul.f32 %v1397, %v1722
  %v1846 = vmul.f32 %v1398, %v1724
  %v1847 = vmul.f32 %v1399, %v1726
  %v1848 = vmul.f32 %v1400, %v1728
  %v1849 = vmul.f32 %v1401, %v1730
  %v1850 = vmul.f32 %v1402, %v1732
  %v1851 = vmul.f32 %v1403, %v1734
  %v1852 = vmul.f32 %v1404, %v1736
  %v1853 = vmul.f32 %v1405, %v1738
  %v1854 = vmul.f32 %v1406, %v1740
  %v1855 = vmul.f32 %v1407, %v1742
  %v1856 = vmul.f32 %v1408, %v1744
  %v1857 = vmul.f32 %v1409, %v1746
  %v1858 = vmul.f32 %v1410, %v1748
  %v1859 = vmul.f32 %v1411, %v1750
  %v1860 = vmul.f32 %v1412, %v1752
  %v1861 = vmul.f32 %v1413, %v1754
  %v1862 = vmul.f32 %v1414, %v1756
  %v1863 = vmul.f32 %v1415, %v1758
  %v1864 = vmul.f32 %v1416, %v1760
  %v1865 = vmul.f32 %v1417, %v1762
  %v1866 = vmul.f32 %v1418, %v1764
  %v1867 = vmul.f32 %v1419, %v1766
  %v1868 = vmul.f32 %v1420, %v1768
  %v1869 = vmul.f32 %v1421, %v1770
  %v1870 = vmul.f32 %v1422, %v1772
  %v1871 = vmul.f32 %v1423, %v1774
  %v1872 = vmul.f32 %v1424, %v1776
  %v1873 = vmul.f32 %v1425, %v1778
  %v1874 = vmul.f32 %v1426, %v1780
  %v1875 = vmul.f32 %v1427, %v1782
  %v1876 = vmul.f32 %v1428, %v1784
  %v1877 = vmul.f32 %v1429, %v1786
  %v1878 = vmul.f32 %v1430, %v1788
  %v1879 = vmul.f32 %v1431, %v1790
  %v1880 = vmul.f32 %v1432, %v1792
  %v1881 = vmul.f32 %v1433, %v1794
  %v1882 = vmul.f32 %v1434, %v1796
  %v1883 = vmul.f32 %v1435, %v1798
  %v1884 = vmul.f32 %v1436, %v1800
  %v1885 = vmul.f32 %v1437, %v1802
  %v1886 = vmul.f32 %v1438, %v1804
  %v1887 = vmul.f32 %v1439, %v1806
  %v1888 = vmul.f32 %v1440, %v1808
  %v1889 = vmul.f32 %v1441, %v1810
  %v1890 = vmul.f32 %v1442, %v1812
  %v1891 = vmul.f32 %v1443, %v1814
  %v1892 = vmul.f32 %v1444, %v1816
  %v1893 = vmul.f32 %v1445, %v1818
  %v1894 = vmul.f32 %v1446, %v1820
  %v1895 = vmul.f32 %v1447, %v1822
  %v1896 = vmul.f32 %v1448, %v1824
  %v1897 = vmul.f32 %v1449, %v1826
  %v1898 = vmul.f32 %v1450, %v1828
  %v1899 = vmul.f32 %v1451, %v1830
  %v1900 = vmul.f32 %v1452, %v1832
  %v1901 = vmul.f32 %v1453, %v1834
  %v1902 = vmul.f32 %v1454, %v1836
  %v1903 = vmul.f32 %v1455, %v1838
  %v1904 = vmul.f32 %v1456, %v1840
  %vm1905 = vcmask 64512
  %1906 = vst.msk [vmem:[%s6] sm:$0xff] %vm1905, %v1841
  %1907 = vst.msk [vmem:[%s6 + $0x8] sm:$0xff] %vm1905, %v1842
  %1908 = vst.msk [vmem:[%s6 + $0x10] sm:$0xff] %vm1905, %v1843
  %1909 = vst.msk [vmem:[%s6 + $0x18] sm:$0xff] %vm1905, %v1844
  %1910 = vst.msk [vmem:[%s6 + $0x20] sm:$0xff] %vm1905, %v1845
  %1911 = vst.msk [vmem:[%s6 + $0x28] sm:$0xff] %vm1905, %v1846
  %1912 = vst.msk [vmem:[%s6 + $0x30] sm:$0xff] %vm1905, %v1847
  %1913 = vst.msk [vmem:[%s6 + $0x38] sm:$0xff] %vm1905, %v1848
  %1914 = vst.msk [vmem:[%s6 + $0x40] sm:$0xff] %vm1905, %v1849
  %1915 = vst.msk [vmem:[%s6 + $0x48] sm:$0xff] %vm1905, %v1850
  %1916 = vst.msk [vmem:[%s6 + $0x50] sm:$0xff] %vm1905, %v1851
  %1917 = vst.msk [vmem:[%s6 + $0x58] sm:$0xff] %vm1905, %v1852
  %1918 = vst.msk [vmem:[%s6 + $0x60] sm:$0xff] %vm1905, %v1853
  %1919 = vst.msk [vmem:[%s6 + $0x68] sm:$0xff] %vm1905, %v1854
  %1920 = vst.msk [vmem:[%s6 + $0x70] sm:$0xff] %vm1905, %v1855
  %1921 = vst.msk [vmem:[%s6 + $0x78] sm:$0xff] %vm1905, %v1856
  %1922 = vst.msk [vmem:[%s6 + $0x80] sm:$0xff] %vm1905, %v1857
  %1923 = vst.msk [vmem:[%s6 + $0x88] sm:$0xff] %vm1905, %v1858
  %1924 = vst.msk [vmem:[%s6 + $0x90] sm:$0xff] %vm1905, %v1859
  %1925 = vst.msk [vmem:[%s6 + $0x98] sm:$0xff] %vm1905, %v1860
  %1926 = vst.msk [vmem:[%s6 + $0xa0] sm:$0xff] %vm1905, %v1861
  %1927 = vst.msk [vmem:[%s6 + $0xa8] sm:$0xff] %vm1905, %v1862
  %1928 = vst.msk [vmem:[%s6 + $0xb0] sm:$0xff] %vm1905, %v1863
  %1929 = vst.msk [vmem:[%s6 + $0xb8] sm:$0xff] %vm1905, %v1864
  %1930 = vst.msk [vmem:[%s6 + $0xc0] sm:$0xff] %vm1905, %v1865
  %1931 = vst.msk [vmem:[%s6 + $0xc8] sm:$0xff] %vm1905, %v1866
  %1932 = vst.msk [vmem:[%s6 + $0xd0] sm:$0xff] %vm1905, %v1867
  %1933 = vst.msk [vmem:[%s6 + $0xd8] sm:$0xff] %vm1905, %v1868
  %1934 = vst.msk [vmem:[%s6 + $0xe0] sm:$0xff] %vm1905, %v1869
  %1935 = vst.msk [vmem:[%s6 + $0xe8] sm:$0xff] %vm1905, %v1870
  %1936 = vst.msk [vmem:[%s6 + $0xf0] sm:$0xff] %vm1905, %v1871
  %1937 = vst.msk [vmem:[%s6 + $0xf8] sm:$0xff] %vm1905, %v1872
  %1938 = vst.msk [vmem:[%s6 + $0x100] sm:$0xff] %vm1905, %v1873
  %1939 = vst.msk [vmem:[%s6 + $0x108] sm:$0xff] %vm1905, %v1874
  %1940 = vst.msk [vmem:[%s6 + $0x110] sm:$0xff] %vm1905, %v1875
  %1941 = vst.msk [vmem:[%s6 + $0x118] sm:$0xff] %vm1905, %v1876
  %1942 = vst.msk [vmem:[%s6 + $0x120] sm:$0xff] %vm1905, %v1877
  %1943 = vst.msk [vmem:[%s6 + $0x128] sm:$0xff] %vm1905, %v1878
  %1944 = vst.msk [vmem:[%s6 + $0x130] sm:$0xff] %vm1905, %v1879
  %1945 = vst.msk [vmem:[%s6 + $0x138] sm:$0xff] %vm1905, %v1880
  %1946 = vst.msk [vmem:[%s6 + $0x140] sm:$0xff] %vm1905, %v1881
  %1947 = vst.msk [vmem:[%s6 + $0x148] sm:$0xff] %vm1905, %v1882
  %1948 = vst.msk [vmem:[%s6 + $0x150] sm:$0xff] %vm1905, %v1883
  %1949 = vst.msk [vmem:[%s6 + $0x158] sm:$0xff] %vm1905, %v1884
  %1950 = vst.msk [vmem:[%s6 + $0x160] sm:$0xff] %vm1905, %v1885
  %1951 = vst.msk [vmem:[%s6 + $0x168] sm:$0xff] %vm1905, %v1886
  %1952 = vst.msk [vmem:[%s6 + $0x170] sm:$0xff] %vm1905, %v1887
  %1953 = vst.msk [vmem:[%s6 + $0x178] sm:$0xff] %vm1905, %v1888
  %1954 = vst.msk [vmem:[%s6 + $0x180] sm:$0xff] %vm1905, %v1889
  %1955 = vst.msk [vmem:[%s6 + $0x188] sm:$0xff] %vm1905, %v1890
  %1956 = vst.msk [vmem:[%s6 + $0x190] sm:$0xff] %vm1905, %v1891
  %1957 = vst.msk [vmem:[%s6 + $0x198] sm:$0xff] %vm1905, %v1892
  %1958 = vst.msk [vmem:[%s6 + $0x1a0] sm:$0xff] %vm1905, %v1893
  %1959 = vst.msk [vmem:[%s6 + $0x1a8] sm:$0xff] %vm1905, %v1894
  %1960 = vst.msk [vmem:[%s6 + $0x1b0] sm:$0xff] %vm1905, %v1895
  %1961 = vst.msk [vmem:[%s6 + $0x1b8] sm:$0xff] %vm1905, %v1896
  %1962 = vst.msk [vmem:[%s6 + $0x1c0] sm:$0xff] %vm1905, %v1897
  %1963 = vst.msk [vmem:[%s6 + $0x1c8] sm:$0xff] %vm1905, %v1898
  %1964 = vst.msk [vmem:[%s6 + $0x1d0] sm:$0xff] %vm1905, %v1899
  %1965 = vst.msk [vmem:[%s6 + $0x1d8] sm:$0xff] %vm1905, %v1900
  %1966 = vst.msk [vmem:[%s6 + $0x1e0] sm:$0xff] %vm1905, %v1901
  %1967 = vst.msk [vmem:[%s6 + $0x1e8] sm:$0xff] %vm1905, %v1902
  %1968 = vst.msk [vmem:[%s6 + $0x1f0] sm:$0xff] %vm1905, %v1903
  %1969 = vst.msk [vmem:[%s6 + $0x1f8] sm:$0xff] %vm1905, %v1904
  // Predicated region
  $region26: #{c2_forward.5} parent=0 // pred_check
    _
  $region27: #{c2_forward.5} parent=0 // pred_check_branch
    %1971 = sbr.rel (0) target = $region29
  $region28: #{c2_forward.5} parent=0 // pred_region
    _
  $region29: #{c2_forward.5} parent=0 // pred_fallthru
    _
  // Predicated region
  $region30: #{c2_forward.5} parent=0 // pred_check
    _
  $region31: #{c2_forward.5} parent=0 // pred_check_branch
    %1973 = sbr.rel (0) target = $region33
  $region32: #{c2_forward.5} parent=0 // pred_region
    _
  $region33: #{c2_forward.5} parent=0 // pred_fallthru
    _

// kernel: c2_forward.4
$region0: #{c2_forward.4}
  #allocation0 [shape = 'u32[]', space=smem, size = 0x4, offset = 0x4, fixed_abs, tag = 'smem constant byte address 0x4 - core index']
  #allocation1 [shape = 'u32[144,128]{1,0:T(1,128)}', space=vmem, size = 0x12000, scoped, tag = 'internal scratch']
  %s0 = inlined_call_operand.vmem [shape: f32[2,16,16,4], index: 0, kind: input, shape index: {}]
  %s1 = inlined_call_operand.vmem [shape: f32[36,4], index: 1, kind: input, shape index: {}]
  %s2 = inlined_call_operand.vmem [shape: f32[1,4], index: 2, kind: input, shape index: {}]
  %s3 = inlined_call_operand.vmem [shape: f32[1,4], index: 3, kind: input, shape index: {}]
  %s4 = inlined_call_operand.vmem [shape: f32[36,4], index: 4, kind: input, shape index: {}]
  %s5 = inlined_call_operand.vmem [shape: f32[1,4], index: 5, kind: input, shape index: {}]
  %s6 = inlined_call_operand.vmem [shape: f32[1,4], index: 6, kind: input, shape index: {}]
  %s7 = inlined_call_operand.vmem [shape: f32[2,16,16,4], index: 7, kind: output, shape index: {}]
  %s8 = sld [smem:[#allocation0]]
  $region61: #{c2_forward.4} parent=0
    _
  %s10 = ssub.s32 1, %s8
  %s11 = scalar_select 0, %s10, %s8
  loop: start=0, step=1, limit=4
  $region2: #{c2_forward.4} parent=0 // loop_pre_header
    _
  $region3: #{c2_forward.4} parent=0 // loop_header
    %s13 = sphi 0, %s17
    %p14 = scmp.ge.s32.totalorder %s13, 4
    %s23 = sphi 0, %s25
    %s26 = sphi 0, %s23
    %s27 = sphi 0, %s26
    %s43 = sphi 0, %s27
    %s47 = sphi 0, %s47
    %s49 = sphi 0, %s47
    %s50 = sphi 0, %s49
    %s64 = sphi 0, %s50
    %s68 = sphi 0, %s68
    %s70 = sphi 0, %s68
    %s71 = sphi 0, %s70
    %s85 = sphi 0, %s71
    %s89 = sphi 0, %s89
    %s91 = sphi 0, %s89
    %s92 = sphi 0, %s91
    %s106 = sphi 0, %s92
    %s110 = sphi 0, %s110
    %s112 = sphi 0, %s110
    %s113 = sphi 0, %s112
    %s127 = sphi 0, %s113
    %s131 = sphi 0, %s131
    %s133 = sphi 0, %s131
    %s134 = sphi 0, %s133
    %s148 = sphi 0, %s134
    %s152 = sphi 0, %s152
    %s154 = sphi 0, %s152
    %s155 = sphi 0, %s154
    %s169 = sphi 0, %s155
    %s175 = sphi 0, %s177
    %s178 = sphi 0, %s175
    %s179 = sphi 0, %s178
    %s195 = sphi 0, %s179
  $region4: #{c2_forward.4} parent=0 // loop_header_branch
    %16 = sbr.rel (%p14) target = $region8
  $region5: #{c2_forward.4} parent=0 // loop_body
    %s18 = ssub.s32 %s13, 1
    %s19 = ssub.s32 %s13, 2
    %s20 = sadd.s32 %s13, 1
    %s21 = ssub.s32 %s13, %s20
    %p22 = scmp.eq.s32.totalorder %s21, 0
    %s24 = sadd.s32 %s23, 1
    %s25 = scalar_select %p22, %s23, %s24
    %p28 = pneg %p22
    %p29 = scmp.eq.s32.totalorder %s13, 1
    %p30 = por %p28, %p29
    %p31 = scmp.ne.s32.totalorder %s23, %s26
    %p32 = scmp.eq.s32.totalorder %s13, 0
    %p33 = por %p31, %p32
    %p34 = scmp.ne.s32.totalorder %s23, %s26
    %p35 = scmp.eq.s32.totalorder %s18, 1
    %p36 = por %p34, %p35
    %p37 = scmp.ne.s32.totalorder %s26, %s27
    %p38 = scmp.eq.s32.totalorder %s18, 0
    %p39 = por %p37, %p38
    %p40 = scmp.ne.s32.totalorder %s26, %s27
    %p41 = scmp.eq.s32.totalorder %s19, 1
    %p42 = por %p40, %p41
    %p44 = scmp.ne.s32.totalorder %s27, %s43
    %p45 = scmp.eq.s32.totalorder %s19, 0
    %p46 = por %p44, %p45
    %s48 = sadd.s32 %s47, 1
    %p51 = scmp.eq.s32.totalorder %s13, 1
    %p52 = scmp.ne.s32.totalorder %s47, %s49
    %p53 = scmp.eq.s32.totalorder %s13, 0
    %p54 = por %p52, %p53
    %p55 = scmp.ne.s32.totalorder %s47, %s49
    %p56 = scmp.eq.s32.totalorder %s18, 1
    %p57 = por %p55, %p56
    %p58 = scmp.ne.s32.totalorder %s49, %s50
    %p59 = scmp.eq.s32.totalorder %s18, 0
    %p60 = por %p58, %p59
    %p61 = scmp.ne.s32.totalorder %s49, %s50
    %p62 = scmp.eq.s32.totalorder %s19, 1
    %p63 = por %p61, %p62
    %p65 = scmp.ne.s32.totalorder %s50, %s64
    %p66 = scmp.eq.s32.totalorder %s19, 0
    %p67 = por %p65, %p66
    %s69 = sadd.s32 %s68, 1
    %p72 = scmp.eq.s32.totalorder %s13, 1
    %p73 = scmp.ne.s32.totalorder %s68, %s70
    %p74 = scmp.eq.s32.totalorder %s13, 0
    %p75 = por %p73, %p74
    %p76 = scmp.ne.s32.totalorder %s68, %s70
    %p77 = scmp.eq.s32.totalorder %s18, 1
    %p78 = por %p76, %p77
    %p79 = scmp.ne.s32.totalorder %s70, %s71
    %p80 = scmp.eq.s32.totalorder %s18, 0
    %p81 = por %p79, %p80
    %p82 = scmp.ne.s32.totalorder %s70, %s71
    %p83 = scmp.eq.s32.totalorder %s19, 1
    %p84 = por %p82, %p83
    %p86 = scmp.ne.s32.totalorder %s71, %s85
    %p87 = scmp.eq.s32.totalorder %s19, 0
    %p88 = por %p86, %p87
    %s90 = sadd.s32 %s89, 1
    %p93 = scmp.eq.s32.totalorder %s13, 1
    %p94 = scmp.ne.s32.totalorder %s89, %s91
    %p95 = scmp.eq.s32.totalorder %s13, 0
    %p96 = por %p94, %p95
    %p97 = scmp.ne.s32.totalorder %s89, %s91
    %p98 = scmp.eq.s32.totalorder %s18, 1
    %p99 = por %p97, %p98
    %p100 = scmp.ne.s32.totalorder %s91, %s92
    %p101 = scmp.eq.s32.totalorder %s18, 0
    %p102 = por %p100, %p101
    %p103 = scmp.ne.s32.totalorder %s91, %s92
    %p104 = scmp.eq.s32.totalorder %s19, 1
    %p105 = por %p103, %p104
    %p107 = scmp.ne.s32.totalorder %s92, %s106
    %p108 = scmp.eq.s32.totalorder %s19, 0
    %p109 = por %p107, %p108
    %s111 = sadd.s32 %s110, 1
    %p114 = scmp.eq.s32.totalorder %s13, 1
    %p115 = scmp.ne.s32.totalorder %s110, %s112
    %p116 = scmp.eq.s32.totalorder %s13, 0
    %p117 = por %p115, %p116
    %p118 = scmp.ne.s32.totalorder %s110, %s112
    %p119 = scmp.eq.s32.totalorder %s18, 1
    %p120 = por %p118, %p119
    %p121 = scmp.ne.s32.totalorder %s112, %s113
    %p122 = scmp.eq.s32.totalorder %s18, 0
    %p123 = por %p121, %p122
    %p124 = scmp.ne.s32.totalorder %s112, %s113
    %p125 = scmp.eq.s32.totalorder %s19, 1
    %p126 = por %p124, %p125
    %p128 = scmp.ne.s32.totalorder %s113, %s127
    %p129 = scmp.eq.s32.totalorder %s19, 0
    %p130 = por %p128, %p129
    %s132 = sadd.s32 %s131, 1
    %p135 = scmp.eq.s32.totalorder %s13, 1
    %p136 = scmp.ne.s32.totalorder %s131, %s133
    %p137 = scmp.eq.s32.totalorder %s13, 0
    %p138 = por %p136, %p137
    %p139 = scmp.ne.s32.totalorder %s131, %s133
    %p140 = scmp.eq.s32.totalorder %s18, 1
    %p141 = por %p139, %p140
    %p142 = scmp.ne.s32.totalorder %s133, %s134
    %p143 = scmp.eq.s32.totalorder %s18, 0
    %p144 = por %p142, %p143
    %p145 = scmp.ne.s32.totalorder %s133, %s134
    %p146 = scmp.eq.s32.totalorder %s19, 1
    %p147 = por %p145, %p146
    %p149 = scmp.ne.s32.totalorder %s134, %s148
    %p150 = scmp.eq.s32.totalorder %s19, 0
    %p151 = por %p149, %p150
    %s153 = sadd.s32 %s152, 1
    %p156 = scmp.eq.s32.totalorder %s13, 1
    %p157 = scmp.ne.s32.totalorder %s152, %s154
    %p158 = scmp.eq.s32.totalorder %s13, 0
    %p159 = por %p157, %p158
    %p160 = scmp.ne.s32.totalorder %s152, %s154
    %p161 = scmp.eq.s32.totalorder %s18, 1
    %p162 = por %p160, %p161
    %p163 = scmp.ne.s32.totalorder %s154, %s155
    %p164 = scmp.eq.s32.totalorder %s18, 0
    %p165 = por %p163, %p164
    %p166 = scmp.ne.s32.totalorder %s154, %s155
    %p167 = scmp.eq.s32.totalorder %s19, 1
    %p168 = por %p166, %p167
    %p170 = scmp.ne.s32.totalorder %s155, %s169
    %p171 = scmp.eq.s32.totalorder %s19, 0
    %p172 = por %p170, %p171
    %s173 = ssub.s32 %s13, %s20
    %p174 = scmp.eq.s32.totalorder %s173, 0
    %s176 = sadd.s32 %s175, 1
    %s177 = scalar_select %p174, %s175, %s176
    %p180 = pneg %p174
    %p181 = scmp.eq.s32.totalorder %s13, 1
    %p182 = por %p180, %p181
    %p183 = scmp.ne.s32.totalorder %s175, %s178
    %p184 = scmp.eq.s32.totalorder %s13, 0
    %p185 = por %p183, %p184
    %p186 = scmp.ne.s32.totalorder %s175, %s178
    %p187 = scmp.eq.s32.totalorder %s18, 1
    %p188 = por %p186, %p187
    %p189 = scmp.ne.s32.totalorder %s178, %s179
    %p190 = scmp.eq.s32.totalorder %s18, 0
    %p191 = por %p189, %p190
    %p192 = scmp.ne.s32.totalorder %s178, %s179
    %p193 = scmp.eq.s32.totalorder %s19, 1
    %p194 = por %p192, %p193
    %p196 = scmp.ne.s32.totalorder %s179, %s195
    %p197 = scmp.eq.s32.totalorder %s19, 0
    %p198 = por %p196, %p197
    %p199 = scmp.le.s32.totalorder 1, %s13
    %p200 = scmp.lt.s32.totalorder %s13, 3
    %p201 = pnand %p199, %p200
    %p202 = pneg %p201
    // Predicated region
    $region9: #{c2_forward.4} parent=5 // pred_check
      _
    $region10: #{c2_forward.4} parent=5 // pred_check_branch
      %204 = sbr.rel (%p201) target = $region12
    $region11: #{c2_forward.4} parent=5 // pred_region
      %s205 = ssub.s32 %s13, 1
      // Predicated region
      $region13: #{c2_forward.4} parent=11 // pred_check
        %p206 = pneg %p60
      $region14: #{c2_forward.4} parent=11 // pred_check_branch
        %208 = sbr.rel (%p206) target = $region16
      $region15: #{c2_forward.4} parent=11 // pred_region
        _
      $region16: #{c2_forward.4} parent=11 // pred_fallthru
        _
      // Predicated region
      $region17: #{c2_forward.4} parent=11 // pred_check
        %p209 = pneg %p81
      $region18: #{c2_forward.4} parent=11 // pred_check_branch
        %211 = sbr.rel (%p209) target = $region20
      $region19: #{c2_forward.4} parent=11 // pred_region
        _
      $region20: #{c2_forward.4} parent=11 // pred_fallthru
        _
      // Predicated region
      $region21: #{c2_forward.4} parent=11 // pred_check
        %p212 = pneg %p102
      $region22: #{c2_forward.4} parent=11 // pred_check_branch
        %214 = sbr.rel (%p212) target = $region24
      $region23: #{c2_forward.4} parent=11 // pred_region
        _
      $region24: #{c2_forward.4} parent=11 // pred_fallthru
        _
      // Predicated region
      $region25: #{c2_forward.4} parent=11 // pred_check
        %p215 = pneg %p123
      $region26: #{c2_forward.4} parent=11 // pred_check_branch
        %217 = sbr.rel (%p215) target = $region28
      $region27: #{c2_forward.4} parent=11 // pred_region
        _
      $region28: #{c2_forward.4} parent=11 // pred_fallthru
        _
      // Predicated region
      $region29: #{c2_forward.4} parent=11 // pred_check
        %p218 = pneg %p144
      $region30: #{c2_forward.4} parent=11 // pred_check_branch
        %220 = sbr.rel (%p218) target = $region32
      $region31: #{c2_forward.4} parent=11 // pred_region
        _
      $region32: #{c2_forward.4} parent=11 // pred_fallthru
        _
      // Predicated region
      $region33: #{c2_forward.4} parent=11 // pred_check
        %p221 = pneg %p165
      $region34: #{c2_forward.4} parent=11 // pred_check_branch
        %223 = sbr.rel (%p221) target = $region36
      $region35: #{c2_forward.4} parent=11 // pred_region
        _
      $region36: #{c2_forward.4} parent=11 // pred_fallthru
        _
    $region12: #{c2_forward.4} parent=5 // pred_fallthru
      _
    %p224 = scmp.lt.s32.totalorder %s13, 2
    // Predicated region
    $region37: #{c2_forward.4} parent=5 // pred_check
      %p225 = pneg %p224
    $region38: #{c2_forward.4} parent=5 // pred_check_branch
      %227 = sbr.rel (%p225) target = $region40
    $region39: #{c2_forward.4} parent=5 // pred_region
      // Predicated region
      $region41: #{c2_forward.4} parent=39 // pred_check
        %p228 = pneg %p33
      $region42: #{c2_forward.4} parent=39 // pred_check_branch
        %230 = sbr.rel (%p228) target = $region44
      $region43: #{c2_forward.4} parent=39 // pred_region
        %p231 = scmp.lt.s32.totalorder %s13, 1
        %s232 = scalar_select %p231, %s13, 1
        %s233 = smul.addr %s232, 32
        %s234 = smul.addr %s233, 8
        %s235 = scalar_lea.vmem %s0, %s234
      $region44: #{c2_forward.4} parent=39 // pred_fallthru
        _
    $region40: #{c2_forward.4} parent=5 // pred_fallthru
      _
    %p236 = scmp.le.s32.totalorder 1, %s13
    %p237 = scmp.lt.s32.totalorder %s13, 3
    %p238 = pnand %p236, %p237
    %p239 = pneg %p238
    // Predicated region
    $region45: #{c2_forward.4} parent=5 // pred_check
      _
    $region46: #{c2_forward.4} parent=5 // pred_check_branch
      %241 = sbr.rel (%p238) target = $region48
    $region47: #{c2_forward.4} parent=5 // pred_region
      %s242 = ssub.s32 %s13, 1
      %p243 = scmp.lt.s32.totalorder %s18, 1
      %s244 = scalar_select %p243, %s18, 1
      %s245 = smul.addr %s244, 32
      %s246 = smul.addr %s245, 8
      %s247 = scalar_lea.vmem %s0, %s246
      %p248 = pneg %p39
      %p249 = pneg %p36
      %p250 = pneg %p60
      %p251 = pneg %p57
      %p252 = pneg %p81
      %p253 = pneg %p78
      %p254 = pneg %p102
      %p255 = pneg %p99
      %p256 = pneg %p123
      %p257 = pneg %p120
      %p258 = pneg %p144
      %p259 = pneg %p141
      %p260 = pneg %p165
      %p261 = pneg %p162
      %p262 = pneg %p191
      %p263 = pneg %p188
      %p264 = scmp.lt.s32.totalorder %s18, 1
      %s265 = scalar_select %p264, %s18, 1
      %s266 = smul.addr %s265, 32
      %s267 = smul.addr %s266, 8
      %s268 = scalar_lea.vmem %s7, %s267
      %p269 = scmp.lt.s32.totalorder %s18, 1
      %s270 = scalar_select %p269, %s18, 1
      %s271 = smul.addr %s270, 32
      %s272 = smul.addr %s271, 8
      %s273 = scalar_lea.vmem %s0, %s272
      %p274 = scmp.lt.s32.totalorder %s18, 1
      %s275 = scalar_select %p274, %s18, 1
      %s276 = smul.addr %s275, 32
      %s277 = smul.addr %s276, 8
      %s278 = scalar_lea.vmem %s7, %s277
      %v279 = vld [vmem:[%s273] sm:$0xff]
      %v280 = vld [vmem:[%s273 + $0x8] sm:$0xff]
      %v281 = vld [vmem:[%s273 + $0x10] sm:$0xff]
      %v282 = vld [vmem:[%s273 + $0x18] sm:$0xff]
      %v283 = vld [vmem:[%s273 + $0x20] sm:$0xff]
      %v284 = vld [vmem:[%s273 + $0x28] sm:$0xff]
      %v285 = vld [vmem:[%s273 + $0x30] sm:$0xff]
      %v286 = vld [vmem:[%s273 + $0x38] sm:$0xff]
      %v287 = vld [vmem:[%s273 + $0x40] sm:$0xff]
      %v288 = vld [vmem:[%s273 + $0x48] sm:$0xff]
      %v289 = vld [vmem:[%s273 + $0x50] sm:$0xff]
      %v290 = vld [vmem:[%s273 + $0x58] sm:$0xff]
      %v291 = vld [vmem:[%s273 + $0x60] sm:$0xff]
      %v292 = vld [vmem:[%s273 + $0x68] sm:$0xff]
      %v293 = vld [vmem:[%s273 + $0x70] sm:$0xff]
      %v294 = vld [vmem:[%s273 + $0x78] sm:$0xff]
      %v295 = vld [vmem:[%s273 + $0x80] sm:$0xff]
      %v296 = vld [vmem:[%s273 + $0x88] sm:$0xff]
      %v297 = vld [vmem:[%s273 + $0x90] sm:$0xff]
      %v298 = vld [vmem:[%s273 + $0x98] sm:$0xff]
      %v299 = vld [vmem:[%s273 + $0xa0] sm:$0xff]
      %v300 = vld [vmem:[%s273 + $0xa8] sm:$0xff]
      %v301 = vld [vmem:[%s273 + $0xb0] sm:$0xff]
      %v302 = vld [vmem:[%s273 + $0xb8] sm:$0xff]
      %v303 = vld [vmem:[%s273 + $0xc0] sm:$0xff]
      %v304 = vld [vmem:[%s273 + $0xc8] sm:$0xff]
      %v305 = vld [vmem:[%s273 + $0xd0] sm:$0xff]
      %v306 = vld [vmem:[%s273 + $0xd8] sm:$0xff]
      %v307 = vld [vmem:[%s273 + $0xe0] sm:$0xff]
      %v308 = vld [vmem:[%s273 + $0xe8] sm:$0xff]
      %v309 = vld [vmem:[%s273 + $0xf0] sm:$0xff]
      %v310 = vld [vmem:[%s273 + $0xf8] sm:$0xff]
      %v311 = vld [vmem:[%s1] sm:$0xff]
      %v312 = vld [vmem:[%s1 + $0x8] sm:$0xff]
      %v313 = vld [vmem:[%s1 + $0x10] sm:$0xff]
      %v314 = vld [vmem:[%s1 + $0x18] sm:$0xff]
      %v315 = vld [vmem:[%s1 + $0x20] sm:$0xf]
      %v316 = vld [vmem:[%s2] sm:$0x1]
      %v317 = vld [vmem:[%s3] sm:$0x1]
      %vm350 = vcmask 1040384
      %v351 = vrot.slane %v279, 7
      %v352 = vrot.slane %v280, 7
      %v353 = vsel %vm350, %v351, %v352
      %v354 = vrot.slane %v281, 7
      %v355 = vrot.slane %v282, 7
      %v356 = vsel %vm350, %v354, %v355
      %v357 = vrot.slane %v283, 7
      %v358 = vrot.slane %v284, 7
      %v359 = vsel %vm350, %v357, %v358
      %v360 = vrot.slane %v285, 7
      %v361 = vrot.slane %v286, 7
      %v362 = vsel %vm350, %v360, %v361
      %v363 = vrot.slane %v287, 7
      %v364 = vrot.slane %v288, 7
      %v365 = vsel %vm350, %v363, %v364
      %v366 = vrot.slane %v289, 7
      %v367 = vrot.slane %v290, 7
      %v368 = vsel %vm350, %v366, %v367
      %v369 = vrot.slane %v291, 7
      %v370 = vrot.slane %v292, 7
      %v371 = vsel %vm350, %v369, %v370
      %v372 = vrot.slane %v293, 7
      %v373 = vrot.slane %v294, 7
      %v374 = vsel %vm350, %v372, %v373
      %v375 = vrot.slane %v295, 7
      %v376 = vrot.slane %v296, 7
      %v377 = vsel %vm350, %v375, %v376
      %v378 = vrot.slane %v297, 7
      %v379 = vrot.slane %v298, 7
      %v380 = vsel %vm350, %v378, %v379
      %v381 = vrot.slane %v299, 7
      %v382 = vrot.slane %v300, 7
      %v383 = vsel %vm350, %v381, %v382
      %v384 = vrot.slane %v301, 7
      %v385 = vrot.slane %v302, 7
      %v386 = vsel %vm350, %v384, %v385
      %v387 = vrot.slane %v303, 7
      %v388 = vrot.slane %v304, 7
      %v389 = vsel %vm350, %v387, %v388
      %v390 = vrot.slane %v305, 7
      %v391 = vrot.slane %v306, 7
      %v392 = vsel %vm350, %v390, %v391
      %v393 = vrot.slane %v307, 7
      %v394 = vrot.slane %v308, 7
      %v395 = vsel %vm350, %v393, %v394
      %v396 = vrot.slane %v309, 7
      %v397 = vrot.slane %v310, 7
      %v398 = vsel %vm350, %v396, %v397
      %v446 = vsel %vm350, 0.0, %v351
      %v447 = vsel %vm350, 0.0, %v354
      %v448 = vsel %vm350, 0.0, %v357
      %v449 = vsel %vm350, 0.0, %v360
      %v450 = vsel %vm350, 0.0, %v363
      %v451 = vsel %vm350, 0.0, %v366
      %v452 = vsel %vm350, 0.0, %v369
      %v453 = vsel %vm350, 0.0, %v372
      %v454 = vsel %vm350, 0.0, %v375
      %v455 = vsel %vm350, 0.0, %v378
      %v456 = vsel %vm350, 0.0, %v381
      %v457 = vsel %vm350, 0.0, %v384
      %v458 = vsel %vm350, 0.0, %v387
      %v459 = vsel %vm350, 0.0, %v390
      %v460 = vsel %vm350, 0.0, %v393
      %v461 = vsel %vm350, 0.0, %v396
      %v462 = vsel %vm350, %v352, 0.0
      %v463 = vsel %vm350, %v355, 0.0
      %v464 = vsel %vm350, %v358, 0.0
      %v465 = vsel %vm350, %v361, 0.0
      %v466 = vsel %vm350, %v364, 0.0
      %v467 = vsel %vm350, %v367, 0.0
      %v468 = vsel %vm350, %v370, 0.0
      %v469 = vsel %vm350, %v373, 0.0
      %v470 = vsel %vm350, %v376, 0.0
      %v471 = vsel %vm350, %v379, 0.0
      %v472 = vsel %vm350, %v382, 0.0
      %v473 = vsel %vm350, %v385, 0.0
      %v474 = vsel %vm350, %v388, 0.0
      %v475 = vsel %vm350, %v391, 0.0
      %v476 = vsel %vm350, %v394, 0.0
      %v477 = vsel %vm350, %v397, 0.0
      %vm509 = vcmask 1046528
      %v510 = vrot.slane 0.0, 1
      %v511 = vsel %vm509, %v510, %v510
      %v512 = vrot.slane %v446, 1
      %v513 = vrot.slane %v353, 1
      %v514 = vsel %vm509, %v512, %v513
      %v515 = vrot.slane %v462, 1
      %v516 = vsel %vm509, %v513, %v515
      %v517 = vrot.slane %v447, 1
      %v518 = vrot.slane %v356, 1
      %v519 = vsel %vm509, %v517, %v518
      %v520 = vrot.slane %v463, 1
      %v521 = vsel %vm509, %v518, %v520
      %v522 = vrot.slane %v448, 1
      %v523 = vrot.slane %v359, 1
      %v524 = vsel %vm509, %v522, %v523
      %v525 = vrot.slane %v464, 1
      %v526 = vsel %vm509, %v523, %v525
      %v527 = vrot.slane %v449, 1
      %v528 = vrot.slane %v362, 1
      %v529 = vsel %vm509, %v527, %v528
      %v530 = vrot.slane %v465, 1
      %v531 = vsel %vm509, %v528, %v530
      %v532 = vrot.slane %v450, 1
      %v533 = vrot.slane %v365, 1
      %v534 = vsel %vm509, %v532, %v533
      %v535 = vrot.slane %v466, 1
      %v536 = vsel %vm509, %v533, %v535
      %v537 = vrot.slane %v451, 1
      %v538 = vrot.slane %v368, 1
      %v539 = vsel %vm509, %v537, %v538
      %v540 = vrot.slane %v467, 1
      %v541 = vsel %vm509, %v538, %v540
      %v542 = vrot.slane %v452, 1
      %v543 = vrot.slane %v371, 1
      %v544 = vsel %vm509, %v542, %v543
      %v545 = vrot.slane %v468, 1
      %v546 = vsel %vm509, %v543, %v545
      %v547 = vrot.slane %v453, 1
      %v548 = vrot.slane %v374, 1
      %v549 = vsel %vm509, %v547, %v548
      %v550 = vrot.slane %v469, 1
      %v551 = vsel %vm509, %v548, %v550
      %v552 = vrot.slane %v454, 1
      %v553 = vrot.slane %v377, 1
      %v554 = vsel %vm509, %v552, %v553
      %v555 = vrot.slane %v470, 1
      %v556 = vsel %vm509, %v553, %v555
      %v557 = vrot.slane %v455, 1
      %v558 = vrot.slane %v380, 1
      %v559 = vsel %vm509, %v557, %v558
      %v560 = vrot.slane %v471, 1
      %v561 = vsel %vm509, %v558, %v560
      %v562 = vrot.slane %v456, 1
      %v563 = vrot.slane %v383, 1
      %v564 = vsel %vm509, %v562, %v563
      %v565 = vrot.slane %v472, 1
      %v566 = vsel %vm509, %v563, %v565
      %v567 = vrot.slane %v457, 1
      %v568 = vrot.slane %v386, 1
      %v569 = vsel %vm509, %v567, %v568
      %v570 = vrot.slane %v473, 1
      %v571 = vsel %vm509, %v568, %v570
      %v572 = vrot.slane %v458, 1
      %v573 = vrot.slane %v389, 1
      %v574 = vsel %vm509, %v572, %v573
      %v575 = vrot.slane %v474, 1
      %v576 = vsel %vm509, %v573, %v575
      %v577 = vrot.slane %v459, 1
      %v578 = vrot.slane %v392, 1
      %v579 = vsel %vm509, %v577, %v578
      %v580 = vrot.slane %v475, 1
      %v581 = vsel %vm509, %v578, %v580
      %v582 = vrot.slane %v460, 1
      %v583 = vrot.slane %v395, 1
      %v584 = vsel %vm509, %v582, %v583
      %v585 = vrot.slane %v476, 1
      %v586 = vsel %vm509, %v583, %v585
      %587 = vrot.lane.b32.xlu0 %v511, 4
      %v588 = vpop.permute.xlu0 %587
      %589 = vrot.lane.b32.xlu0 %v514, 4
      %v590 = vpop.permute.xlu0 %589
      %591 = vrot.lane.b32.xlu0 %v516, 4
      %v592 = vpop.permute.xlu0 %591
      %593 = vrot.lane.b32.xlu0 %v519, 4
      %v594 = vpop.permute.xlu0 %593
      %595 = vrot.lane.b32.xlu0 %v521, 4
      %v596 = vpop.permute.xlu0 %595
      %597 = vrot.lane.b32.xlu0 %v524, 4
      %v598 = vpop.permute.xlu0 %597
      %599 = vrot.lane.b32.xlu0 %v526, 4
      %v600 = vpop.permute.xlu0 %599
      %601 = vrot.lane.b32.xlu0 %v529, 4
      %v602 = vpop.permute.xlu0 %601
      %603 = vrot.lane.b32.xlu0 %v531, 4
      %v604 = vpop.permute.xlu0 %603
      %605 = vrot.lane.b32.xlu0 %v534, 4
      %v606 = vpop.permute.xlu0 %605
      %607 = vrot.lane.b32.xlu0 %v536, 4
      %v608 = vpop.permute.xlu0 %607
      %609 = vrot.lane.b32.xlu0 %v539, 4
      %v610 = vpop.permute.xlu0 %609
      %611 = vrot.lane.b32.xlu0 %v541, 4
      %v612 = vpop.permute.xlu0 %611
      %613 = vrot.lane.b32.xlu0 %v544, 4
      %v614 = vpop.permute.xlu0 %613
      %615 = vrot.lane.b32.xlu0 %v546, 4
      %v616 = vpop.permute.xlu0 %615
      %617 = vrot.lane.b32.xlu0 %v549, 4
      %v618 = vpop.permute.xlu0 %617
      %619 = vrot.lane.b32.xlu0 %v551, 4
      %v620 = vpop.permute.xlu0 %619
      %621 = vrot.lane.b32.xlu0 %v554, 4
      %v622 = vpop.permute.xlu0 %621
      %623 = vrot.lane.b32.xlu0 %v556, 4
      %v624 = vpop.permute.xlu0 %623
      %625 = vrot.lane.b32.xlu0 %v559, 4
      %v626 = vpop.permute.xlu0 %625
      %627 = vrot.lane.b32.xlu0 %v561, 4
      %v628 = vpop.permute.xlu0 %627
      %629 = vrot.lane.b32.xlu0 %v564, 4
      %v630 = vpop.permute.xlu0 %629
      %631 = vrot.lane.b32.xlu0 %v566, 4
      %v632 = vpop.permute.xlu0 %631
      %633 = vrot.lane.b32.xlu0 %v569, 4
      %v634 = vpop.permute.xlu0 %633
      %635 = vrot.lane.b32.xlu0 %v571, 4
      %v636 = vpop.permute.xlu0 %635
      %637 = vrot.lane.b32.xlu0 %v574, 4
      %v638 = vpop.permute.xlu0 %637
      %639 = vrot.lane.b32.xlu0 %v576, 4
      %v640 = vpop.permute.xlu0 %639
      %641 = vrot.lane.b32.xlu0 %v579, 4
      %v642 = vpop.permute.xlu0 %641
      %643 = vrot.lane.b32.xlu0 %v581, 4
      %v644 = vpop.permute.xlu0 %643
      %645 = vrot.lane.b32.xlu0 %v584, 4
      %v646 = vpop.permute.xlu0 %645
      %647 = vrot.lane.b32.xlu0 %v586, 4
      %v648 = vpop.permute.xlu0 %647
      %vm680 = vcmask 1045504
      %v681 = vrot.slane 0.0, 2
      %v682 = vsel %vm680, %v681, %v681
      %v683 = vrot.slane %v446, 2
      %v684 = vrot.slane %v353, 2
      %v685 = vsel %vm680, %v683, %v684
      %v686 = vrot.slane %v462, 2
      %v687 = vsel %vm680, %v684, %v686
      %v688 = vrot.slane %v447, 2
      %v689 = vrot.slane %v356, 2
      %v690 = vsel %vm680, %v688, %v689
      %v691 = vrot.slane %v463, 2
      %v692 = vsel %vm680, %v689, %v691
      %v693 = vrot.slane %v448, 2
      %v694 = vrot.slane %v359, 2
      %v695 = vsel %vm680, %v693, %v694
      %v696 = vrot.slane %v464, 2
      %v697 = vsel %vm680, %v694, %v696
      %v698 = vrot.slane %v449, 2
      %v699 = vrot.slane %v362, 2
      %v700 = vsel %vm680, %v698, %v699
      %v701 = vrot.slane %v465, 2
      %v702 = vsel %vm680, %v699, %v701
      %v703 = vrot.slane %v450, 2
      %v704 = vrot.slane %v365, 2
      %v705 = vsel %vm680, %v703, %v704
      %v706 = vrot.slane %v466, 2
      %v707 = vsel %vm680, %v704, %v706
      %v708 = vrot.slane %v451, 2
      %v709 = vrot.slane %v368, 2
      %v710 = vsel %vm680, %v708, %v709
      %v711 = vrot.slane %v467, 2
      %v712 = vsel %vm680, %v709, %v711
      %v713 = vrot.slane %v452, 2
      %v714 = vrot.slane %v371, 2
      %v715 = vsel %vm680, %v713, %v714
      %v716 = vrot.slane %v468, 2
      %v717 = vsel %vm680, %v714, %v716
      %v718 = vrot.slane %v453, 2
      %v719 = vrot.slane %v374, 2
      %v720 = vsel %vm680, %v718, %v719
      %v721 = vrot.slane %v469, 2
      %v722 = vsel %vm680, %v719, %v721
      %v723 = vrot.slane %v454, 2
      %v724 = vrot.slane %v377, 2
      %v725 = vsel %vm680, %v723, %v724
      %v726 = vrot.slane %v470, 2
      %v727 = vsel %vm680, %v724, %v726
      %v728 = vrot.slane %v455, 2
      %v729 = vrot.slane %v380, 2
      %v730 = vsel %vm680, %v728, %v729
      %v731 = vrot.slane %v471, 2
      %v732 = vsel %vm680, %v729, %v731
      %v733 = vrot.slane %v456, 2
      %v734 = vrot.slane %v383, 2
      %v735 = vsel %vm680, %v733, %v734
      %v736 = vrot.slane %v472, 2
      %v737 = vsel %vm680, %v734, %v736
      %v738 = vrot.slane %v457, 2
      %v739 = vrot.slane %v386, 2
      %v740 = vsel %vm680, %v738, %v739
      %v741 = vrot.slane %v473, 2
      %v742 = vsel %vm680, %v739, %v741
      %v743 = vrot.slane %v458, 2
      %v744 = vrot.slane %v389, 2
      %v745 = vsel %vm680, %v743, %v744
      %v746 = vrot.slane %v474, 2
      %v747 = vsel %vm680, %v744, %v746
      %v748 = vrot.slane %v459, 2
      %v749 = vrot.slane %v392, 2
      %v750 = vsel %vm680, %v748, %v749
      %v751 = vrot.slane %v475, 2
      %v752 = vsel %vm680, %v749, %v751
      %v753 = vrot.slane %v460, 2
      %v754 = vrot.slane %v395, 2
      %v755 = vsel %vm680, %v753, %v754
      %v756 = vrot.slane %v476, 2
      %v757 = vsel %vm680, %v754, %v756
      %758 = vrot.lane.b32.xlu0 %v682, 8
      %v759 = vpop.permute.xlu0 %758
      %760 = vrot.lane.b32.xlu0 %v685, 8
      %v761 = vpop.permute.xlu0 %760
      %762 = vrot.lane.b32.xlu0 %v687, 8
      %v763 = vpop.permute.xlu0 %762
      %764 = vrot.lane.b32.xlu0 %v690, 8
      %v765 = vpop.permute.xlu0 %764
      %766 = vrot.lane.b32.xlu0 %v692, 8
      %v767 = vpop.permute.xlu0 %766
      %768 = vrot.lane.b32.xlu0 %v695, 8
      %v769 = vpop.permute.xlu0 %768
      %770 = vrot.lane.b32.xlu0 %v697, 8
      %v771 = vpop.permute.xlu0 %770
      %772 = vrot.lane.b32.xlu0 %v700, 8
      %v773 = vpop.permute.xlu0 %772
      %774 = vrot.lane.b32.xlu0 %v702, 8
      %v775 = vpop.permute.xlu0 %774
      %776 = vrot.lane.b32.xlu0 %v705, 8
      %v777 = vpop.permute.xlu0 %776
      %778 = vrot.lane.b32.xlu0 %v707, 8
      %v779 = vpop.permute.xlu0 %778
      %780 = vrot.lane.b32.xlu0 %v710, 8
      %v781 = vpop.permute.xlu0 %780
      %782 = vrot.lane.b32.xlu0 %v712, 8
      %v783 = vpop.permute.xlu0 %782
      %784 = vrot.lane.b32.xlu0 %v715, 8
      %v785 = vpop.permute.xlu0 %784
      %786 = vrot.lane.b32.xlu0 %v717, 8
      %v787 = vpop.permute.xlu0 %786
      %788 = vrot.lane.b32.xlu0 %v720, 8
      %v789 = vpop.permute.xlu0 %788
      %790 = vrot.lane.b32.xlu0 %v722, 8
      %v791 = vpop.permute.xlu0 %790
      %792 = vrot.lane.b32.xlu0 %v725, 8
      %v793 = vpop.permute.xlu0 %792
      %794 = vrot.lane.b32.xlu0 %v727, 8
      %v795 = vpop.permute.xlu0 %794
      %796 = vrot.lane.b32.xlu0 %v730, 8
      %v797 = vpop.permute.xlu0 %796
      %798 = vrot.lane.b32.xlu0 %v732, 8
      %v799 = vpop.permute.xlu0 %798
      %800 = vrot.lane.b32.xlu0 %v735, 8
      %v801 = vpop.permute.xlu0 %800
      %802 = vrot.lane.b32.xlu0 %v737, 8
      %v803 = vpop.permute.xlu0 %802
      %804 = vrot.lane.b32.xlu0 %v740, 8
      %v805 = vpop.permute.xlu0 %804
      %806 = vrot.lane.b32.xlu0 %v742, 8
      %v807 = vpop.permute.xlu0 %806
      %808 = vrot.lane.b32.xlu0 %v745, 8
      %v809 = vpop.permute.xlu0 %808
      %810 = vrot.lane.b32.xlu0 %v747, 8
      %v811 = vpop.permute.xlu0 %810
      %812 = vrot.lane.b32.xlu0 %v750, 8
      %v813 = vpop.permute.xlu0 %812
      %814 = vrot.lane.b32.xlu0 %v752, 8
      %v815 = vpop.permute.xlu0 %814
      %816 = vrot.lane.b32.xlu0 %v755, 8
      %v817 = vpop.permute.xlu0 %816
      %818 = vrot.lane.b32.xlu0 %v757, 8
      %v819 = vpop.permute.xlu0 %818
      %852 = vrot.lane.b32.xlu0 %v446, 12
      %v853 = vpop.permute.xlu0 %852
      %854 = vrot.lane.b32.xlu0 %v353, 12
      %v855 = vpop.permute.xlu0 %854
      %856 = vrot.lane.b32.xlu0 %v447, 12
      %v857 = vpop.permute.xlu0 %856
      %858 = vrot.lane.b32.xlu0 %v356, 12
      %v859 = vpop.permute.xlu0 %858
      %860 = vrot.lane.b32.xlu0 %v448, 12
      %v861 = vpop.permute.xlu0 %860
      %862 = vrot.lane.b32.xlu0 %v359, 12
      %v863 = vpop.permute.xlu0 %862
      %864 = vrot.lane.b32.xlu0 %v449, 12
      %v865 = vpop.permute.xlu0 %864
      %866 = vrot.lane.b32.xlu0 %v362, 12
      %v867 = vpop.permute.xlu0 %866
      %868 = vrot.lane.b32.xlu0 %v450, 12
      %v869 = vpop.permute.xlu0 %868
      %870 = vrot.lane.b32.xlu0 %v365, 12
      %v871 = vpop.permute.xlu0 %870
      %872 = vrot.lane.b32.xlu0 %v451, 12
      %v873 = vpop.permute.xlu0 %872
      %874 = vrot.lane.b32.xlu0 %v368, 12
      %v875 = vpop.permute.xlu0 %874
      %876 = vrot.lane.b32.xlu0 %v452, 12
      %v877 = vpop.permute.xlu0 %876
      %878 = vrot.lane.b32.xlu0 %v371, 12
      %v879 = vpop.permute.xlu0 %878
      %880 = vrot.lane.b32.xlu0 %v453, 12
      %v881 = vpop.permute.xlu0 %880
      %882 = vrot.lane.b32.xlu0 %v374, 12
      %v883 = vpop.permute.xlu0 %882
      %884 = vrot.lane.b32.xlu0 %v454, 12
      %v885 = vpop.permute.xlu0 %884
      %886 = vrot.lane.b32.xlu0 %v377, 12
      %v887 = vpop.permute.xlu0 %886
      %888 = vrot.lane.b32.xlu0 %v455, 12
      %v889 = vpop.permute.xlu0 %888
      %890 = vrot.lane.b32.xlu0 %v380, 12
      %v891 = vpop.permute.xlu0 %890
      %892 = vrot.lane.b32.xlu0 %v456, 12
      %v893 = vpop.permute.xlu0 %892
      %894 = vrot.lane.b32.xlu0 %v383, 12
      %v895 = vpop.permute.xlu0 %894
      %896 = vrot.lane.b32.xlu0 %v457, 12
      %v897 = vpop.permute.xlu0 %896
      %898 = vrot.lane.b32.xlu0 %v386, 12
      %v899 = vpop.permute.xlu0 %898
      %900 = vrot.lane.b32.xlu0 %v458, 12
      %v901 = vpop.permute.xlu0 %900
      %902 = vrot.lane.b32.xlu0 %v389, 12
      %v903 = vpop.permute.xlu0 %902
      %904 = vrot.lane.b32.xlu0 %v459, 12
      %v905 = vpop.permute.xlu0 %904
      %906 = vrot.lane.b32.xlu0 %v392, 12
      %v907 = vpop.permute.xlu0 %906
      %908 = vrot.lane.b32.xlu0 %v460, 12
      %v909 = vpop.permute.xlu0 %908
      %910 = vrot.lane.b32.xlu0 %v395, 12
      %v911 = vpop.permute.xlu0 %910
      %912 = vrot.lane.b32.xlu0 %v461, 12
      %v913 = vpop.permute.xlu0 %912
      %914 = vrot.lane.b32.xlu0 %v398, 12
      %v915 = vpop.permute.xlu0 %914
      %v949 = vrot.slane %v461, 1
      %v950 = vrot.slane %v398, 1
      %v951 = vsel %vm509, %v949, %v950
      %v952 = vrot.slane %v477, 1
      %v953 = vsel %vm509, %v950, %v952
      %954 = vrot.lane.b32.xlu0 %v514, 16
      %v955 = vpop.permute.xlu0 %954
      %956 = vrot.lane.b32.xlu0 %v516, 16
      %v957 = vpop.permute.xlu0 %956
      %958 = vrot.lane.b32.xlu0 %v519, 16
      %v959 = vpop.permute.xlu0 %958
      %960 = vrot.lane.b32.xlu0 %v521, 16
      %v961 = vpop.permute.xlu0 %960
      %962 = vrot.lane.b32.xlu0 %v524, 16
      %v963 = vpop.permute.xlu0 %962
      %964 = vrot.lane.b32.xlu0 %v526, 16
      %v965 = vpop.permute.xlu0 %964
      %966 = vrot.lane.b32.xlu0 %v529, 16
      %v967 = vpop.permute.xlu0 %966
      %968 = vrot.lane.b32.xlu0 %v531, 16
      %v969 = vpop.permute.xlu0 %968
      %970 = vrot.lane.b32.xlu0 %v534, 16
      %v971 = vpop.permute.xlu0 %970
      %972 = vrot.lane.b32.xlu0 %v536, 16
      %v973 = vpop.permute.xlu0 %972
      %974 = vrot.lane.b32.xlu0 %v539, 16
      %v975 = vpop.permute.xlu0 %974
      %976 = vrot.lane.b32.xlu0 %v541, 16
      %v977 = vpop.permute.xlu0 %976
      %978 = vrot.lane.b32.xlu0 %v544, 16
      %v979 = vpop.permute.xlu0 %978
      %980 = vrot.lane.b32.xlu0 %v546, 16
      %v981 = vpop.permute.xlu0 %980
      %982 = vrot.lane.b32.xlu0 %v549, 16
      %v983 = vpop.permute.xlu0 %982
      %984 = vrot.lane.b32.xlu0 %v551, 16
      %v985 = vpop.permute.xlu0 %984
      %986 = vrot.lane.b32.xlu0 %v554, 16
      %v987 = vpop.permute.xlu0 %986
      %988 = vrot.lane.b32.xlu0 %v556, 16
      %v989 = vpop.permute.xlu0 %988
      %990 = vrot.lane.b32.xlu0 %v559, 16
      %v991 = vpop.permute.xlu0 %990
      %992 = vrot.lane.b32.xlu0 %v561, 16
      %v993 = vpop.permute.xlu0 %992
      %994 = vrot.lane.b32.xlu0 %v564, 16
      %v995 = vpop.permute.xlu0 %994
      %996 = vrot.lane.b32.xlu0 %v566, 16
      %v997 = vpop.permute.xlu0 %996
      %998 = vrot.lane.b32.xlu0 %v569, 16
      %v999 = vpop.permute.xlu0 %998
      %1000 = vrot.lane.b32.xlu0 %v571, 16
      %v1001 = vpop.permute.xlu0 %1000
      %1002 = vrot.lane.b32.xlu0 %v574, 16
      %v1003 = vpop.permute.xlu0 %1002
      %1004 = vrot.lane.b32.xlu0 %v576, 16
      %v1005 = vpop.permute.xlu0 %1004
      %1006 = vrot.lane.b32.xlu0 %v579, 16
      %v1007 = vpop.permute.xlu0 %1006
      %1008 = vrot.lane.b32.xlu0 %v581, 16
      %v1009 = vpop.permute.xlu0 %1008
      %1010 = vrot.lane.b32.xlu0 %v584, 16
      %v1011 = vpop.permute.xlu0 %1010
      %1012 = vrot.lane.b32.xlu0 %v586, 16
      %v1013 = vpop.permute.xlu0 %1012
      %1014 = vrot.lane.b32.xlu0 %v951, 16
      %v1015 = vpop.permute.xlu0 %1014
      %1016 = vrot.lane.b32.xlu0 %v953, 16
      %v1017 = vpop.permute.xlu0 %1016
      %v1050 = vrot.slane %v461, 2
      %v1051 = vrot.slane %v398, 2
      %v1052 = vsel %vm680, %v1050, %v1051
      %v1053 = vrot.slane %v477, 2
      %v1054 = vsel %vm680, %v1051, %v1053
      %1055 = vrot.lane.b32.xlu0 %v685, 20
      %v1056 = vpop.permute.xlu0 %1055
      %1057 = vrot.lane.b32.xlu0 %v687, 20
      %v1058 = vpop.permute.xlu0 %1057
      %1059 = vrot.lane.b32.xlu0 %v690, 20
      %v1060 = vpop.permute.xlu0 %1059
      %1061 = vrot.lane.b32.xlu0 %v692, 20
      %v1062 = vpop.permute.xlu0 %1061
      %1063 = vrot.lane.b32.xlu0 %v695, 20
      %v1064 = vpop.permute.xlu0 %1063
      %1065 = vrot.lane.b32.xlu0 %v697, 20
      %v1066 = vpop.permute.xlu0 %1065
      %1067 = vrot.lane.b32.xlu0 %v700, 20
      %v1068 = vpop.permute.xlu0 %1067
      %1069 = vrot.lane.b32.xlu0 %v702, 20
      %v1070 = vpop.permute.xlu0 %1069
      %1071 = vrot.lane.b32.xlu0 %v705, 20
      %v1072 = vpop.permute.xlu0 %1071
      %1073 = vrot.lane.b32.xlu0 %v707, 20
      %v1074 = vpop.permute.xlu0 %1073
      %1075 = vrot.lane.b32.xlu0 %v710, 20
      %v1076 = vpop.permute.xlu0 %1075
      %1077 = vrot.lane.b32.xlu0 %v712, 20
      %v1078 = vpop.permute.xlu0 %1077
      %1079 = vrot.lane.b32.xlu0 %v715, 20
      %v1080 = vpop.permute.xlu0 %1079
      %1081 = vrot.lane.b32.xlu0 %v717, 20
      %v1082 = vpop.permute.xlu0 %1081
      %1083 = vrot.lane.b32.xlu0 %v720, 20
      %v1084 = vpop.permute.xlu0 %1083
      %1085 = vrot.lane.b32.xlu0 %v722, 20
      %v1086 = vpop.permute.xlu0 %1085
      %1087 = vrot.lane.b32.xlu0 %v725, 20
      %v1088 = vpop.permute.xlu0 %1087
      %1089 = vrot.lane.b32.xlu0 %v727, 20
      %v1090 = vpop.permute.xlu0 %1089
      %1091 = vrot.lane.b32.xlu0 %v730, 20
      %v1092 = vpop.permute.xlu0 %1091
      %1093 = vrot.lane.b32.xlu0 %v732, 20
      %v1094 = vpop.permute.xlu0 %1093
      %1095 = vrot.lane.b32.xlu0 %v735, 20
      %v1096 = vpop.permute.xlu0 %1095
      %1097 = vrot.lane.b32.xlu0 %v737, 20
      %v1098 = vpop.permute.xlu0 %1097
      %1099 = vrot.lane.b32.xlu0 %v740, 20
      %v1100 = vpop.permute.xlu0 %1099
      %1101 = vrot.lane.b32.xlu0 %v742, 20
      %v1102 = vpop.permute.xlu0 %1101
      %1103 = vrot.lane.b32.xlu0 %v745, 20
      %v1104 = vpop.permute.xlu0 %1103
      %1105 = vrot.lane.b32.xlu0 %v747, 20
      %v1106 = vpop.permute.xlu0 %1105
      %1107 = vrot.lane.b32.xlu0 %v750, 20
      %v1108 = vpop.permute.xlu0 %1107
      %1109 = vrot.lane.b32.xlu0 %v752, 20
      %v1110 = vpop.permute.xlu0 %1109
      %1111 = vrot.lane.b32.xlu0 %v755, 20
      %v1112 = vpop.permute.xlu0 %1111
      %1113 = vrot.lane.b32.xlu0 %v757, 20
      %v1114 = vpop.permute.xlu0 %1113
      %1115 = vrot.lane.b32.xlu0 %v1052, 20
      %v1116 = vpop.permute.xlu0 %1115
      %1117 = vrot.lane.b32.xlu0 %v1054, 20
      %v1118 = vpop.permute.xlu0 %1117
      %1151 = vrot.lane.b32.xlu0 %v447, 24
      %v1152 = vpop.permute.xlu0 %1151
      %1153 = vrot.lane.b32.xlu0 %v356, 24
      %v1154 = vpop.permute.xlu0 %1153
      %1155 = vrot.lane.b32.xlu0 %v448, 24
      %v1156 = vpop.permute.xlu0 %1155
      %1157 = vrot.lane.b32.xlu0 %v359, 24
      %v1158 = vpop.permute.xlu0 %1157
      %1159 = vrot.lane.b32.xlu0 %v449, 24
      %v1160 = vpop.permute.xlu0 %1159
      %1161 = vrot.lane.b32.xlu0 %v362, 24
      %v1162 = vpop.permute.xlu0 %1161
      %1163 = vrot.lane.b32.xlu0 %v450, 24
      %v1164 = vpop.permute.xlu0 %1163
      %1165 = vrot.lane.b32.xlu0 %v365, 24
      %v1166 = vpop.permute.xlu0 %1165
      %1167 = vrot.lane.b32.xlu0 %v451, 24
      %v1168 = vpop.permute.xlu0 %1167
      %1169 = vrot.lane.b32.xlu0 %v368, 24
      %v1170 = vpop.permute.xlu0 %1169
      %1171 = vrot.lane.b32.xlu0 %v452, 24
      %v1172 = vpop.permute.xlu0 %1171
      %1173 = vrot.lane.b32.xlu0 %v371, 24
      %v1174 = vpop.permute.xlu0 %1173
      %1175 = vrot.lane.b32.xlu0 %v453, 24
      %v1176 = vpop.permute.xlu0 %1175
      %1177 = vrot.lane.b32.xlu0 %v374, 24
      %v1178 = vpop.permute.xlu0 %1177
      %1179 = vrot.lane.b32.xlu0 %v454, 24
      %v1180 = vpop.permute.xlu0 %1179
      %1181 = vrot.lane.b32.xlu0 %v377, 24
      %v1182 = vpop.permute.xlu0 %1181
      %1183 = vrot.lane.b32.xlu0 %v455, 24
      %v1184 = vpop.permute.xlu0 %1183
      %1185 = vrot.lane.b32.xlu0 %v380, 24
      %v1186 = vpop.permute.xlu0 %1185
      %1187 = vrot.lane.b32.xlu0 %v456, 24
      %v1188 = vpop.permute.xlu0 %1187
      %1189 = vrot.lane.b32.xlu0 %v383, 24
      %v1190 = vpop.permute.xlu0 %1189
      %1191 = vrot.lane.b32.xlu0 %v457, 24
      %v1192 = vpop.permute.xlu0 %1191
      %1193 = vrot.lane.b32.xlu0 %v386, 24
      %v1194 = vpop.permute.xlu0 %1193
      %1195 = vrot.lane.b32.xlu0 %v458, 24
      %v1196 = vpop.permute.xlu0 %1195
      %1197 = vrot.lane.b32.xlu0 %v389, 24
      %v1198 = vpop.permute.xlu0 %1197
      %1199 = vrot.lane.b32.xlu0 %v459, 24
      %v1200 = vpop.permute.xlu0 %1199
      %1201 = vrot.lane.b32.xlu0 %v392, 24
      %v1202 = vpop.permute.xlu0 %1201
      %1203 = vrot.lane.b32.xlu0 %v460, 24
      %v1204 = vpop.permute.xlu0 %1203
      %1205 = vrot.lane.b32.xlu0 %v395, 24
      %v1206 = vpop.permute.xlu0 %1205
      %1207 = vrot.lane.b32.xlu0 %v461, 24
      %v1208 = vpop.permute.xlu0 %1207
      %1209 = vrot.lane.b32.xlu0 %v398, 24
      %v1210 = vpop.permute.xlu0 %1209
      %1211 = vrot.lane.b32.xlu0 0.0, 24
      %v1212 = vpop.permute.xlu0 %1211
      %1244 = vrot.lane.b32.xlu0 %v519, 28
      %v1245 = vpop.permute.xlu0 %1244
      %1246 = vrot.lane.b32.xlu0 %v521, 28
      %v1247 = vpop.permute.xlu0 %1246
      %1248 = vrot.lane.b32.xlu0 %v524, 28
      %v1249 = vpop.permute.xlu0 %1248
      %1250 = vrot.lane.b32.xlu0 %v526, 28
      %v1251 = vpop.permute.xlu0 %1250
      %1252 = vrot.lane.b32.xlu0 %v529, 28
      %v1253 = vpop.permute.xlu0 %1252
      %1254 = vrot.lane.b32.xlu0 %v531, 28
      %v1255 = vpop.permute.xlu0 %1254
      %1256 = vrot.lane.b32.xlu0 %v534, 28
      %v1257 = vpop.permute.xlu0 %1256
      %1258 = vrot.lane.b32.xlu0 %v536, 28
      %v1259 = vpop.permute.xlu0 %1258
      %1260 = vrot.lane.b32.xlu0 %v539, 28
      %v1261 = vpop.permute.xlu0 %1260
      %1262 = vrot.lane.b32.xlu0 %v541, 28
      %v1263 = vpop.permute.xlu0 %1262
      %1264 = vrot.lane.b32.xlu0 %v544, 28
      %v1265 = vpop.permute.xlu0 %1264
      %1266 = vrot.lane.b32.xlu0 %v546, 28
      %v1267 = vpop.permute.xlu0 %1266
      %1268 = vrot.lane.b32.xlu0 %v549, 28
      %v1269 = vpop.permute.xlu0 %1268
      %1270 = vrot.lane.b32.xlu0 %v551, 28
      %v1271 = vpop.permute.xlu0 %1270
      %1272 = vrot.lane.b32.xlu0 %v554, 28
      %v1273 = vpop.permute.xlu0 %1272
      %1274 = vrot.lane.b32.xlu0 %v556, 28
      %v1275 = vpop.permute.xlu0 %1274
      %1276 = vrot.lane.b32.xlu0 %v559, 28
      %v1277 = vpop.permute.xlu0 %1276
      %1278 = vrot.lane.b32.xlu0 %v561, 28
      %v1279 = vpop.permute.xlu0 %1278
      %1280 = vrot.lane.b32.xlu0 %v564, 28
      %v1281 = vpop.permute.xlu0 %1280
      %1282 = vrot.lane.b32.xlu0 %v566, 28
      %v1283 = vpop.permute.xlu0 %1282
      %1284 = vrot.lane.b32.xlu0 %v569, 28
      %v1285 = vpop.permute.xlu0 %1284
      %1286 = vrot.lane.b32.xlu0 %v571, 28
      %v1287 = vpop.permute.xlu0 %1286
      %1288 = vrot.lane.b32.xlu0 %v574, 28
      %v1289 = vpop.permute.xlu0 %1288
      %1290 = vrot.lane.b32.xlu0 %v576, 28
      %v1291 = vpop.permute.xlu0 %1290
      %1292 = vrot.lane.b32.xlu0 %v579, 28
      %v1293 = vpop.permute.xlu0 %1292
      %1294 = vrot.lane.b32.xlu0 %v581, 28
      %v1295 = vpop.permute.xlu0 %1294
      %1296 = vrot.lane.b32.xlu0 %v584, 28
      %v1297 = vpop.permute.xlu0 %1296
      %1298 = vrot.lane.b32.xlu0 %v586, 28
      %v1299 = vpop.permute.xlu0 %1298
      %1300 = vrot.lane.b32.xlu0 %v951, 28
      %v1301 = vpop.permute.xlu0 %1300
      %1302 = vrot.lane.b32.xlu0 %v953, 28
      %v1303 = vpop.permute.xlu0 %1302
      %1304 = vrot.lane.b32.xlu0 %v511, 28
      %v1305 = vpop.permute.xlu0 %1304
      %1337 = vrot.lane.b32.xlu0 %v690, 32
      %v1338 = vpop.permute.xlu0 %1337
      %1339 = vrot.lane.b32.xlu0 %v692, 32
      %v1340 = vpop.permute.xlu0 %1339
      %1341 = vrot.lane.b32.xlu0 %v695, 32
      %v1342 = vpop.permute.xlu0 %1341
      %1343 = vrot.lane.b32.xlu0 %v697, 32
      %v1344 = vpop.permute.xlu0 %1343
      %1345 = vrot.lane.b32.xlu0 %v700, 32
      %v1346 = vpop.permute.xlu0 %1345
      %1347 = vrot.lane.b32.xlu0 %v702, 32
      %v1348 = vpop.permute.xlu0 %1347
      %1349 = vrot.lane.b32.xlu0 %v705, 32
      %v1350 = vpop.permute.xlu0 %1349
      %1351 = vrot.lane.b32.xlu0 %v707, 32
      %v1352 = vpop.permute.xlu0 %1351
      %1353 = vrot.lane.b32.xlu0 %v710, 32
      %v1354 = vpop.permute.xlu0 %1353
      %1355 = vrot.lane.b32.xlu0 %v712, 32
      %v1356 = vpop.permute.xlu0 %1355
      %1357 = vrot.lane.b32.xlu0 %v715, 32
      %v1358 = vpop.permute.xlu0 %1357
      %1359 = vrot.lane.b32.xlu0 %v717, 32
      %v1360 = vpop.permute.xlu0 %1359
      %1361 = vrot.lane.b32.xlu0 %v720, 32
      %v1362 = vpop.permute.xlu0 %1361
      %1363 = vrot.lane.b32.xlu0 %v722, 32
      %v1364 = vpop.permute.xlu0 %1363
      %1365 = vrot.lane.b32.xlu0 %v725, 32
      %v1366 = vpop.permute.xlu0 %1365
      %1367 = vrot.lane.b32.xlu0 %v727, 32
      %v1368 = vpop.permute.xlu0 %1367
      %1369 = vrot.lane.b32.xlu0 %v730, 32
      %v1370 = vpop.permute.xlu0 %1369
      %1371 = vrot.lane.b32.xlu0 %v732, 32
      %v1372 = vpop.permute.xlu0 %1371
      %1373 = vrot.lane.b32.xlu0 %v735, 32
      %v1374 = vpop.permute.xlu0 %1373
      %1375 = vrot.lane.b32.xlu0 %v737, 32
      %v1376 = vpop.permute.xlu0 %1375
      %1377 = vrot.lane.b32.xlu0 %v740, 32
      %v1378 = vpop.permute.xlu0 %1377
      %1379 = vrot.lane.b32.xlu0 %v742, 32
      %v1380 = vpop.permute.xlu0 %1379
      %1381 = vrot.lane.b32.xlu0 %v745, 32
      %v1382 = vpop.permute.xlu0 %1381
      %1383 = vrot.lane.b32.xlu0 %v747, 32
      %v1384 = vpop.permute.xlu0 %1383
      %1385 = vrot.lane.b32.xlu0 %v750, 32
      %v1386 = vpop.permute.xlu0 %1385
      %1387 = vrot.lane.b32.xlu0 %v752, 32
      %v1388 = vpop.permute.xlu0 %1387
      %1389 = vrot.lane.b32.xlu0 %v755, 32
      %v1390 = vpop.permute.xlu0 %1389
      %1391 = vrot.lane.b32.xlu0 %v757, 32
      %v1392 = vpop.permute.xlu0 %1391
      %1393 = vrot.lane.b32.xlu0 %v1052, 32
      %v1394 = vpop.permute.xlu0 %1393
      %1395 = vrot.lane.b32.xlu0 %v1054, 32
      %v1396 = vpop.permute.xlu0 %1395
      %1397 = vrot.lane.b32.xlu0 %v682, 32
      %v1398 = vpop.permute.xlu0 %1397
      %vm1430 = vcmask 31744
      %v1431 = vsel %vm1430, 0.0, %v588
      %v1432 = vsel %vm1430, %v446, %v590
      %v1433 = vsel %vm1430, %v353, %v592
      %v1434 = vsel %vm1430, %v447, %v594
      %v1435 = vsel %vm1430, %v356, %v596
      %v1436 = vsel %vm1430, %v448, %v598
      %v1437 = vsel %vm1430, %v359, %v600
      %v1438 = vsel %vm1430, %v449, %v602
      %v1439 = vsel %vm1430, %v362, %v604
      %v1440 = vsel %vm1430, %v450, %v606
      %v1441 = vsel %vm1430, %v365, %v608
      %v1442 = vsel %vm1430, %v451, %v610
      %v1443 = vsel %vm1430, %v368, %v612
      %v1444 = vsel %vm1430, %v452, %v614
      %v1445 = vsel %vm1430, %v371, %v616
      %v1446 = vsel %vm1430, %v453, %v618
      %v1447 = vsel %vm1430, %v374, %v620
      %v1448 = vsel %vm1430, %v454, %v622
      %v1449 = vsel %vm1430, %v377, %v624
      %v1450 = vsel %vm1430, %v455, %v626
      %v1451 = vsel %vm1430, %v380, %v628
      %v1452 = vsel %vm1430, %v456, %v630
      %v1453 = vsel %vm1430, %v383, %v632
      %v1454 = vsel %vm1430, %v457, %v634
      %v1455 = vsel %vm1430, %v386, %v636
      %v1456 = vsel %vm1430, %v458, %v638
      %v1457 = vsel %vm1430, %v389, %v640
      %v1458 = vsel %vm1430, %v459, %v642
      %v1459 = vsel %vm1430, %v392, %v644
      %v1460 = vsel %vm1430, %v460, %v646
      %v1461 = vsel %vm1430, %v395, %v648
      %vm1462 = vcmask 64512
      %v1463 = vsel %vm1462, %v1431, %v759
      %v1464 = vsel %vm1462, %v1432, %v761
      %v1465 = vsel %vm1462, %v1433, %v763
      %v1466 = vsel %vm1462, %v1434, %v765
      %v1467 = vsel %vm1462, %v1435, %v767
      %v1468 = vsel %vm1462, %v1436, %v769
      %v1469 = vsel %vm1462, %v1437, %v771
      %v1470 = vsel %vm1462, %v1438, %v773
      %v1471 = vsel %vm1462, %v1439, %v775
      %v1472 = vsel %vm1462, %v1440, %v777
      %v1473 = vsel %vm1462, %v1441, %v779
      %v1474 = vsel %vm1462, %v1442, %v781
      %v1475 = vsel %vm1462, %v1443, %v783
      %v1476 = vsel %vm1462, %v1444, %v785
      %v1477 = vsel %vm1462, %v1445, %v787
      %v1478 = vsel %vm1462, %v1446, %v789
      %v1479 = vsel %vm1462, %v1447, %v791
      %v1480 = vsel %vm1462, %v1448, %v793
      %v1481 = vsel %vm1462, %v1449, %v795
      %v1482 = vsel %vm1462, %v1450, %v797
      %v1483 = vsel %vm1462, %v1451, %v799
      %v1484 = vsel %vm1462, %v1452, %v801
      %v1485 = vsel %vm1462, %v1453, %v803
      %v1486 = vsel %vm1462, %v1454, %v805
      %v1487 = vsel %vm1462, %v1455, %v807
      %v1488 = vsel %vm1462, %v1456, %v809
      %v1489 = vsel %vm1462, %v1457, %v811
      %v1490 = vsel %vm1462, %v1458, %v813
      %v1491 = vsel %vm1462, %v1459, %v815
      %v1492 = vsel %vm1462, %v1460, %v817
      %v1493 = vsel %vm1462, %v1461, %v819
      %vm1494 = vcmask 97280
      %v1495 = vsel %vm1494, %v1463, %v853
      %v1496 = vsel %vm1494, %v1463, %v855
      %v1497 = vsel %vm1494, %v1464, %v857
      %v1498 = vsel %vm1494, %v1465, %v859
      %v1499 = vsel %vm1494, %v1466, %v861
      %v1500 = vsel %vm1494, %v1467, %v863
      %v1501 = vsel %vm1494, %v1468, %v865
      %v1502 = vsel %vm1494, %v1469, %v867
      %v1503 = vsel %vm1494, %v1470, %v869
      %v1504 = vsel %vm1494, %v1471, %v871
      %v1505 = vsel %vm1494, %v1472, %v873
      %v1506 = vsel %vm1494, %v1473, %v875
      %v1507 = vsel %vm1494, %v1474, %v877
      %v1508 = vsel %vm1494, %v1475, %v879
      %v1509 = vsel %vm1494, %v1476, %v881
      %v1510 = vsel %vm1494, %v1477, %v883
      %v1511 = vsel %vm1494, %v1478, %v885
      %v1512 = vsel %vm1494, %v1479, %v887
      %v1513 = vsel %vm1494, %v1480, %v889
      %v1514 = vsel %vm1494, %v1481, %v891
      %v1515 = vsel %vm1494, %v1482, %v893
      %v1516 = vsel %vm1494, %v1483, %v895
      %v1517 = vsel %vm1494, %v1484, %v897
      %v1518 = vsel %vm1494, %v1485, %v899
      %v1519 = vsel %vm1494, %v1486, %v901
      %v1520 = vsel %vm1494, %v1487, %v903
      %v1521 = vsel %vm1494, %v1488, %v905
      %v1522 = vsel %vm1494, %v1489, %v907
      %v1523 = vsel %vm1494, %v1490, %v909
      %v1524 = vsel %vm1494, %v1491, %v911
      %v1525 = vsel %vm1494, %v1492, %v913
      %v1526 = vsel %vm1494, %v1493, %v915
      %vm1527 = vcmask 130048
      %v1528 = vsel %vm1527, %v1495, %v955
      %v1529 = vsel %vm1527, %v1496, %v957
      %v1530 = vsel %vm1527, %v1497, %v959
      %v1531 = vsel %vm1527, %v1498, %v961
      %v1532 = vsel %vm1527, %v1499, %v963
      %v1533 = vsel %vm1527, %v1500, %v965
      %v1534 = vsel %vm1527, %v1501, %v967
      %v1535 = vsel %vm1527, %v1502, %v969
      %v1536 = vsel %vm1527, %v1503, %v971
      %v1537 = vsel %vm1527, %v1504, %v973
      %v1538 = vsel %vm1527, %v1505, %v975
      %v1539 = vsel %vm1527, %v1506, %v977
      %v1540 = vsel %vm1527, %v1507, %v979
      %v1541 = vsel %vm1527, %v1508, %v981
      %v1542 = vsel %vm1527, %v1509, %v983
      %v1543 = vsel %vm1527, %v1510, %v985
      %v1544 = vsel %vm1527, %v1511, %v987
      %v1545 = vsel %vm1527, %v1512, %v989
      %v1546 = vsel %vm1527, %v1513, %v991
      %v1547 = vsel %vm1527, %v1514, %v993
      %v1548 = vsel %vm1527, %v1515, %v995
      %v1549 = vsel %vm1527, %v1516, %v997
      %v1550 = vsel %vm1527, %v1517, %v999
      %v1551 = vsel %vm1527, %v1518, %v1001
      %v1552 = vsel %vm1527, %v1519, %v1003
      %v1553 = vsel %vm1527, %v1520, %v1005
      %v1554 = vsel %vm1527, %v1521, %v1007
      %v1555 = vsel %vm1527, %v1522, %v1009
      %v1556 = vsel %vm1527, %v1523, %v1011
      %v1557 = vsel %vm1527, %v1524, %v1013
      %v1558 = vsel %vm1527, %v1525, %v1015
      %v1559 = vsel %vm1527, %v1526, %v1017
      %vm1560 = vcmask 162816
      %v1561 = vsel %vm1560, %v1528, %v1056
      %v1562 = vsel %vm1560, %v1529, %v1058
      %v1563 = vsel %vm1560, %v1530, %v1060
      %v1564 = vsel %vm1560, %v1531, %v1062
      %v1565 = vsel %vm1560, %v1532, %v1064
      %v1566 = vsel %vm1560, %v1533, %v1066
      %v1567 = vsel %vm1560, %v1534, %v1068
      %v1568 = vsel %vm1560, %v1535, %v1070
      %v1569 = vsel %vm1560, %v1536, %v1072
      %v1570 = vsel %vm1560, %v1537, %v1074
      %v1571 = vsel %vm1560, %v1538, %v1076
      %v1572 = vsel %vm1560, %v1539, %v1078
      %v1573 = vsel %vm1560, %v1540, %v1080
      %v1574 = vsel %vm1560, %v1541, %v1082
      %v1575 = vsel %vm1560, %v1542, %v1084
      %v1576 = vsel %vm1560, %v1543, %v1086
      %v1577 = vsel %vm1560, %v1544, %v1088
      %v1578 = vsel %vm1560, %v1545, %v1090
      %v1579 = vsel %vm1560, %v1546, %v1092
      %v1580 = vsel %vm1560, %v1547, %v1094
      %v1581 = vsel %vm1560, %v1548, %v1096
      %v1582 = vsel %vm1560, %v1549, %v1098
      %v1583 = vsel %vm1560, %v1550, %v1100
      %v1584 = vsel %vm1560, %v1551, %v1102
      %v1585 = vsel %vm1560, %v1552, %v1104
      %v1586 = vsel %vm1560, %v1553, %v1106
      %v1587 = vsel %vm1560, %v1554, %v1108
      %v1588 = vsel %vm1560, %v1555, %v1110
      %v1589 = vsel %vm1560, %v1556, %v1112
      %v1590 = vsel %vm1560, %v1557, %v1114
      %v1591 = vsel %vm1560, %v1558, %v1116
      %v1592 = vsel %vm1560, %v1559, %v1118
      %vm1593 = vcmask 195584
      %v1594 = vsel %vm1593, %v1561, %v1152
      %v1595 = vsel %vm1593, %v1562, %v1154
      %v1596 = vsel %vm1593, %v1563, %v1156
      %v1597 = vsel %vm1593, %v1564, %v1158
      %v1598 = vsel %vm1593, %v1565, %v1160
      %v1599 = vsel %vm1593, %v1566, %v1162
      %v1600 = vsel %vm1593, %v1567, %v1164
      %v1601 = vsel %vm1593, %v1568, %v1166
      %v1602 = vsel %vm1593, %v1569, %v1168
      %v1603 = vsel %vm1593, %v1570, %v1170
      %v1604 = vsel %vm1593, %v1571, %v1172
      %v1605 = vsel %vm1593, %v1572, %v1174
      %v1606 = vsel %vm1593, %v1573, %v1176
      %v1607 = vsel %vm1593, %v1574, %v1178
      %v1608 = vsel %vm1593, %v1575, %v1180
      %v1609 = vsel %vm1593, %v1576, %v1182
      %v1610 = vsel %vm1593, %v1577, %v1184
      %v1611 = vsel %vm1593, %v1578, %v1186
      %v1612 = vsel %vm1593, %v1579, %v1188
      %v1613 = vsel %vm1593, %v1580, %v1190
      %v1614 = vsel %vm1593, %v1581, %v1192
      %v1615 = vsel %vm1593, %v1582, %v1194
      %v1616 = vsel %vm1593, %v1583, %v1196
      %v1617 = vsel %vm1593, %v1584, %v1198
      %v1618 = vsel %vm1593, %v1585, %v1200
      %v1619 = vsel %vm1593, %v1586, %v1202
      %v1620 = vsel %vm1593, %v1587, %v1204
      %v1621 = vsel %vm1593, %v1588, %v1206
      %v1622 = vsel %vm1593, %v1589, %v1208
      %v1623 = vsel %vm1593, %v1590, %v1210
      %v1624 = vsel %vm1593, %v1591, %v1212
      %v1625 = vsel %vm1593, %v1592, %v1212
      %vm1626 = vcmask 228352
      %v1627 = vsel %vm1626, %v1594, %v1245
      %v1628 = vsel %vm1626, %v1595, %v1247
      %v1629 = vsel %vm1626, %v1596, %v1249
      %v1630 = vsel %vm1626, %v1597, %v1251
      %v1631 = vsel %vm1626, %v1598, %v1253
      %v1632 = vsel %vm1626, %v1599, %v1255
      %v1633 = vsel %vm1626, %v1600, %v1257
      %v1634 = vsel %vm1626, %v1601, %v1259
      %v1635 = vsel %vm1626, %v1602, %v1261
      %v1636 = vsel %vm1626, %v1603, %v1263
      %v1637 = vsel %vm1626, %v1604, %v1265
      %v1638 = vsel %vm1626, %v1605, %v1267
      %v1639 = vsel %vm1626, %v1606, %v1269
      %v1640 = vsel %vm1626, %v1607, %v1271
      %v1641 = vsel %vm1626, %v1608, %v1273
      %v1642 = vsel %vm1626, %v1609, %v1275
      %v1643 = vsel %vm1626, %v1610, %v1277
      %v1644 = vsel %vm1626, %v1611, %v1279
      %v1645 = vsel %vm1626, %v1612, %v1281
      %v1646 = vsel %vm1626, %v1613, %v1283
      %v1647 = vsel %vm1626, %v1614, %v1285
      %v1648 = vsel %vm1626, %v1615, %v1287
      %v1649 = vsel %vm1626, %v1616, %v1289
      %v1650 = vsel %vm1626, %v1617, %v1291
      %v1651 = vsel %vm1626, %v1618, %v1293
      %v1652 = vsel %vm1626, %v1619, %v1295
      %v1653 = vsel %vm1626, %v1620, %v1297
      %v1654 = vsel %vm1626, %v1621, %v1299
      %v1655 = vsel %vm1626, %v1622, %v1301
      %v1656 = vsel %vm1626, %v1623, %v1303
      %v1657 = vsel %vm1626, %v1624, %v1305
      %v1658 = vsel %vm1626, %v1625, %v1305
      %vm1659 = vcmask 261120
      %v1660 = vsel %vm1659, %v1627, %v1338
      %v1661 = vsel %vm1659, %v1628, %v1340
      %v1662 = vsel %vm1659, %v1629, %v1342
      %v1663 = vsel %vm1659, %v1630, %v1344
      %v1664 = vsel %vm1659, %v1631, %v1346
      %v1665 = vsel %vm1659, %v1632, %v1348
      %v1666 = vsel %vm1659, %v1633, %v1350
      %v1667 = vsel %vm1659, %v1634, %v1352
      %v1668 = vsel %vm1659, %v1635, %v1354
      %v1669 = vsel %vm1659, %v1636, %v1356
      %v1670 = vsel %vm1659, %v1637, %v1358
      %v1671 = vsel %vm1659, %v1638, %v1360
      %v1672 = vsel %vm1659, %v1639, %v1362
      %v1673 = vsel %vm1659, %v1640, %v1364
      %v1674 = vsel %vm1659, %v1641, %v1366
      %v1675 = vsel %vm1659, %v1642, %v1368
      %v1676 = vsel %vm1659, %v1643, %v1370
      %v1677 = vsel %vm1659, %v1644, %v1372
      %v1678 = vsel %vm1659, %v1645, %v1374
      %v1679 = vsel %vm1659, %v1646, %v1376
      %v1680 = vsel %vm1659, %v1647, %v1378
      %v1681 = vsel %vm1659, %v1648, %v1380
      %v1682 = vsel %vm1659, %v1649, %v1382
      %v1683 = vsel %vm1659, %v1650, %v1384
      %v1684 = vsel %vm1659, %v1651, %v1386
      %v1685 = vsel %vm1659, %v1652, %v1388
      %v1686 = vsel %vm1659, %v1653, %v1390
      %v1687 = vsel %vm1659, %v1654, %v1392
      %v1688 = vsel %vm1659, %v1655, %v1394
      %v1689 = vsel %vm1659, %v1656, %v1396
      %v1690 = vsel %vm1659, %v1657, %v1398
      %v1691 = vsel %vm1659, %v1658, %v1398
      %vm1692 = vcmask 293888
      %v1694 = vsel %vm1692, %v1660, 0
      %v1697 = vsel %vm1692, %v1661, 0
      %v1700 = vsel %vm1692, %v1662, 0
      %v1703 = vsel %vm1692, %v1663, 0
      %v1706 = vsel %vm1692, %v1664, 0
      %v1709 = vsel %vm1692, %v1665, 0
      %v1712 = vsel %vm1692, %v1666, 0
      %v1715 = vsel %vm1692, %v1667, 0
      %v1718 = vsel %vm1692, %v1668, 0
      %v1721 = vsel %vm1692, %v1669, 0
      %v1724 = vsel %vm1692, %v1670, 0
      %v1727 = vsel %vm1692, %v1671, 0
      %v1730 = vsel %vm1692, %v1672, 0
      %v1733 = vsel %vm1692, %v1673, 0
      %v1736 = vsel %vm1692, %v1674, 0
      %v1739 = vsel %vm1692, %v1675, 0
      %v1742 = vsel %vm1692, %v1676, 0
      %v1745 = vsel %vm1692, %v1677, 0
      %v1748 = vsel %vm1692, %v1678, 0
      %v1751 = vsel %vm1692, %v1679, 0
      %v1754 = vsel %vm1692, %v1680, 0
      %v1757 = vsel %vm1692, %v1681, 0
      %v1760 = vsel %vm1692, %v1682, 0
      %v1763 = vsel %vm1692, %v1683, 0
      %v1766 = vsel %vm1692, %v1684, 0
      %v1769 = vsel %vm1692, %v1685, 0
      %v1772 = vsel %vm1692, %v1686, 0
      %v1775 = vsel %vm1692, %v1687, 0
      %v1778 = vsel %vm1692, %v1688, 0
      %v1781 = vsel %vm1692, %v1689, 0
      %v1784 = vsel %vm1692, %v1690, 0
      %v1787 = vsel %vm1692, %v1691, 0
      %vm1789 = vcmask 1043456
      %v1791 = vsel %vm1789, %v315, 0
      %1793 = vmatprep.subr.mxu0 0.0
      %1794 = vmatpush1.msra.mxu0 0.0
      %1795 = vmatprep.subr.mxu0 0.0
      %1796 = vmatpush1.msra.mxu0 0.0
      %1797 = vmatprep.subr.mxu0 0.0
      %1798 = vmatpush1.msra.mxu0 0.0
      %1799 = vmatprep.subr.mxu0 0.0
      %1800 = vmatpush1.msra.mxu0 0.0
      %1801 = vmatprep.subr.mxu0 0.0
      %1802 = vmatpush1.msra.mxu0 0.0
      %1803 = vmatprep.subr.mxu0 0.0
      %1804 = vmatpush1.msra.mxu0 0.0
      %1805 = vmatprep.subr.mxu0 0.0
      %1806 = vmatpush1.msra.mxu0 0.0
      %1807 = vmatprep.subr.mxu0 0.0
      %1808 = vmatpush1.msra.mxu0 0.0
      %1809 = vmatprep.subr.mxu0 0.0
      %1810 = vmatpush1.msra.mxu0 0.0
      %1811 = vmatprep.subr.mxu0 0.0
      %1812 = vmatpush1.msra.mxu0 0.0
      %1813 = vmatprep.subr.mxu0 0.0
      %1814 = vmatpush1.msra.mxu0 0.0
      %1815 = vmatprep.subr.mxu0 0.0
      %1816 = vmatpush1.msra.mxu0 %v1791
      %1817 = vmatprep.subr.mxu0 0.0
      %1818 = vmatpush1.msra.mxu0 %v314
      %1819 = vmatprep.subr.mxu0 0.0
      %1820 = vmatpush1.msra.mxu0 %v313
      %1821 = vmatprep.subr.mxu0 0.0
      %1822 = vmatpush1.msra.mxu0 %v312
      %1823 = vmatprep.subr.mxu0 0.0
      %1824 = vmatpush1.msra.mxu0 %v311
      %1825 = vmatprep.subr.mxu0 0.0
      %1826 = vmatpush2.msra.mxu0 0.0
      %1827 = vmatprep.subr.mxu0 0.0
      %1828 = vmatpush2.msra.mxu0 0.0
      %1829 = vmatprep.subr.mxu0 0.0
      %1830 = vmatpush2.msra.mxu0 0.0
      %1831 = vmatprep.subr.mxu0 0.0
      %1832 = vmatpush2.msra.mxu0 0.0
      %1833 = vmatprep.subr.mxu0 0.0
      %1834 = vmatpush2.msra.mxu0 0.0
      %1835 = vmatprep.subr.mxu0 0.0
      %1836 = vmatpush2.msra.mxu0 0.0
      %1837 = vmatprep.subr.mxu0 0.0
      %1838 = vmatpush2.msra.mxu0 0.0
      %1839 = vmatprep.subr.mxu0 0.0
      %1840 = vmatpush2.msra.mxu0 0.0
      %1841 = vmatprep.subr.mxu0 0.0
      %1842 = vmatpush2.msra.mxu0 0.0
      %1843 = vmatprep.subr.mxu0 0.0
      %1844 = vmatpush2.msra.mxu0 0.0
      %1845 = vmatprep.subr.mxu0 0.0
      %1846 = vmatpush2.msra.mxu0 0.0
      %1847 = vmatprep.subr.mxu0 0.0
      %1848 = vmatpush2.msra.mxu0 0.0
      %1849 = vmatprep.subr.mxu0 0.0
      %1850 = vmatpush2.msra.mxu0 0.0
      %1851 = vmatprep.subr.mxu0 0.0
      %1852 = vmatpush2.msra.mxu0 0.0
      %1853 = vmatprep.subr.mxu0 0.0
      %1854 = vmatpush2.msra.mxu0 0.0
      %1855 = vmatprep.subr.mxu0 0.0
      %1856 = vmatpush2.msra.mxu0 0.0
      %1857 = vmatprep.mubr.f32.mxu0 0.0
      %1858 = vmatmul.mubr.f32.gmra.mxu0 %v1694
      %v1859 = vpop.f32.mrf.mxu0
      %v1860 = vadd.f32 0.0, %v1859
      %v1861 = vpop.f32.mrf.mxu0
      %1862 = vmatprep.mubr.f32.mxu0 0.0
      %1863 = vmatmul.mubr.f32.gmra.mxu0 %v1697
      %v1864 = vpop.f32.mrf.mxu0
      %v1865 = vadd.f32 0.0, %v1864
      %v1866 = vpop.f32.mrf.mxu0
      %1867 = vmatprep.mubr.f32.mxu0 0.0
      %1868 = vmatmul.mubr.f32.gmra.mxu0 %v1700
      %v1869 = vpop.f32.mrf.mxu0
      %v1870 = vadd.f32 0.0, %v1869
      %v1871 = vpop.f32.mrf.mxu0
      %1872 = vmatprep.mubr.f32.mxu0 0.0
      %1873 = vmatmul.mubr.f32.gmra.mxu0 %v1703
      %v1874 = vpop.f32.mrf.mxu0
      %v1875 = vadd.f32 0.0, %v1874
      %v1876 = vpop.f32.mrf.mxu0
      %1877 = vmatprep.mubr.f32.mxu0 0.0
      %1878 = vmatmul.mubr.f32.gmra.mxu0 %v1706
      %v1879 = vpop.f32.mrf.mxu0
      %v1880 = vadd.f32 0.0, %v1879
      %v1881 = vpop.f32.mrf.mxu0
      %1882 = vmatprep.mubr.f32.mxu0 0.0
      %1883 = vmatmul.mubr.f32.gmra.mxu0 %v1709
      %v1884 = vpop.f32.mrf.mxu0
      %v1885 = vadd.f32 0.0, %v1884
      %v1886 = vpop.f32.mrf.mxu0
      %1887 = vmatprep.mubr.f32.mxu0 0.0
      %1888 = vmatmul.mubr.f32.gmra.mxu0 %v1712
      %v1889 = vpop.f32.mrf.mxu0
      %v1890 = vadd.f32 0.0, %v1889
      %v1891 = vpop.f32.mrf.mxu0
      %1892 = vmatprep.mubr.f32.mxu0 0.0
      %1893 = vmatmul.mubr.f32.gmra.mxu0 %v1715
      %v1894 = vpop.f32.mrf.mxu0
      %v1895 = vadd.f32 0.0, %v1894
      %v1896 = vpop.f32.mrf.mxu0
      %1897 = vmatprep.mubr.f32.mxu0 0.0
      %1898 = vmatmul.mubr.f32.gmra.mxu0 %v1718
      %v1899 = vpop.f32.mrf.mxu0
      %v1900 = vadd.f32 0.0, %v1899
      %v1901 = vpop.f32.mrf.mxu0
      %1902 = vmatprep.mubr.f32.mxu0 0.0
      %1903 = vmatmul.mubr.f32.gmra.mxu0 %v1721
      %v1904 = vpop.f32.mrf.mxu0
      %v1905 = vadd.f32 0.0, %v1904
      %v1906 = vpop.f32.mrf.mxu0
      %1907 = vmatprep.mubr.f32.mxu0 0.0
      %1908 = vmatmul.mubr.f32.gmra.mxu0 %v1724
      %v1909 = vpop.f32.mrf.mxu0
      %v1910 = vadd.f32 0.0, %v1909
      %v1911 = vpop.f32.mrf.mxu0
      %1912 = vmatprep.mubr.f32.mxu0 0.0
      %1913 = vmatmul.mubr.f32.gmra.mxu0 %v1727
      %v1914 = vpop.f32.mrf.mxu0
      %v1915 = vadd.f32 0.0, %v1914
      %v1916 = vpop.f32.mrf.mxu0
      %1917 = vmatprep.mubr.f32.mxu0 0.0
      %1918 = vmatmul.mubr.f32.gmra.mxu0 %v1730
      %v1919 = vpop.f32.mrf.mxu0
      %v1920 = vadd.f32 0.0, %v1919
      %v1921 = vpop.f32.mrf.mxu0
      %1922 = vmatprep.mubr.f32.mxu0 0.0
      %1923 = vmatmul.mubr.f32.gmra.mxu0 %v1733
      %v1924 = vpop.f32.mrf.mxu0
      %v1925 = vadd.f32 0.0, %v1924
      %v1926 = vpop.f32.mrf.mxu0
      %1927 = vmatprep.mubr.f32.mxu0 0.0
      %1928 = vmatmul.mubr.f32.gmra.mxu0 %v1736
      %v1929 = vpop.f32.mrf.mxu0
      %v1930 = vadd.f32 0.0, %v1929
      %v1931 = vpop.f32.mrf.mxu0
      %1932 = vmatprep.mubr.f32.mxu0 0.0
      %1933 = vmatmul.mubr.f32.gmra.mxu0 %v1739
      %v1934 = vpop.f32.mrf.mxu0
      %v1935 = vadd.f32 0.0, %v1934
      %v1936 = vpop.f32.mrf.mxu0
      %1937 = vmatprep.mubr.f32.mxu0 0.0
      %1938 = vmatmul.mubr.f32.gmra.mxu0 %v1742
      %v1939 = vpop.f32.mrf.mxu0
      %v1940 = vadd.f32 0.0, %v1939
      %v1941 = vpop.f32.mrf.mxu0
      %1942 = vmatprep.mubr.f32.mxu0 0.0
      %1943 = vmatmul.mubr.f32.gmra.mxu0 %v1745
      %v1944 = vpop.f32.mrf.mxu0
      %v1945 = vadd.f32 0.0, %v1944
      %v1946 = vpop.f32.mrf.mxu0
      %1947 = vmatprep.mubr.f32.mxu0 0.0
      %1948 = vmatmul.mubr.f32.gmra.mxu0 %v1748
      %v1949 = vpop.f32.mrf.mxu0
      %v1950 = vadd.f32 0.0, %v1949
      %v1951 = vpop.f32.mrf.mxu0
      %1952 = vmatprep.mubr.f32.mxu0 0.0
      %1953 = vmatmul.mubr.f32.gmra.mxu0 %v1751
      %v1954 = vpop.f32.mrf.mxu0
      %v1955 = vadd.f32 0.0, %v1954
      %v1956 = vpop.f32.mrf.mxu0
      %1957 = vmatprep.mubr.f32.mxu0 0.0
      %1958 = vmatmul.mubr.f32.gmra.mxu0 %v1754
      %v1959 = vpop.f32.mrf.mxu0
      %v1960 = vadd.f32 0.0, %v1959
      %v1961 = vpop.f32.mrf.mxu0
      %1962 = vmatprep.mubr.f32.mxu0 0.0
      %1963 = vmatmul.mubr.f32.gmra.mxu0 %v1757
      %v1964 = vpop.f32.mrf.mxu0
      %v1965 = vadd.f32 0.0, %v1964
      %v1966 = vpop.f32.mrf.mxu0
      %1967 = vmatprep.mubr.f32.mxu0 0.0
      %1968 = vmatmul.mubr.f32.gmra.mxu0 %v1760
      %v1969 = vpop.f32.mrf.mxu0
      %v1970 = vadd.f32 0.0, %v1969
      %v1971 = vpop.f32.mrf.mxu0
      %1972 = vmatprep.mubr.f32.mxu0 0.0
      %1973 = vmatmul.mubr.f32.gmra.mxu0 %v1763
      %v1974 = vpop.f32.mrf.mxu0
      %v1975 = vadd.f32 0.0, %v1974
      %v1976 = vpop.f32.mrf.mxu0
      %1977 = vmatprep.mubr.f32.mxu0 0.0
      %1978 = vmatmul.mubr.f32.gmra.mxu0 %v1766
      %v1979 = vpop.f32.mrf.mxu0
      %v1980 = vadd.f32 0.0, %v1979
      %v1981 = vpop.f32.mrf.mxu0
      %1982 = vmatprep.mubr.f32.mxu0 0.0
      %1983 = vmatmul.mubr.f32.gmra.mxu0 %v1769
      %v1984 = vpop.f32.mrf.mxu0
      %v1985 = vadd.f32 0.0, %v1984
      %v1986 = vpop.f32.mrf.mxu0
      %1987 = vmatprep.mubr.f32.mxu0 0.0
      %1988 = vmatmul.mubr.f32.gmra.mxu0 %v1772
      %v1989 = vpop.f32.mrf.mxu0
      %v1990 = vadd.f32 0.0, %v1989
      %v1991 = vpop.f32.mrf.mxu0
      %1992 = vmatprep.mubr.f32.mxu0 0.0
      %1993 = vmatmul.mubr.f32.gmra.mxu0 %v1775
      %v1994 = vpop.f32.mrf.mxu0
      %v1995 = vadd.f32 0.0, %v1994
      %v1996 = vpop.f32.mrf.mxu0
      %1997 = vmatprep.mubr.f32.mxu0 0.0
      %1998 = vmatmul.mubr.f32.gmra.mxu0 %v1778
      %v1999 = vpop.f32.mrf.mxu0
      %v2000 = vadd.f32 0.0, %v1999
      %v2001 = vpop.f32.mrf.mxu0
      %2002 = vmatprep.mubr.f32.mxu0 0.0
      %2003 = vmatmul.mubr.f32.gmra.mxu0 %v1781
      %v2004 = vpop.f32.mrf.mxu0
      %v2005 = vadd.f32 0.0, %v2004
      %v2006 = vpop.f32.mrf.mxu0
      %2007 = vmatprep.mubr.f32.mxu0 0.0
      %2008 = vmatmul.mubr.f32.gmra.mxu0 %v1784
      %v2009 = vpop.f32.mrf.mxu0
      %v2010 = vadd.f32 0.0, %v2009
      %v2011 = vpop.f32.mrf.mxu0
      %2012 = vmatprep.mubr.f32.mxu0 0.0
      %2013 = vmatmul.mubr.f32.gmra.mxu0 %v1787
      %v2014 = vpop.f32.mrf.mxu0
      %v2015 = vadd.f32 0.0, %v2014
      %v2016 = vpop.f32.mrf.mxu0
      %2017 = vdwg.mxu0
      %v2019 = vlaneseq
      %v2020 = vshrl.u32 %v2019, 7
      %v2021 = vsub.s32 0, %v2020
      %v2022 = vrot.slane %v316, %v2021
      %v2024 = vmul.f32 %v1860, %v2022
      %v2025 = vmul.f32 %v1865, %v2022
      %v2026 = vmul.f32 %v1870, %v2022
      %v2027 = vmul.f32 %v1875, %v2022
      %v2028 = vmul.f32 %v1880, %v2022
      %v2029 = vmul.f32 %v1885, %v2022
      %v2030 = vmul.f32 %v1890, %v2022
      %v2031 = vmul.f32 %v1895, %v2022
      %v2032 = vmul.f32 %v1900, %v2022
      %v2033 = vmul.f32 %v1905, %v2022
      %v2034 = vmul.f32 %v1910, %v2022
      %v2035 = vmul.f32 %v1915, %v2022
      %v2036 = vmul.f32 %v1920, %v2022
      %v2037 = vmul.f32 %v1925, %v2022
      %v2038 = vmul.f32 %v1930, %v2022
      %v2039 = vmul.f32 %v1935, %v2022
      %v2040 = vmul.f32 %v1940, %v2022
      %v2041 = vmul.f32 %v1945, %v2022
      %v2042 = vmul.f32 %v1950, %v2022
      %v2043 = vmul.f32 %v1955, %v2022
      %v2044 = vmul.f32 %v1960, %v2022
      %v2045 = vmul.f32 %v1965, %v2022
      %v2046 = vmul.f32 %v1970, %v2022
      %v2047 = vmul.f32 %v1975, %v2022
      %v2048 = vmul.f32 %v1980, %v2022
      %v2049 = vmul.f32 %v1985, %v2022
      %v2050 = vmul.f32 %v1990, %v2022
      %v2051 = vmul.f32 %v1995, %v2022
      %v2052 = vmul.f32 %v2000, %v2022
      %v2053 = vmul.f32 %v2005, %v2022
      %v2054 = vmul.f32 %v2010, %v2022
      %v2055 = vmul.f32 %v2015, %v2022
      %v2057 = vlaneseq
      %v2058 = vshrl.u32 %v2057, 7
      %v2059 = vsub.s32 0, %v2058
      %v2060 = vrot.slane %v317, %v2059
      %v2062 = vadd.f32 %v2024, %v2060
      %v2063 = vadd.f32 %v2025, %v2060
      %v2064 = vadd.f32 %v2026, %v2060
      %v2065 = vadd.f32 %v2027, %v2060
      %v2066 = vadd.f32 %v2028, %v2060
      %v2067 = vadd.f32 %v2029, %v2060
      %v2068 = vadd.f32 %v2030, %v2060
      %v2069 = vadd.f32 %v2031, %v2060
      %v2070 = vadd.f32 %v2032, %v2060
      %v2071 = vadd.f32 %v2033, %v2060
      %v2072 = vadd.f32 %v2034, %v2060
      %v2073 = vadd.f32 %v2035, %v2060
      %v2074 = vadd.f32 %v2036, %v2060
      %v2075 = vadd.f32 %v2037, %v2060
      %v2076 = vadd.f32 %v2038, %v2060
      %v2077 = vadd.f32 %v2039, %v2060
      %v2078 = vadd.f32 %v2040, %v2060
      %v2079 = vadd.f32 %v2041, %v2060
      %v2080 = vadd.f32 %v2042, %v2060
      %v2081 = vadd.f32 %v2043, %v2060
      %v2082 = vadd.f32 %v2044, %v2060
      %v2083 = vadd.f32 %v2045, %v2060
      %v2084 = vadd.f32 %v2046, %v2060
      %v2085 = vadd.f32 %v2047, %v2060
      %v2086 = vadd.f32 %v2048, %v2060
      %v2087 = vadd.f32 %v2049, %v2060
      %v2088 = vadd.f32 %v2050, %v2060
      %v2089 = vadd.f32 %v2051, %v2060
      %v2090 = vadd.f32 %v2052, %v2060
      %v2091 = vadd.f32 %v2053, %v2060
      %v2092 = vadd.f32 %v2054, %v2060
      %v2093 = vadd.f32 %v2055, %v2060
      %v2094 = vxor.u32 %v2062, 2147483648
      %v2095 = vxor.u32 %v2063, 2147483648
      %v2096 = vxor.u32 %v2064, 2147483648
      %v2097 = vxor.u32 %v2065, 2147483648
      %v2098 = vxor.u32 %v2066, 2147483648
      %v2099 = vxor.u32 %v2067, 2147483648
      %v2100 = vxor.u32 %v2068, 2147483648
      %v2101 = vxor.u32 %v2069, 2147483648
      %v2102 = vxor.u32 %v2070, 2147483648
      %v2103 = vxor.u32 %v2071, 2147483648
      %v2104 = vxor.u32 %v2072, 2147483648
      %v2105 = vxor.u32 %v2073, 2147483648
      %v2106 = vxor.u32 %v2074, 2147483648
      %v2107 = vxor.u32 %v2075, 2147483648
      %v2108 = vxor.u32 %v2076, 2147483648
      %v2109 = vxor.u32 %v2077, 2147483648
      %v2110 = vxor.u32 %v2078, 2147483648
      %v2111 = vxor.u32 %v2079, 2147483648
      %v2112 = vxor.u32 %v2080, 2147483648
      %v2113 = vxor.u32 %v2081, 2147483648
      %v2114 = vxor.u32 %v2082, 2147483648
      %v2115 = vxor.u32 %v2083, 2147483648
      %v2116 = vxor.u32 %v2084, 2147483648
      %v2117 = vxor.u32 %v2085, 2147483648
      %v2118 = vxor.u32 %v2086, 2147483648
      %v2119 = vxor.u32 %v2087, 2147483648
      %v2120 = vxor.u32 %v2088, 2147483648
      %v2121 = vxor.u32 %v2089, 2147483648
      %v2122 = vxor.u32 %v2090, 2147483648
      %v2123 = vxor.u32 %v2091, 2147483648
      %v2124 = vxor.u32 %v2092, 2147483648
      %v2125 = vxor.u32 %v2093, 2147483648
      %v2126 = vmul.f32 %v2094, 1.442695
      %v2127 = vpow.pop %v2126
      %v2128 = vmul.f32 %v2095, 1.442695
      %v2129 = vpow.pop %v2128
      %v2130 = vmul.f32 %v2096, 1.442695
      %v2131 = vpow.pop %v2130
      %v2132 = vmul.f32 %v2097, 1.442695
      %v2133 = vpow.pop %v2132
      %v2134 = vmul.f32 %v2098, 1.442695
      %v2135 = vpow.pop %v2134
      %v2136 = vmul.f32 %v2099, 1.442695
      %v2137 = vpow.pop %v2136
      %v2138 = vmul.f32 %v2100, 1.442695
      %v2139 = vpow.pop %v2138
      %v2140 = vmul.f32 %v2101, 1.442695
      %v2141 = vpow.pop %v2140
      %v2142 = vmul.f32 %v2102, 1.442695
      %v2143 = vpow.pop %v2142
      %v2144 = vmul.f32 %v2103, 1.442695
      %v2145 = vpow.pop %v2144
      %v2146 = vmul.f32 %v2104, 1.442695
      %v2147 = vpow.pop %v2146
      %v2148 = vmul.f32 %v2105, 1.442695
      %v2149 = vpow.pop %v2148
      %v2150 = vmul.f32 %v2106, 1.442695
      %v2151 = vpow.pop %v2150
      %v2152 = vmul.f32 %v2107, 1.442695
      %v2153 = vpow.pop %v2152
      %v2154 = vmul.f32 %v2108, 1.442695
      %v2155 = vpow.pop %v2154
      %v2156 = vmul.f32 %v2109, 1.442695
      %v2157 = vpow.pop %v2156
      %v2158 = vmul.f32 %v2110, 1.442695
      %v2159 = vpow.pop %v2158
      %v2160 = vmul.f32 %v2111, 1.442695
      %v2161 = vpow.pop %v2160
      %v2162 = vmul.f32 %v2112, 1.442695
      %v2163 = vpow.pop %v2162
      %v2164 = vmul.f32 %v2113, 1.442695
      %v2165 = vpow.pop %v2164
      %v2166 = vmul.f32 %v2114, 1.442695
      %v2167 = vpow.pop %v2166
      %v2168 = vmul.f32 %v2115, 1.442695
      %v2169 = vpow.pop %v2168
      %v2170 = vmul.f32 %v2116, 1.442695
      %v2171 = vpow.pop %v2170
      %v2172 = vmul.f32 %v2117, 1.442695
      %v2173 = vpow.pop %v2172
      %v2174 = vmul.f32 %v2118, 1.442695
      %v2175 = vpow.pop %v2174
      %v2176 = vmul.f32 %v2119, 1.442695
      %v2177 = vpow.pop %v2176
      %v2178 = vmul.f32 %v2120, 1.442695
      %v2179 = vpow.pop %v2178
      %v2180 = vmul.f32 %v2121, 1.442695
      %v2181 = vpow.pop %v2180
      %v2182 = vmul.f32 %v2122, 1.442695
      %v2183 = vpow.pop %v2182
      %v2184 = vmul.f32 %v2123, 1.442695
      %v2185 = vpow.pop %v2184
      %v2186 = vmul.f32 %v2124, 1.442695
      %v2187 = vpow.pop %v2186
      %v2188 = vmul.f32 %v2125, 1.442695
      %v2189 = vpow.pop %v2188
      %v2190 = vadd.f32 %v2127, 1.0
      %v2191 = vadd.f32 %v2129, 1.0
      %v2192 = vadd.f32 %v2131, 1.0
      %v2193 = vadd.f32 %v2133, 1.0
      %v2194 = vadd.f32 %v2135, 1.0
      %v2195 = vadd.f32 %v2137, 1.0
      %v2196 = vadd.f32 %v2139, 1.0
      %v2197 = vadd.f32 %v2141, 1.0
      %v2198 = vadd.f32 %v2143, 1.0
      %v2199 = vadd.f32 %v2145, 1.0
      %v2200 = vadd.f32 %v2147, 1.0
      %v2201 = vadd.f32 %v2149, 1.0
      %v2202 = vadd.f32 %v2151, 1.0
      %v2203 = vadd.f32 %v2153, 1.0
      %v2204 = vadd.f32 %v2155, 1.0
      %v2205 = vadd.f32 %v2157, 1.0
      %v2206 = vadd.f32 %v2159, 1.0
      %v2207 = vadd.f32 %v2161, 1.0
      %v2208 = vadd.f32 %v2163, 1.0
      %v2209 = vadd.f32 %v2165, 1.0
      %v2210 = vadd.f32 %v2167, 1.0
      %v2211 = vadd.f32 %v2169, 1.0
      %v2212 = vadd.f32 %v2171, 1.0
      %v2213 = vadd.f32 %v2173, 1.0
      %v2214 = vadd.f32 %v2175, 1.0
      %v2215 = vadd.f32 %v2177, 1.0
      %v2216 = vadd.f32 %v2179, 1.0
      %v2217 = vadd.f32 %v2181, 1.0
      %v2218 = vadd.f32 %v2183, 1.0
      %v2219 = vadd.f32 %v2185, 1.0
      %v2220 = vadd.f32 %v2187, 1.0
      %v2221 = vadd.f32 %v2189, 1.0
      %v2222 = vrcp.pop %v2190
      %v2223 = vmul.f32 1.0, %v2222
      %v2224 = vrcp.pop %v2191
      %v2225 = vmul.f32 1.0, %v2224
      %v2226 = vrcp.pop %v2192
      %v2227 = vmul.f32 1.0, %v2226
      %v2228 = vrcp.pop %v2193
      %v2229 = vmul.f32 1.0, %v2228
      %v2230 = vrcp.pop %v2194
      %v2231 = vmul.f32 1.0, %v2230
      %v2232 = vrcp.pop %v2195
      %v2233 = vmul.f32 1.0, %v2232
      %v2234 = vrcp.pop %v2196
      %v2235 = vmul.f32 1.0, %v2234
      %v2236 = vrcp.pop %v2197
      %v2237 = vmul.f32 1.0, %v2236
      %v2238 = vrcp.pop %v2198
      %v2239 = vmul.f32 1.0, %v2238
      %v2240 = vrcp.pop %v2199
      %v2241 = vmul.f32 1.0, %v2240
      %v2242 = vrcp.pop %v2200
      %v2243 = vmul.f32 1.0, %v2242
      %v2244 = vrcp.pop %v2201
      %v2245 = vmul.f32 1.0, %v2244
      %v2246 = vrcp.pop %v2202
      %v2247 = vmul.f32 1.0, %v2246
      %v2248 = vrcp.pop %v2203
      %v2249 = vmul.f32 1.0, %v2248
      %v2250 = vrcp.pop %v2204
      %v2251 = vmul.f32 1.0, %v2250
      %v2252 = vrcp.pop %v2205
      %v2253 = vmul.f32 1.0, %v2252
      %v2254 = vrcp.pop %v2206
      %v2255 = vmul.f32 1.0, %v2254
      %v2256 = vrcp.pop %v2207
      %v2257 = vmul.f32 1.0, %v2256
      %v2258 = vrcp.pop %v2208
      %v2259 = vmul.f32 1.0, %v2258
      %v2260 = vrcp.pop %v2209
      %v2261 = vmul.f32 1.0, %v2260
      %v2262 = vrcp.pop %v2210
      %v2263 = vmul.f32 1.0, %v2262
      %v2264 = vrcp.pop %v2211
      %v2265 = vmul.f32 1.0, %v2264
      %v2266 = vrcp.pop %v2212
      %v2267 = vmul.f32 1.0, %v2266
      %v2268 = vrcp.pop %v2213
      %v2269 = vmul.f32 1.0, %v2268
      %v2270 = vrcp.pop %v2214
      %v2271 = vmul.f32 1.0, %v2270
      %v2272 = vrcp.pop %v2215
      %v2273 = vmul.f32 1.0, %v2272
      %v2274 = vrcp.pop %v2216
      %v2275 = vmul.f32 1.0, %v2274
      %v2276 = vrcp.pop %v2217
      %v2277 = vmul.f32 1.0, %v2276
      %v2278 = vrcp.pop %v2218
      %v2279 = vmul.f32 1.0, %v2278
      %v2280 = vrcp.pop %v2219
      %v2281 = vmul.f32 1.0, %v2280
      %v2282 = vrcp.pop %v2220
      %v2283 = vmul.f32 1.0, %v2282
      %v2284 = vrcp.pop %v2221
      %v2285 = vmul.f32 1.0, %v2284
      %v2286 = vmul.f32 %v2062, %v2223
      %v2287 = vmul.f32 %v2063, %v2225
      %v2288 = vmul.f32 %v2064, %v2227
      %v2289 = vmul.f32 %v2065, %v2229
      %v2290 = vmul.f32 %v2066, %v2231
      %v2291 = vmul.f32 %v2067, %v2233
      %v2292 = vmul.f32 %v2068, %v2235
      %v2293 = vmul.f32 %v2069, %v2237
      %v2294 = vmul.f32 %v2070, %v2239
      %v2295 = vmul.f32 %v2071, %v2241
      %v2296 = vmul.f32 %v2072, %v2243
      %v2297 = vmul.f32 %v2073, %v2245
      %v2298 = vmul.f32 %v2074, %v2247
      %v2299 = vmul.f32 %v2075, %v2249
      %v2300 = vmul.f32 %v2076, %v2251
      %v2301 = vmul.f32 %v2077, %v2253
      %v2302 = vmul.f32 %v2078, %v2255
      %v2303 = vmul.f32 %v2079, %v2257
      %v2304 = vmul.f32 %v2080, %v2259
      %v2305 = vmul.f32 %v2081, %v2261
      %v2306 = vmul.f32 %v2082, %v2263
      %v2307 = vmul.f32 %v2083, %v2265
      %v2308 = vmul.f32 %v2084, %v2267
      %v2309 = vmul.f32 %v2085, %v2269
      %v2310 = vmul.f32 %v2086, %v2271
      %v2311 = vmul.f32 %v2087, %v2273
      %v2312 = vmul.f32 %v2088, %v2275
      %v2313 = vmul.f32 %v2089, %v2277
      %v2314 = vmul.f32 %v2090, %v2279
      %v2315 = vmul.f32 %v2091, %v2281
      %v2316 = vmul.f32 %v2092, %v2283
      %v2317 = vmul.f32 %v2093, %v2285
      %v2318 = vld [vmem:[%s4] sm:$0xff]
      %v2319 = vld [vmem:[%s4 + $0x8] sm:$0xff]
      %v2320 = vld [vmem:[%s4 + $0x10] sm:$0xff]
      %v2321 = vld [vmem:[%s4 + $0x18] sm:$0xff]
      %v2322 = vld [vmem:[%s4 + $0x20] sm:$0xf]
      %v2323 = vld [vmem:[%s5] sm:$0x1]
      %v2324 = vld [vmem:[%s6] sm:$0x1]
      %v2357 = vrot.slane %v2286, 7
      %v2358 = vrot.slane %v2287, 7
      %v2359 = vsel %vm350, %v2357, %v2358
      %v2360 = vrot.slane %v2288, 7
      %v2361 = vrot.slane %v2289, 7
      %v2362 = vsel %vm350, %v2360, %v2361
      %v2363 = vrot.slane %v2290, 7
      %v2364 = vrot.slane %v2291, 7
      %v2365 = vsel %vm350, %v2363, %v2364
      %v2366 = vrot.slane %v2292, 7
      %v2367 = vrot.slane %v2293, 7
      %v2368 = vsel %vm350, %v2366, %v2367
      %v2369 = vrot.slane %v2294, 7
      %v2370 = vrot.slane %v2295, 7
      %v2371 = vsel %vm350, %v2369, %v2370
      %v2372 = vrot.slane %v2296, 7
      %v2373 = vrot.slane %v2297, 7
      %v2374 = vsel %vm350, %v2372, %v2373
      %v2375 = vrot.slane %v2298, 7
      %v2376 = vrot.slane %v2299, 7
      %v2377 = vsel %vm350, %v2375, %v2376
      %v2378 = vrot.slane %v2300, 7
      %v2379 = vrot.slane %v2301, 7
      %v2380 = vsel %vm350, %v2378, %v2379
      %v2381 = vrot.slane %v2302, 7
      %v2382 = vrot.slane %v2303, 7
      %v2383 = vsel %vm350, %v2381, %v2382
      %v2384 = vrot.slane %v2304, 7
      %v2385 = vrot.slane %v2305, 7
      %v2386 = vsel %vm350, %v2384, %v2385
      %v2387 = vrot.slane %v2306, 7
      %v2388 = vrot.slane %v2307, 7
      %v2389 = vsel %vm350, %v2387, %v2388
      %v2390 = vrot.slane %v2308, 7
      %v2391 = vrot.slane %v2309, 7
      %v2392 = vsel %vm350, %v2390, %v2391
      %v2393 = vrot.slane %v2310, 7
      %v2394 = vrot.slane %v2311, 7
      %v2395 = vsel %vm350, %v2393, %v2394
      %v2396 = vrot.slane %v2312, 7
      %v2397 = vrot.slane %v2313, 7
      %v2398 = vsel %vm350, %v2396, %v2397
      %v2399 = vrot.slane %v2314, 7
      %v2400 = vrot.slane %v2315, 7
      %v2401 = vsel %vm350, %v2399, %v2400
      %v2402 = vrot.slane %v2316, 7
      %v2403 = vrot.slane %v2317, 7
      %v2404 = vsel %vm350, %v2402, %v2403
      %v2452 = vsel %vm350, 0.0, %v2357
      %v2453 = vsel %vm350, 0.0, %v2360
      %v2454 = vsel %vm350, 0.0, %v2363
      %v2455 = vsel %vm350, 0.0, %v2366
      %v2456 = vsel %vm350, 0.0, %v2369
      %v2457 = vsel %vm350, 0.0, %v2372
      %v2458 = vsel %vm350, 0.0, %v2375
      %v2459 = vsel %vm350, 0.0, %v2378
      %v2460 = vsel %vm350, 0.0, %v2381
      %v2461 = vsel %vm350, 0.0, %v2384
      %v2462 = vsel %vm350, 0.0, %v2387
      %v2463 = vsel %vm350, 0.0, %v2390
      %v2464 = vsel %vm350, 0.0, %v2393
      %v2465 = vsel %vm350, 0.0, %v2396
      %v2466 = vsel %vm350, 0.0, %v2399
      %v2467 = vsel %vm350, 0.0, %v2402
      %v2468 = vsel %vm350, %v2358, 0.0
      %v2469 = vsel %vm350, %v2361, 0.0
      %v2470 = vsel %vm350, %v2364, 0.0
      %v2471 = vsel %vm350, %v2367, 0.0
      %v2472 = vsel %vm350, %v2370, 0.0
      %v2473 = vsel %vm350, %v2373, 0.0
      %v2474 = vsel %vm350, %v2376, 0.0
      %v2475 = vsel %vm350, %v2379, 0.0
      %v2476 = vsel %vm350, %v2382, 0.0
      %v2477 = vsel %vm350, %v2385, 0.0
      %v2478 = vsel %vm350, %v2388, 0.0
      %v2479 = vsel %vm350, %v2391, 0.0
      %v2480 = vsel %vm350, %v2394, 0.0
      %v2481 = vsel %vm350, %v2397, 0.0
      %v2482 = vsel %vm350, %v2400, 0.0
      %v2483 = vsel %vm350, %v2403, 0.0
      %v2514 = vrot.slane %v2452, 1
      %v2515 = vrot.slane %v2359, 1
      %v2516 = vsel %vm509, %v2514, %v2515
      %v2517 = vrot.slane %v2468, 1
      %v2518 = vsel %vm509, %v2515, %v2517
      %v2519 = vrot.slane %v2453, 1
      %v2520 = vrot.slane %v2362, 1
      %v2521 = vsel %vm509, %v2519, %v2520
      %v2522 = vrot.slane %v2469, 1
      %v2523 = vsel %vm509, %v2520, %v2522
      %v2524 = vrot.slane %v2454, 1
      %v2525 = vrot.slane %v2365, 1
      %v2526 = vsel %vm509, %v2524, %v2525
      %v2527 = vrot.slane %v2470, 1
      %v2528 = vsel %vm509, %v2525, %v2527
      %v2529 = vrot.slane %v2455, 1
      %v2530 = vrot.slane %v2368, 1
      %v2531 = vsel %vm509, %v2529, %v2530
      %v2532 = vrot.slane %v2471, 1
      %v2533 = vsel %vm509, %v2530, %v2532
      %v2534 = vrot.slane %v2456, 1
      %v2535 = vrot.slane %v2371, 1
      %v2536 = vsel %vm509, %v2534, %v2535
      %v2537 = vrot.slane %v2472, 1
      %v2538 = vsel %vm509, %v2535, %v2537
      %v2539 = vrot.slane %v2457, 1
      %v2540 = vrot.slane %v2374, 1
      %v2541 = vsel %vm509, %v2539, %v2540
      %v2542 = vrot.slane %v2473, 1
      %v2543 = vsel %vm509, %v2540, %v2542
      %v2544 = vrot.slane %v2458, 1
      %v2545 = vrot.slane %v2377, 1
      %v2546 = vsel %vm509, %v2544, %v2545
      %v2547 = vrot.slane %v2474, 1
      %v2548 = vsel %vm509, %v2545, %v2547
      %v2549 = vrot.slane %v2459, 1
      %v2550 = vrot.slane %v2380, 1
      %v2551 = vsel %vm509, %v2549, %v2550
      %v2552 = vrot.slane %v2475, 1
      %v2553 = vsel %vm509, %v2550, %v2552
      %v2554 = vrot.slane %v2460, 1
      %v2555 = vrot.slane %v2383, 1
      %v2556 = vsel %vm509, %v2554, %v2555
      %v2557 = vrot.slane %v2476, 1
      %v2558 = vsel %vm509, %v2555, %v2557
      %v2559 = vrot.slane %v2461, 1
      %v2560 = vrot.slane %v2386, 1
      %v2561 = vsel %vm509, %v2559, %v2560
      %v2562 = vrot.slane %v2477, 1
      %v2563 = vsel %vm509, %v2560, %v2562
      %v2564 = vrot.slane %v2462, 1
      %v2565 = vrot.slane %v2389, 1
      %v2566 = vsel %vm509, %v2564, %v2565
      %v2567 = vrot.slane %v2478, 1
      %v2568 = vsel %vm509, %v2565, %v2567
      %v2569 = vrot.slane %v2463, 1
      %v2570 = vrot.slane %v2392, 1
      %v2571 = vsel %vm509, %v2569, %v2570
      %v2572 = vrot.slane %v2479, 1
      %v2573 = vsel %vm509, %v2570, %v2572
      %v2574 = vrot.slane %v2464, 1
      %v2575 = vrot.slane %v2395, 1
      %v2576 = vsel %vm509, %v2574, %v2575
      %v2577 = vrot.slane %v2480, 1
      %v2578 = vsel %vm509, %v2575, %v2577
      %v2579 = vrot.slane %v2465, 1
      %v2580 = vrot.slane %v2398, 1
      %v2581 = vsel %vm509, %v2579, %v2580
      %v2582 = vrot.slane %v2481, 1
      %v2583 = vsel %vm509, %v2580, %v2582
      %v2584 = vrot.slane %v2466, 1
      %v2585 = vrot.slane %v2401, 1
      %v2586 = vsel %vm509, %v2584, %v2585
      %v2587 = vrot.slane %v2482, 1
      %v2588 = vsel %vm509, %v2585, %v2587
      %2589 = vrot.lane.b32.xlu0 %v2516, 4
      %v2590 = vpop.permute.xlu0 %2589
      %2591 = vrot.lane.b32.xlu0 %v2518, 4
      %v2592 = vpop.permute.xlu0 %2591
      %2593 = vrot.lane.b32.xlu0 %v2521, 4
      %v2594 = vpop.permute.xlu0 %2593
      %2595 = vrot.lane.b32.xlu0 %v2523, 4
      %v2596 = vpop.permute.xlu0 %2595
      %2597 = vrot.lane.b32.xlu0 %v2526, 4
      %v2598 = vpop.permute.xlu0 %2597
      %2599 = vrot.lane.b32.xlu0 %v2528, 4
      %v2600 = vpop.permute.xlu0 %2599
      %2601 = vrot.lane.b32.xlu0 %v2531, 4
      %v2602 = vpop.permute.xlu0 %2601
      %2603 = vrot.lane.b32.xlu0 %v2533, 4
      %v2604 = vpop.permute.xlu0 %2603
      %2605 = vrot.lane.b32.xlu0 %v2536, 4
      %v2606 = vpop.permute.xlu0 %2605
      %2607 = vrot.lane.b32.xlu0 %v2538, 4
      %v2608 = vpop.permute.xlu0 %2607
      %2609 = vrot.lane.b32.xlu0 %v2541, 4
      %v2610 = vpop.permute.xlu0 %2609
      %2611 = vrot.lane.b32.xlu0 %v2543, 4
      %v2612 = vpop.permute.xlu0 %2611
      %2613 = vrot.lane.b32.xlu0 %v2546, 4
      %v2614 = vpop.permute.xlu0 %2613
      %2615 = vrot.lane.b32.xlu0 %v2548, 4
      %v2616 = vpop.permute.xlu0 %2615
      %2617 = vrot.lane.b32.xlu0 %v2551, 4
      %v2618 = vpop.permute.xlu0 %2617
      %2619 = vrot.lane.b32.xlu0 %v2553, 4
      %v2620 = vpop.permute.xlu0 %2619
      %2621 = vrot.lane.b32.xlu0 %v2556, 4
      %v2622 = vpop.permute.xlu0 %2621
      %2623 = vrot.lane.b32.xlu0 %v2558, 4
      %v2624 = vpop.permute.xlu0 %2623
      %2625 = vrot.lane.b32.xlu0 %v2561, 4
      %v2626 = vpop.permute.xlu0 %2625
      %2627 = vrot.lane.b32.xlu0 %v2563, 4
      %v2628 = vpop.permute.xlu0 %2627
      %2629 = vrot.lane.b32.xlu0 %v2566, 4
      %v2630 = vpop.permute.xlu0 %2629
      %2631 = vrot.lane.b32.xlu0 %v2568, 4
      %v2632 = vpop.permute.xlu0 %2631
      %2633 = vrot.lane.b32.xlu0 %v2571, 4
      %v2634 = vpop.permute.xlu0 %2633
      %2635 = vrot.lane.b32.xlu0 %v2573, 4
      %v2636 = vpop.permute.xlu0 %2635
      %2637 = vrot.lane.b32.xlu0 %v2576, 4
      %v2638 = vpop.permute.xlu0 %2637
      %2639 = vrot.lane.b32.xlu0 %v2578, 4
      %v2640 = vpop.permute.xlu0 %2639
      %2641 = vrot.lane.b32.xlu0 %v2581, 4
      %v2642 = vpop.permute.xlu0 %2641
      %2643 = vrot.lane.b32.xlu0 %v2583, 4
      %v2644 = vpop.permute.xlu0 %2643
      %2645 = vrot.lane.b32.xlu0 %v2586, 4
      %v2646 = vpop.permute.xlu0 %2645
      %2647 = vrot.lane.b32.xlu0 %v2588, 4
      %v2648 = vpop.permute.xlu0 %2647
      %v2679 = vrot.slane %v2452, 2
      %v2680 = vrot.slane %v2359, 2
      %v2681 = vsel %vm680, %v2679, %v2680
      %v2682 = vrot.slane %v2468, 2
      %v2683 = vsel %vm680, %v2680, %v2682
      %v2684 = vrot.slane %v2453, 2
      %v2685 = vrot.slane %v2362, 2
      %v2686 = vsel %vm680, %v2684, %v2685
      %v2687 = vrot.slane %v2469, 2
      %v2688 = vsel %vm680, %v2685, %v2687
      %v2689 = vrot.slane %v2454, 2
      %v2690 = vrot.slane %v2365, 2
      %v2691 = vsel %vm680, %v2689, %v2690
      %v2692 = vrot.slane %v2470, 2
      %v2693 = vsel %vm680, %v2690, %v2692
      %v2694 = vrot.slane %v2455, 2
      %v2695 = vrot.slane %v2368, 2
      %v2696 = vsel %vm680, %v2694, %v2695
      %v2697 = vrot.slane %v2471, 2
      %v2698 = vsel %vm680, %v2695, %v2697
      %v2699 = vrot.slane %v2456, 2
      %v2700 = vrot.slane %v2371, 2
      %v2701 = vsel %vm680, %v2699, %v2700
      %v2702 = vrot.slane %v2472, 2
      %v2703 = vsel %vm680, %v2700, %v2702
      %v2704 = vrot.slane %v2457, 2
      %v2705 = vrot.slane %v2374, 2
      %v2706 = vsel %vm680, %v2704, %v2705
      %v2707 = vrot.slane %v2473, 2
      %v2708 = vsel %vm680, %v2705, %v2707
      %v2709 = vrot.slane %v2458, 2
      %v2710 = vrot.slane %v2377, 2
      %v2711 = vsel %vm680, %v2709, %v2710
      %v2712 = vrot.slane %v2474, 2
      %v2713 = vsel %vm680, %v2710, %v2712
      %v2714 = vrot.slane %v2459, 2
      %v2715 = vrot.slane %v2380, 2
      %v2716 = vsel %vm680, %v2714, %v2715
      %v2717 = vrot.slane %v2475, 2
      %v2718 = vsel %vm680, %v2715, %v2717
      %v2719 = vrot.slane %v2460, 2
      %v2720 = vrot.slane %v2383, 2
      %v2721 = vsel %vm680, %v2719, %v2720
      %v2722 = vrot.slane %v2476, 2
      %v2723 = vsel %vm680, %v2720, %v2722
      %v2724 = vrot.slane %v2461, 2
      %v2725 = vrot.slane %v2386, 2
      %v2726 = vsel %vm680, %v2724, %v2725
      %v2727 = vrot.slane %v2477, 2
      %v2728 = vsel %vm680, %v2725, %v2727
      %v2729 = vrot.slane %v2462, 2
      %v2730 = vrot.slane %v2389, 2
      %v2731 = vsel %vm680, %v2729, %v2730
      %v2732 = vrot.slane %v2478, 2
      %v2733 = vsel %vm680, %v2730, %v2732
      %v2734 = vrot.slane %v2463, 2
      %v2735 = vrot.slane %v2392, 2
      %v2736 = vsel %vm680, %v2734, %v2735
      %v2737 = vrot.slane %v2479, 2
      %v2738 = vsel %vm680, %v2735, %v2737
      %v2739 = vrot.slane %v2464, 2
      %v2740 = vrot.slane %v2395, 2
      %v2741 = vsel %vm680, %v2739, %v2740
      %v2742 = vrot.slane %v2480, 2
      %v2743 = vsel %vm680, %v2740, %v2742
      %v2744 = vrot.slane %v2465, 2
      %v2745 = vrot.slane %v2398, 2
      %v2746 = vsel %vm680, %v2744, %v2745
      %v2747 = vrot.slane %v2481, 2
      %v2748 = vsel %vm680, %v2745, %v2747
      %v2749 = vrot.slane %v2466, 2
      %v2750 = vrot.slane %v2401, 2
      %v2751 = vsel %vm680, %v2749, %v2750
      %v2752 = vrot.slane %v2482, 2
      %v2753 = vsel %vm680, %v2750, %v2752
      %2754 = vrot.lane.b32.xlu0 %v2681, 8
      %v2755 = vpop.permute.xlu0 %2754
      %2756 = vrot.lane.b32.xlu0 %v2683, 8
      %v2757 = vpop.permute.xlu0 %2756
      %2758 = vrot.lane.b32.xlu0 %v2686, 8
      %v2759 = vpop.permute.xlu0 %2758
      %2760 = vrot.lane.b32.xlu0 %v2688, 8
      %v2761 = vpop.permute.xlu0 %2760
      %2762 = vrot.lane.b32.xlu0 %v2691, 8
      %v2763 = vpop.permute.xlu0 %2762
      %2764 = vrot.lane.b32.xlu0 %v2693, 8
      %v2765 = vpop.permute.xlu0 %2764
      %2766 = vrot.lane.b32.xlu0 %v2696, 8
      %v2767 = vpop.permute.xlu0 %2766
      %2768 = vrot.lane.b32.xlu0 %v2698, 8
      %v2769 = vpop.permute.xlu0 %2768
      %2770 = vrot.lane.b32.xlu0 %v2701, 8
      %v2771 = vpop.permute.xlu0 %2770
      %2772 = vrot.lane.b32.xlu0 %v2703, 8
      %v2773 = vpop.permute.xlu0 %2772
      %2774 = vrot.lane.b32.xlu0 %v2706, 8
      %v2775 = vpop.permute.xlu0 %2774
      %2776 = vrot.lane.b32.xlu0 %v2708, 8
      %v2777 = vpop.permute.xlu0 %2776
      %2778 = vrot.lane.b32.xlu0 %v2711, 8
      %v2779 = vpop.permute.xlu0 %2778
      %2780 = vrot.lane.b32.xlu0 %v2713, 8
      %v2781 = vpop.permute.xlu0 %2780
      %2782 = vrot.lane.b32.xlu0 %v2716, 8
      %v2783 = vpop.permute.xlu0 %2782
      %2784 = vrot.lane.b32.xlu0 %v2718, 8
      %v2785 = vpop.permute.xlu0 %2784
      %2786 = vrot.lane.b32.xlu0 %v2721, 8
      %v2787 = vpop.permute.xlu0 %2786
      %2788 = vrot.lane.b32.xlu0 %v2723, 8
      %v2789 = vpop.permute.xlu0 %2788
      %2790 = vrot.lane.b32.xlu0 %v2726, 8
      %v2791 = vpop.permute.xlu0 %2790
      %2792 = vrot.lane.b32.xlu0 %v2728, 8
      %v2793 = vpop.permute.xlu0 %2792
      %2794 = vrot.lane.b32.xlu0 %v2731, 8
      %v2795 = vpop.permute.xlu0 %2794
      %2796 = vrot.lane.b32.xlu0 %v2733, 8
      %v2797 = vpop.permute.xlu0 %2796
      %2798 = vrot.lane.b32.xlu0 %v2736, 8
      %v2799 = vpop.permute.xlu0 %2798
      %2800 = vrot.lane.b32.xlu0 %v2738, 8
      %v2801 = vpop.permute.xlu0 %2800
      %2802 = vrot.lane.b32.xlu0 %v2741, 8
      %v2803 = vpop.permute.xlu0 %2802
      %2804 = vrot.lane.b32.xlu0 %v2743, 8
      %v2805 = vpop.permute.xlu0 %2804
      %2806 = vrot.lane.b32.xlu0 %v2746, 8
      %v2807 = vpop.permute.xlu0 %2806
      %2808 = vrot.lane.b32.xlu0 %v2748, 8
      %v2809 = vpop.permute.xlu0 %2808
      %2810 = vrot.lane.b32.xlu0 %v2751, 8
      %v2811 = vpop.permute.xlu0 %2810
      %2812 = vrot.lane.b32.xlu0 %v2753, 8
      %v2813 = vpop.permute.xlu0 %2812
      %2845 = vrot.lane.b32.xlu0 %v2452, 12
      %v2846 = vpop.permute.xlu0 %2845
      %2847 = vrot.lane.b32.xlu0 %v2359, 12
      %v2848 = vpop.permute.xlu0 %2847
      %2849 = vrot.lane.b32.xlu0 %v2453, 12
      %v2850 = vpop.permute.xlu0 %2849
      %2851 = vrot.lane.b32.xlu0 %v2362, 12
      %v2852 = vpop.permute.xlu0 %2851
      %2853 = vrot.lane.b32.xlu0 %v2454, 12
      %v2854 = vpop.permute.xlu0 %2853
      %2855 = vrot.lane.b32.xlu0 %v2365, 12
      %v2856 = vpop.permute.xlu0 %2855
      %2857 = vrot.lane.b32.xlu0 %v2455, 12
      %v2858 = vpop.permute.xlu0 %2857
      %2859 = vrot.lane.b32.xlu0 %v2368, 12
      %v2860 = vpop.permute.xlu0 %2859
      %2861 = vrot.lane.b32.xlu0 %v2456, 12
      %v2862 = vpop.permute.xlu0 %2861
      %2863 = vrot.lane.b32.xlu0 %v2371, 12
      %v2864 = vpop.permute.xlu0 %2863
      %2865 = vrot.lane.b32.xlu0 %v2457, 12
      %v2866 = vpop.permute.xlu0 %2865
      %2867 = vrot.lane.b32.xlu0 %v2374, 12
      %v2868 = vpop.permute.xlu0 %2867
      %2869 = vrot.lane.b32.xlu0 %v2458, 12
      %v2870 = vpop.permute.xlu0 %2869
      %2871 = vrot.lane.b32.xlu0 %v2377, 12
      %v2872 = vpop.permute.xlu0 %2871
      %2873 = vrot.lane.b32.xlu0 %v2459, 12
      %v2874 = vpop.permute.xlu0 %2873
      %2875 = vrot.lane.b32.xlu0 %v2380, 12
      %v2876 = vpop.permute.xlu0 %2875
      %2877 = vrot.lane.b32.xlu0 %v2460, 12
      %v2878 = vpop.permute.xlu0 %2877
      %2879 = vrot.lane.b32.xlu0 %v2383, 12
      %v2880 = vpop.permute.xlu0 %2879
      %2881 = vrot.lane.b32.xlu0 %v2461, 12
      %v2882 = vpop.permute.xlu0 %2881
      %2883 = vrot.lane.b32.xlu0 %v2386, 12
      %v2884 = vpop.permute.xlu0 %2883
      %2885 = vrot.lane.b32.xlu0 %v2462, 12
      %v2886 = vpop.permute.xlu0 %2885
      %2887 = vrot.lane.b32.xlu0 %v2389, 12
      %v2888 = vpop.permute.xlu0 %2887
      %2889 = vrot.lane.b32.xlu0 %v2463, 12
      %v2890 = vpop.permute.xlu0 %2889
      %2891 = vrot.lane.b32.xlu0 %v2392, 12
      %v2892 = vpop.permute.xlu0 %2891
      %2893 = vrot.lane.b32.xlu0 %v2464, 12
      %v2894 = vpop.permute.xlu0 %2893
      %2895 = vrot.lane.b32.xlu0 %v2395, 12
      %v2896 = vpop.permute.xlu0 %2895
      %2897 = vrot.lane.b32.xlu0 %v2465, 12
      %v2898 = vpop.permute.xlu0 %2897
      %2899 = vrot.lane.b32.xlu0 %v2398, 12
      %v2900 = vpop.permute.xlu0 %2899
      %2901 = vrot.lane.b32.xlu0 %v2466, 12
      %v2902 = vpop.permute.xlu0 %2901
      %2903 = vrot.lane.b32.xlu0 %v2401, 12
      %v2904 = vpop.permute.xlu0 %2903
      %2905 = vrot.lane.b32.xlu0 %v2467, 12
      %v2906 = vpop.permute.xlu0 %2905
      %2907 = vrot.lane.b32.xlu0 %v2404, 12
      %v2908 = vpop.permute.xlu0 %2907
      %v2942 = vrot.slane %v2467, 1
      %v2943 = vrot.slane %v2404, 1
      %v2944 = vsel %vm509, %v2942, %v2943
      %v2945 = vrot.slane %v2483, 1
      %v2946 = vsel %vm509, %v2943, %v2945
      %2947 = vrot.lane.b32.xlu0 %v2516, 16
      %v2948 = vpop.permute.xlu0 %2947
      %2949 = vrot.lane.b32.xlu0 %v2518, 16
      %v2950 = vpop.permute.xlu0 %2949
      %2951 = vrot.lane.b32.xlu0 %v2521, 16
      %v2952 = vpop.permute.xlu0 %2951
      %2953 = vrot.lane.b32.xlu0 %v2523, 16
      %v2954 = vpop.permute.xlu0 %2953
      %2955 = vrot.lane.b32.xlu0 %v2526, 16
      %v2956 = vpop.permute.xlu0 %2955
      %2957 = vrot.lane.b32.xlu0 %v2528, 16
      %v2958 = vpop.permute.xlu0 %2957
      %2959 = vrot.lane.b32.xlu0 %v2531, 16
      %v2960 = vpop.permute.xlu0 %2959
      %2961 = vrot.lane.b32.xlu0 %v2533, 16
      %v2962 = vpop.permute.xlu0 %2961
      %2963 = vrot.lane.b32.xlu0 %v2536, 16
      %v2964 = vpop.permute.xlu0 %2963
      %2965 = vrot.lane.b32.xlu0 %v2538, 16
      %v2966 = vpop.permute.xlu0 %2965
      %2967 = vrot.lane.b32.xlu0 %v2541, 16
      %v2968 = vpop.permute.xlu0 %2967
      %2969 = vrot.lane.b32.xlu0 %v2543, 16
      %v2970 = vpop.permute.xlu0 %2969
      %2971 = vrot.lane.b32.xlu0 %v2546, 16
      %v2972 = vpop.permute.xlu0 %2971
      %2973 = vrot.lane.b32.xlu0 %v2548, 16
      %v2974 = vpop.permute.xlu0 %2973
      %2975 = vrot.lane.b32.xlu0 %v2551, 16
      %v2976 = vpop.permute.xlu0 %2975
      %2977 = vrot.lane.b32.xlu0 %v2553, 16
      %v2978 = vpop.permute.xlu0 %2977
      %2979 = vrot.lane.b32.xlu0 %v2556, 16
      %v2980 = vpop.permute.xlu0 %2979
      %2981 = vrot.lane.b32.xlu0 %v2558, 16
      %v2982 = vpop.permute.xlu0 %2981
      %2983 = vrot.lane.b32.xlu0 %v2561, 16
      %v2984 = vpop.permute.xlu0 %2983
      %2985 = vrot.lane.b32.xlu0 %v2563, 16
      %v2986 = vpop.permute.xlu0 %2985
      %2987 = vrot.lane.b32.xlu0 %v2566, 16
      %v2988 = vpop.permute.xlu0 %2987
      %2989 = vrot.lane.b32.xlu0 %v2568, 16
      %v2990 = vpop.permute.xlu0 %2989
      %2991 = vrot.lane.b32.xlu0 %v2571, 16
      %v2992 = vpop.permute.xlu0 %2991
      %2993 = vrot.lane.b32.xlu0 %v2573, 16
      %v2994 = vpop.permute.xlu0 %2993
      %2995 = vrot.lane.b32.xlu0 %v2576, 16
      %v2996 = vpop.permute.xlu0 %2995
      %2997 = vrot.lane.b32.xlu0 %v2578, 16
      %v2998 = vpop.permute.xlu0 %2997
      %2999 = vrot.lane.b32.xlu0 %v2581, 16
      %v3000 = vpop.permute.xlu0 %2999
      %3001 = vrot.lane.b32.xlu0 %v2583, 16
      %v3002 = vpop.permute.xlu0 %3001
      %3003 = vrot.lane.b32.xlu0 %v2586, 16
      %v3004 = vpop.permute.xlu0 %3003
      %3005 = vrot.lane.b32.xlu0 %v2588, 16
      %v3006 = vpop.permute.xlu0 %3005
      %3007 = vrot.lane.b32.xlu0 %v2944, 16
      %v3008 = vpop.permute.xlu0 %3007
      %3009 = vrot.lane.b32.xlu0 %v2946, 16
      %v3010 = vpop.permute.xlu0 %3009
      %v3043 = vrot.slane %v2467, 2
      %v3044 = vrot.slane %v2404, 2
      %v3045 = vsel %vm680, %v3043, %v3044
      %v3046 = vrot.slane %v2483, 2
      %v3047 = vsel %vm680, %v3044, %v3046
      %3048 = vrot.lane.b32.xlu0 %v2681, 20
      %v3049 = vpop.permute.xlu0 %3048
      %3050 = vrot.lane.b32.xlu0 %v2683, 20
      %v3051 = vpop.permute.xlu0 %3050
      %3052 = vrot.lane.b32.xlu0 %v2686, 20
      %v3053 = vpop.permute.xlu0 %3052
      %3054 = vrot.lane.b32.xlu0 %v2688, 20
      %v3055 = vpop.permute.xlu0 %3054
      %3056 = vrot.lane.b32.xlu0 %v2691, 20
      %v3057 = vpop.permute.xlu0 %3056
      %3058 = vrot.lane.b32.xlu0 %v2693, 20
      %v3059 = vpop.permute.xlu0 %3058
      %3060 = vrot.lane.b32.xlu0 %v2696, 20
      %v3061 = vpop.permute.xlu0 %3060
      %3062 = vrot.lane.b32.xlu0 %v2698, 20
      %v3063 = vpop.permute.xlu0 %3062
      %3064 = vrot.lane.b32.xlu0 %v2701, 20
      %v3065 = vpop.permute.xlu0 %3064
      %3066 = vrot.lane.b32.xlu0 %v2703, 20
      %v3067 = vpop.permute.xlu0 %3066
      %3068 = vrot.lane.b32.xlu0 %v2706, 20
      %v3069 = vpop.permute.xlu0 %3068
      %3070 = vrot.lane.b32.xlu0 %v2708, 20
      %v3071 = vpop.permute.xlu0 %3070
      %3072 = vrot.lane.b32.xlu0 %v2711, 20
      %v3073 = vpop.permute.xlu0 %3072
      %3074 = vrot.lane.b32.xlu0 %v2713, 20
      %v3075 = vpop.permute.xlu0 %3074
      %3076 = vrot.lane.b32.xlu0 %v2716, 20
      %v3077 = vpop.permute.xlu0 %3076
      %3078 = vrot.lane.b32.xlu0 %v2718, 20
      %v3079 = vpop.permute.xlu0 %3078
      %3080 = vrot.lane.b32.xlu0 %v2721, 20
      %v3081 = vpop.permute.xlu0 %3080
      %3082 = vrot.lane.b32.xlu0 %v2723, 20
      %v3083 = vpop.permute.xlu0 %3082
      %3084 = vrot.lane.b32.xlu0 %v2726, 20
      %v3085 = vpop.permute.xlu0 %3084
      %3086 = vrot.lane.b32.xlu0 %v2728, 20
      %v3087 = vpop.permute.xlu0 %3086
      %3088 = vrot.lane.b32.xlu0 %v2731, 20
      %v3089 = vpop.permute.xlu0 %3088
      %3090 = vrot.lane.b32.xlu0 %v2733, 20
      %v3091 = vpop.permute.xlu0 %3090
      %3092 = vrot.lane.b32.xlu0 %v2736, 20
      %v3093 = vpop.permute.xlu0 %3092
      %3094 = vrot.lane.b32.xlu0 %v2738, 20
      %v3095 = vpop.permute.xlu0 %3094
      %3096 = vrot.lane.b32.xlu0 %v2741, 20
      %v3097 = vpop.permute.xlu0 %3096
      %3098 = vrot.lane.b32.xlu0 %v2743, 20
      %v3099 = vpop.permute.xlu0 %3098
      %3100 = vrot.lane.b32.xlu0 %v2746, 20
      %v3101 = vpop.permute.xlu0 %3100
      %3102 = vrot.lane.b32.xlu0 %v2748, 20
      %v3103 = vpop.permute.xlu0 %3102
      %3104 = vrot.lane.b32.xlu0 %v2751, 20
      %v3105 = vpop.permute.xlu0 %3104
      %3106 = vrot.lane.b32.xlu0 %v2753, 20
      %v3107 = vpop.permute.xlu0 %3106
      %3108 = vrot.lane.b32.xlu0 %v3045, 20
      %v3109 = vpop.permute.xlu0 %3108
      %3110 = vrot.lane.b32.xlu0 %v3047, 20
      %v3111 = vpop.permute.xlu0 %3110
      %3144 = vrot.lane.b32.xlu0 %v2453, 24
      %v3145 = vpop.permute.xlu0 %3144
      %3146 = vrot.lane.b32.xlu0 %v2362, 24
      %v3147 = vpop.permute.xlu0 %3146
      %3148 = vrot.lane.b32.xlu0 %v2454, 24
      %v3149 = vpop.permute.xlu0 %3148
      %3150 = vrot.lane.b32.xlu0 %v2365, 24
      %v3151 = vpop.permute.xlu0 %3150
      %3152 = vrot.lane.b32.xlu0 %v2455, 24
      %v3153 = vpop.permute.xlu0 %3152
      %3154 = vrot.lane.b32.xlu0 %v2368, 24
      %v3155 = vpop.permute.xlu0 %3154
      %3156 = vrot.lane.b32.xlu0 %v2456, 24
      %v3157 = vpop.permute.xlu0 %3156
      %3158 = vrot.lane.b32.xlu0 %v2371, 24
      %v3159 = vpop.permute.xlu0 %3158
      %3160 = vrot.lane.b32.xlu0 %v2457, 24
      %v3161 = vpop.permute.xlu0 %3160
      %3162 = vrot.lane.b32.xlu0 %v2374, 24
      %v3163 = vpop.permute.xlu0 %3162
      %3164 = vrot.lane.b32.xlu0 %v2458, 24
      %v3165 = vpop.permute.xlu0 %3164
      %3166 = vrot.lane.b32.xlu0 %v2377, 24
      %v3167 = vpop.permute.xlu0 %3166
      %3168 = vrot.lane.b32.xlu0 %v2459, 24
      %v3169 = vpop.permute.xlu0 %3168
      %3170 = vrot.lane.b32.xlu0 %v2380, 24
      %v3171 = vpop.permute.xlu0 %3170
      %3172 = vrot.lane.b32.xlu0 %v2460, 24
      %v3173 = vpop.permute.xlu0 %3172
      %3174 = vrot.lane.b32.xlu0 %v2383, 24
      %v3175 = vpop.permute.xlu0 %3174
      %3176 = vrot.lane.b32.xlu0 %v2461, 24
      %v3177 = vpop.permute.xlu0 %3176
      %3178 = vrot.lane.b32.xlu0 %v2386, 24
      %v3179 = vpop.permute.xlu0 %3178
      %3180 = vrot.lane.b32.xlu0 %v2462, 24
      %v3181 = vpop.permute.xlu0 %3180
      %3182 = vrot.lane.b32.xlu0 %v2389, 24
      %v3183 = vpop.permute.xlu0 %3182
      %3184 = vrot.lane.b32.xlu0 %v2463, 24
      %v3185 = vpop.permute.xlu0 %3184
      %3186 = vrot.lane.b32.xlu0 %v2392, 24
      %v3187 = vpop.permute.xlu0 %3186
      %3188 = vrot.lane.b32.xlu0 %v2464, 24
      %v3189 = vpop.permute.xlu0 %3188
      %3190 = vrot.lane.b32.xlu0 %v2395, 24
      %v3191 = vpop.permute.xlu0 %3190
      %3192 = vrot.lane.b32.xlu0 %v2465, 24
      %v3193 = vpop.permute.xlu0 %3192
      %3194 = vrot.lane.b32.xlu0 %v2398, 24
      %v3195 = vpop.permute.xlu0 %3194
      %3196 = vrot.lane.b32.xlu0 %v2466, 24
      %v3197 = vpop.permute.xlu0 %3196
      %3198 = vrot.lane.b32.xlu0 %v2401, 24
      %v3199 = vpop.permute.xlu0 %3198
      %3200 = vrot.lane.b32.xlu0 %v2467, 24
      %v3201 = vpop.permute.xlu0 %3200
      %3202 = vrot.lane.b32.xlu0 %v2404, 24
      %v3203 = vpop.permute.xlu0 %3202
      %3234 = vrot.lane.b32.xlu0 %v2521, 28
      %v3235 = vpop.permute.xlu0 %3234
      %3236 = vrot.lane.b32.xlu0 %v2523, 28
      %v3237 = vpop.permute.xlu0 %3236
      %3238 = vrot.lane.b32.xlu0 %v2526, 28
      %v3239 = vpop.permute.xlu0 %3238
      %3240 = vrot.lane.b32.xlu0 %v2528, 28
      %v3241 = vpop.permute.xlu0 %3240
      %3242 = vrot.lane.b32.xlu0 %v2531, 28
      %v3243 = vpop.permute.xlu0 %3242
      %3244 = vrot.lane.b32.xlu0 %v2533, 28
      %v3245 = vpop.permute.xlu0 %3244
      %3246 = vrot.lane.b32.xlu0 %v2536, 28
      %v3247 = vpop.permute.xlu0 %3246
      %3248 = vrot.lane.b32.xlu0 %v2538, 28
      %v3249 = vpop.permute.xlu0 %3248
      %3250 = vrot.lane.b32.xlu0 %v2541, 28
      %v3251 = vpop.permute.xlu0 %3250
      %3252 = vrot.lane.b32.xlu0 %v2543, 28
      %v3253 = vpop.permute.xlu0 %3252
      %3254 = vrot.lane.b32.xlu0 %v2546, 28
      %v3255 = vpop.permute.xlu0 %3254
      %3256 = vrot.lane.b32.xlu0 %v2548, 28
      %v3257 = vpop.permute.xlu0 %3256
      %3258 = vrot.lane.b32.xlu0 %v2551, 28
      %v3259 = vpop.permute.xlu0 %3258
      %3260 = vrot.lane.b32.xlu0 %v2553, 28
      %v3261 = vpop.permute.xlu0 %3260
      %3262 = vrot.lane.b32.xlu0 %v2556, 28
      %v3263 = vpop.permute.xlu0 %3262
      %3264 = vrot.lane.b32.xlu0 %v2558, 28
      %v3265 = vpop.permute.xlu0 %3264
      %3266 = vrot.lane.b32.xlu0 %v2561, 28
      %v3267 = vpop.permute.xlu0 %3266
      %3268 = vrot.lane.b32.xlu0 %v2563, 28
      %v3269 = vpop.permute.xlu0 %3268
      %3270 = vrot.lane.b32.xlu0 %v2566, 28
      %v3271 = vpop.permute.xlu0 %3270
      %3272 = vrot.lane.b32.xlu0 %v2568, 28
      %v3273 = vpop.permute.xlu0 %3272
      %3274 = vrot.lane.b32.xlu0 %v2571, 28
      %v3275 = vpop.permute.xlu0 %3274
      %3276 = vrot.lane.b32.xlu0 %v2573, 28
      %v3277 = vpop.permute.xlu0 %3276
      %3278 = vrot.lane.b32.xlu0 %v2576, 28
      %v3279 = vpop.permute.xlu0 %3278
      %3280 = vrot.lane.b32.xlu0 %v2578, 28
      %v3281 = vpop.permute.xlu0 %3280
      %3282 = vrot.lane.b32.xlu0 %v2581, 28
      %v3283 = vpop.permute.xlu0 %3282
      %3284 = vrot.lane.b32.xlu0 %v2583, 28
      %v3285 = vpop.permute.xlu0 %3284
      %3286 = vrot.lane.b32.xlu0 %v2586, 28
      %v3287 = vpop.permute.xlu0 %3286
      %3288 = vrot.lane.b32.xlu0 %v2588, 28
      %v3289 = vpop.permute.xlu0 %3288
      %3290 = vrot.lane.b32.xlu0 %v2944, 28
      %v3291 = vpop.permute.xlu0 %3290
      %3292 = vrot.lane.b32.xlu0 %v2946, 28
      %v3293 = vpop.permute.xlu0 %3292
      %3324 = vrot.lane.b32.xlu0 %v2686, 32
      %v3325 = vpop.permute.xlu0 %3324
      %3326 = vrot.lane.b32.xlu0 %v2688, 32
      %v3327 = vpop.permute.xlu0 %3326
      %3328 = vrot.lane.b32.xlu0 %v2691, 32
      %v3329 = vpop.permute.xlu0 %3328
      %3330 = vrot.lane.b32.xlu0 %v2693, 32
      %v3331 = vpop.permute.xlu0 %3330
      %3332 = vrot.lane.b32.xlu0 %v2696, 32
      %v3333 = vpop.permute.xlu0 %3332
      %3334 = vrot.lane.b32.xlu0 %v2698, 32
      %v3335 = vpop.permute.xlu0 %3334
      %3336 = vrot.lane.b32.xlu0 %v2701, 32
      %v3337 = vpop.permute.xlu0 %3336
      %3338 = vrot.lane.b32.xlu0 %v2703, 32
      %v3339 = vpop.permute.xlu0 %3338
      %3340 = vrot.lane.b32.xlu0 %v2706, 32
      %v3341 = vpop.permute.xlu0 %3340
      %3342 = vrot.lane.b32.xlu0 %v2708, 32
      %v3343 = vpop.permute.xlu0 %3342
      %3344 = vrot.lane.b32.xlu0 %v2711, 32
      %v3345 = vpop.permute.xlu0 %3344
      %3346 = vrot.lane.b32.xlu0 %v2713, 32
      %v3347 = vpop.permute.xlu0 %3346
      %3348 = vrot.lane.b32.xlu0 %v2716, 32
      %v3349 = vpop.permute.xlu0 %3348
      %3350 = vrot.lane.b32.xlu0 %v2718, 32
      %v3351 = vpop.permute.xlu0 %3350
      %3352 = vrot.lane.b32.xlu0 %v2721, 32
      %v3353 = vpop.permute.xlu0 %3352
      %3354 = vrot.lane.b32.xlu0 %v2723, 32
      %v3355 = vpop.permute.xlu0 %3354
      %3356 = vrot.lane.b32.xlu0 %v2726, 32
      %v3357 = vpop.permute.xlu0 %3356
      %3358 = vrot.lane.b32.xlu0 %v2728, 32
      %v3359 = vpop.permute.xlu0 %3358
      %3360 = vrot.lane.b32.xlu0 %v2731, 32
      %v3361 = vpop.permute.xlu0 %3360
      %3362 = vrot.lane.b32.xlu0 %v2733, 32
      %v3363 = vpop.permute.xlu0 %3362
      %3364 = vrot.lane.b32.xlu0 %v2736, 32
      %v3365 = vpop.permute.xlu0 %3364
      %3366 = vrot.lane.b32.xlu0 %v2738, 32
      %v3367 = vpop.permute.xlu0 %3366
      %3368 = vrot.lane.b32.xlu0 %v2741, 32
      %v3369 = vpop.permute.xlu0 %3368
      %3370 = vrot.lane.b32.xlu0 %v2743, 32
      %v3371 = vpop.permute.xlu0 %3370
      %3372 = vrot.lane.b32.xlu0 %v2746, 32
      %v3373 = vpop.permute.xlu0 %3372
      %3374 = vrot.lane.b32.xlu0 %v2748, 32
      %v3375 = vpop.permute.xlu0 %3374
      %3376 = vrot.lane.b32.xlu0 %v2751, 32
      %v3377 = vpop.permute.xlu0 %3376
      %3378 = vrot.lane.b32.xlu0 %v2753, 32
      %v3379 = vpop.permute.xlu0 %3378
      %3380 = vrot.lane.b32.xlu0 %v3045, 32
      %v3381 = vpop.permute.xlu0 %3380
      %3382 = vrot.lane.b32.xlu0 %v3047, 32
      %v3383 = vpop.permute.xlu0 %3382
      %v3414 = vsel %vm1430, %v2452, %v2590
      %v3415 = vsel %vm1430, %v2359, %v2592
      %v3416 = vsel %vm1430, %v2453, %v2594
      %v3417 = vsel %vm1430, %v2362, %v2596
      %v3418 = vsel %vm1430, %v2454, %v2598
      %v3419 = vsel %vm1430, %v2365, %v2600
      %v3420 = vsel %vm1430, %v2455, %v2602
      %v3421 = vsel %vm1430, %v2368, %v2604
      %v3422 = vsel %vm1430, %v2456, %v2606
      %v3423 = vsel %vm1430, %v2371, %v2608
      %v3424 = vsel %vm1430, %v2457, %v2610
      %v3425 = vsel %vm1430, %v2374, %v2612
      %v3426 = vsel %vm1430, %v2458, %v2614
      %v3427 = vsel %vm1430, %v2377, %v2616
      %v3428 = vsel %vm1430, %v2459, %v2618
      %v3429 = vsel %vm1430, %v2380, %v2620
      %v3430 = vsel %vm1430, %v2460, %v2622
      %v3431 = vsel %vm1430, %v2383, %v2624
      %v3432 = vsel %vm1430, %v2461, %v2626
      %v3433 = vsel %vm1430, %v2386, %v2628
      %v3434 = vsel %vm1430, %v2462, %v2630
      %v3435 = vsel %vm1430, %v2389, %v2632
      %v3436 = vsel %vm1430, %v2463, %v2634
      %v3437 = vsel %vm1430, %v2392, %v2636
      %v3438 = vsel %vm1430, %v2464, %v2638
      %v3439 = vsel %vm1430, %v2395, %v2640
      %v3440 = vsel %vm1430, %v2465, %v2642
      %v3441 = vsel %vm1430, %v2398, %v2644
      %v3442 = vsel %vm1430, %v2466, %v2646
      %v3443 = vsel %vm1430, %v2401, %v2648
      %v3444 = vsel %vm1462, %v3414, %v2755
      %v3445 = vsel %vm1462, %v3415, %v2757
      %v3446 = vsel %vm1462, %v3416, %v2759
      %v3447 = vsel %vm1462, %v3417, %v2761
      %v3448 = vsel %vm1462, %v3418, %v2763
      %v3449 = vsel %vm1462, %v3419, %v2765
      %v3450 = vsel %vm1462, %v3420, %v2767
      %v3451 = vsel %vm1462, %v3421, %v2769
      %v3452 = vsel %vm1462, %v3422, %v2771
      %v3453 = vsel %vm1462, %v3423, %v2773
      %v3454 = vsel %vm1462, %v3424, %v2775
      %v3455 = vsel %vm1462, %v3425, %v2777
      %v3456 = vsel %vm1462, %v3426, %v2779
      %v3457 = vsel %vm1462, %v3427, %v2781
      %v3458 = vsel %vm1462, %v3428, %v2783
      %v3459 = vsel %vm1462, %v3429, %v2785
      %v3460 = vsel %vm1462, %v3430, %v2787
      %v3461 = vsel %vm1462, %v3431, %v2789
      %v3462 = vsel %vm1462, %v3432, %v2791
      %v3463 = vsel %vm1462, %v3433, %v2793
      %v3464 = vsel %vm1462, %v3434, %v2795
      %v3465 = vsel %vm1462, %v3435, %v2797
      %v3466 = vsel %vm1462, %v3436, %v2799
      %v3467 = vsel %vm1462, %v3437, %v2801
      %v3468 = vsel %vm1462, %v3438, %v2803
      %v3469 = vsel %vm1462, %v3439, %v2805
      %v3470 = vsel %vm1462, %v3440, %v2807
      %v3471 = vsel %vm1462, %v3441, %v2809
      %v3472 = vsel %vm1462, %v3442, %v2811
      %v3473 = vsel %vm1462, %v3443, %v2813
      %v3474 = vsel %vm1494, %v1463, %v2846
      %v3475 = vsel %vm1494, %v1463, %v2848
      %v3476 = vsel %vm1494, %v3444, %v2850
      %v3477 = vsel %vm1494, %v3445, %v2852
      %v3478 = vsel %vm1494, %v3446, %v2854
      %v3479 = vsel %vm1494, %v3447, %v2856
      %v3480 = vsel %vm1494, %v3448, %v2858
      %v3481 = vsel %vm1494, %v3449, %v2860
      %v3482 = vsel %vm1494, %v3450, %v2862
      %v3483 = vsel %vm1494, %v3451, %v2864
      %v3484 = vsel %vm1494, %v3452, %v2866
      %v3485 = vsel %vm1494, %v3453, %v2868
      %v3486 = vsel %vm1494, %v3454, %v2870
      %v3487 = vsel %vm1494, %v3455, %v2872
      %v3488 = vsel %vm1494, %v3456, %v2874
      %v3489 = vsel %vm1494, %v3457, %v2876
      %v3490 = vsel %vm1494, %v3458, %v2878
      %v3491 = vsel %vm1494, %v3459, %v2880
      %v3492 = vsel %vm1494, %v3460, %v2882
      %v3493 = vsel %vm1494, %v3461, %v2884
      %v3494 = vsel %vm1494, %v3462, %v2886
      %v3495 = vsel %vm1494, %v3463, %v2888
      %v3496 = vsel %vm1494, %v3464, %v2890
      %v3497 = vsel %vm1494, %v3465, %v2892
      %v3498 = vsel %vm1494, %v3466, %v2894
      %v3499 = vsel %vm1494, %v3467, %v2896
      %v3500 = vsel %vm1494, %v3468, %v2898
      %v3501 = vsel %vm1494, %v3469, %v2900
      %v3502 = vsel %vm1494, %v3470, %v2902
      %v3503 = vsel %vm1494, %v3471, %v2904
      %v3504 = vsel %vm1494, %v3472, %v2906
      %v3505 = vsel %vm1494, %v3473, %v2908
      %v3506 = vsel %vm1527, %v3474, %v2948
      %v3507 = vsel %vm1527, %v3475, %v2950
      %v3508 = vsel %vm1527, %v3476, %v2952
      %v3509 = vsel %vm1527, %v3477, %v2954
      %v3510 = vsel %vm1527, %v3478, %v2956
      %v3511 = vsel %vm1527, %v3479, %v2958
      %v3512 = vsel %vm1527, %v3480, %v2960
      %v3513 = vsel %vm1527, %v3481, %v2962
      %v3514 = vsel %vm1527, %v3482, %v2964
      %v3515 = vsel %vm1527, %v3483, %v2966
      %v3516 = vsel %vm1527, %v3484, %v2968
      %v3517 = vsel %vm1527, %v3485, %v2970
      %v3518 = vsel %vm1527, %v3486, %v2972
      %v3519 = vsel %vm1527, %v3487, %v2974
      %v3520 = vsel %vm1527, %v3488, %v2976
      %v3521 = vsel %vm1527, %v3489, %v2978
      %v3522 = vsel %vm1527, %v3490, %v2980
      %v3523 = vsel %vm1527, %v3491, %v2982
      %v3524 = vsel %vm1527, %v3492, %v2984
      %v3525 = vsel %vm1527, %v3493, %v2986
      %v3526 = vsel %vm1527, %v3494, %v2988
      %v3527 = vsel %vm1527, %v3495, %v2990
      %v3528 = vsel %vm1527, %v3496, %v2992
      %v3529 = vsel %vm1527, %v3497, %v2994
      %v3530 = vsel %vm1527, %v3498, %v2996
      %v3531 = vsel %vm1527, %v3499, %v2998
      %v3532 = vsel %vm1527, %v3500, %v3000
      %v3533 = vsel %vm1527, %v3501, %v3002
      %v3534 = vsel %vm1527, %v3502, %v3004
      %v3535 = vsel %vm1527, %v3503, %v3006
      %v3536 = vsel %vm1527, %v3504, %v3008
      %v3537 = vsel %vm1527, %v3505, %v3010
      %v3538 = vsel %vm1560, %v3506, %v3049
      %v3539 = vsel %vm1560, %v3507, %v3051
      %v3540 = vsel %vm1560, %v3508, %v3053
      %v3541 = vsel %vm1560, %v3509, %v3055
      %v3542 = vsel %vm1560, %v3510, %v3057
      %v3543 = vsel %vm1560, %v3511, %v3059
      %v3544 = vsel %vm1560, %v3512, %v3061
      %v3545 = vsel %vm1560, %v3513, %v3063
      %v3546 = vsel %vm1560, %v3514, %v3065
      %v3547 = vsel %vm1560, %v3515, %v3067
      %v3548 = vsel %vm1560, %v3516, %v3069
      %v3549 = vsel %vm1560, %v3517, %v3071
      %v3550 = vsel %vm1560, %v3518, %v3073
      %v3551 = vsel %vm1560, %v3519, %v3075
      %v3552 = vsel %vm1560, %v3520, %v3077
      %v3553 = vsel %vm1560, %v3521, %v3079
      %v3554 = vsel %vm1560, %v3522, %v3081
      %v3555 = vsel %vm1560, %v3523, %v3083
      %v3556 = vsel %vm1560, %v3524, %v3085
      %v3557 = vsel %vm1560, %v3525, %v3087
      %v3558 = vsel %vm1560, %v3526, %v3089
      %v3559 = vsel %vm1560, %v3527, %v3091
      %v3560 = vsel %vm1560, %v3528, %v3093
      %v3561 = vsel %vm1560, %v3529, %v3095
      %v3562 = vsel %vm1560, %v3530, %v3097
      %v3563 = vsel %vm1560, %v3531, %v3099
      %v3564 = vsel %vm1560, %v3532, %v3101
      %v3565 = vsel %vm1560, %v3533, %v3103
      %v3566 = vsel %vm1560, %v3534, %v3105
      %v3567 = vsel %vm1560, %v3535, %v3107
      %v3568 = vsel %vm1560, %v3536, %v3109
      %v3569 = vsel %vm1560, %v3537, %v3111
      %v3570 = vsel %vm1593, %v3538, %v3145
      %v3571 = vsel %vm1593, %v3539, %v3147
      %v3572 = vsel %vm1593, %v3540, %v3149
      %v3573 = vsel %vm1593, %v3541, %v3151
      %v3574 = vsel %vm1593, %v3542, %v3153
      %v3575 = vsel %vm1593, %v3543, %v3155
      %v3576 = vsel %vm1593, %v3544, %v3157
      %v3577 = vsel %vm1593, %v3545, %v3159
      %v3578 = vsel %vm1593, %v3546, %v3161
      %v3579 = vsel %vm1593, %v3547, %v3163
      %v3580 = vsel %vm1593, %v3548, %v3165
      %v3581 = vsel %vm1593, %v3549, %v3167
      %v3582 = vsel %vm1593, %v3550, %v3169
      %v3583 = vsel %vm1593, %v3551, %v3171
      %v3584 = vsel %vm1593, %v3552, %v3173
      %v3585 = vsel %vm1593, %v3553, %v3175
      %v3586 = vsel %vm1593, %v3554, %v3177
      %v3587 = vsel %vm1593, %v3555, %v3179
      %v3588 = vsel %vm1593, %v3556, %v3181
      %v3589 = vsel %vm1593, %v3557, %v3183
      %v3590 = vsel %vm1593, %v3558, %v3185
      %v3591 = vsel %vm1593, %v3559, %v3187
      %v3592 = vsel %vm1593, %v3560, %v3189
      %v3593 = vsel %vm1593, %v3561, %v3191
      %v3594 = vsel %vm1593, %v3562, %v3193
      %v3595 = vsel %vm1593, %v3563, %v3195
      %v3596 = vsel %vm1593, %v3564, %v3197
      %v3597 = vsel %vm1593, %v3565, %v3199
      %v3598 = vsel %vm1593, %v3566, %v3201
      %v3599 = vsel %vm1593, %v3567, %v3203
      %v3600 = vsel %vm1593, %v3568, %v1212
      %v3601 = vsel %vm1593, %v3569, %v1212
      %v3602 = vsel %vm1626, %v3570, %v3235
      %v3603 = vsel %vm1626, %v3571, %v3237
      %v3604 = vsel %vm1626, %v3572, %v3239
      %v3605 = vsel %vm1626, %v3573, %v3241
      %v3606 = vsel %vm1626, %v3574, %v3243
      %v3607 = vsel %vm1626, %v3575, %v3245
      %v3608 = vsel %vm1626, %v3576, %v3247
      %v3609 = vsel %vm1626, %v3577, %v3249
      %v3610 = vsel %vm1626, %v3578, %v3251
      %v3611 = vsel %vm1626, %v3579, %v3253
      %v3612 = vsel %vm1626, %v3580, %v3255
      %v3613 = vsel %vm1626, %v3581, %v3257
      %v3614 = vsel %vm1626, %v3582, %v3259
      %v3615 = vsel %vm1626, %v3583, %v3261
      %v3616 = vsel %vm1626, %v3584, %v3263
      %v3617 = vsel %vm1626, %v3585, %v3265
      %v3618 = vsel %vm1626, %v3586, %v3267
      %v3619 = vsel %vm1626, %v3587, %v3269
      %v3620 = vsel %vm1626, %v3588, %v3271
      %v3621 = vsel %vm1626, %v3589, %v3273
      %v3622 = vsel %vm1626, %v3590, %v3275
      %v3623 = vsel %vm1626, %v3591, %v3277
      %v3624 = vsel %vm1626, %v3592, %v3279
      %v3625 = vsel %vm1626, %v3593, %v3281
      %v3626 = vsel %vm1626, %v3594, %v3283
      %v3627 = vsel %vm1626, %v3595, %v3285
      %v3628 = vsel %vm1626, %v3596, %v3287
      %v3629 = vsel %vm1626, %v3597, %v3289
      %v3630 = vsel %vm1626, %v3598, %v3291
      %v3631 = vsel %vm1626, %v3599, %v3293
      %v3632 = vsel %vm1626, %v3600, %v1305
      %v3633 = vsel %vm1626, %v3601, %v1305
      %v3634 = vsel %vm1659, %v3602, %v3325
      %v3635 = vsel %vm1659, %v3603, %v3327
      %v3636 = vsel %vm1659, %v3604, %v3329
      %v3637 = vsel %vm1659, %v3605, %v3331
      %v3638 = vsel %vm1659, %v3606, %v3333
      %v3639 = vsel %vm1659, %v3607, %v3335
      %v3640 = vsel %vm1659, %v3608, %v3337
      %v3641 = vsel %vm1659, %v3609, %v3339
      %v3642 = vsel %vm1659, %v3610, %v3341
      %v3643 = vsel %vm1659, %v3611, %v3343
      %v3644 = vsel %vm1659, %v3612, %v3345
      %v3645 = vsel %vm1659, %v3613, %v3347
      %v3646 = vsel %vm1659, %v3614, %v3349
      %v3647 = vsel %vm1659, %v3615, %v3351
      %v3648 = vsel %vm1659, %v3616, %v3353
      %v3649 = vsel %vm1659, %v3617, %v3355
      %v3650 = vsel %vm1659, %v3618, %v3357
      %v3651 = vsel %vm1659, %v3619, %v3359
      %v3652 = vsel %vm1659, %v3620, %v3361
      %v3653 = vsel %vm1659, %v3621, %v3363
      %v3654 = vsel %vm1659, %v3622, %v3365
      %v3655 = vsel %vm1659, %v3623, %v3367
      %v3656 = vsel %vm1659, %v3624, %v3369
      %v3657 = vsel %vm1659, %v3625, %v3371
      %v3658 = vsel %vm1659, %v3626, %v3373
      %v3659 = vsel %vm1659, %v3627, %v3375
      %v3660 = vsel %vm1659, %v3628, %v3377
      %v3661 = vsel %vm1659, %v3629, %v3379
      %v3662 = vsel %vm1659, %v3630, %v3381
      %v3663 = vsel %vm1659, %v3631, %v3383
      %v3664 = vsel %vm1659, %v3632, %v1398
      %v3665 = vsel %vm1659, %v3633, %v1398
      %v3667 = vsel %vm1692, %v3634, 0
      %v3670 = vsel %vm1692, %v3635, 0
      %v3673 = vsel %vm1692, %v3636, 0
      %v3676 = vsel %vm1692, %v3637, 0
      %v3679 = vsel %vm1692, %v3638, 0
      %v3682 = vsel %vm1692, %v3639, 0
      %v3685 = vsel %vm1692, %v3640, 0
      %v3688 = vsel %vm1692, %v3641, 0
      %v3691 = vsel %vm1692, %v3642, 0
      %v3694 = vsel %vm1692, %v3643, 0
      %v3697 = vsel %vm1692, %v3644, 0
      %v3700 = vsel %vm1692, %v3645, 0
      %v3703 = vsel %vm1692, %v3646, 0
      %v3706 = vsel %vm1692, %v3647, 0
      %v3709 = vsel %vm1692, %v3648, 0
      %v3712 = vsel %vm1692, %v3649, 0
      %v3715 = vsel %vm1692, %v3650, 0
      %v3718 = vsel %vm1692, %v3651, 0
      %v3721 = vsel %vm1692, %v3652, 0
      %v3724 = vsel %vm1692, %v3653, 0
      %v3727 = vsel %vm1692, %v3654, 0
      %v3730 = vsel %vm1692, %v3655, 0
      %v3733 = vsel %vm1692, %v3656, 0
      %v3736 = vsel %vm1692, %v3657, 0
      %v3739 = vsel %vm1692, %v3658, 0
      %v3742 = vsel %vm1692, %v3659, 0
      %v3745 = vsel %vm1692, %v3660, 0
      %v3748 = vsel %vm1692, %v3661, 0
      %v3751 = vsel %vm1692, %v3662, 0
      %v3754 = vsel %vm1692, %v3663, 0
      %v3757 = vsel %vm1692, %v3664, 0
      %v3760 = vsel %vm1692, %v3665, 0
      %v3763 = vsel %vm1789, %v2322, 0
      %3765 = vmatprep.subr.mxu0 0.0
      %3766 = vmatpush1.msra.mxu0 0.0
      %3767 = vmatprep.subr.mxu0 0.0
      %3768 = vmatpush1.msra.mxu0 0.0
      %3769 = vmatprep.subr.mxu0 0.0
      %3770 = vmatpush1.msra.mxu0 0.0
      %3771 = vmatprep.subr.mxu0 0.0
      %3772 = vmatpush1.msra.mxu0 0.0
      %3773 = vmatprep.subr.mxu0 0.0
      %3774 = vmatpush1.msra.mxu0 0.0
      %3775 = vmatprep.subr.mxu0 0.0
      %3776 = vmatpush1.msra.mxu0 0.0
      %3777 = vmatprep.subr.mxu0 0.0
      %3778 = vmatpush1.msra.mxu0 0.0
      %3779 = vmatprep.subr.mxu0 0.0
      %3780 = vmatpush1.msra.mxu0 0.0
      %3781 = vmatprep.subr.mxu0 0.0
      %3782 = vmatpush1.msra.mxu0 0.0
      %3783 = vmatprep.subr.mxu0 0.0
      %3784 = vmatpush1.msra.mxu0 0.0
      %3785 = vmatprep.subr.mxu0 0.0
      %3786 = vmatpush1.msra.mxu0 0.0
      %3787 = vmatprep.subr.mxu0 0.0
      %3788 = vmatpush1.msra.mxu0 %v3763
      %3789 = vmatprep.subr.mxu0 0.0
      %3790 = vmatpush1.msra.mxu0 %v2321
      %3791 = vmatprep.subr.mxu0 0.0
      %3792 = vmatpush1.msra.mxu0 %v2320
      %3793 = vmatprep.subr.mxu0 0.0
      %3794 = vmatpush1.msra.mxu0 %v2319
      %3795 = vmatprep.subr.mxu0 0.0
      %3796 = vmatpush1.msra.mxu0 %v2318
      %3797 = vmatprep.subr.mxu0 0.0
      %3798 = vmatpush2.msra.mxu0 0.0
      %3799 = vmatprep.subr.mxu0 0.0
      %3800 = vmatpush2.msra.mxu0 0.0
      %3801 = vmatprep.subr.mxu0 0.0
      %3802 = vmatpush2.msra.mxu0 0.0
      %3803 = vmatprep.subr.mxu0 0.0
      %3804 = vmatpush2.msra.mxu0 0.0
      %3805 = vmatprep.subr.mxu0 0.0
      %3806 = vmatpush2.msra.mxu0 0.0
      %3807 = vmatprep.subr.mxu0 0.0
      %3808 = vmatpush2.msra.mxu0 0.0
      %3809 = vmatprep.subr.mxu0 0.0
      %3810 = vmatpush2.msra.mxu0 0.0
      %3811 = vmatprep.subr.mxu0 0.0
      %3812 = vmatpush2.msra.mxu0 0.0
      %3813 = vmatprep.subr.mxu0 0.0
      %3814 = vmatpush2.msra.mxu0 0.0
      %3815 = vmatprep.subr.mxu0 0.0
      %3816 = vmatpush2.msra.mxu0 0.0
      %3817 = vmatprep.subr.mxu0 0.0
      %3818 = vmatpush2.msra.mxu0 0.0
      %3819 = vmatprep.subr.mxu0 0.0
      %3820 = vmatpush2.msra.mxu0 0.0
      %3821 = vmatprep.subr.mxu0 0.0
      %3822 = vmatpush2.msra.mxu0 0.0
      %3823 = vmatprep.subr.mxu0 0.0
      %3824 = vmatpush2.msra.mxu0 0.0
      %3825 = vmatprep.subr.mxu0 0.0
      %3826 = vmatpush2.msra.mxu0 0.0
      %3827 = vmatprep.subr.mxu0 0.0
      %3828 = vmatpush2.msra.mxu0 0.0
      %3829 = vmatprep.mubr.f32.mxu0 0.0
      %3830 = vmatmul.mubr.f32.gmra.mxu0 %v3667
      %v3831 = vpop.f32.mrf.mxu0
      %v3832 = vadd.f32 0.0, %v3831
      %v3833 = vpop.f32.mrf.mxu0
      %3834 = vmatprep.mubr.f32.mxu0 0.0
      %3835 = vmatmul.mubr.f32.gmra.mxu0 %v3670
      %v3836 = vpop.f32.mrf.mxu0
      %v3837 = vadd.f32 0.0, %v3836
      %v3838 = vpop.f32.mrf.mxu0
      %3839 = vmatprep.mubr.f32.mxu0 0.0
      %3840 = vmatmul.mubr.f32.gmra.mxu0 %v3673
      %v3841 = vpop.f32.mrf.mxu0
      %v3842 = vadd.f32 0.0, %v3841
      %v3843 = vpop.f32.mrf.mxu0
      %3844 = vmatprep.mubr.f32.mxu0 0.0
      %3845 = vmatmul.mubr.f32.gmra.mxu0 %v3676
      %v3846 = vpop.f32.mrf.mxu0
      %v3847 = vadd.f32 0.0, %v3846
      %v3848 = vpop.f32.mrf.mxu0
      %3849 = vmatprep.mubr.f32.mxu0 0.0
      %3850 = vmatmul.mubr.f32.gmra.mxu0 %v3679
      %v3851 = vpop.f32.mrf.mxu0
      %v3852 = vadd.f32 0.0, %v3851
      %v3853 = vpop.f32.mrf.mxu0
      %3854 = vmatprep.mubr.f32.mxu0 0.0
      %3855 = vmatmul.mubr.f32.gmra.mxu0 %v3682
      %v3856 = vpop.f32.mrf.mxu0
      %v3857 = vadd.f32 0.0, %v3856
      %v3858 = vpop.f32.mrf.mxu0
      %3859 = vmatprep.mubr.f32.mxu0 0.0
      %3860 = vmatmul.mubr.f32.gmra.mxu0 %v3685
      %v3861 = vpop.f32.mrf.mxu0
      %v3862 = vadd.f32 0.0, %v3861
      %v3863 = vpop.f32.mrf.mxu0
      %3864 = vmatprep.mubr.f32.mxu0 0.0
      %3865 = vmatmul.mubr.f32.gmra.mxu0 %v3688
      %v3866 = vpop.f32.mrf.mxu0
      %v3867 = vadd.f32 0.0, %v3866
      %v3868 = vpop.f32.mrf.mxu0
      %3869 = vmatprep.mubr.f32.mxu0 0.0
      %3870 = vmatmul.mubr.f32.gmra.mxu0 %v3691
      %v3871 = vpop.f32.mrf.mxu0
      %v3872 = vadd.f32 0.0, %v3871
      %v3873 = vpop.f32.mrf.mxu0
      %3874 = vmatprep.mubr.f32.mxu0 0.0
      %3875 = vmatmul.mubr.f32.gmra.mxu0 %v3694
      %v3876 = vpop.f32.mrf.mxu0
      %v3877 = vadd.f32 0.0, %v3876
      %v3878 = vpop.f32.mrf.mxu0
      %3879 = vmatprep.mubr.f32.mxu0 0.0
      %3880 = vmatmul.mubr.f32.gmra.mxu0 %v3697
      %v3881 = vpop.f32.mrf.mxu0
      %v3882 = vadd.f32 0.0, %v3881
      %v3883 = vpop.f32.mrf.mxu0
      %3884 = vmatprep.mubr.f32.mxu0 0.0
      %3885 = vmatmul.mubr.f32.gmra.mxu0 %v3700
      %v3886 = vpop.f32.mrf.mxu0
      %v3887 = vadd.f32 0.0, %v3886
      %v3888 = vpop.f32.mrf.mxu0
      %3889 = vmatprep.mubr.f32.mxu0 0.0
      %3890 = vmatmul.mubr.f32.gmra.mxu0 %v3703
      %v3891 = vpop.f32.mrf.mxu0
      %v3892 = vadd.f32 0.0, %v3891
      %v3893 = vpop.f32.mrf.mxu0
      %3894 = vmatprep.mubr.f32.mxu0 0.0
      %3895 = vmatmul.mubr.f32.gmra.mxu0 %v3706
      %v3896 = vpop.f32.mrf.mxu0
      %v3897 = vadd.f32 0.0, %v3896
      %v3898 = vpop.f32.mrf.mxu0
      %3899 = vmatprep.mubr.f32.mxu0 0.0
      %3900 = vmatmul.mubr.f32.gmra.mxu0 %v3709
      %v3901 = vpop.f32.mrf.mxu0
      %v3902 = vadd.f32 0.0, %v3901
      %v3903 = vpop.f32.mrf.mxu0
      %3904 = vmatprep.mubr.f32.mxu0 0.0
      %3905 = vmatmul.mubr.f32.gmra.mxu0 %v3712
      %v3906 = vpop.f32.mrf.mxu0
      %v3907 = vadd.f32 0.0, %v3906
      %v3908 = vpop.f32.mrf.mxu0
      %3909 = vmatprep.mubr.f32.mxu0 0.0
      %3910 = vmatmul.mubr.f32.gmra.mxu0 %v3715
      %v3911 = vpop.f32.mrf.mxu0
      %v3912 = vadd.f32 0.0, %v3911
      %v3913 = vpop.f32.mrf.mxu0
      %3914 = vmatprep.mubr.f32.mxu0 0.0
      %3915 = vmatmul.mubr.f32.gmra.mxu0 %v3718
      %v3916 = vpop.f32.mrf.mxu0
      %v3917 = vadd.f32 0.0, %v3916
      %v3918 = vpop.f32.mrf.mxu0
      %3919 = vmatprep.mubr.f32.mxu0 0.0
      %3920 = vmatmul.mubr.f32.gmra.mxu0 %v3721
      %v3921 = vpop.f32.mrf.mxu0
      %v3922 = vadd.f32 0.0, %v3921
      %v3923 = vpop.f32.mrf.mxu0
      %3924 = vmatprep.mubr.f32.mxu0 0.0
      %3925 = vmatmul.mubr.f32.gmra.mxu0 %v3724
      %v3926 = vpop.f32.mrf.mxu0
      %v3927 = vadd.f32 0.0, %v3926
      %v3928 = vpop.f32.mrf.mxu0
      %3929 = vmatprep.mubr.f32.mxu0 0.0
      %3930 = vmatmul.mubr.f32.gmra.mxu0 %v3727
      %v3931 = vpop.f32.mrf.mxu0
      %v3932 = vadd.f32 0.0, %v3931
      %v3933 = vpop.f32.mrf.mxu0
      %3934 = vmatprep.mubr.f32.mxu0 0.0
      %3935 = vmatmul.mubr.f32.gmra.mxu0 %v3730
      %v3936 = vpop.f32.mrf.mxu0
      %v3937 = vadd.f32 0.0, %v3936
      %v3938 = vpop.f32.mrf.mxu0
      %3939 = vmatprep.mubr.f32.mxu0 0.0
      %3940 = vmatmul.mubr.f32.gmra.mxu0 %v3733
      %v3941 = vpop.f32.mrf.mxu0
      %v3942 = vadd.f32 0.0, %v3941
      %v3943 = vpop.f32.mrf.mxu0
      %3944 = vmatprep.mubr.f32.mxu0 0.0
      %3945 = vmatmul.mubr.f32.gmra.mxu0 %v3736
      %v3946 = vpop.f32.mrf.mxu0
      %v3947 = vadd.f32 0.0, %v3946
      %v3948 = vpop.f32.mrf.mxu0
      %3949 = vmatprep.mubr.f32.mxu0 0.0
      %3950 = vmatmul.mubr.f32.gmra.mxu0 %v3739
      %v3951 = vpop.f32.mrf.mxu0
      %v3952 = vadd.f32 0.0, %v3951
      %v3953 = vpop.f32.mrf.mxu0
      %3954 = vmatprep.mubr.f32.mxu0 0.0
      %3955 = vmatmul.mubr.f32.gmra.mxu0 %v3742
      %v3956 = vpop.f32.mrf.mxu0
      %v3957 = vadd.f32 0.0, %v3956
      %v3958 = vpop.f32.mrf.mxu0
      %3959 = vmatprep.mubr.f32.mxu0 0.0
      %3960 = vmatmul.mubr.f32.gmra.mxu0 %v3745
      %v3961 = vpop.f32.mrf.mxu0
      %v3962 = vadd.f32 0.0, %v3961
      %v3963 = vpop.f32.mrf.mxu0
      %3964 = vmatprep.mubr.f32.mxu0 0.0
      %3965 = vmatmul.mubr.f32.gmra.mxu0 %v3748
      %v3966 = vpop.f32.mrf.mxu0
      %v3967 = vadd.f32 0.0, %v3966
      %v3968 = vpop.f32.mrf.mxu0
      %3969 = vmatprep.mubr.f32.mxu0 0.0
      %3970 = vmatmul.mubr.f32.gmra.mxu0 %v3751
      %v3971 = vpop.f32.mrf.mxu0
      %v3972 = vadd.f32 0.0, %v3971
      %v3973 = vpop.f32.mrf.mxu0
      %3974 = vmatprep.mubr.f32.mxu0 0.0
      %3975 = vmatmul.mubr.f32.gmra.mxu0 %v3754
      %v3976 = vpop.f32.mrf.mxu0
      %v3977 = vadd.f32 0.0, %v3976
      %v3978 = vpop.f32.mrf.mxu0
      %3979 = vmatprep.mubr.f32.mxu0 0.0
      %3980 = vmatmul.mubr.f32.gmra.mxu0 %v3757
      %v3981 = vpop.f32.mrf.mxu0
      %v3982 = vadd.f32 0.0, %v3981
      %v3983 = vpop.f32.mrf.mxu0
      %3984 = vmatprep.mubr.f32.mxu0 0.0
      %3985 = vmatmul.mubr.f32.gmra.mxu0 %v3760
      %v3986 = vpop.f32.mrf.mxu0
      %v3987 = vadd.f32 0.0, %v3986
      %v3988 = vpop.f32.mrf.mxu0
      %3989 = vdwg.mxu0
      %v3991 = vlaneseq
      %v3992 = vshrl.u32 %v3991, 7
      %v3993 = vsub.s32 0, %v3992
      %v3994 = vrot.slane %v2323, %v3993
      %v3996 = vmul.f32 %v3832, %v3994
      %v3997 = vmul.f32 %v3837, %v3994
      %v3998 = vmul.f32 %v3842, %v3994
      %v3999 = vmul.f32 %v3847, %v3994
      %v4000 = vmul.f32 %v3852, %v3994
      %v4001 = vmul.f32 %v3857, %v3994
      %v4002 = vmul.f32 %v3862, %v3994
      %v4003 = vmul.f32 %v3867, %v3994
      %v4004 = vmul.f32 %v3872, %v3994
      %v4005 = vmul.f32 %v3877, %v3994
      %v4006 = vmul.f32 %v3882, %v3994
      %v4007 = vmul.f32 %v3887, %v3994
      %v4008 = vmul.f32 %v3892, %v3994
      %v4009 = vmul.f32 %v3897, %v3994
      %v4010 = vmul.f32 %v3902, %v3994
      %v4011 = vmul.f32 %v3907, %v3994
      %v4012 = vmul.f32 %v3912, %v3994
      %v4013 = vmul.f32 %v3917, %v3994
      %v4014 = vmul.f32 %v3922, %v3994
      %v4015 = vmul.f32 %v3927, %v3994
      %v4016 = vmul.f32 %v3932, %v3994
      %v4017 = vmul.f32 %v3937, %v3994
      %v4018 = vmul.f32 %v3942, %v3994
      %v4019 = vmul.f32 %v3947, %v3994
      %v4020 = vmul.f32 %v3952, %v3994
      %v4021 = vmul.f32 %v3957, %v3994
      %v4022 = vmul.f32 %v3962, %v3994
      %v4023 = vmul.f32 %v3967, %v3994
      %v4024 = vmul.f32 %v3972, %v3994
      %v4025 = vmul.f32 %v3977, %v3994
      %v4026 = vmul.f32 %v3982, %v3994
      %v4027 = vmul.f32 %v3987, %v3994
      %v4029 = vlaneseq
      %v4030 = vshrl.u32 %v4029, 7
      %v4031 = vsub.s32 0, %v4030
      %v4032 = vrot.slane %v2324, %v4031
      %v4034 = vadd.f32 %v3996, %v4032
      %v4035 = vadd.f32 %v3997, %v4032
      %v4036 = vadd.f32 %v3998, %v4032
      %v4037 = vadd.f32 %v3999, %v4032
      %v4038 = vadd.f32 %v4000, %v4032
      %v4039 = vadd.f32 %v4001, %v4032
      %v4040 = vadd.f32 %v4002, %v4032
      %v4041 = vadd.f32 %v4003, %v4032
      %v4042 = vadd.f32 %v4004, %v4032
      %v4043 = vadd.f32 %v4005, %v4032
      %v4044 = vadd.f32 %v4006, %v4032
      %v4045 = vadd.f32 %v4007, %v4032
      %v4046 = vadd.f32 %v4008, %v4032
      %v4047 = vadd.f32 %v4009, %v4032
      %v4048 = vadd.f32 %v4010, %v4032
      %v4049 = vadd.f32 %v4011, %v4032
      %v4050 = vadd.f32 %v4012, %v4032
      %v4051 = vadd.f32 %v4013, %v4032
      %v4052 = vadd.f32 %v4014, %v4032
      %v4053 = vadd.f32 %v4015, %v4032
      %v4054 = vadd.f32 %v4016, %v4032
      %v4055 = vadd.f32 %v4017, %v4032
      %v4056 = vadd.f32 %v4018, %v4032
      %v4057 = vadd.f32 %v4019, %v4032
      %v4058 = vadd.f32 %v4020, %v4032
      %v4059 = vadd.f32 %v4021, %v4032
      %v4060 = vadd.f32 %v4022, %v4032
      %v4061 = vadd.f32 %v4023, %v4032
      %v4062 = vadd.f32 %v4024, %v4032
      %v4063 = vadd.f32 %v4025, %v4032
      %v4064 = vadd.f32 %v4026, %v4032
      %v4065 = vadd.f32 %v4027, %v4032
      %v4066 = vxor.u32 %v4034, 2147483648
      %v4067 = vxor.u32 %v4035, 2147483648
      %v4068 = vxor.u32 %v4036, 2147483648
      %v4069 = vxor.u32 %v4037, 2147483648
      %v4070 = vxor.u32 %v4038, 2147483648
      %v4071 = vxor.u32 %v4039, 2147483648
      %v4072 = vxor.u32 %v4040, 2147483648
      %v4073 = vxor.u32 %v4041, 2147483648
      %v4074 = vxor.u32 %v4042, 2147483648
      %v4075 = vxor.u32 %v4043, 2147483648
      %v4076 = vxor.u32 %v4044, 2147483648
      %v4077 = vxor.u32 %v4045, 2147483648
      %v4078 = vxor.u32 %v4046, 2147483648
      %v4079 = vxor.u32 %v4047, 2147483648
      %v4080 = vxor.u32 %v4048, 2147483648
      %v4081 = vxor.u32 %v4049, 2147483648
      %v4082 = vxor.u32 %v4050, 2147483648
      %v4083 = vxor.u32 %v4051, 2147483648
      %v4084 = vxor.u32 %v4052, 2147483648
      %v4085 = vxor.u32 %v4053, 2147483648
      %v4086 = vxor.u32 %v4054, 2147483648
      %v4087 = vxor.u32 %v4055, 2147483648
      %v4088 = vxor.u32 %v4056, 2147483648
      %v4089 = vxor.u32 %v4057, 2147483648
      %v4090 = vxor.u32 %v4058, 2147483648
      %v4091 = vxor.u32 %v4059, 2147483648
      %v4092 = vxor.u32 %v4060, 2147483648
      %v4093 = vxor.u32 %v4061, 2147483648
      %v4094 = vxor.u32 %v4062, 2147483648
      %v4095 = vxor.u32 %v4063, 2147483648
      %v4096 = vxor.u32 %v4064, 2147483648
      %v4097 = vxor.u32 %v4065, 2147483648
      %v4098 = vmul.f32 %v4066, 1.442695
      %v4099 = vpow.pop %v4098
      %v4100 = vmul.f32 %v4067, 1.442695
      %v4101 = vpow.pop %v4100
      %v4102 = vmul.f32 %v4068, 1.442695
      %v4103 = vpow.pop %v4102
      %v4104 = vmul.f32 %v4069, 1.442695
      %v4105 = vpow.pop %v4104
      %v4106 = vmul.f32 %v4070, 1.442695
      %v4107 = vpow.pop %v4106
      %v4108 = vmul.f32 %v4071, 1.442695
      %v4109 = vpow.pop %v4108
      %v4110 = vmul.f32 %v4072, 1.442695
      %v4111 = vpow.pop %v4110
      %v4112 = vmul.f32 %v4073, 1.442695
      %v4113 = vpow.pop %v4112
      %v4114 = vmul.f32 %v4074, 1.442695
      %v4115 = vpow.pop %v4114
      %v4116 = vmul.f32 %v4075, 1.442695
      %v4117 = vpow.pop %v4116
      %v4118 = vmul.f32 %v4076, 1.442695
      %v4119 = vpow.pop %v4118
      %v4120 = vmul.f32 %v4077, 1.442695
      %v4121 = vpow.pop %v4120
      %v4122 = vmul.f32 %v4078, 1.442695
      %v4123 = vpow.pop %v4122
      %v4124 = vmul.f32 %v4079, 1.442695
      %v4125 = vpow.pop %v4124
      %v4126 = vmul.f32 %v4080, 1.442695
      %v4127 = vpow.pop %v4126
      %v4128 = vmul.f32 %v4081, 1.442695
      %v4129 = vpow.pop %v4128
      %v4130 = vmul.f32 %v4082, 1.442695
      %v4131 = vpow.pop %v4130
      %v4132 = vmul.f32 %v4083, 1.442695
      %v4133 = vpow.pop %v4132
      %v4134 = vmul.f32 %v4084, 1.442695
      %v4135 = vpow.pop %v4134
      %v4136 = vmul.f32 %v4085, 1.442695
      %v4137 = vpow.pop %v4136
      %v4138 = vmul.f32 %v4086, 1.442695
      %v4139 = vpow.pop %v4138
      %v4140 = vmul.f32 %v4087, 1.442695
      %v4141 = vpow.pop %v4140
      %v4142 = vmul.f32 %v4088, 1.442695
      %v4143 = vpow.pop %v4142
      %v4144 = vmul.f32 %v4089, 1.442695
      %v4145 = vpow.pop %v4144
      %v4146 = vmul.f32 %v4090, 1.442695
      %v4147 = vpow.pop %v4146
      %v4148 = vmul.f32 %v4091, 1.442695
      %v4149 = vpow.pop %v4148
      %v4150 = vmul.f32 %v4092, 1.442695
      %v4151 = vpow.pop %v4150
      %v4152 = vmul.f32 %v4093, 1.442695
      %v4153 = vpow.pop %v4152
      %v4154 = vmul.f32 %v4094, 1.442695
      %v4155 = vpow.pop %v4154
      %v4156 = vmul.f32 %v4095, 1.442695
      %v4157 = vpow.pop %v4156
      %v4158 = vmul.f32 %v4096, 1.442695
      %v4159 = vpow.pop %v4158
      %v4160 = vmul.f32 %v4097, 1.442695
      %v4161 = vpow.pop %v4160
      %v4162 = vadd.f32 %v4099, 1.0
      %v4163 = vadd.f32 %v4101, 1.0
      %v4164 = vadd.f32 %v4103, 1.0
      %v4165 = vadd.f32 %v4105, 1.0
      %v4166 = vadd.f32 %v4107, 1.0
      %v4167 = vadd.f32 %v4109, 1.0
      %v4168 = vadd.f32 %v4111, 1.0
      %v4169 = vadd.f32 %v4113, 1.0
      %v4170 = vadd.f32 %v4115, 1.0
      %v4171 = vadd.f32 %v4117, 1.0
      %v4172 = vadd.f32 %v4119, 1.0
      %v4173 = vadd.f32 %v4121, 1.0
      %v4174 = vadd.f32 %v4123, 1.0
      %v4175 = vadd.f32 %v4125, 1.0
      %v4176 = vadd.f32 %v4127, 1.0
      %v4177 = vadd.f32 %v4129, 1.0
      %v4178 = vadd.f32 %v4131, 1.0
      %v4179 = vadd.f32 %v4133, 1.0
      %v4180 = vadd.f32 %v4135, 1.0
      %v4181 = vadd.f32 %v4137, 1.0
      %v4182 = vadd.f32 %v4139, 1.0
      %v4183 = vadd.f32 %v4141, 1.0
      %v4184 = vadd.f32 %v4143, 1.0
      %v4185 = vadd.f32 %v4145, 1.0
      %v4186 = vadd.f32 %v4147, 1.0
      %v4187 = vadd.f32 %v4149, 1.0
      %v4188 = vadd.f32 %v4151, 1.0
      %v4189 = vadd.f32 %v4153, 1.0
      %v4190 = vadd.f32 %v4155, 1.0
      %v4191 = vadd.f32 %v4157, 1.0
      %v4192 = vadd.f32 %v4159, 1.0
      %v4193 = vadd.f32 %v4161, 1.0
      %v4194 = vrcp.pop %v4162
      %v4195 = vmul.f32 1.0, %v4194
      %v4196 = vrcp.pop %v4163
      %v4197 = vmul.f32 1.0, %v4196
      %v4198 = vrcp.pop %v4164
      %v4199 = vmul.f32 1.0, %v4198
      %v4200 = vrcp.pop %v4165
      %v4201 = vmul.f32 1.0, %v4200
      %v4202 = vrcp.pop %v4166
      %v4203 = vmul.f32 1.0, %v4202
      %v4204 = vrcp.pop %v4167
      %v4205 = vmul.f32 1.0, %v4204
      %v4206 = vrcp.pop %v4168
      %v4207 = vmul.f32 1.0, %v4206
      %v4208 = vrcp.pop %v4169
      %v4209 = vmul.f32 1.0, %v4208
      %v4210 = vrcp.pop %v4170
      %v4211 = vmul.f32 1.0, %v4210
      %v4212 = vrcp.pop %v4171
      %v4213 = vmul.f32 1.0, %v4212
      %v4214 = vrcp.pop %v4172
      %v4215 = vmul.f32 1.0, %v4214
      %v4216 = vrcp.pop %v4173
      %v4217 = vmul.f32 1.0, %v4216
      %v4218 = vrcp.pop %v4174
      %v4219 = vmul.f32 1.0, %v4218
      %v4220 = vrcp.pop %v4175
      %v4221 = vmul.f32 1.0, %v4220
      %v4222 = vrcp.pop %v4176
      %v4223 = vmul.f32 1.0, %v4222
      %v4224 = vrcp.pop %v4177
      %v4225 = vmul.f32 1.0, %v4224
      %v4226 = vrcp.pop %v4178
      %v4227 = vmul.f32 1.0, %v4226
      %v4228 = vrcp.pop %v4179
      %v4229 = vmul.f32 1.0, %v4228
      %v4230 = vrcp.pop %v4180
      %v4231 = vmul.f32 1.0, %v4230
      %v4232 = vrcp.pop %v4181
      %v4233 = vmul.f32 1.0, %v4232
      %v4234 = vrcp.pop %v4182
      %v4235 = vmul.f32 1.0, %v4234
      %v4236 = vrcp.pop %v4183
      %v4237 = vmul.f32 1.0, %v4236
      %v4238 = vrcp.pop %v4184
      %v4239 = vmul.f32 1.0, %v4238
      %v4240 = vrcp.pop %v4185
      %v4241 = vmul.f32 1.0, %v4240
      %v4242 = vrcp.pop %v4186
      %v4243 = vmul.f32 1.0, %v4242
      %v4244 = vrcp.pop %v4187
      %v4245 = vmul.f32 1.0, %v4244
      %v4246 = vrcp.pop %v4188
      %v4247 = vmul.f32 1.0, %v4246
      %v4248 = vrcp.pop %v4189
      %v4249 = vmul.f32 1.0, %v4248
      %v4250 = vrcp.pop %v4190
      %v4251 = vmul.f32 1.0, %v4250
      %v4252 = vrcp.pop %v4191
      %v4253 = vmul.f32 1.0, %v4252
      %v4254 = vrcp.pop %v4192
      %v4255 = vmul.f32 1.0, %v4254
      %v4256 = vrcp.pop %v4193
      %v4257 = vmul.f32 1.0, %v4256
      %v4258 = vmul.f32 %v4034, %v4195
      %v4259 = vmul.f32 %v4035, %v4197
      %v4260 = vmul.f32 %v4036, %v4199
      %v4261 = vmul.f32 %v4037, %v4201
      %v4262 = vmul.f32 %v4038, %v4203
      %v4263 = vmul.f32 %v4039, %v4205
      %v4264 = vmul.f32 %v4040, %v4207
      %v4265 = vmul.f32 %v4041, %v4209
      %v4266 = vmul.f32 %v4042, %v4211
      %v4267 = vmul.f32 %v4043, %v4213
      %v4268 = vmul.f32 %v4044, %v4215
      %v4269 = vmul.f32 %v4045, %v4217
      %v4270 = vmul.f32 %v4046, %v4219
      %v4271 = vmul.f32 %v4047, %v4221
      %v4272 = vmul.f32 %v4048, %v4223
      %v4273 = vmul.f32 %v4049, %v4225
      %v4274 = vmul.f32 %v4050, %v4227
      %v4275 = vmul.f32 %v4051, %v4229
      %v4276 = vmul.f32 %v4052, %v4231
      %v4277 = vmul.f32 %v4053, %v4233
      %v4278 = vmul.f32 %v4054, %v4235
      %v4279 = vmul.f32 %v4055, %v4237
      %v4280 = vmul.f32 %v4056, %v4239
      %v4281 = vmul.f32 %v4057, %v4241
      %v4282 = vmul.f32 %v4058, %v4243
      %v4283 = vmul.f32 %v4059, %v4245
      %v4284 = vmul.f32 %v4060, %v4247
      %v4285 = vmul.f32 %v4061, %v4249
      %v4286 = vmul.f32 %v4062, %v4251
      %v4287 = vmul.f32 %v4063, %v4253
      %v4288 = vmul.f32 %v4064, %v4255
      %v4289 = vmul.f32 %v4065, %v4257
      %v4290 = vadd.f32 %v279, %v4258
      %v4291 = vadd.f32 %v280, %v4259
      %v4292 = vadd.f32 %v281, %v4260
      %v4293 = vadd.f32 %v282, %v4261
      %v4294 = vadd.f32 %v283, %v4262
      %v4295 = vadd.f32 %v284, %v4263
      %v4296 = vadd.f32 %v285, %v4264
      %v4297 = vadd.f32 %v286, %v4265
      %v4298 = vadd.f32 %v287, %v4266
      %v4299 = vadd.f32 %v288, %v4267
      %v4300 = vadd.f32 %v289, %v4268
      %v4301 = vadd.f32 %v290, %v4269
      %v4302 = vadd.f32 %v291, %v4270
      %v4303 = vadd.f32 %v292, %v4271
      %v4304 = vadd.f32 %v293, %v4272
      %v4305 = vadd.f32 %v294, %v4273
      %v4306 = vadd.f32 %v295, %v4274
      %v4307 = vadd.f32 %v296, %v4275
      %v4308 = vadd.f32 %v297, %v4276
      %v4309 = vadd.f32 %v298, %v4277
      %v4310 = vadd.f32 %v299, %v4278
      %v4311 = vadd.f32 %v300, %v4279
      %v4312 = vadd.f32 %v301, %v4280
      %v4313 = vadd.f32 %v302, %v4281
      %v4314 = vadd.f32 %v303, %v4282
      %v4315 = vadd.f32 %v304, %v4283
      %v4316 = vadd.f32 %v305, %v4284
      %v4317 = vadd.f32 %v306, %v4285
      %v4318 = vadd.f32 %v307, %v4286
      %v4319 = vadd.f32 %v308, %v4287
      %v4320 = vadd.f32 %v309, %v4288
      %v4321 = vadd.f32 %v310, %v4289
      %4322 = vst.msk [vmem:[%s278] sm:$0xff] %vm1430, %v4290
      %4323 = vst.msk [vmem:[%s278 + $0x8] sm:$0xff] %vm1430, %v4291
      %4324 = vst.msk [vmem:[%s278 + $0x10] sm:$0xff] %vm1430, %v4292
      %4325 = vst.msk [vmem:[%s278 + $0x18] sm:$0xff] %vm1430, %v4293
      %4326 = vst.msk [vmem:[%s278 + $0x20] sm:$0xff] %vm1430, %v4294
      %4327 = vst.msk [vmem:[%s278 + $0x28] sm:$0xff] %vm1430, %v4295
      %4328 = vst.msk [vmem:[%s278 + $0x30] sm:$0xff] %vm1430, %v4296
      %4329 = vst.msk [vmem:[%s278 + $0x38] sm:$0xff] %vm1430, %v4297
      %4330 = vst.msk [vmem:[%s278 + $0x40] sm:$0xff] %vm1430, %v4298
      %4331 = vst.msk [vmem:[%s278 + $0x48] sm:$0xff] %vm1430, %v4299
      %4332 = vst.msk [vmem:[%s278 + $0x50] sm:$0xff] %vm1430, %v4300
      %4333 = vst.msk [vmem:[%s278 + $0x58] sm:$0xff] %vm1430, %v4301
      %4334 = vst.msk [vmem:[%s278 + $0x60] sm:$0xff] %vm1430, %v4302
      %4335 = vst.msk [vmem:[%s278 + $0x68] sm:$0xff] %vm1430, %v4303
      %4336 = vst.msk [vmem:[%s278 + $0x70] sm:$0xff] %vm1430, %v4304
      %4337 = vst.msk [vmem:[%s278 + $0x78] sm:$0xff] %vm1430, %v4305
      %4338 = vst.msk [vmem:[%s278 + $0x80] sm:$0xff] %vm1430, %v4306
      %4339 = vst.msk [vmem:[%s278 + $0x88] sm:$0xff] %vm1430, %v4307
      %4340 = vst.msk [vmem:[%s278 + $0x90] sm:$0xff] %vm1430, %v4308
      %4341 = vst.msk [vmem:[%s278 + $0x98] sm:$0xff] %vm1430, %v4309
      %4342 = vst.msk [vmem:[%s278 + $0xa0] sm:$0xff] %vm1430, %v4310
      %4343 = vst.msk [vmem:[%s278 + $0xa8] sm:$0xff] %vm1430, %v4311
      %4344 = vst.msk [vmem:[%s278 + $0xb0] sm:$0xff] %vm1430, %v4312
      %4345 = vst.msk [vmem:[%s278 + $0xb8] sm:$0xff] %vm1430, %v4313
      %4346 = vst.msk [vmem:[%s278 + $0xc0] sm:$0xff] %vm1430, %v4314
      %4347 = vst.msk [vmem:[%s278 + $0xc8] sm:$0xff] %vm1430, %v4315
      %4348 = vst.msk [vmem:[%s278 + $0xd0] sm:$0xff] %vm1430, %v4316
      %4349 = vst.msk [vmem:[%s278 + $0xd8] sm:$0xff] %vm1430, %v4317
      %4350 = vst.msk [vmem:[%s278 + $0xe0] sm:$0xff] %vm1430, %v4318
      %4351 = vst.msk [vmem:[%s278 + $0xe8] sm:$0xff] %vm1430, %v4319
      %4352 = vst.msk [vmem:[%s278 + $0xf0] sm:$0xff] %vm1430, %v4320
      %4353 = vst.msk [vmem:[%s278 + $0xf8] sm:$0xff] %vm1430, %v4321
      %p4354 = scmp.lt.s32.totalorder %s18, 1
      %s4355 = scalar_select %p4354, %s18, 1
      %s4356 = smul.addr %s4355, 32
      %s4357 = smul.addr %s4356, 8
      %s4358 = scalar_lea.vmem %s7, %s4357
      // Predicated region
      $region49: #{c2_forward.4} parent=47 // pred_check
        %p4359 = pneg %p188
      $region50: #{c2_forward.4} parent=47 // pred_check_branch
        %4361 = sbr.rel (%p4359) target = $region52
      $region51: #{c2_forward.4} parent=47 // pred_region
        _
      $region52: #{c2_forward.4} parent=47 // pred_fallthru
        _
    $region48: #{c2_forward.4} parent=5 // pred_fallthru
      _
    %p4362 = scmp.le.s32.totalorder 2, %s13
    // Predicated region
    $region53: #{c2_forward.4} parent=5 // pred_check
      %p4363 = pneg %p4362
    $region54: #{c2_forward.4} parent=5 // pred_check_branch
      %4365 = sbr.rel (%p4363) target = $region56
    $region55: #{c2_forward.4} parent=5 // pred_region
      %s4366 = ssub.s32 %s13, 2
      // Predicated region
      $region57: #{c2_forward.4} parent=55 // pred_check
        %p4367 = pneg %p194
      $region58: #{c2_forward.4} parent=55 // pred_check_branch
        %4369 = sbr.rel (%p4367) target = $region60
      $region59: #{c2_forward.4} parent=55 // pred_region
        %p4370 = scmp.lt.s32.totalorder %s19, 1
        %s4371 = scalar_select %p4370, %s19, 1
        %s4372 = smul.addr %s4371, 32
        %s4373 = smul.addr %s4372, 8
        %s4374 = scalar_lea.vmem %s7, %s4373
      $region60: #{c2_forward.4} parent=55 // pred_fallthru
        _
    $region56: #{c2_forward.4} parent=5 // pred_fallthru
      _
  $region6: #{c2_forward.4} parent=0 // loop_footer
    %s17 = sadd.s32 1, %s13
  $region7: #{c2_forward.4} parent=0 // loop_footer_branch
    %12 = sbr.rel target = $region3
  $region8: #{c2_forward.4} parent=0 // loop_exit
    _

</llo_original>
